<compile_context>
chip_gen: v7x
topology: tpu7x:2x2x1
jax: 0.10.0
libtpu: 0.0.40
codegen_flags: <defaults>
</compile_context>

<pallas_src>
import functools

import jax
import jax.numpy as jnp
import numpy as np
from jax.experimental import pallas as pl
from jax.experimental.pallas import tpu as pltpu


# ---------------------------------------------------------------------------
# Chip-aware VMEM budget (perf review: set vmem_limit_bytes explicitly).
# ---------------------------------------------------------------------------
def _default_vmem_limit():
    try:
        cap = int(pltpu.get_tpu_info().vmem_capacity_bytes)
    except Exception:
        cap = 64 * 1024 * 1024  # conservative (v7x per-core VMEM)
    return int(min(max(cap - (16 << 20), 32 << 20), 100 << 20))


_VMEM_LIMIT = _default_vmem_limit()
_LANE = 128


def _round_up(x, m):
    return -(-x // m) * m


def _compiler_params(semantics):
    return pltpu.CompilerParams(dimension_semantics=semantics,
                                vmem_limit_bytes=_VMEM_LIMIT)


# ---------------------------------------------------------------------------
# Kernel 1: plain GEMM  o = act(W @ X)   (used for the stride-2 downsamples,
# whose patches come from a thin XLA im2col).  All dots in f32.
# ---------------------------------------------------------------------------
def _gemm_kernel(w_ref, x_ref, o_ref, *, relu):
    y = jnp.dot(w_ref[...].astype(jnp.float32), x_ref[...].astype(jnp.float32),
                preferred_element_type=jnp.float32)
    if relu:
        y = jnp.maximum(y, 0.0)
    o_ref[...] = y.astype(o_ref.dtype)


def _choose_tm(K, Cout, M):
    """Lane tile for the tiled GEMM: biggest 128-multiple whose double-buffered
    working set fits a third of the VMEM budget; never a ragged whole-array
    fallback when tiling (M is padded to a tile multiple by the caller)."""
    per_col = 2 * (K * 2 + Cout * 4)          # bf16 input tile + f32 output tile
    budget = max(_VMEM_LIMIT // 3, 1 << 20)
    tm = (budget // per_col) // _LANE * _LANE
    tm = max(_LANE, min(tm, 4096))
    if M <= tm:
        return M, M                           # single whole-M block
    return tm, _round_up(M, tm)


def conv_gemm(wt, xt, *, relu=False, out_dtype=jnp.bfloat16):
    """y = act(wt @ xt).  wt: (Cout, K) bf16 prepacked, xt: (K, M)."""
    Cout, K = wt.shape
    M = xt.shape[1]
    tm, m_pad = _choose_tm(K, Cout, M)
    if m_pad != M:
        xt = jnp.pad(xt, ((0, 0), (0, m_pad - M)))
    grid = (m_pad // tm,)
    out = pl.pallas_call(
        functools.partial(_gemm_kernel, relu=relu),
        out_shape=jax.ShapeDtypeStruct((Cout, m_pad), out_dtype),
        grid_spec=pltpu.PrefetchScalarGridSpec(
            num_scalar_prefetch=0,
            grid=grid,
            in_specs=[pl.BlockSpec((Cout, K), lambda m: (0, 0)),
                      pl.BlockSpec((K, tm), lambda m: (0, m))],
            out_specs=pl.BlockSpec((Cout, tm), lambda m: (0, m))),
        compiler_params=_compiler_params(("parallel",)),
    )(wt, xt)
    return out[:, :M] if m_pad != M else out


# ---------------------------------------------------------------------------
# Kernel 2: stride-1 zero-padded KxK conv with IN-KERNEL patch build.
#   x      : (Cin_p, M)   M = N*H*W  (flattened, channels-first)
#   w      : (Cout, K*K*Cin_p)  bf16 prepacked (tap-major, channel-minor)
#   masks  : (K*K, M) f32  -- 1 where the shifted read is spatially valid
# The activation is copied into a VMEM buffer with a zero halo of p*(W+1)
# lanes on each side; tap (dh,dw) is then just a static-offset lane slice of
# that buffer, masked at row/image boundaries, written into the (K*K*Cin_p, M)
# patch scratch, followed by ONE big-K f32 dot on the MXU.
# ---------------------------------------------------------------------------
def _conv_s1_kernel(*refs, offsets, halo, relu, tanh, has_bias):
    if has_bias:
        x_ref, w_ref, b_ref, m_ref, o_ref, hbuf, pbuf = refs
    else:
        x_ref, w_ref, m_ref, o_ref, hbuf, pbuf = refs
        b_ref = None
    cin = x_ref.shape[0]
    M = o_ref.shape[1]

    hbuf[...] = jnp.zeros(hbuf.shape, hbuf.dtype)
    hbuf[:, pl.ds(halo, M)] = x_ref[...].astype(jnp.float32)
    for t, d in enumerate(offsets):
        pbuf[pl.ds(t * cin, cin), :] = (hbuf[:, pl.ds(halo + d, M)]
                                        * m_ref[pl.ds(t, 1), :])

    y = jnp.dot(w_ref[...].astype(jnp.float32), pbuf[...],
                preferred_element_type=jnp.float32)
    if b_ref is not None:
        y = y + b_ref[...]
    if relu:
        y = jnp.maximum(y, 0.0)
    if tanh:
        y = jnp.tanh(y)
    o_ref[...] = y.astype(o_ref.dtype)


def conv_s1(x_flat, wt, b, masks, *, N, H, W, k, relu=False, tanh=False,
            out_dtype=jnp.bfloat16):
    cin_p, M = x_flat.shape
    assert M == N * H * W
    Cout = wt.shape[0]
    p = (k - 1) // 2
    halo = p * (W + 1)
    offsets = tuple(dh * W + dw for dh in range(-p, p + 1)
                    for dw in range(-p, p + 1))
    T = k * k
    has_bias = b is not None

    in_specs = [pl.BlockSpec((cin_p, M), lambda i: (0, 0)),
                pl.BlockSpec(wt.shape, lambda i: (0, 0))]
    args = [x_flat, wt]
    if has_bias:
        in_specs.append(pl.BlockSpec(b.shape, lambda i: (0, 0)))
        args.append(b)
    in_specs.append(pl.BlockSpec((T, M), lambda i: (0, 0)))
    args.append(masks)

    kernel = functools.partial(_conv_s1_kernel, offsets=offsets, halo=halo,
                               relu=relu, tanh=tanh, has_bias=has_bias)
    return pl.pallas_call(
        kernel,
        out_shape=jax.ShapeDtypeStruct((Cout, M), out_dtype),
        grid_spec=pltpu.PrefetchScalarGridSpec(
            num_scalar_prefetch=0,
            grid=(1,),
            in_specs=in_specs,
            out_specs=pl.BlockSpec((Cout, M), lambda i: (0, 0)),
            scratch_shapes=[pltpu.VMEM((cin_p, M + 2 * halo), jnp.float32),
                            pltpu.VMEM((T * cin_p, M), jnp.float32)]),
        compiler_params=_compiler_params(("arbitrary",)),
    )(*args)


# ---------------------------------------------------------------------------
# Kernel 3: whole ResnetBlock fused into one pallas_call (no bias):
#   h = relu(conv3x3(x)) ; y = x + conv3x3(h)
# Both patch blocks are built in VMEM with the same halo trick; h never
# leaves the chip.
# ---------------------------------------------------------------------------
def _resblock_kernel(x_ref, w1_ref, w2_ref, m_ref, o_ref, hbuf, pbuf,
                     *, offsets, halo):
    dim = x_ref.shape[0]
    M = o_ref.shape[1]
    x = x_ref[...].astype(jnp.float32)

    hbuf[...] = jnp.zeros(hbuf.shape, hbuf.dtype)

    def build_patches(v):
        hbuf[:, pl.ds(halo, M)] = v
        for t, d in enumerate(offsets):
            pbuf[pl.ds(t * dim, dim), :] = (hbuf[:, pl.ds(halo + d, M)]
                                            * m_ref[pl.ds(t, 1), :])

    build_patches(x)
    h = jnp.maximum(
        jnp.dot(w1_ref[...].astype(jnp.float32), pbuf[...],
                preferred_element_type=jnp.float32), 0.0)
    build_patches(h)
    y = jnp.dot(w2_ref[...].astype(jnp.float32), pbuf[...],
                preferred_element_type=jnp.float32)
    o_ref[...] = (x + y).astype(o_ref.dtype)


def resblock(x_flat, w1t, w2t, masks, *, N, H, W):
    dim, M = x_flat.shape
    assert M == N * H * W
    halo = W + 1
    offsets = tuple(dh * W + dw for dh in (-1, 0, 1) for dw in (-1, 0, 1))
    return pl.pallas_call(
        functools.partial(_resblock_kernel, offsets=offsets, halo=halo),
        out_shape=jax.ShapeDtypeStruct((dim, M), jnp.float32),  # residual carry f32
        grid_spec=pltpu.PrefetchScalarGridSpec(
            num_scalar_prefetch=0,
            grid=(1,),
            in_specs=[pl.BlockSpec((dim, M), lambda i: (0, 0)),
                      pl.BlockSpec(w1t.shape, lambda i: (0, 0)),
                      pl.BlockSpec(w2t.shape, lambda i: (0, 0)),
                      pl.BlockSpec(masks.shape, lambda i: (0, 0))],
            out_specs=pl.BlockSpec((dim, M), lambda i: (0, 0)),
            scratch_shapes=[pltpu.VMEM((dim, M + 2 * halo), jnp.float32),
                            pltpu.VMEM((9 * dim, M), jnp.float32)]),
        compiler_params=_compiler_params(("arbitrary",)),
    )(x_flat, w1t, w2t, masks)


# ---------------------------------------------------------------------------
# Kernel 4: BOTH ConvTranspose(k2,s2)+ReLU layers fused.  A k2/s2 deconv is a
# per-pixel 1x1 GEMM producing 4 output sub-pixels, so the two layers chain as
# GEMMs entirely in VMEM; output rows are ordered (a0,b0,a1,b1,c) and a single
# XLA depth-to-space produces (Cout, N, 4H, 4W).
# ---------------------------------------------------------------------------
def _upsample2x2_kernel(x_ref, w0_ref, w1_ref, o_ref):
    c_mid = w0_ref.shape[0] // 4
    c_out4 = w1_ref.shape[0]
    x = x_ref[...].astype(jnp.float32)
    y0 = jnp.maximum(
        jnp.dot(w0_ref[...].astype(jnp.float32), x,
                preferred_element_type=jnp.float32), 0.0)
    w1 = w1_ref[...].astype(jnp.float32)
    for k in range(4):
        z = jnp.dot(w1, y0[k * c_mid:(k + 1) * c_mid, :],
                    preferred_element_type=jnp.float32)
        o_ref[pl.ds(k * c_out4, c_out4), :] = jnp.maximum(z, 0.0).astype(o_ref.dtype)


def upsample_fused(x_flat, w0t, w1t, *, N, H, W, out_dtype=jnp.bfloat16):
    cin, M = x_flat.shape
    assert M == N * H * W
    c_out4 = w1t.shape[0]
    c_out = c_out4 // 4
    y = pl.pallas_call(
        _upsample2x2_kernel,
        out_shape=jax.ShapeDtypeStruct((4 * c_out4, M), out_dtype),
        grid_spec=pltpu.PrefetchScalarGridSpec(
            num_scalar_prefetch=0,
            grid=(1,),
            in_specs=[pl.BlockSpec((cin, M), lambda i: (0, 0)),
                      pl.BlockSpec(w0t.shape, lambda i: (0, 0)),
                      pl.BlockSpec(w1t.shape, lambda i: (0, 0))],
            out_specs=pl.BlockSpec((4 * c_out4, M), lambda i: (0, 0))),
        compiler_params=_compiler_params(("arbitrary",)),
    )(x_flat, w0t, w1t)
    # single combined depth-to-space: rows (a0,b0,a1,b1,c) -> (c, N, 4H, 4W)
    t = y.reshape(2, 2, 2, 2, c_out, N, H, W)
    t = jnp.transpose(t, (4, 5, 6, 0, 2, 7, 1, 3))
    return t.reshape(c_out, N, 4 * H, 4 * W)


# ---------------------------------------------------------------------------
# XLA-side helpers: boundary masks, im2col for the stride-2 convs, weight
# prepacking (done ONCE at init, bf16 GEMM layout).
# ---------------------------------------------------------------------------
def _make_masks(N, H, W, p):
    """(T, N*H*W) f32 validity masks for shifted reads of a flattened map."""
    idx = np.arange(N * H * W)
    i = (idx // W) % H
    j = idx % W
    rows = []
    for dh in range(-p, p + 1):
        for dw in range(-p, p + 1):
            valid = (i + dh >= 0) & (i + dh < H) & (j + dw >= 0) & (j + dw < W)
            rows.append(valid.astype(np.float32))
    return jnp.asarray(np.stack(rows))


def _im2col_T(x, KH, KW, *, stride=1, pad=0):
    """x: (C, N, H, W) -> (KH*KW*C, N*Ho*Wo), tap-major / channel-minor rows."""
    C, N, H, W = x.shape
    Ho = (H + 2 * pad - KH) // stride + 1
    Wo = (W + 2 * pad - KW) // stride + 1
    xp = jnp.pad(x, ((0, 0), (0, 0), (pad, pad), (pad, pad)))
    taps = []
    for kh in range(KH):
        for kw in range(KW):
            taps.append(xp[:, :, kh:kh + stride * (Ho - 1) + 1:stride,
                                  kw:kw + stride * (Wo - 1) + 1:stride])
    p = jnp.stack(taps, axis=0)                        # (T, C, N, Ho, Wo)
    return p.reshape(KH * KW * C, N * Ho * Wo), (N, Ho, Wo)


def _pack_conv_w(w_hwio, cin_pad=None):
    """(KH,KW,Cin,Cout) -> (Cout, KH*KW*Cin_p) bf16, tap-major/channel-minor."""
    KH, KW, Cin, Cout = w_hwio.shape
    if cin_pad is not None and cin_pad != Cin:
        w_hwio = jnp.pad(w_hwio, ((0, 0), (0, 0), (0, cin_pad - Cin), (0, 0)))
        Cin = cin_pad
    return w_hwio.reshape(KH * KW * Cin, Cout).T.astype(jnp.bfloat16)


def _pack_deconv_w(w_t):
    """PyTorch ConvTranspose2d weight (Cin, Cout, 2, 2) -> (4*Cout, Cin) bf16
    with rows ordered (a, b, cout)."""
    return jnp.transpose(w_t, (2, 3, 1, 0)).reshape(-1, w_t.shape[0]).astype(jnp.bfloat16)


# ---------------------------------------------------------------------------
# Parameter construction (deterministic synthetic weights, prepacked).
# ---------------------------------------------------------------------------
def init_resnet_generator(key, input_nc, output_nc, ngf=8, n_blocks=2):
    keys = iter(jax.random.split(key, 8 + 2 * n_blocks))

    def w_hwio(k, kh, kw, cin, cout, scale=0.05):
        return jax.random.normal(k, (kh, kw, cin, cout), jnp.float32) * scale

    cin_p = _round_up(max(input_nc, 1), 8)          # 8-sublane aligned patch rows
    cout_p = _round_up(max(output_nc, 1), 8)        # sublane-dense final store
    p = {}
    # stem + downsampling (bias=False since norm_layer == BatchNorm2d)
    p["c0_w"] = _pack_conv_w(w_hwio(next(keys), 7, 7, input_nc, ngf), cin_pad=cin_p)
    p["d0_w"] = _pack_conv_w(w_hwio(next(keys), 3, 3, ngf, ngf * 2))
    p["d1_w"] = _pack_conv_w(w_hwio(next(keys), 3, 3, ngf * 2, ngf * 4))
    # resnet blocks (dim = 4*ngf, no bias)
    dim = ngf * 4
    p["blocks"] = []
    for _ in range(n_blocks):
        p["blocks"].append({
            "w1": _pack_conv_w(w_hwio(next(keys), 3, 3, dim, dim)),
            "w2": _pack_conv_w(w_hwio(next(keys), 3, 3, dim, dim)),
        })
    # ConvTranspose2d(k=2, s=2), bias=False, fused pair
    p["u0_w"] = _pack_deconv_w(
        jax.random.normal(next(keys), (dim, ngf * 2, 2, 2), jnp.float32) * 0.05)
    p["u1_w"] = _pack_deconv_w(
        jax.random.normal(next(keys), (ngf * 2, ngf, 2, 2), jnp.float32) * 0.05)
    # final 7x7 conv (bias=True in PyTorch) + Tanh; Cout padded to 8
    wcf = w_hwio(next(keys), 7, 7, ngf, output_nc)
    wcf = jnp.pad(wcf, ((0, 0), (0, 0), (0, 0), (0, cout_p - output_nc)))
    p["cf_w"] = _pack_conv_w(wcf)
    bcf = jax.random.normal(next(keys), (output_nc,), jnp.float32) * 0.05
    p["cf_b"] = jnp.pad(bcf, (0, cout_p - output_nc)).reshape(cout_p, 1)
    return p


# ---------------------------------------------------------------------------
# Forward pass (NCHW in / NCHW out, matching PyTorch semantics).
# Internally activations live in channels-first flattened (C, N*H*W) layout so
# the Pallas GEMM lane dim is the large spatial extent; intermediates are bf16
# except the residual carry and the final tanh output (f32).
# ---------------------------------------------------------------------------
def resnet_generator_forward(params, x_nchw, *, output_nc):
    N, Cin, H, W = x_nchw.shape
    ngf = params["c0_w"].shape[0]
    cin_p = params["c0_w"].shape[1] // 49
    M0 = N * H * W

    x = jnp.transpose(x_nchw, (1, 0, 2, 3)).astype(jnp.bfloat16)   # (C, N, H, W)
    if cin_p != Cin:
        x = jnp.pad(x, ((0, cin_p - Cin), (0, 0), (0, 0), (0, 0)))
    x = x.reshape(cin_p, M0)

    masks7 = _make_masks(N, H, W, 3)

    # 7x7 stem + ReLU (in-kernel patch build, one big-K GEMM)
    y = conv_s1(x, params["c0_w"], None, masks7, N=N, H=H, W=W, k=7,
                relu=True, out_dtype=jnp.bfloat16)
    y = y.reshape(ngf, N, H, W)

    # two stride-2 downsamples (XLA im2col + Pallas GEMM, no bias)
    xt, (_, H1, W1) = _im2col_T(y, 3, 3, stride=2, pad=1)
    y = conv_gemm(params["d0_w"], xt, relu=True, out_dtype=jnp.bfloat16)
    y = y.reshape(2 * ngf, N, H1, W1)

    xt, (_, H2, W2) = _im2col_T(y, 3, 3, stride=2, pad=1)
    y = conv_gemm(params["d1_w"], xt, relu=True, out_dtype=jnp.float32)  # carry f32

    # fused ResnetBlocks: conv+ReLU+conv+residual, one pallas_call each
    masks3 = _make_masks(N, H2, W2, 1)
    for blk in params["blocks"]:
        y = resblock(y, blk["w1"], blk["w2"], masks3, N=N, H=H2, W=W2)

    # fused double ConvTranspose(k2,s2)+ReLU, single depth-to-space
    y = upsample_fused(y, params["u0_w"], params["u1_w"], N=N, H=H2, W=W2,
                       out_dtype=jnp.bfloat16)            # (ngf, N, 4H2, 4W2)
    y = y.reshape(ngf, M0)

    # final 7x7 conv (bias) + Tanh; output channels padded to 8 in-kernel
    y = conv_s1(y, params["cf_w"], params["cf_b"], masks7, N=N, H=H, W=W, k=7,
                relu=False, tanh=True, out_dtype=jnp.float32)
    y = y[:output_nc].reshape(output_nc, N, H, W)
    return jnp.transpose(y, (1, 0, 2, 3))                 # back to NCHW


if __name__ == "__main__":
    key = jax.random.PRNGKey(0)
    k_param, k_input = jax.random.split(key)

    # Small shapes consistent with the module: batch=2, input_nc=output_nc=4,
    # ngf=8, n_blocks=2, spatial 16x16 (NCHW like PyTorch).
    input_nc, output_nc, ngf, n_blocks = 4, 4, 8, 2
    params = init_resnet_generator(k_param, input_nc, output_nc,
                                   ngf=ngf, n_blocks=n_blocks)
    x = jax.random.normal(k_input, (2, input_nc, 16, 16), jnp.float32)

    fwd = jax.jit(functools.partial(resnet_generator_forward,
                                    output_nc=output_nc))
    out = jax.block_until_ready(fwd(params, x))

    assert out.shape == (2, output_nc, 16, 16), out.shape
    assert bool(jnp.all(jnp.isfinite(out)))
    assert bool(jnp.all(jnp.abs(out) <= 1.0))  # Tanh range
    print("KERNEL_OK")
</pallas_src>

<mosaic_0001>
module attributes {stable_mosaic.version = 11 : i64} {
  func.func @_conv_s1_kernel(%arg0: i32, %arg1: memref<8x512xbf16, #tpu.memory_space<vmem>>, %arg2: memref<8x392xbf16, #tpu.memory_space<vmem>>, %arg3: memref<49x512xf32, #tpu.memory_space<vmem>>, %arg4: memref<8x512xbf16, #tpu.memory_space<vmem>>, %arg5: memref<8x614xf32, #tpu.memory_space<vmem>>, %arg6: memref<392x512xf32, #tpu.memory_space<vmem>>) attributes {dimension_semantics = [#tpu.dimension_semantics<arbitrary>], iteration_bounds = array<i64: 1>, scalar_prefetch = 0 : i64, scratch_operands = 2 : i64, tpu.core_type = #tpu.core_type<tc>, window_params = [{pipeline_mode = #tpu.pipeline_mode<synchronous>, transform_indices = @transform_0, window_bounds = array<i64: 8, 512>}, {pipeline_mode = #tpu.pipeline_mode<synchronous>, transform_indices = @transform_1, window_bounds = array<i64: 8, 392>}, {pipeline_mode = #tpu.pipeline_mode<synchronous>, transform_indices = @transform_2, window_bounds = array<i64: 49, 512>}, {pipeline_mode = #tpu.pipeline_mode<synchronous>, transform_indices = @transform_3, window_bounds = array<i64: 8, 512>}]} {
    %cst = arith.constant 0.000000e+00 : f32
    %0 = vector.broadcast %cst : f32 to vector<8x614xf32>
    %c0 = arith.constant 0 : index
    %c0_0 = arith.constant 0 : index
    %1 = vector.load %arg5[%c0, %c0_0] : memref<8x614xf32, #tpu.memory_space<vmem>>, vector<8x614xf32>
    tpu.vector_store %arg5[%c0, %c0_0], %0 {strides = array<i32>} : memref<8x614xf32, #tpu.memory_space<vmem>>, vector<8x614xf32>,
    %c0_1 = arith.constant 0 : index
    %c0_2 = arith.constant 0 : index
    %2 = vector.load %arg1[%c0_1, %c0_2] : memref<8x512xbf16, #tpu.memory_space<vmem>>, vector<8x512xbf16>
    %3 = arith.extf %2 : vector<8x512xbf16> to vector<8x512xf32>
    %c0_3 = arith.constant 0 : index
    %c51 = arith.constant 51 : index
    %4 = vector.load %arg5[%c0_3, %c51] : memref<8x614xf32, #tpu.memory_space<vmem>>, vector<8x512xf32>
    tpu.vector_store %arg5[%c0_3, %c51], %3 {strides = array<i32>} : memref<8x614xf32, #tpu.memory_space<vmem>>, vector<8x512xf32>,
    %c0_4 = arith.constant 0 : index
    %c0_5 = arith.constant 0 : index
    %5 = vector.load %arg5[%c0_4, %c0_5] : memref<8x614xf32, #tpu.memory_space<vmem>>, vector<8x512xf32>
    %c0_6 = arith.constant 0 : index
    %c0_7 = arith.constant 0 : index
    %6 = vector.load %arg3[%c0_6, %c0_7] : memref<49x512xf32, #tpu.memory_space<vmem>>, vector<1x512xf32>
    %7 = vector.broadcast %6 : vector<1x512xf32> to vector<8x512xf32>
    %8 = arith.mulf %5, %7 : vector<8x512xf32>
    %c0_8 = arith.constant 0 : index
    %c0_9 = arith.constant 0 : index
    %9 = vector.load %arg6[%c0_8, %c0_9] : memref<392x512xf32, #tpu.memory_space<vmem>>, vector<8x512xf32>
    tpu.vector_store %arg6[%c0_8, %c0_9], %8 {strides = array<i32>} : memref<392x512xf32, #tpu.memory_space<vmem>>, vector<8x512xf32>,
    %c0_10 = arith.constant 0 : index
    %c1 = arith.constant 1 : index
    %10 = vector.load %arg5[%c0_10, %c1] : memref<8x614xf32, #tpu.memory_space<vmem>>, vector<8x512xf32>
    %c1_11 = arith.constant 1 : index
    %c0_12 = arith.constant 0 : index
    %11 = vector.load %arg3[%c1_11, %c0_12] : memref<49x512xf32, #tpu.memory_space<vmem>>, vector<1x512xf32>
    %12 = vector.broadcast %11 : vector<1x512xf32> to vector<8x512xf32>
    %13 = arith.mulf %10, %12 : vector<8x512xf32>
    %c8 = arith.constant 8 : index
    %c0_13 = arith.constant 0 : index
    %14 = vector.load %arg6[%c8, %c0_13] : memref<392x512xf32, #tpu.memory_space<vmem>>, vector<8x512xf32>
    tpu.vector_store %arg6[%c8, %c0_13], %13 {strides = array<i32>} : memref<392x512xf32, #tpu.memory_space<vmem>>, vector<8x512xf32>,
    %c0_14 = arith.constant 0 : index
    %c2 = arith.constant 2 : index
    %15 = vector.load %arg5[%c0_14, %c2] : memref<8x614xf32, #tpu.memory_space<vmem>>, vector<8x512xf32>
    %c2_15 = arith.constant 2 : index
    %c0_16 = arith.constant 0 : index
    %16 = vector.load %arg3[%c2_15, %c0_16] : memref<49x512xf32, #tpu.memory_space<vmem>>, vector<1x512xf32>
    %17 = vector.broadcast %16 : vector<1x512xf32> to vector<8x512xf32>
    %18 = arith.mulf %15, %17 : vector<8x512xf32>
    %c16 = arith.constant 16 : index
    %c0_17 = arith.constant 0 : index
    %19 = vector.load %arg6[%c16, %c0_17] : memref<392x512xf32, #tpu.memory_space<vmem>>, vector<8x512xf32>
    tpu.vector_store %arg6[%c16, %c0_17], %18 {strides = array<i32>} : memref<392x512xf32, #tpu.memory_space<vmem>>, vector<8x512xf32>,
    %c0_18 = arith.constant 0 : index
    %c3 = arith.constant 3 : index
    %20 = vector.load %arg5[%c0_18, %c3] : memref<8x614xf32, #tpu.memory_space<vmem>>, vector<8x512xf32>
    %c3_19 = arith.constant 3 : index
    %c0_20 = arith.constant 0 : index
    %21 = vector.load %arg3[%c3_19, %c0_20] : memref<49x512xf32, #tpu.memory_space<vmem>>, vector<1x512xf32>
    %22 = vector.broadcast %21 : vector<1x512xf32> to vector<8x512xf32>
    %23 = arith.mulf %20, %22 : vector<8x512xf32>
    %c24 = arith.constant 24 : index
    %c0_21 = arith.constant 0 : index
    %24 = vector.load %arg6[%c24, %c0_21] : memref<392x512xf32, #tpu.memory_space<vmem>>, vector<8x512xf32>
    tpu.vector_store %arg6[%c24, %c0_21], %23 {strides = array<i32>} : memref<392x512xf32, #tpu.memory_space<vmem>>, vector<8x512xf32>,
    %c0_22 = arith.constant 0 : index
    %c4 = arith.constant 4 : index
    %25 = vector.load %arg5[%c0_22, %c4] : memref<8x614xf32, #tpu.memory_space<vmem>>, vector<8x512xf32>
    %c4_23 = arith.constant 4 : index
    %c0_24 = arith.constant 0 : index
    %26 = vector.load %arg3[%c4_23, %c0_24] : memref<49x512xf32, #tpu.memory_space<vmem>>, vector<1x512xf32>
    %27 = vector.broadcast %26 : vector<1x512xf32> to vector<8x512xf32>
    %28 = arith.mulf %25, %27 : vector<8x512xf32>
    %c32 = arith.constant 32 : index
    %c0_25 = arith.constant 0 : index
    %29 = vector.load %arg6[%c32, %c0_25] : memref<392x512xf32, #tpu.memory_space<vmem>>, vector<8x512xf32>
    tpu.vector_store %arg6[%c32, %c0_25], %28 {strides = array<i32>} : memref<392x512xf32, #tpu.memory_space<vmem>>, vector<8x512xf32>,
    %c0_26 = arith.constant 0 : index
    %c5 = arith.constant 5 : index
    %30 = vector.load %arg5[%c0_26, %c5] : memref<8x614xf32, #tpu.memory_space<vmem>>, vector<8x512xf32>
    %c5_27 = arith.constant 5 : index
    %c0_28 = arith.constant 0 : index
    %31 = vector.load %arg3[%c5_27, %c0_28] : memref<49x512xf32, #tpu.memory_space<vmem>>, vector<1x512xf32>
    %32 = vector.broadcast %31 : vector<1x512xf32> to vector<8x512xf32>
    %33 = arith.mulf %30, %32 : vector<8x512xf32>
    %c40 = arith.constant 40 : index
    %c0_29 = arith.constant 0 : index
    %34 = vector.load %arg6[%c40, %c0_29] : memref<392x512xf32, #tpu.memory_space<vmem>>, vector<8x512xf32>
    tpu.vector_store %arg6[%c40, %c0_29], %33 {strides = array<i32>} : memref<392x512xf32, #tpu.memory_space<vmem>>, vector<8x512xf32>,
    %c0_30 = arith.constant 0 : index
    %c6 = arith.constant 6 : index
    %35 = vector.load %arg5[%c0_30, %c6] : memref<8x614xf32, #tpu.memory_space<vmem>>, vector<8x512xf32>
    %c6_31 = arith.constant 6 : index
    %c0_32 = arith.constant 0 : index
    %36 = vector.load %arg3[%c6_31, %c0_32] : memref<49x512xf32, #tpu.memory_space<vmem>>, vector<1x512xf32>
    %37 = vector.broadcast %36 : vector<1x512xf32> to vector<8x512xf32>
    %38 = arith.mulf %35, %37 : vector<8x512xf32>
    %c48 = arith.constant 48 : index
    %c0_33 = arith.constant 0 : index
    %39 = vector.load %arg6[%c48, %c0_33] : memref<392x512xf32, #tpu.memory_space<vmem>>, vector<8x512xf32>
    tpu.vector_store %arg6[%c48, %c0_33], %38 {strides = array<i32>} : memref<392x512xf32, #tpu.memory_space<vmem>>, vector<8x512xf32>,
    %c0_34 = arith.constant 0 : index
    %c16_35 = arith.constant 16 : index
    %40 = vector.load %arg5[%c0_34, %c16_35] : memref<8x614xf32, #tpu.memory_space<vmem>>, vector<8x512xf32>
    %c7 = arith.constant 7 : index
    %c0_36 = arith.constant 0 : index
    %41 = vector.load %arg3[%c7, %c0_36] : memref<49x512xf32, #tpu.memory_space<vmem>>, vector<1x512xf32>
    %42 = vector.broadcast %41 : vector<1x512xf32> to vector<8x512xf32>
    %43 = arith.mulf %40, %42 : vector<8x512xf32>
    %c56 = arith.constant 56 : index
    %c0_37 = arith.constant 0 : index
    %44 = vector.load %arg6[%c56, %c0_37] : memref<392x512xf32, #tpu.memory_space<vmem>>, vector<8x512xf32>
    tpu.vector_store %arg6[%c56, %c0_37], %43 {strides = array<i32>} : memref<392x512xf32, #tpu.memory_space<vmem>>, vector<8x512xf32>,
    %c0_38 = arith.constant 0 : index
    %c17 = arith.constant 17 : index
    %45 = vector.load %arg5[%c0_38, %c17] : memref<8x614xf32, #tpu.memory_space<vmem>>, vector<8x512xf32>
    %c8_39 = arith.constant 8 : index
    %c0_40 = arith.constant 0 : index
    %46 = vector.load %arg3[%c8_39, %c0_40] : memref<49x512xf32, #tpu.memory_space<vmem>>, vector<1x512xf32>
    %47 = vector.broadcast %46 : vector<1x512xf32> to vector<8x512xf32>
    %48 = arith.mulf %45, %47 : vector<8x512xf32>
    %c64 = arith.constant 64 : index
    %c0_41 = arith.constant 0 : index
    %49 = vector.load %arg6[%c64, %c0_41] : memref<392x512xf32, #tpu.memory_space<vmem>>, vector<8x512xf32>
    tpu.vector_store %arg6[%c64, %c0_41], %48 {strides = array<i32>} : memref<392x512xf32, #tpu.memory_space<vmem>>, vector<8x512xf32>,
    %c0_42 = arith.constant 0 : index
    %c18 = arith.constant 18 : index
    %50 = vector.load %arg5[%c0_42, %c18] : memref<8x614xf32, #tpu.memory_space<vmem>>, vector<8x512xf32>
    %c9 = arith.constant 9 : index
    %c0_43 = arith.constant 0 : index
    %51 = vector.load %arg3[%c9, %c0_43] : memref<49x512xf32, #tpu.memory_space<vmem>>, vector<1x512xf32>
    %52 = vector.broadcast %51 : vector<1x512xf32> to vector<8x512xf32>
    %53 = arith.mulf %50, %52 : vector<8x512xf32>
    %c72 = arith.constant 72 : index
    %c0_44 = arith.constant 0 : index
    %54 = vector.load %arg6[%c72, %c0_44] : memref<392x512xf32, #tpu.memory_space<vmem>>, vector<8x512xf32>
    tpu.vector_store %arg6[%c72, %c0_44], %53 {strides = array<i32>} : memref<392x512xf32, #tpu.memory_space<vmem>>, vector<8x512xf32>,
    %c0_45 = arith.constant 0 : index
    %c19 = arith.constant 19 : index
    %55 = vector.load %arg5[%c0_45, %c19] : memref<8x614xf32, #tpu.memory_space<vmem>>, vector<8x512xf32>
    %c10 = arith.constant 10 : index
    %c0_46 = arith.constant 0 : index
    %56 = vector.load %arg3[%c10, %c0_46] : memref<49x512xf32, #tpu.memory_space<vmem>>, vector<1x512xf32>
    %57 = vector.broadcast %56 : vector<1x512xf32> to vector<8x512xf32>
    %58 = arith.mulf %55, %57 : vector<8x512xf32>
    %c80 = arith.constant 80 : index
    %c0_47 = arith.constant 0 : index
    %59 = vector.load %arg6[%c80, %c0_47] : memref<392x512xf32, #tpu.memory_space<vmem>>, vector<8x512xf32>
    tpu.vector_store %arg6[%c80, %c0_47], %58 {strides = array<i32>} : memref<392x512xf32, #tpu.memory_space<vmem>>, vector<8x512xf32>,
    %c0_48 = arith.constant 0 : index
    %c20 = arith.constant 20 : index
    %60 = vector.load %arg5[%c0_48, %c20] : memref<8x614xf32, #tpu.memory_space<vmem>>, vector<8x512xf32>
    %c11 = arith.constant 11 : index
    %c0_49 = arith.constant 0 : index
    %61 = vector.load %arg3[%c11, %c0_49] : memref<49x512xf32, #tpu.memory_space<vmem>>, vector<1x512xf32>
    %62 = vector.broadcast %61 : vector<1x512xf32> to vector<8x512xf32>
    %63 = arith.mulf %60, %62 : vector<8x512xf32>
    %c88 = arith.constant 88 : index
    %c0_50 = arith.constant 0 : index
    %64 = vector.load %arg6[%c88, %c0_50] : memref<392x512xf32, #tpu.memory_space<vmem>>, vector<8x512xf32>
    tpu.vector_store %arg6[%c88, %c0_50], %63 {strides = array<i32>} : memref<392x512xf32, #tpu.memory_space<vmem>>, vector<8x512xf32>,
    %c0_51 = arith.constant 0 : index
    %c21 = arith.constant 21 : index
    %65 = vector.load %arg5[%c0_51, %c21] : memref<8x614xf32, #tpu.memory_space<vmem>>, vector<8x512xf32>
    %c12 = arith.constant 12 : index
    %c0_52 = arith.constant 0 : index
    %66 = vector.load %arg3[%c12, %c0_52] : memref<49x512xf32, #tpu.memory_space<vmem>>, vector<1x512xf32>
    %67 = vector.broadcast %66 : vector<1x512xf32> to vector<8x512xf32>
    %68 = arith.mulf %65, %67 : vector<8x512xf32>
    %c96 = arith.constant 96 : index
    %c0_53 = arith.constant 0 : index
    %69 = vector.load %arg6[%c96, %c0_53] : memref<392x512xf32, #tpu.memory_space<vmem>>, vector<8x512xf32>
    tpu.vector_store %arg6[%c96, %c0_53], %68 {strides = array<i32>} : memref<392x512xf32, #tpu.memory_space<vmem>>, vector<8x512xf32>,
    %c0_54 = arith.constant 0 : index
    %c22 = arith.constant 22 : index
    %70 = vector.load %arg5[%c0_54, %c22] : memref<8x614xf32, #tpu.memory_space<vmem>>, vector<8x512xf32>
    %c13 = arith.constant 13 : index
    %c0_55 = arith.constant 0 : index
    %71 = vector.load %arg3[%c13, %c0_55] : memref<49x512xf32, #tpu.memory_space<vmem>>, vector<1x512xf32>
    %72 = vector.broadcast %71 : vector<1x512xf32> to vector<8x512xf32>
    %73 = arith.mulf %70, %72 : vector<8x512xf32>
    %c104 = arith.constant 104 : index
    %c0_56 = arith.constant 0 : index
    %74 = vector.load %arg6[%c104, %c0_56] : memref<392x512xf32, #tpu.memory_space<vmem>>, vector<8x512xf32>
    tpu.vector_store %arg6[%c104, %c0_56], %73 {strides = array<i32>} : memref<392x512xf32, #tpu.memory_space<vmem>>, vector<8x512xf32>,
    %c0_57 = arith.constant 0 : index
    %c32_58 = arith.constant 32 : index
    %75 = vector.load %arg5[%c0_57, %c32_58] : memref<8x614xf32, #tpu.memory_space<vmem>>, vector<8x512xf32>
    %c14 = arith.constant 14 : index
    %c0_59 = arith.constant 0 : index
    %76 = vector.load %arg3[%c14, %c0_59] : memref<49x512xf32, #tpu.memory_space<vmem>>, vector<1x512xf32>
    %77 = vector.broadcast %76 : vector<1x512xf32> to vector<8x512xf32>
    %78 = arith.mulf %75, %77 : vector<8x512xf32>
    %c112 = arith.constant 112 : index
    %c0_60 = arith.constant 0 : index
    %79 = vector.load %arg6[%c112, %c0_60] : memref<392x512xf32, #tpu.memory_space<vmem>>, vector<8x512xf32>
    tpu.vector_store %arg6[%c112, %c0_60], %78 {strides = array<i32>} : memref<392x512xf32, #tpu.memory_space<vmem>>, vector<8x512xf32>,
    %c0_61 = arith.constant 0 : index
    %c33 = arith.constant 33 : index
    %80 = vector.load %arg5[%c0_61, %c33] : memref<8x614xf32, #tpu.memory_space<vmem>>, vector<8x512xf32>
    %c15 = arith.constant 15 : index
    %c0_62 = arith.constant 0 : index
    %81 = vector.load %arg3[%c15, %c0_62] : memref<49x512xf32, #tpu.memory_space<vmem>>, vector<1x512xf32>
    %82 = vector.broadcast %81 : vector<1x512xf32> to vector<8x512xf32>
    %83 = arith.mulf %80, %82 : vector<8x512xf32>
    %c120 = arith.constant 120 : index
    %c0_63 = arith.constant 0 : index
    %84 = vector.load %arg6[%c120, %c0_63] : memref<392x512xf32, #tpu.memory_space<vmem>>, vector<8x512xf32>
    tpu.vector_store %arg6[%c120, %c0_63], %83 {strides = array<i32>} : memref<392x512xf32, #tpu.memory_space<vmem>>, vector<8x512xf32>,
    %c0_64 = arith.constant 0 : index
    %c34 = arith.constant 34 : index
    %85 = vector.load %arg5[%c0_64, %c34] : memref<8x614xf32, #tpu.memory_space<vmem>>, vector<8x512xf32>
    %c16_65 = arith.constant 16 : index
    %c0_66 = arith.constant 0 : index
    %86 = vector.load %arg3[%c16_65, %c0_66] : memref<49x512xf32, #tpu.memory_space<vmem>>, vector<1x512xf32>
    %87 = vector.broadcast %86 : vector<1x512xf32> to vector<8x512xf32>
    %88 = arith.mulf %85, %87 : vector<8x512xf32>
    %c128 = arith.constant 128 : index
    %c0_67 = arith.constant 0 : index
    %89 = vector.load %arg6[%c128, %c0_67] : memref<392x512xf32, #tpu.memory_space<vmem>>, vector<8x512xf32>
    tpu.vector_store %arg6[%c128, %c0_67], %88 {strides = array<i32>} : memref<392x512xf32, #tpu.memory_space<vmem>>, vector<8x512xf32>,
    %c0_68 = arith.constant 0 : index
    %c35 = arith.constant 35 : index
    %90 = vector.load %arg5[%c0_68, %c35] : memref<8x614xf32, #tpu.memory_space<vmem>>, vector<8x512xf32>
    %c17_69 = arith.constant 17 : index
    %c0_70 = arith.constant 0 : index
    %91 = vector.load %arg3[%c17_69, %c0_70] : memref<49x512xf32, #tpu.memory_space<vmem>>, vector<1x512xf32>
    %92 = vector.broadcast %91 : vector<1x512xf32> to vector<8x512xf32>
    %93 = arith.mulf %90, %92 : vector<8x512xf32>
    %c136 = arith.constant 136 : index
    %c0_71 = arith.constant 0 : index
    %94 = vector.load %arg6[%c136, %c0_71] : memref<392x512xf32, #tpu.memory_space<vmem>>, vector<8x512xf32>
    tpu.vector_store %arg6[%c136, %c0_71], %93 {strides = array<i32>} : memref<392x512xf32, #tpu.memory_space<vmem>>, vector<8x512xf32>,
    %c0_72 = arith.constant 0 : index
    %c36 = arith.constant 36 : index
    %95 = vector.load %arg5[%c0_72, %c36] : memref<8x614xf32, #tpu.memory_space<vmem>>, vector<8x512xf32>
    %c18_73 = arith.constant 18 : index
    %c0_74 = arith.constant 0 : index
    %96 = vector.load %arg3[%c18_73, %c0_74] : memref<49x512xf32, #tpu.memory_space<vmem>>, vector<1x512xf32>
    %97 = vector.broadcast %96 : vector<1x512xf32> to vector<8x512xf32>
    %98 = arith.mulf %95, %97 : vector<8x512xf32>
    %c144 = arith.constant 144 : index
    %c0_75 = arith.constant 0 : index
    %99 = vector.load %arg6[%c144, %c0_75] : memref<392x512xf32, #tpu.memory_space<vmem>>, vector<8x512xf32>
    tpu.vector_store %arg6[%c144, %c0_75], %98 {strides = array<i32>} : memref<392x512xf32, #tpu.memory_space<vmem>>, vector<8x512xf32>,
    %c0_76 = arith.constant 0 : index
    %c37 = arith.constant 37 : index
    %100 = vector.load %arg5[%c0_76, %c37] : memref<8x614xf32, #tpu.memory_space<vmem>>, vector<8x512xf32>
    %c19_77 = arith.constant 19 : index
    %c0_78 = arith.constant 0 : index
    %101 = vector.load %arg3[%c19_77, %c0_78] : memref<49x512xf32, #tpu.memory_space<vmem>>, vector<1x512xf32>
    %102 = vector.broadcast %101 : vector<1x512xf32> to vector<8x512xf32>
    %103 = arith.mulf %100, %102 : vector<8x512xf32>
    %c152 = arith.constant 152 : index
    %c0_79 = arith.constant 0 : index
    %104 = vector.load %arg6[%c152, %c0_79] : memref<392x512xf32, #tpu.memory_space<vmem>>, vector<8x512xf32>
    tpu.vector_store %arg6[%c152, %c0_79], %103 {strides = array<i32>} : memref<392x512xf32, #tpu.memory_space<vmem>>, vector<8x512xf32>,
    %c0_80 = arith.constant 0 : index
    %c38 = arith.constant 38 : index
    %105 = vector.load %arg5[%c0_80, %c38] : memref<8x614xf32, #tpu.memory_space<vmem>>, vector<8x512xf32>
    %c20_81 = arith.constant 20 : index
    %c0_82 = arith.constant 0 : index
    %106 = vector.load %arg3[%c20_81, %c0_82] : memref<49x512xf32, #tpu.memory_space<vmem>>, vector<1x512xf32>
    %107 = vector.broadcast %106 : vector<1x512xf32> to vector<8x512xf32>
    %108 = arith.mulf %105, %107 : vector<8x512xf32>
    %c160 = arith.constant 160 : index
    %c0_83 = arith.constant 0 : index
    %109 = vector.load %arg6[%c160, %c0_83] : memref<392x512xf32, #tpu.memory_space<vmem>>, vector<8x512xf32>
    tpu.vector_store %arg6[%c160, %c0_83], %108 {strides = array<i32>} : memref<392x512xf32, #tpu.memory_space<vmem>>, vector<8x512xf32>,
    %c0_84 = arith.constant 0 : index
    %c48_85 = arith.constant 48 : index
    %110 = vector.load %arg5[%c0_84, %c48_85] : memref<8x614xf32, #tpu.memory_space<vmem>>, vector<8x512xf32>
    %c21_86 = arith.constant 21 : index
    %c0_87 = arith.constant 0 : index
    %111 = vector.load %arg3[%c21_86, %c0_87] : memref<49x512xf32, #tpu.memory_space<vmem>>, vector<1x512xf32>
    %112 = vector.broadcast %111 : vector<1x512xf32> to vector<8x512xf32>
    %113 = arith.mulf %110, %112 : vector<8x512xf32>
    %c168 = arith.constant 168 : index
    %c0_88 = arith.constant 0 : index
    %114 = vector.load %arg6[%c168, %c0_88] : memref<392x512xf32, #tpu.memory_space<vmem>>, vector<8x512xf32>
    tpu.vector_store %arg6[%c168, %c0_88], %113 {strides = array<i32>} : memref<392x512xf32, #tpu.memory_space<vmem>>, vector<8x512xf32>,
    %c0_89 = arith.constant 0 : index
    %c49 = arith.constant 49 : index
    %115 = vector.load %arg5[%c0_89, %c49] : memref<8x614xf32, #tpu.memory_space<vmem>>, vector<8x512xf32>
    %c22_90 = arith.constant 22 : index
    %c0_91 = arith.constant 0 : index
    %116 = vector.load %arg3[%c22_90, %c0_91] : memref<49x512xf32, #tpu.memory_space<vmem>>, vector<1x512xf32>
    %117 = vector.broadcast %116 : vector<1x512xf32> to vector<8x512xf32>
    %118 = arith.mulf %115, %117 : vector<8x512xf32>
    %c176 = arith.constant 176 : index
    %c0_92 = arith.constant 0 : index
    %119 = vector.load %arg6[%c176, %c0_92] : memref<392x512xf32, #tpu.memory_space<vmem>>, vector<8x512xf32>
    tpu.vector_store %arg6[%c176, %c0_92], %118 {strides = array<i32>} : memref<392x512xf32, #tpu.memory_space<vmem>>, vector<8x512xf32>,
    %c0_93 = arith.constant 0 : index
    %c50 = arith.constant 50 : index
    %120 = vector.load %arg5[%c0_93, %c50] : memref<8x614xf32, #tpu.memory_space<vmem>>, vector<8x512xf32>
    %c23 = arith.constant 23 : index
    %c0_94 = arith.constant 0 : index
    %121 = vector.load %arg3[%c23, %c0_94] : memref<49x512xf32, #tpu.memory_space<vmem>>, vector<1x512xf32>
    %122 = vector.broadcast %121 : vector<1x512xf32> to vector<8x512xf32>
    %123 = arith.mulf %120, %122 : vector<8x512xf32>
    %c184 = arith.constant 184 : index
    %c0_95 = arith.constant 0 : index
    %124 = vector.load %arg6[%c184, %c0_95] : memref<392x512xf32, #tpu.memory_space<vmem>>, vector<8x512xf32>
    tpu.vector_store %arg6[%c184, %c0_95], %123 {strides = array<i32>} : memref<392x512xf32, #tpu.memory_space<vmem>>, vector<8x512xf32>,
    %c0_96 = arith.constant 0 : index
    %c51_97 = arith.constant 51 : index
    %125 = vector.load %arg5[%c0_96, %c51_97] : memref<8x614xf32, #tpu.memory_space<vmem>>, vector<8x512xf32>
    %c24_98 = arith.constant 24 : index
    %c0_99 = arith.constant 0 : index
    %126 = vector.load %arg3[%c24_98, %c0_99] : memref<49x512xf32, #tpu.memory_space<vmem>>, vector<1x512xf32>
    %127 = vector.broadcast %126 : vector<1x512xf32> to vector<8x512xf32>
    %128 = arith.mulf %125, %127 : vector<8x512xf32>
    %c192 = arith.constant 192 : index
    %c0_100 = arith.constant 0 : index
    %129 = vector.load %arg6[%c192, %c0_100] : memref<392x512xf32, #tpu.memory_space<vmem>>, vector<8x512xf32>
    tpu.vector_store %arg6[%c192, %c0_100], %128 {strides = array<i32>} : memref<392x512xf32, #tpu.memory_space<vmem>>, vector<8x512xf32>,
    %c0_101 = arith.constant 0 : index
    %c52 = arith.constant 52 : index
    %130 = vector.load %arg5[%c0_101, %c52] : memref<8x614xf32, #tpu.memory_space<vmem>>, vector<8x512xf32>
    %c25 = arith.constant 25 : index
    %c0_102 = arith.constant 0 : index
    %131 = vector.load %arg3[%c25, %c0_102] : memref<49x512xf32, #tpu.memory_space<vmem>>, vector<1x512xf32>
    %132 = vector.broadcast %131 : vector<1x512xf32> to vector<8x512xf32>
    %133 = arith.mulf %130, %132 : vector<8x512xf32>
    %c200 = arith.constant 200 : index
    %c0_103 = arith.constant 0 : index
    %134 = vector.load %arg6[%c200, %c0_103] : memref<392x512xf32, #tpu.memory_space<vmem>>, vector<8x512xf32>
    tpu.vector_store %arg6[%c200, %c0_103], %133 {strides = array<i32>} : memref<392x512xf32, #tpu.memory_space<vmem>>, vector<8x512xf32>,
    %c0_104 = arith.constant 0 : index
    %c53 = arith.constant 53 : index
    %135 = vector.load %arg5[%c0_104, %c53] : memref<8x614xf32, #tpu.memory_space<vmem>>, vector<8x512xf32>
    %c26 = arith.constant 26 : index
    %c0_105 = arith.constant 0 : index
    %136 = vector.load %arg3[%c26, %c0_105] : memref<49x512xf32, #tpu.memory_space<vmem>>, vector<1x512xf32>
    %137 = vector.broadcast %136 : vector<1x512xf32> to vector<8x512xf32>
    %138 = arith.mulf %135, %137 : vector<8x512xf32>
    %c208 = arith.constant 208 : index
    %c0_106 = arith.constant 0 : index
    %139 = vector.load %arg6[%c208, %c0_106] : memref<392x512xf32, #tpu.memory_space<vmem>>, vector<8x512xf32>
    tpu.vector_store %arg6[%c208, %c0_106], %138 {strides = array<i32>} : memref<392x512xf32, #tpu.memory_space<vmem>>, vector<8x512xf32>,
    %c0_107 = arith.constant 0 : index
    %c54 = arith.constant 54 : index
    %140 = vector.load %arg5[%c0_107, %c54] : memref<8x614xf32, #tpu.memory_space<vmem>>, vector<8x512xf32>
    %c27 = arith.constant 27 : index
    %c0_108 = arith.constant 0 : index
    %141 = vector.load %arg3[%c27, %c0_108] : memref<49x512xf32, #tpu.memory_space<vmem>>, vector<1x512xf32>
    %142 = vector.broadcast %141 : vector<1x512xf32> to vector<8x512xf32>
    %143 = arith.mulf %140, %142 : vector<8x512xf32>
    %c216 = arith.constant 216 : index
    %c0_109 = arith.constant 0 : index
    %144 = vector.load %arg6[%c216, %c0_109] : memref<392x512xf32, #tpu.memory_space<vmem>>, vector<8x512xf32>
    tpu.vector_store %arg6[%c216, %c0_109], %143 {strides = array<i32>} : memref<392x512xf32, #tpu.memory_space<vmem>>, vector<8x512xf32>,
    %c0_110 = arith.constant 0 : index
    %c64_111 = arith.constant 64 : index
    %145 = vector.load %arg5[%c0_110, %c64_111] : memref<8x614xf32, #tpu.memory_space<vmem>>, vector<8x512xf32>
    %c28 = arith.constant 28 : index
    %c0_112 = arith.constant 0 : index
    %146 = vector.load %arg3[%c28, %c0_112] : memref<49x512xf32, #tpu.memory_space<vmem>>, vector<1x512xf32>
    %147 = vector.broadcast %146 : vector<1x512xf32> to vector<8x512xf32>
    %148 = arith.mulf %145, %147 : vector<8x512xf32>
    %c224 = arith.constant 224 : index
    %c0_113 = arith.constant 0 : index
    %149 = vector.load %arg6[%c224, %c0_113] : memref<392x512xf32, #tpu.memory_space<vmem>>, vector<8x512xf32>
    tpu.vector_store %arg6[%c224, %c0_113], %148 {strides = array<i32>} : memref<392x512xf32, #tpu.memory_space<vmem>>, vector<8x512xf32>,
    %c0_114 = arith.constant 0 : index
    %c65 = arith.constant 65 : index
    %150 = vector.load %arg5[%c0_114, %c65] : memref<8x614xf32, #tpu.memory_space<vmem>>, vector<8x512xf32>
    %c29 = arith.constant 29 : index
    %c0_115 = arith.constant 0 : index
    %151 = vector.load %arg3[%c29, %c0_115] : memref<49x512xf32, #tpu.memory_space<vmem>>, vector<1x512xf32>
    %152 = vector.broadcast %151 : vector<1x512xf32> to vector<8x512xf32>
    %153 = arith.mulf %150, %152 : vector<8x512xf32>
    %c232 = arith.constant 232 : index
    %c0_116 = arith.constant 0 : index
    %154 = vector.load %arg6[%c232, %c0_116] : memref<392x512xf32, #tpu.memory_space<vmem>>, vector<8x512xf32>
    tpu.vector_store %arg6[%c232, %c0_116], %153 {strides = array<i32>} : memref<392x512xf32, #tpu.memory_space<vmem>>, vector<8x512xf32>,
    %c0_117 = arith.constant 0 : index
    %c66 = arith.constant 66 : index
    %155 = vector.load %arg5[%c0_117, %c66] : memref<8x614xf32, #tpu.memory_space<vmem>>, vector<8x512xf32>
    %c30 = arith.constant 30 : index
    %c0_118 = arith.constant 0 : index
    %156 = vector.load %arg3[%c30, %c0_118] : memref<49x512xf32, #tpu.memory_space<vmem>>, vector<1x512xf32>
    %157 = vector.broadcast %156 : vector<1x512xf32> to vector<8x512xf32>
    %158 = arith.mulf %155, %157 : vector<8x512xf32>
    %c240 = arith.constant 240 : index
    %c0_119 = arith.constant 0 : index
    %159 = vector.load %arg6[%c240, %c0_119] : memref<392x512xf32, #tpu.memory_space<vmem>>, vector<8x512xf32>
    tpu.vector_store %arg6[%c240, %c0_119], %158 {strides = array<i32>} : memref<392x512xf32, #tpu.memory_space<vmem>>, vector<8x512xf32>,
    %c0_120 = arith.constant 0 : index
    %c67 = arith.constant 67 : index
    %160 = vector.load %arg5[%c0_120, %c67] : memref<8x614xf32, #tpu.memory_space<vmem>>, vector<8x512xf32>
    %c31 = arith.constant 31 : index
    %c0_121 = arith.constant 0 : index
    %161 = vector.load %arg3[%c31, %c0_121] : memref<49x512xf32, #tpu.memory_space<vmem>>, vector<1x512xf32>
    %162 = vector.broadcast %161 : vector<1x512xf32> to vector<8x512xf32>
    %163 = arith.mulf %160, %162 : vector<8x512xf32>
    %c248 = arith.constant 248 : index
    %c0_122 = arith.constant 0 : index
    %164 = vector.load %arg6[%c248, %c0_122] : memref<392x512xf32, #tpu.memory_space<vmem>>, vector<8x512xf32>
    tpu.vector_store %arg6[%c248, %c0_122], %163 {strides = array<i32>} : memref<392x512xf32, #tpu.memory_space<vmem>>, vector<8x512xf32>,
    %c0_123 = arith.constant 0 : index
    %c68 = arith.constant 68 : index
    %165 = vector.load %arg5[%c0_123, %c68] : memref<8x614xf32, #tpu.memory_space<vmem>>, vector<8x512xf32>
    %c32_124 = arith.constant 32 : index
    %c0_125 = arith.constant 0 : index
    %166 = vector.load %arg3[%c32_124, %c0_125] : memref<49x512xf32, #tpu.memory_space<vmem>>, vector<1x512xf32>
    %167 = vector.broadcast %166 : vector<1x512xf32> to vector<8x512xf32>
    %168 = arith.mulf %165, %167 : vector<8x512xf32>
    %c256 = arith.constant 256 : index
    %c0_126 = arith.constant 0 : index
    %169 = vector.load %arg6[%c256, %c0_126] : memref<392x512xf32, #tpu.memory_space<vmem>>, vector<8x512xf32>
    tpu.vector_store %arg6[%c256, %c0_126], %168 {strides = array<i32>} : memref<392x512xf32, #tpu.memory_space<vmem>>, vector<8x512xf32>,
    %c0_127 = arith.constant 0 : index
    %c69 = arith.constant 69 : index
    %170 = vector.load %arg5[%c0_127, %c69] : memref<8x614xf32, #tpu.memory_space<vmem>>, vector<8x512xf32>
    %c33_128 = arith.constant 33 : index
    %c0_129 = arith.constant 0 : index
    %171 = vector.load %arg3[%c33_128, %c0_129] : memref<49x512xf32, #tpu.memory_space<vmem>>, vector<1x512xf32>
    %172 = vector.broadcast %171 : vector<1x512xf32> to vector<8x512xf32>
    %173 = arith.mulf %170, %172 : vector<8x512xf32>
    %c264 = arith.constant 264 : index
    %c0_130 = arith.constant 0 : index
    %174 = vector.load %arg6[%c264, %c0_130] : memref<392x512xf32, #tpu.memory_space<vmem>>, vector<8x512xf32>
    tpu.vector_store %arg6[%c264, %c0_130], %173 {strides = array<i32>} : memref<392x512xf32, #tpu.memory_space<vmem>>, vector<8x512xf32>,
    %c0_131 = arith.constant 0 : index
    %c70 = arith.constant 70 : index
    %175 = vector.load %arg5[%c0_131, %c70] : memref<8x614xf32, #tpu.memory_space<vmem>>, vector<8x512xf32>
    %c34_132 = arith.constant 34 : index
    %c0_133 = arith.constant 0 : index
    %176 = vector.load %arg3[%c34_132, %c0_133] : memref<49x512xf32, #tpu.memory_space<vmem>>, vector<1x512xf32>
    %177 = vector.broadcast %176 : vector<1x512xf32> to vector<8x512xf32>
    %178 = arith.mulf %175, %177 : vector<8x512xf32>
    %c272 = arith.constant 272 : index
    %c0_134 = arith.constant 0 : index
    %179 = vector.load %arg6[%c272, %c0_134] : memref<392x512xf32, #tpu.memory_space<vmem>>, vector<8x512xf32>
    tpu.vector_store %arg6[%c272, %c0_134], %178 {strides = array<i32>} : memref<392x512xf32, #tpu.memory_space<vmem>>, vector<8x512xf32>,
    %c0_135 = arith.constant 0 : index
    %c80_136 = arith.constant 80 : index
    %180 = vector.load %arg5[%c0_135, %c80_136] : memref<8x614xf32, #tpu.memory_space<vmem>>, vector<8x512xf32>
    %c35_137 = arith.constant 35 : index
    %c0_138 = arith.constant 0 : index
    %181 = vector.load %arg3[%c35_137, %c0_138] : memref<49x512xf32, #tpu.memory_space<vmem>>, vector<1x512xf32>
    %182 = vector.broadcast %181 : vector<1x512xf32> to vector<8x512xf32>
    %183 = arith.mulf %180, %182 : vector<8x512xf32>
    %c280 = arith.constant 280 : index
    %c0_139 = arith.constant 0 : index
    %184 = vector.load %arg6[%c280, %c0_139] : memref<392x512xf32, #tpu.memory_space<vmem>>, vector<8x512xf32>
    tpu.vector_store %arg6[%c280, %c0_139], %183 {strides = array<i32>} : memref<392x512xf32, #tpu.memory_space<vmem>>, vector<8x512xf32>,
    %c0_140 = arith.constant 0 : index
    %c81 = arith.constant 81 : index
    %185 = vector.load %arg5[%c0_140, %c81] : memref<8x614xf32, #tpu.memory_space<vmem>>, vector<8x512xf32>
    %c36_141 = arith.constant 36 : index
    %c0_142 = arith.constant 0 : index
    %186 = vector.load %arg3[%c36_141, %c0_142] : memref<49x512xf32, #tpu.memory_space<vmem>>, vector<1x512xf32>
    %187 = vector.broadcast %186 : vector<1x512xf32> to vector<8x512xf32>
    %188 = arith.mulf %185, %187 : vector<8x512xf32>
    %c288 = arith.constant 288 : index
    %c0_143 = arith.constant 0 : index
    %189 = vector.load %arg6[%c288, %c0_143] : memref<392x512xf32, #tpu.memory_space<vmem>>, vector<8x512xf32>
    tpu.vector_store %arg6[%c288, %c0_143], %188 {strides = array<i32>} : memref<392x512xf32, #tpu.memory_space<vmem>>, vector<8x512xf32>,
    %c0_144 = arith.constant 0 : index
    %c82 = arith.constant 82 : index
    %190 = vector.load %arg5[%c0_144, %c82] : memref<8x614xf32, #tpu.memory_space<vmem>>, vector<8x512xf32>
    %c37_145 = arith.constant 37 : index
    %c0_146 = arith.constant 0 : index
    %191 = vector.load %arg3[%c37_145, %c0_146] : memref<49x512xf32, #tpu.memory_space<vmem>>, vector<1x512xf32>
    %192 = vector.broadcast %191 : vector<1x512xf32> to vector<8x512xf32>
    %193 = arith.mulf %190, %192 : vector<8x512xf32>
    %c296 = arith.constant 296 : index
    %c0_147 = arith.constant 0 : index
    %194 = vector.load %arg6[%c296, %c0_147] : memref<392x512xf32, #tpu.memory_space<vmem>>, vector<8x512xf32>
    tpu.vector_store %arg6[%c296, %c0_147], %193 {strides = array<i32>} : memref<392x512xf32, #tpu.memory_space<vmem>>, vector<8x512xf32>,
    %c0_148 = arith.constant 0 : index
    %c83 = arith.constant 83 : index
    %195 = vector.load %arg5[%c0_148, %c83] : memref<8x614xf32, #tpu.memory_space<vmem>>, vector<8x512xf32>
    %c38_149 = arith.constant 38 : index
    %c0_150 = arith.constant 0 : index
    %196 = vector.load %arg3[%c38_149, %c0_150] : memref<49x512xf32, #tpu.memory_space<vmem>>, vector<1x512xf32>
    %197 = vector.broadcast %196 : vector<1x512xf32> to vector<8x512xf32>
    %198 = arith.mulf %195, %197 : vector<8x512xf32>
    %c304 = arith.constant 304 : index
    %c0_151 = arith.constant 0 : index
    %199 = vector.load %arg6[%c304, %c0_151] : memref<392x512xf32, #tpu.memory_space<vmem>>, vector<8x512xf32>
    tpu.vector_store %arg6[%c304, %c0_151], %198 {strides = array<i32>} : memref<392x512xf32, #tpu.memory_space<vmem>>, vector<8x512xf32>,
    %c0_152 = arith.constant 0 : index
    %c84 = arith.constant 84 : index
    %200 = vector.load %arg5[%c0_152, %c84] : memref<8x614xf32, #tpu.memory_space<vmem>>, vector<8x512xf32>
    %c39 = arith.constant 39 : index
    %c0_153 = arith.constant 0 : index
    %201 = vector.load %arg3[%c39, %c0_153] : memref<49x512xf32, #tpu.memory_space<vmem>>, vector<1x512xf32>
    %202 = vector.broadcast %201 : vector<1x512xf32> to vector<8x512xf32>
    %203 = arith.mulf %200, %202 : vector<8x512xf32>
    %c312 = arith.constant 312 : index
    %c0_154 = arith.constant 0 : index
    %204 = vector.load %arg6[%c312, %c0_154] : memref<392x512xf32, #tpu.memory_space<vmem>>, vector<8x512xf32>
    tpu.vector_store %arg6[%c312, %c0_154], %203 {strides = array<i32>} : memref<392x512xf32, #tpu.memory_space<vmem>>, vector<8x512xf32>,
    %c0_155 = arith.constant 0 : index
    %c85 = arith.constant 85 : index
    %205 = vector.load %arg5[%c0_155, %c85] : memref<8x614xf32, #tpu.memory_space<vmem>>, vector<8x512xf32>
    %c40_156 = arith.constant 40 : index
    %c0_157 = arith.constant 0 : index
    %206 = vector.load %arg3[%c40_156, %c0_157] : memref<49x512xf32, #tpu.memory_space<vmem>>, vector<1x512xf32>
    %207 = vector.broadcast %206 : vector<1x512xf32> to vector<8x512xf32>
    %208 = arith.mulf %205, %207 : vector<8x512xf32>
    %c320 = arith.constant 320 : index
    %c0_158 = arith.constant 0 : index
    %209 = vector.load %arg6[%c320, %c0_158] : memref<392x512xf32, #tpu.memory_space<vmem>>, vector<8x512xf32>
    tpu.vector_store %arg6[%c320, %c0_158], %208 {strides = array<i32>} : memref<392x512xf32, #tpu.memory_space<vmem>>, vector<8x512xf32>,
    %c0_159 = arith.constant 0 : index
    %c86 = arith.constant 86 : index
    %210 = vector.load %arg5[%c0_159, %c86] : memref<8x614xf32, #tpu.memory_space<vmem>>, vector<8x512xf32>
    %c41 = arith.constant 41 : index
    %c0_160 = arith.constant 0 : index
    %211 = vector.load %arg3[%c41, %c0_160] : memref<49x512xf32, #tpu.memory_space<vmem>>, vector<1x512xf32>
    %212 = vector.broadcast %211 : vector<1x512xf32> to vector<8x512xf32>
    %213 = arith.mulf %210, %212 : vector<8x512xf32>
    %c328 = arith.constant 328 : index
    %c0_161 = arith.constant 0 : index
    %214 = vector.load %arg6[%c328, %c0_161] : memref<392x512xf32, #tpu.memory_space<vmem>>, vector<8x512xf32>
    tpu.vector_store %arg6[%c328, %c0_161], %213 {strides = array<i32>} : memref<392x512xf32, #tpu.memory_space<vmem>>, vector<8x512xf32>,
    %c0_162 = arith.constant 0 : index
    %c96_163 = arith.constant 96 : index
    %215 = vector.load %arg5[%c0_162, %c96_163] : memref<8x614xf32, #tpu.memory_space<vmem>>, vector<8x512xf32>
    %c42 = arith.constant 42 : index
    %c0_164 = arith.constant 0 : index
    %216 = vector.load %arg3[%c42, %c0_164] : memref<49x512xf32, #tpu.memory_space<vmem>>, vector<1x512xf32>
    %217 = vector.broadcast %216 : vector<1x512xf32> to vector<8x512xf32>
    %218 = arith.mulf %215, %217 : vector<8x512xf32>
    %c336 = arith.constant 336 : index
    %c0_165 = arith.constant 0 : index
    %219 = vector.load %arg6[%c336, %c0_165] : memref<392x512xf32, #tpu.memory_space<vmem>>, vector<8x512xf32>
    tpu.vector_store %arg6[%c336, %c0_165], %218 {strides = array<i32>} : memref<392x512xf32, #tpu.memory_space<vmem>>, vector<8x512xf32>,
    %c0_166 = arith.constant 0 : index
    %c97 = arith.constant 97 : index
    %220 = vector.load %arg5[%c0_166, %c97] : memref<8x614xf32, #tpu.memory_space<vmem>>, vector<8x512xf32>
    %c43 = arith.constant 43 : index
    %c0_167 = arith.constant 0 : index
    %221 = vector.load %arg3[%c43, %c0_167] : memref<49x512xf32, #tpu.memory_space<vmem>>, vector<1x512xf32>
    %222 = vector.broadcast %221 : vector<1x512xf32> to vector<8x512xf32>
    %223 = arith.mulf %220, %222 : vector<8x512xf32>
    %c344 = arith.constant 344 : index
    %c0_168 = arith.constant 0 : index
    %224 = vector.load %arg6[%c344, %c0_168] : memref<392x512xf32, #tpu.memory_space<vmem>>, vector<8x512xf32>
    tpu.vector_store %arg6[%c344, %c0_168], %223 {strides = array<i32>} : memref<392x512xf32, #tpu.memory_space<vmem>>, vector<8x512xf32>,
    %c0_169 = arith.constant 0 : index
    %c98 = arith.constant 98 : index
    %225 = vector.load %arg5[%c0_169, %c98] : memref<8x614xf32, #tpu.memory_space<vmem>>, vector<8x512xf32>
    %c44 = arith.constant 44 : index
    %c0_170 = arith.constant 0 : index
    %226 = vector.load %arg3[%c44, %c0_170] : memref<49x512xf32, #tpu.memory_space<vmem>>, vector<1x512xf32>
    %227 = vector.broadcast %226 : vector<1x512xf32> to vector<8x512xf32>
    %228 = arith.mulf %225, %227 : vector<8x512xf32>
    %c352 = arith.constant 352 : index
    %c0_171 = arith.constant 0 : index
    %229 = vector.load %arg6[%c352, %c0_171] : memref<392x512xf32, #tpu.memory_space<vmem>>, vector<8x512xf32>
    tpu.vector_store %arg6[%c352, %c0_171], %228 {strides = array<i32>} : memref<392x512xf32, #tpu.memory_space<vmem>>, vector<8x512xf32>,
    %c0_172 = arith.constant 0 : index
    %c99 = arith.constant 99 : index
    %230 = vector.load %arg5[%c0_172, %c99] : memref<8x614xf32, #tpu.memory_space<vmem>>, vector<8x512xf32>
    %c45 = arith.constant 45 : index
    %c0_173 = arith.constant 0 : index
    %231 = vector.load %arg3[%c45, %c0_173] : memref<49x512xf32, #tpu.memory_space<vmem>>, vector<1x512xf32>
    %232 = vector.broadcast %231 : vector<1x512xf32> to vector<8x512xf32>
    %233 = arith.mulf %230, %232 : vector<8x512xf32>
    %c360 = arith.constant 360 : index
    %c0_174 = arith.constant 0 : index
    %234 = vector.load %arg6[%c360, %c0_174] : memref<392x512xf32, #tpu.memory_space<vmem>>, vector<8x512xf32>
    tpu.vector_store %arg6[%c360, %c0_174], %233 {strides = array<i32>} : memref<392x512xf32, #tpu.memory_space<vmem>>, vector<8x512xf32>,
    %c0_175 = arith.constant 0 : index
    %c100 = arith.constant 100 : index
    %235 = vector.load %arg5[%c0_175, %c100] : memref<8x614xf32, #tpu.memory_space<vmem>>, vector<8x512xf32>
    %c46 = arith.constant 46 : index
    %c0_176 = arith.constant 0 : index
    %236 = vector.load %arg3[%c46, %c0_176] : memref<49x512xf32, #tpu.memory_space<vmem>>, vector<1x512xf32>
    %237 = vector.broadcast %236 : vector<1x512xf32> to vector<8x512xf32>
    %238 = arith.mulf %235, %237 : vector<8x512xf32>
    %c368 = arith.constant 368 : index
    %c0_177 = arith.constant 0 : index
    %239 = vector.load %arg6[%c368, %c0_177] : memref<392x512xf32, #tpu.memory_space<vmem>>, vector<8x512xf32>
    tpu.vector_store %arg6[%c368, %c0_177], %238 {strides = array<i32>} : memref<392x512xf32, #tpu.memory_space<vmem>>, vector<8x512xf32>,
    %c0_178 = arith.constant 0 : index
    %c101 = arith.constant 101 : index
    %240 = vector.load %arg5[%c0_178, %c101] : memref<8x614xf32, #tpu.memory_space<vmem>>, vector<8x512xf32>
    %c47 = arith.constant 47 : index
    %c0_179 = arith.constant 0 : index
    %241 = vector.load %arg3[%c47, %c0_179] : memref<49x512xf32, #tpu.memory_space<vmem>>, vector<1x512xf32>
    %242 = vector.broadcast %241 : vector<1x512xf32> to vector<8x512xf32>
    %243 = arith.mulf %240, %242 : vector<8x512xf32>
    %c376 = arith.constant 376 : index
    %c0_180 = arith.constant 0 : index
    %244 = vector.load %arg6[%c376, %c0_180] : memref<392x512xf32, #tpu.memory_space<vmem>>, vector<8x512xf32>
    tpu.vector_store %arg6[%c376, %c0_180], %243 {strides = array<i32>} : memref<392x512xf32, #tpu.memory_space<vmem>>, vector<8x512xf32>,
    %c0_181 = arith.constant 0 : index
    %c102 = arith.constant 102 : index
    %245 = vector.load %arg5[%c0_181, %c102] : memref<8x614xf32, #tpu.memory_space<vmem>>, vector<8x512xf32>
    %c48_182 = arith.constant 48 : index
    %c0_183 = arith.constant 0 : index
    %246 = vector.load %arg3[%c48_182, %c0_183] : memref<49x512xf32, #tpu.memory_space<vmem>>, vector<1x512xf32>
    %247 = vector.broadcast %246 : vector<1x512xf32> to vector<8x512xf32>
    %248 = arith.mulf %245, %247 : vector<8x512xf32>
    %c384 = arith.constant 384 : index
    %c0_184 = arith.constant 0 : index
    %249 = vector.load %arg6[%c384, %c0_184] : memref<392x512xf32, #tpu.memory_space<vmem>>, vector<8x512xf32>
    tpu.vector_store %arg6[%c384, %c0_184], %248 {strides = array<i32>} : memref<392x512xf32, #tpu.memory_space<vmem>>, vector<8x512xf32>,
    %c0_185 = arith.constant 0 : index
    %c0_186 = arith.constant 0 : index
    %250 = vector.load %arg2[%c0_185, %c0_186] : memref<8x392xbf16, #tpu.memory_space<vmem>>, vector<8x392xbf16>
    %251 = arith.extf %250 : vector<8x392xbf16> to vector<8x392xf32>
    %c0_187 = arith.constant 0 : index
    %c0_188 = arith.constant 0 : index
    %252 = vector.load %arg6[%c0_187, %c0_188] : memref<392x512xf32, #tpu.memory_space<vmem>>, vector<392x512xf32>
    %cst_189 = arith.constant dense<0.000000e+00> : vector<8x512xf32>
    %253 = tpu.matmul %251, %252, %cst_189 {dimension_numbers = #tpu.dot_dimension_numbers<[1], [0], [0], [1], [0, 0, 1, 1], [], []>} : vector<8x392xf32>, vector<392x512xf32>, vector<8x512xf32> -> vector<8x512xf32>
    %cst_190 = arith.constant 0.000000e+00 : f32
    %254 = vector.broadcast %cst_190 : f32 to vector<8x512xf32>
    %255 = arith.maximumf %253, %254 : vector<8x512xf32>
    %256 = arith.truncf %255 : vector<8x512xf32> to vector<8x512xbf16>
    %c0_191 = arith.constant 0 : index
    %c0_192 = arith.constant 0 : index
    %257 = vector.load %arg4[%c0_191, %c0_192] : memref<8x512xbf16, #tpu.memory_space<vmem>>, vector<8x512xbf16>
    tpu.vector_store %arg4[%c0_191, %c0_192], %256 {strides = array<i32>} : memref<8x512xbf16, #tpu.memory_space<vmem>>, vector<8x512xbf16>,
    return
  }
  func.func @transform_0(%arg0: i32) -> (i32, i32) {
    %c0_i32 = arith.constant 0 : i32
    %c0_i32_0 = arith.constant 0 : i32
    %c0_i32_1 = arith.constant 0 : i32
    return %c0_i32, %c0_i32_0 : i32, i32
  }
  func.func @transform_1(%arg0: i32) -> (i32, i32) {
    %c0_i32 = arith.constant 0 : i32
    %c0_i32_0 = arith.constant 0 : i32
    %c0_i32_1 = arith.constant 0 : i32
    return %c0_i32, %c0_i32_0 : i32, i32
  }
  func.func @transform_2(%arg0: i32) -> (i32, i32) {
    %c0_i32 = arith.constant 0 : i32
    %c0_i32_0 = arith.constant 0 : i32
    %c0_i32_1 = arith.constant 0 : i32
    return %c0_i32, %c0_i32_0 : i32, i32
  }
  func.func @transform_3(%arg0: i32) -> (i32, i32) {
    %c0_i32 = arith.constant 0 : i32
    %c0_i32_0 = arith.constant 0 : i32
    %c0_i32_1 = arith.constant 0 : i32
    return %c0_i32, %c0_i32_0 : i32, i32
  }
}

module attributes {stable_mosaic.version = 11 : i64} {
  func.func @_gemm_kernel(%arg0: i32, %arg1: memref<16x72xbf16, #tpu.memory_space<vmem>>, %arg2: memref<72x128xbf16, #tpu.memory_space<vmem>>, %arg3: memref<16x128xbf16, #tpu.memory_space<vmem>>) attributes {dimension_semantics = [#tpu.dimension_semantics<parallel>], iteration_bounds = array<i64: 1>, scalar_prefetch = 0 : i64, scratch_operands = 0 : i64, tpu.core_type = #tpu.core_type<tc>, window_params = [{pipeline_mode = #tpu.pipeline_mode<synchronous>, transform_indices = @transform_0, window_bounds = array<i64: 16, 72>}, {transform_indices = @transform_1, window_bounds = array<i64: 72, 128>}, {transform_indices = @transform_2, window_bounds = array<i64: 16, 128>}]} {
    %c0 = arith.constant 0 : index
    %c0_0 = arith.constant 0 : index
    %0 = vector.load %arg1[%c0, %c0_0] : memref<16x72xbf16, #tpu.memory_space<vmem>>, vector<16x72xbf16>
    %1 = arith.extf %0 : vector<16x72xbf16> to vector<16x72xf32>
    %c0_1 = arith.constant 0 : index
    %c0_2 = arith.constant 0 : index
    %2 = vector.load %arg2[%c0_1, %c0_2] : memref<72x128xbf16, #tpu.memory_space<vmem>>, vector<72x128xbf16>
    %3 = arith.extf %2 : vector<72x128xbf16> to vector<72x128xf32>
    %cst = arith.constant dense<0.000000e+00> : vector<16x128xf32>
    %4 = tpu.matmul %1, %3, %cst {dimension_numbers = #tpu.dot_dimension_numbers<[1], [0], [0], [1], [0, 0, 1, 1], [], []>} : vector<16x72xf32>, vector<72x128xf32>, vector<16x128xf32> -> vector<16x128xf32>
    %cst_3 = arith.constant 0.000000e+00 : f32
    %5 = vector.broadcast %cst_3 : f32 to vector<16x128xf32>
    %6 = arith.maximumf %4, %5 : vector<16x128xf32>
    %7 = arith.truncf %6 : vector<16x128xf32> to vector<16x128xbf16>
    %c0_4 = arith.constant 0 : index
    %c0_5 = arith.constant 0 : index
    %8 = vector.load %arg3[%c0_4, %c0_5] : memref<16x128xbf16, #tpu.memory_space<vmem>>, vector<16x128xbf16>
    tpu.vector_store %arg3[%c0_4, %c0_5], %7 {strides = array<i32>} : memref<16x128xbf16, #tpu.memory_space<vmem>>, vector<16x128xbf16>,
    return
  }
  func.func @transform_0(%arg0: i32) -> (i32, i32) {
    %c0_i32 = arith.constant 0 : i32
    %c0_i32_0 = arith.constant 0 : i32
    %c0_i32_1 = arith.constant 0 : i32
    return %c0_i32, %c0_i32_0 : i32, i32
  }
  func.func @transform_1(%arg0: i32) -> (i32, i32) {
    %c0_i32 = arith.constant 0 : i32
    %c0_i32_0 = arith.constant 0 : i32
    return %c0_i32, %arg0 : i32, i32
  }
  func.func @transform_2(%arg0: i32) -> (i32, i32) {
    %c0_i32 = arith.constant 0 : i32
    %c0_i32_0 = arith.constant 0 : i32
    return %c0_i32, %arg0 : i32, i32
  }
}

module attributes {stable_mosaic.version = 11 : i64} {
  func.func @_gemm_kernel(%arg0: i32, %arg1: memref<32x144xbf16, #tpu.memory_space<vmem>>, %arg2: memref<144x32xbf16, #tpu.memory_space<vmem>>, %arg3: memref<32x32xf32, #tpu.memory_space<vmem>>) attributes {dimension_semantics = [#tpu.dimension_semantics<parallel>], iteration_bounds = array<i64: 1>, scalar_prefetch = 0 : i64, scratch_operands = 0 : i64, tpu.core_type = #tpu.core_type<tc>, window_params = [{pipeline_mode = #tpu.pipeline_mode<synchronous>, transform_indices = @transform_0, window_bounds = array<i64: 32, 144>}, {transform_indices = @transform_1, window_bounds = array<i64: 144, 32>}, {transform_indices = @transform_2, window_bounds = array<i64: 32, 32>}]} {
    %c0 = arith.constant 0 : index
    %c0_0 = arith.constant 0 : index
    %0 = vector.load %arg1[%c0, %c0_0] : memref<32x144xbf16, #tpu.memory_space<vmem>>, vector<32x144xbf16>
    %1 = arith.extf %0 : vector<32x144xbf16> to vector<32x144xf32>
    %c0_1 = arith.constant 0 : index
    %c0_2 = arith.constant 0 : index
    %2 = vector.load %arg2[%c0_1, %c0_2] : memref<144x32xbf16, #tpu.memory_space<vmem>>, vector<144x32xbf16>
    %3 = arith.extf %2 : vector<144x32xbf16> to vector<144x32xf32>
    %cst = arith.constant dense<0.000000e+00> : vector<32x32xf32>
    %4 = tpu.matmul %1, %3, %cst {dimension_numbers = #tpu.dot_dimension_numbers<[1], [0], [0], [1], [0, 0, 1, 1], [], []>} : vector<32x144xf32>, vector<144x32xf32>, vector<32x32xf32> -> vector<32x32xf32>
    %cst_3 = arith.constant 0.000000e+00 : f32
    %5 = vector.broadcast %cst_3 : f32 to vector<32x32xf32>
    %6 = arith.maximumf %4, %5 : vector<32x32xf32>
    %c0_4 = arith.constant 0 : index
    %c0_5 = arith.constant 0 : index
    %7 = vector.load %arg3[%c0_4, %c0_5] : memref<32x32xf32, #tpu.memory_space<vmem>>, vector<32x32xf32>
    tpu.vector_store %arg3[%c0_4, %c0_5], %6 {strides = array<i32>} : memref<32x32xf32, #tpu.memory_space<vmem>>, vector<32x32xf32>,
    return
  }
  func.func @transform_0(%arg0: i32) -> (i32, i32) {
    %c0_i32 = arith.constant 0 : i32
    %c0_i32_0 = arith.constant 0 : i32
    %c0_i32_1 = arith.constant 0 : i32
    return %c0_i32, %c0_i32_0 : i32, i32
  }
  func.func @transform_1(%arg0: i32) -> (i32, i32) {
    %c0_i32 = arith.constant 0 : i32
    %c0_i32_0 = arith.constant 0 : i32
    return %c0_i32, %arg0 : i32, i32
  }
  func.func @transform_2(%arg0: i32) -> (i32, i32) {
    %c0_i32 = arith.constant 0 : i32
    %c0_i32_0 = arith.constant 0 : i32
    return %c0_i32, %arg0 : i32, i32
  }
}

module attributes {stable_mosaic.version = 11 : i64} {
  func.func @_resblock_kernel(%arg0: i32, %arg1: memref<32x32xf32, #tpu.memory_space<vmem>>, %arg2: memref<32x288xbf16, #tpu.memory_space<vmem>>, %arg3: memref<32x288xbf16, #tpu.memory_space<vmem>>, %arg4: memref<9x32xf32, #tpu.memory_space<vmem>>, %arg5: memref<32x32xf32, #tpu.memory_space<vmem>>, %arg6: memref<32x42xf32, #tpu.memory_space<vmem>>, %arg7: memref<288x32xf32, #tpu.memory_space<vmem>>) attributes {dimension_semantics = [#tpu.dimension_semantics<arbitrary>], iteration_bounds = array<i64: 1>, scalar_prefetch = 0 : i64, scratch_operands = 2 : i64, tpu.core_type = #tpu.core_type<tc>, window_params = [{pipeline_mode = #tpu.pipeline_mode<synchronous>, transform_indices = @transform_0, window_bounds = array<i64: 32, 32>}, {pipeline_mode = #tpu.pipeline_mode<synchronous>, transform_indices = @transform_1, window_bounds = array<i64: 32, 288>}, {pipeline_mode = #tpu.pipeline_mode<synchronous>, transform_indices = @transform_2, window_bounds = array<i64: 32, 288>}, {pipeline_mode = #tpu.pipeline_mode<synchronous>, transform_indices = @transform_3, window_bounds = array<i64: 9, 32>}, {pipeline_mode = #tpu.pipeline_mode<synchronous>, transform_indices = @transform_4, window_bounds = array<i64: 32, 32>}]} {
    %c0 = arith.constant 0 : index
    %c0_0 = arith.constant 0 : index
    %0 = vector.load %arg1[%c0, %c0_0] : memref<32x32xf32, #tpu.memory_space<vmem>>, vector<32x32xf32>
    %cst = arith.constant 0.000000e+00 : f32
    %1 = vector.broadcast %cst : f32 to vector<32x42xf32>
    %c0_1 = arith.constant 0 : index
    %c0_2 = arith.constant 0 : index
    %2 = vector.load %arg6[%c0_1, %c0_2] : memref<32x42xf32, #tpu.memory_space<vmem>>, vector<32x42xf32>
    tpu.vector_store %arg6[%c0_1, %c0_2], %1 {strides = array<i32>} : memref<32x42xf32, #tpu.memory_space<vmem>>, vector<32x42xf32>,
    %c0_3 = arith.constant 0 : index
    %c5 = arith.constant 5 : index
    %3 = vector.load %arg6[%c0_3, %c5] : memref<32x42xf32, #tpu.memory_space<vmem>>, vector<32x32xf32>
    tpu.vector_store %arg6[%c0_3, %c5], %0 {strides = array<i32>} : memref<32x42xf32, #tpu.memory_space<vmem>>, vector<32x32xf32>,
    %c0_4 = arith.constant 0 : index
    %c0_5 = arith.constant 0 : index
    %4 = vector.load %arg6[%c0_4, %c0_5] : memref<32x42xf32, #tpu.memory_space<vmem>>, vector<32x32xf32>
    %c0_6 = arith.constant 0 : index
    %c0_7 = arith.constant 0 : index
    %5 = vector.load %arg4[%c0_6, %c0_7] : memref<9x32xf32, #tpu.memory_space<vmem>>, vector<1x32xf32>
    %6 = vector.broadcast %5 : vector<1x32xf32> to vector<32x32xf32>
    %7 = arith.mulf %4, %6 : vector<32x32xf32>
    %c0_8 = arith.constant 0 : index
    %c0_9 = arith.constant 0 : index
    %8 = vector.load %arg7[%c0_8, %c0_9] : memref<288x32xf32, #tpu.memory_space<vmem>>, vector<32x32xf32>
    tpu.vector_store %arg7[%c0_8, %c0_9], %7 {strides = array<i32>} : memref<288x32xf32, #tpu.memory_space<vmem>>, vector<32x32xf32>,
    %c0_10 = arith.constant 0 : index
    %c1 = arith.constant 1 : index
    %9 = vector.load %arg6[%c0_10, %c1] : memref<32x42xf32, #tpu.memory_space<vmem>>, vector<32x32xf32>
    %c1_11 = arith.constant 1 : index
    %c0_12 = arith.constant 0 : index
    %10 = vector.load %arg4[%c1_11, %c0_12] : memref<9x32xf32, #tpu.memory_space<vmem>>, vector<1x32xf32>
    %11 = vector.broadcast %10 : vector<1x32xf32> to vector<32x32xf32>
    %12 = arith.mulf %9, %11 : vector<32x32xf32>
    %c32 = arith.constant 32 : index
    %c0_13 = arith.constant 0 : index
    %13 = vector.load %arg7[%c32, %c0_13] : memref<288x32xf32, #tpu.memory_space<vmem>>, vector<32x32xf32>
    tpu.vector_store %arg7[%c32, %c0_13], %12 {strides = array<i32>} : memref<288x32xf32, #tpu.memory_space<vmem>>, vector<32x32xf32>,
    %c0_14 = arith.constant 0 : index
    %c2 = arith.constant 2 : index
    %14 = vector.load %arg6[%c0_14, %c2] : memref<32x42xf32, #tpu.memory_space<vmem>>, vector<32x32xf32>
    %c2_15 = arith.constant 2 : index
    %c0_16 = arith.constant 0 : index
    %15 = vector.load %arg4[%c2_15, %c0_16] : memref<9x32xf32, #tpu.memory_space<vmem>>, vector<1x32xf32>
    %16 = vector.broadcast %15 : vector<1x32xf32> to vector<32x32xf32>
    %17 = arith.mulf %14, %16 : vector<32x32xf32>
    %c64 = arith.constant 64 : index
    %c0_17 = arith.constant 0 : index
    %18 = vector.load %arg7[%c64, %c0_17] : memref<288x32xf32, #tpu.memory_space<vmem>>, vector<32x32xf32>
    tpu.vector_store %arg7[%c64, %c0_17], %17 {strides = array<i32>} : memref<288x32xf32, #tpu.memory_space<vmem>>, vector<32x32xf32>,
    %c0_18 = arith.constant 0 : index
    %c4 = arith.constant 4 : index
    %19 = vector.load %arg6[%c0_18, %c4] : memref<32x42xf32, #tpu.memory_space<vmem>>, vector<32x32xf32>
    %c3 = arith.constant 3 : index
    %c0_19 = arith.constant 0 : index
    %20 = vector.load %arg4[%c3, %c0_19] : memref<9x32xf32, #tpu.memory_space<vmem>>, vector<1x32xf32>
    %21 = vector.broadcast %20 : vector<1x32xf32> to vector<32x32xf32>
    %22 = arith.mulf %19, %21 : vector<32x32xf32>
    %c96 = arith.constant 96 : index
    %c0_20 = arith.constant 0 : index
    %23 = vector.load %arg7[%c96, %c0_20] : memref<288x32xf32, #tpu.memory_space<vmem>>, vector<32x32xf32>
    tpu.vector_store %arg7[%c96, %c0_20], %22 {strides = array<i32>} : memref<288x32xf32, #tpu.memory_space<vmem>>, vector<32x32xf32>,
    %c0_21 = arith.constant 0 : index
    %c5_22 = arith.constant 5 : index
    %24 = vector.load %arg6[%c0_21, %c5_22] : memref<32x42xf32, #tpu.memory_space<vmem>>, vector<32x32xf32>
    %c4_23 = arith.constant 4 : index
    %c0_24 = arith.constant 0 : index
    %25 = vector.load %arg4[%c4_23, %c0_24] : memref<9x32xf32, #tpu.memory_space<vmem>>, vector<1x32xf32>
    %26 = vector.broadcast %25 : vector<1x32xf32> to vector<32x32xf32>
    %27 = arith.mulf %24, %26 : vector<32x32xf32>
    %c128 = arith.constant 128 : index
    %c0_25 = arith.constant 0 : index
    %28 = vector.load %arg7[%c128, %c0_25] : memref<288x32xf32, #tpu.memory_space<vmem>>, vector<32x32xf32>
    tpu.vector_store %arg7[%c128, %c0_25], %27 {strides = array<i32>} : memref<288x32xf32, #tpu.memory_space<vmem>>, vector<32x32xf32>,
    %c0_26 = arith.constant 0 : index
    %c6 = arith.constant 6 : index
    %29 = vector.load %arg6[%c0_26, %c6] : memref<32x42xf32, #tpu.memory_space<vmem>>, vector<32x32xf32>
    %c5_27 = arith.constant 5 : index
    %c0_28 = arith.constant 0 : index
    %30 = vector.load %arg4[%c5_27, %c0_28] : memref<9x32xf32, #tpu.memory_space<vmem>>, vector<1x32xf32>
    %31 = vector.broadcast %30 : vector<1x32xf32> to vector<32x32xf32>
    %32 = arith.mulf %29, %31 : vector<32x32xf32>
    %c160 = arith.constant 160 : index
    %c0_29 = arith.constant 0 : index
    %33 = vector.load %arg7[%c160, %c0_29] : memref<288x32xf32, #tpu.memory_space<vmem>>, vector<32x32xf32>
    tpu.vector_store %arg7[%c160, %c0_29], %32 {strides = array<i32>} : memref<288x32xf32, #tpu.memory_space<vmem>>, vector<32x32xf32>,
    %c0_30 = arith.constant 0 : index
    %c8 = arith.constant 8 : index
    %34 = vector.load %arg6[%c0_30, %c8] : memref<32x42xf32, #tpu.memory_space<vmem>>, vector<32x32xf32>
    %c6_31 = arith.constant 6 : index
    %c0_32 = arith.constant 0 : index
    %35 = vector.load %arg4[%c6_31, %c0_32] : memref<9x32xf32, #tpu.memory_space<vmem>>, vector<1x32xf32>
    %36 = vector.broadcast %35 : vector<1x32xf32> to vector<32x32xf32>
    %37 = arith.mulf %34, %36 : vector<32x32xf32>
    %c192 = arith.constant 192 : index
    %c0_33 = arith.constant 0 : index
    %38 = vector.load %arg7[%c192, %c0_33] : memref<288x32xf32, #tpu.memory_space<vmem>>, vector<32x32xf32>
    tpu.vector_store %arg7[%c192, %c0_33], %37 {strides = array<i32>} : memref<288x32xf32, #tpu.memory_space<vmem>>, vector<32x32xf32>,
    %c0_34 = arith.constant 0 : index
    %c9 = arith.constant 9 : index
    %39 = vector.load %arg6[%c0_34, %c9] : memref<32x42xf32, #tpu.memory_space<vmem>>, vector<32x32xf32>
    %c7 = arith.constant 7 : index
    %c0_35 = arith.constant 0 : index
    %40 = vector.load %arg4[%c7, %c0_35] : memref<9x32xf32, #tpu.memory_space<vmem>>, vector<1x32xf32>
    %41 = vector.broadcast %40 : vector<1x32xf32> to vector<32x32xf32>
    %42 = arith.mulf %39, %41 : vector<32x32xf32>
    %c224 = arith.constant 224 : index
    %c0_36 = arith.constant 0 : index
    %43 = vector.load %arg7[%c224, %c0_36] : memref<288x32xf32, #tpu.memory_space<vmem>>, vector<32x32xf32>
    tpu.vector_store %arg7[%c224, %c0_36], %42 {strides = array<i32>} : memref<288x32xf32, #tpu.memory_space<vmem>>, vector<32x32xf32>,
    %c0_37 = arith.constant 0 : index
    %c10 = arith.constant 10 : index
    %44 = vector.load %arg6[%c0_37, %c10] : memref<32x42xf32, #tpu.memory_space<vmem>>, vector<32x32xf32>
    %c8_38 = arith.constant 8 : index
    %c0_39 = arith.constant 0 : index
    %45 = vector.load %arg4[%c8_38, %c0_39] : memref<9x32xf32, #tpu.memory_space<vmem>>, vector<1x32xf32>
    %46 = vector.broadcast %45 : vector<1x32xf32> to vector<32x32xf32>
    %47 = arith.mulf %44, %46 : vector<32x32xf32>
    %c256 = arith.constant 256 : index
    %c0_40 = arith.constant 0 : index
    %48 = vector.load %arg7[%c256, %c0_40] : memref<288x32xf32, #tpu.memory_space<vmem>>, vector<32x32xf32>
    tpu.vector_store %arg7[%c256, %c0_40], %47 {strides = array<i32>} : memref<288x32xf32, #tpu.memory_space<vmem>>, vector<32x32xf32>,
    %c0_41 = arith.constant 0 : index
    %c0_42 = arith.constant 0 : index
    %49 = vector.load %arg2[%c0_41, %c0_42] : memref<32x288xbf16, #tpu.memory_space<vmem>>, vector<32x288xbf16>
    %50 = arith.extf %49 : vector<32x288xbf16> to vector<32x288xf32>
    %c0_43 = arith.constant 0 : index
    %c0_44 = arith.constant 0 : index
    %51 = vector.load %arg7[%c0_43, %c0_44] : memref<288x32xf32, #tpu.memory_space<vmem>>, vector<288x32xf32>
    %cst_45 = arith.constant dense<0.000000e+00> : vector<32x32xf32>
    %52 = tpu.matmul %50, %51, %cst_45 {dimension_numbers = #tpu.dot_dimension_numbers<[1], [0], [0], [1], [0, 0, 1, 1], [], []>} : vector<32x288xf32>, vector<288x32xf32>, vector<32x32xf32> -> vector<32x32xf32>
    %cst_46 = arith.constant 0.000000e+00 : f32
    %53 = vector.broadcast %cst_46 : f32 to vector<32x32xf32>
    %54 = arith.maximumf %52, %53 : vector<32x32xf32>
    %c0_47 = arith.constant 0 : index
    %c5_48 = arith.constant 5 : index
    %55 = vector.load %arg6[%c0_47, %c5_48] : memref<32x42xf32, #tpu.memory_space<vmem>>, vector<32x32xf32>
    tpu.vector_store %arg6[%c0_47, %c5_48], %54 {strides = array<i32>} : memref<32x42xf32, #tpu.memory_space<vmem>>, vector<32x32xf32>,
    %c0_49 = arith.constant 0 : index
    %c0_50 = arith.constant 0 : index
    %56 = vector.load %arg6[%c0_49, %c0_50] : memref<32x42xf32, #tpu.memory_space<vmem>>, vector<32x32xf32>
    %c0_51 = arith.constant 0 : index
    %c0_52 = arith.constant 0 : index
    %57 = vector.load %arg4[%c0_51, %c0_52] : memref<9x32xf32, #tpu.memory_space<vmem>>, vector<1x32xf32>
    %58 = vector.broadcast %57 : vector<1x32xf32> to vector<32x32xf32>
    %59 = arith.mulf %56, %58 : vector<32x32xf32>
    %c0_53 = arith.constant 0 : index
    %c0_54 = arith.constant 0 : index
    %60 = vector.load %arg7[%c0_53, %c0_54] : memref<288x32xf32, #tpu.memory_space<vmem>>, vector<32x32xf32>
    tpu.vector_store %arg7[%c0_53, %c0_54], %59 {strides = array<i32>} : memref<288x32xf32, #tpu.memory_space<vmem>>, vector<32x32xf32>,
    %c0_55 = arith.constant 0 : index
    %c1_56 = arith.constant 1 : index
    %61 = vector.load %arg6[%c0_55, %c1_56] : memref<32x42xf32, #tpu.memory_space<vmem>>, vector<32x32xf32>
    %c1_57 = arith.constant 1 : index
    %c0_58 = arith.constant 0 : index
    %62 = vector.load %arg4[%c1_57, %c0_58] : memref<9x32xf32, #tpu.memory_space<vmem>>, vector<1x32xf32>
    %63 = vector.broadcast %62 : vector<1x32xf32> to vector<32x32xf32>
    %64 = arith.mulf %61, %63 : vector<32x32xf32>
    %c32_59 = arith.constant 32 : index
    %c0_60 = arith.constant 0 : index
    %65 = vector.load %arg7[%c32_59, %c0_60] : memref<288x32xf32, #tpu.memory_space<vmem>>, vector<32x32xf32>
    tpu.vector_store %arg7[%c32_59, %c0_60], %64 {strides = array<i32>} : memref<288x32xf32, #tpu.memory_space<vmem>>, vector<32x32xf32>,
    %c0_61 = arith.constant 0 : index
    %c2_62 = arith.constant 2 : index
    %66 = vector.load %arg6[%c0_61, %c2_62] : memref<32x42xf32, #tpu.memory_space<vmem>>, vector<32x32xf32>
    %c2_63 = arith.constant 2 : index
    %c0_64 = arith.constant 0 : index
    %67 = vector.load %arg4[%c2_63, %c0_64] : memref<9x32xf32, #tpu.memory_space<vmem>>, vector<1x32xf32>
    %68 = vector.broadcast %67 : vector<1x32xf32> to vector<32x32xf32>
    %69 = arith.mulf %66, %68 : vector<32x32xf32>
    %c64_65 = arith.constant 64 : index
    %c0_66 = arith.constant 0 : index
    %70 = vector.load %arg7[%c64_65, %c0_66] : memref<288x32xf32, #tpu.memory_space<vmem>>, vector<32x32xf32>
    tpu.vector_store %arg7[%c64_65, %c0_66], %69 {strides = array<i32>} : memref<288x32xf32, #tpu.memory_space<vmem>>, vector<32x32xf32>,
    %c0_67 = arith.constant 0 : index
    %c4_68 = arith.constant 4 : index
    %71 = vector.load %arg6[%c0_67, %c4_68] : memref<32x42xf32, #tpu.memory_space<vmem>>, vector<32x32xf32>
    %c3_69 = arith.constant 3 : index
    %c0_70 = arith.constant 0 : index
    %72 = vector.load %arg4[%c3_69, %c0_70] : memref<9x32xf32, #tpu.memory_space<vmem>>, vector<1x32xf32>
    %73 = vector.broadcast %72 : vector<1x32xf32> to vector<32x32xf32>
    %74 = arith.mulf %71, %73 : vector<32x32xf32>
    %c96_71 = arith.constant 96 : index
    %c0_72 = arith.constant 0 : index
    %75 = vector.load %arg7[%c96_71, %c0_72] : memref<288x32xf32, #tpu.memory_space<vmem>>, vector<32x32xf32>
    tpu.vector_store %arg7[%c96_71, %c0_72], %74 {strides = array<i32>} : memref<288x32xf32, #tpu.memory_space<vmem>>, vector<32x32xf32>,
    %c0_73 = arith.constant 0 : index
    %c5_74 = arith.constant 5 : index
    %76 = vector.load %arg6[%c0_73, %c5_74] : memref<32x42xf32, #tpu.memory_space<vmem>>, vector<32x32xf32>
    %c4_75 = arith.constant 4 : index
    %c0_76 = arith.constant 0 : index
    %77 = vector.load %arg4[%c4_75, %c0_76] : memref<9x32xf32, #tpu.memory_space<vmem>>, vector<1x32xf32>
    %78 = vector.broadcast %77 : vector<1x32xf32> to vector<32x32xf32>
    %79 = arith.mulf %76, %78 : vector<32x32xf32>
    %c128_77 = arith.constant 128 : index
    %c0_78 = arith.constant 0 : index
    %80 = vector.load %arg7[%c128_77, %c0_78] : memref<288x32xf32, #tpu.memory_space<vmem>>, vector<32x32xf32>
    tpu.vector_store %arg7[%c128_77, %c0_78], %79 {strides = array<i32>} : memref<288x32xf32, #tpu.memory_space<vmem>>, vector<32x32xf32>,
    %c0_79 = arith.constant 0 : index
    %c6_80 = arith.constant 6 : index
    %81 = vector.load %arg6[%c0_79, %c6_80] : memref<32x42xf32, #tpu.memory_space<vmem>>, vector<32x32xf32>
    %c5_81 = arith.constant 5 : index
    %c0_82 = arith.constant 0 : index
    %82 = vector.load %arg4[%c5_81, %c0_82] : memref<9x32xf32, #tpu.memory_space<vmem>>, vector<1x32xf32>
    %83 = vector.broadcast %82 : vector<1x32xf32> to vector<32x32xf32>
    %84 = arith.mulf %81, %83 : vector<32x32xf32>
    %c160_83 = arith.constant 160 : index
    %c0_84 = arith.constant 0 : index
    %85 = vector.load %arg7[%c160_83, %c0_84] : memref<288x32xf32, #tpu.memory_space<vmem>>, vector<32x32xf32>
    tpu.vector_store %arg7[%c160_83, %c0_84], %84 {strides = array<i32>} : memref<288x32xf32, #tpu.memory_space<vmem>>, vector<32x32xf32>,
    %c0_85 = arith.constant 0 : index
    %c8_86 = arith.constant 8 : index
    %86 = vector.load %arg6[%c0_85, %c8_86] : memref<32x42xf32, #tpu.memory_space<vmem>>, vector<32x32xf32>
    %c6_87 = arith.constant 6 : index
    %c0_88 = arith.constant 0 : index
    %87 = vector.load %arg4[%c6_87, %c0_88] : memref<9x32xf32, #tpu.memory_space<vmem>>, vector<1x32xf32>
    %88 = vector.broadcast %87 : vector<1x32xf32> to vector<32x32xf32>
    %89 = arith.mulf %86, %88 : vector<32x32xf32>
    %c192_89 = arith.constant 192 : index
    %c0_90 = arith.constant 0 : index
    %90 = vector.load %arg7[%c192_89, %c0_90] : memref<288x32xf32, #tpu.memory_space<vmem>>, vector<32x32xf32>
    tpu.vector_store %arg7[%c192_89, %c0_90], %89 {strides = array<i32>} : memref<288x32xf32, #tpu.memory_space<vmem>>, vector<32x32xf32>,
    %c0_91 = arith.constant 0 : index
    %c9_92 = arith.constant 9 : index
    %91 = vector.load %arg6[%c0_91, %c9_92] : memref<32x42xf32, #tpu.memory_space<vmem>>, vector<32x32xf32>
    %c7_93 = arith.constant 7 : index
    %c0_94 = arith.constant 0 : index
    %92 = vector.load %arg4[%c7_93, %c0_94] : memref<9x32xf32, #tpu.memory_space<vmem>>, vector<1x32xf32>
    %93 = vector.broadcast %92 : vector<1x32xf32> to vector<32x32xf32>
    %94 = arith.mulf %91, %93 : vector<32x32xf32>
    %c224_95 = arith.constant 224 : index
    %c0_96 = arith.constant 0 : index
    %95 = vector.load %arg7[%c224_95, %c0_96] : memref<288x32xf32, #tpu.memory_space<vmem>>, vector<32x32xf32>
    tpu.vector_store %arg7[%c224_95, %c0_96], %94 {strides = array<i32>} : memref<288x32xf32, #tpu.memory_space<vmem>>, vector<32x32xf32>,
    %c0_97 = arith.constant 0 : index
    %c10_98 = arith.constant 10 : index
    %96 = vector.load %arg6[%c0_97, %c10_98] : memref<32x42xf32, #tpu.memory_space<vmem>>, vector<32x32xf32>
    %c8_99 = arith.constant 8 : index
    %c0_100 = arith.constant 0 : index
    %97 = vector.load %arg4[%c8_99, %c0_100] : memref<9x32xf32, #tpu.memory_space<vmem>>, vector<1x32xf32>
    %98 = vector.broadcast %97 : vector<1x32xf32> to vector<32x32xf32>
    %99 = arith.mulf %96, %98 : vector<32x32xf32>
    %c256_101 = arith.constant 256 : index
    %c0_102 = arith.constant 0 : index
    %100 = vector.load %arg7[%c256_101, %c0_102] : memref<288x32xf32, #tpu.memory_space<vmem>>, vector<32x32xf32>
    tpu.vector_store %arg7[%c256_101, %c0_102], %99 {strides = array<i32>} : memref<288x32xf32, #tpu.memory_space<vmem>>, vector<32x32xf32>,
    %c0_103 = arith.constant 0 : index
    %c0_104 = arith.constant 0 : index
    %101 = vector.load %arg3[%c0_103, %c0_104] : memref<32x288xbf16, #tpu.memory_space<vmem>>, vector<32x288xbf16>
    %102 = arith.extf %101 : vector<32x288xbf16> to vector<32x288xf32>
    %c0_105 = arith.constant 0 : index
    %c0_106 = arith.constant 0 : index
    %103 = vector.load %arg7[%c0_105, %c0_106] : memref<288x32xf32, #tpu.memory_space<vmem>>, vector<288x32xf32>
    %cst_107 = arith.constant dense<0.000000e+00> : vector<32x32xf32>
    %104 = tpu.matmul %102, %103, %cst_107 {dimension_numbers = #tpu.dot_dimension_numbers<[1], [0], [0], [1], [0, 0, 1, 1], [], []>} : vector<32x288xf32>, vector<288x32xf32>, vector<32x32xf32> -> vector<32x32xf32>
    %105 = arith.addf %0, %104 : vector<32x32xf32>
    %c0_108 = arith.constant 0 : index
    %c0_109 = arith.constant 0 : index
    %106 = vector.load %arg5[%c0_108, %c0_109] : memref<32x32xf32, #tpu.memory_space<vmem>>, vector<32x32xf32>
    tpu.vector_store %arg5[%c0_108, %c0_109], %105 {strides = array<i32>} : memref<32x32xf32, #tpu.memory_space<vmem>>, vector<32x32xf32>,
    return
  }
  func.func @transform_0(%arg0: i32) -> (i32, i32) {
    %c0_i32 = arith.constant 0 : i32
    %c0_i32_0 = arith.constant 0 : i32
    %c0_i32_1 = arith.constant 0 : i32
    return %c0_i32, %c0_i32_0 : i32, i32
  }
  func.func @transform_1(%arg0: i32) -> (i32, i32) {
    %c0_i32 = arith.constant 0 : i32
    %c0_i32_0 = arith.constant 0 : i32
    %c0_i32_1 = arith.constant 0 : i32
    return %c0_i32, %c0_i32_0 : i32, i32
  }
  func.func @transform_2(%arg0: i32) -> (i32, i32) {
    %c0_i32 = arith.constant 0 : i32
    %c0_i32_0 = arith.constant 0 : i32
    %c0_i32_1 = arith.constant 0 : i32
    return %c0_i32, %c0_i32_0 : i32, i32
  }
  func.func @transform_3(%arg0: i32) -> (i32, i32) {
    %c0_i32 = arith.constant 0 : i32
    %c0_i32_0 = arith.constant 0 : i32
    %c0_i32_1 = arith.constant 0 : i32
    return %c0_i32, %c0_i32_0 : i32, i32
  }
  func.func @transform_4(%arg0: i32) -> (i32, i32) {
    %c0_i32 = arith.constant 0 : i32
    %c0_i32_0 = arith.constant 0 : i32
    %c0_i32_1 = arith.constant 0 : i32
    return %c0_i32, %c0_i32_0 : i32, i32
  }
}

module attributes {stable_mosaic.version = 11 : i64} {
  func.func @_upsample2x2_kernel(%arg0: i32, %arg1: memref<32x32xf32, #tpu.memory_space<vmem>>, %arg2: memref<64x32xbf16, #tpu.memory_space<vmem>>, %arg3: memref<32x16xbf16, #tpu.memory_space<vmem>>, %arg4: memref<128x32xbf16, #tpu.memory_space<vmem>>) attributes {dimension_semantics = [#tpu.dimension_semantics<arbitrary>], iteration_bounds = array<i64: 1>, scalar_prefetch = 0 : i64, scratch_operands = 0 : i64, tpu.core_type = #tpu.core_type<tc>, window_params = [{pipeline_mode = #tpu.pipeline_mode<synchronous>, transform_indices = @transform_0, window_bounds = array<i64: 32, 32>}, {pipeline_mode = #tpu.pipeline_mode<synchronous>, transform_indices = @transform_1, window_bounds = array<i64: 64, 32>}, {pipeline_mode = #tpu.pipeline_mode<synchronous>, transform_indices = @transform_2, window_bounds = array<i64: 32, 16>}, {pipeline_mode = #tpu.pipeline_mode<synchronous>, transform_indices = @transform_3, window_bounds = array<i64: 128, 32>}]} {
    %c0 = arith.constant 0 : index
    %c0_0 = arith.constant 0 : index
    %0 = vector.load %arg1[%c0, %c0_0] : memref<32x32xf32, #tpu.memory_space<vmem>>, vector<32x32xf32>
    %c0_1 = arith.constant 0 : index
    %c0_2 = arith.constant 0 : index
    %1 = vector.load %arg2[%c0_1, %c0_2] : memref<64x32xbf16, #tpu.memory_space<vmem>>, vector<64x32xbf16>
    %2 = arith.extf %1 : vector<64x32xbf16> to vector<64x32xf32>
    %cst = arith.constant dense<0.000000e+00> : vector<64x32xf32>
    %3 = tpu.matmul %2, %0, %cst {dimension_numbers = #tpu.dot_dimension_numbers<[1], [0], [0], [1], [0, 0, 1, 1], [], []>} : vector<64x32xf32>, vector<32x32xf32>, vector<64x32xf32> -> vector<64x32xf32>
    %cst_3 = arith.constant 0.000000e+00 : f32
    %4 = vector.broadcast %cst_3 : f32 to vector<64x32xf32>
    %5 = arith.maximumf %3, %4 : vector<64x32xf32>
    %c0_4 = arith.constant 0 : index
    %c0_5 = arith.constant 0 : index
    %6 = vector.load %arg3[%c0_4, %c0_5] : memref<32x16xbf16, #tpu.memory_space<vmem>>, vector<32x16xbf16>
    %7 = arith.extf %6 : vector<32x16xbf16> to vector<32x16xf32>
    %8 = vector.extract_strided_slice %5 {offsets = [0, 0], sizes = [16, 32], strides = [1, 1]} : vector<64x32xf32> to vector<16x32xf32>
    %cst_6 = arith.constant dense<0.000000e+00> : vector<32x32xf32>
    %9 = tpu.matmul %7, %8, %cst_6 {dimension_numbers = #tpu.dot_dimension_numbers<[1], [0], [0], [1], [0, 0, 1, 1], [], []>} : vector<32x16xf32>, vector<16x32xf32>, vector<32x32xf32> -> vector<32x32xf32>
    %cst_7 = arith.constant 0.000000e+00 : f32
    %10 = vector.broadcast %cst_7 : f32 to vector<32x32xf32>
    %11 = arith.maximumf %9, %10 : vector<32x32xf32>
    %12 = arith.truncf %11 : vector<32x32xf32> to vector<32x32xbf16>
    %c0_8 = arith.constant 0 : index
    %c0_9 = arith.constant 0 : index
    %13 = vector.load %arg4[%c0_8, %c0_9] : memref<128x32xbf16, #tpu.memory_space<vmem>>, vector<32x32xbf16>
    tpu.vector_store %arg4[%c0_8, %c0_9], %12 {strides = array<i32>} : memref<128x32xbf16, #tpu.memory_space<vmem>>, vector<32x32xbf16>,
    %14 = vector.extract_strided_slice %5 {offsets = [16, 0], sizes = [16, 32], strides = [1, 1]} : vector<64x32xf32> to vector<16x32xf32>
    %cst_10 = arith.constant dense<0.000000e+00> : vector<32x32xf32>
    %15 = tpu.matmul %7, %14, %cst_10 {dimension_numbers = #tpu.dot_dimension_numbers<[1], [0], [0], [1], [0, 0, 1, 1], [], []>} : vector<32x16xf32>, vector<16x32xf32>, vector<32x32xf32> -> vector<32x32xf32>
    %cst_11 = arith.constant 0.000000e+00 : f32
    %16 = vector.broadcast %cst_11 : f32 to vector<32x32xf32>
    %17 = arith.maximumf %15, %16 : vector<32x32xf32>
    %18 = arith.truncf %17 : vector<32x32xf32> to vector<32x32xbf16>
    %c32 = arith.constant 32 : index
    %c0_12 = arith.constant 0 : index
    %19 = vector.load %arg4[%c32, %c0_12] : memref<128x32xbf16, #tpu.memory_space<vmem>>, vector<32x32xbf16>
    tpu.vector_store %arg4[%c32, %c0_12], %18 {strides = array<i32>} : memref<128x32xbf16, #tpu.memory_space<vmem>>, vector<32x32xbf16>,
    %20 = vector.extract_strided_slice %5 {offsets = [32, 0], sizes = [16, 32], strides = [1, 1]} : vector<64x32xf32> to vector<16x32xf32>
    %cst_13 = arith.constant dense<0.000000e+00> : vector<32x32xf32>
    %21 = tpu.matmul %7, %20, %cst_13 {dimension_numbers = #tpu.dot_dimension_numbers<[1], [0], [0], [1], [0, 0, 1, 1], [], []>} : vector<32x16xf32>, vector<16x32xf32>, vector<32x32xf32> -> vector<32x32xf32>
    %cst_14 = arith.constant 0.000000e+00 : f32
    %22 = vector.broadcast %cst_14 : f32 to vector<32x32xf32>
    %23 = arith.maximumf %21, %22 : vector<32x32xf32>
    %24 = arith.truncf %23 : vector<32x32xf32> to vector<32x32xbf16>
    %c64 = arith.constant 64 : index
    %c0_15 = arith.constant 0 : index
    %25 = vector.load %arg4[%c64, %c0_15] : memref<128x32xbf16, #tpu.memory_space<vmem>>, vector<32x32xbf16>
    tpu.vector_store %arg4[%c64, %c0_15], %24 {strides = array<i32>} : memref<128x32xbf16, #tpu.memory_space<vmem>>, vector<32x32xbf16>,
    %26 = vector.extract_strided_slice %5 {offsets = [48, 0], sizes = [16, 32], strides = [1, 1]} : vector<64x32xf32> to vector<16x32xf32>
    %cst_16 = arith.constant dense<0.000000e+00> : vector<32x32xf32>
    %27 = tpu.matmul %7, %26, %cst_16 {dimension_numbers = #tpu.dot_dimension_numbers<[1], [0], [0], [1], [0, 0, 1, 1], [], []>} : vector<32x16xf32>, vector<16x32xf32>, vector<32x32xf32> -> vector<32x32xf32>
    %cst_17 = arith.constant 0.000000e+00 : f32
    %28 = vector.broadcast %cst_17 : f32 to vector<32x32xf32>
    %29 = arith.maximumf %27, %28 : vector<32x32xf32>
    %30 = arith.truncf %29 : vector<32x32xf32> to vector<32x32xbf16>
    %c96 = arith.constant 96 : index
    %c0_18 = arith.constant 0 : index
    %31 = vector.load %arg4[%c96, %c0_18] : memref<128x32xbf16, #tpu.memory_space<vmem>>, vector<32x32xbf16>
    tpu.vector_store %arg4[%c96, %c0_18], %30 {strides = array<i32>} : memref<128x32xbf16, #tpu.memory_space<vmem>>, vector<32x32xbf16>,
    return
  }
  func.func @transform_0(%arg0: i32) -> (i32, i32) {
    %c0_i32 = arith.constant 0 : i32
    %c0_i32_0 = arith.constant 0 : i32
    %c0_i32_1 = arith.constant 0 : i32
    return %c0_i32, %c0_i32_0 : i32, i32
  }
  func.func @transform_1(%arg0: i32) -> (i32, i32) {
    %c0_i32 = arith.constant 0 : i32
    %c0_i32_0 = arith.constant 0 : i32
    %c0_i32_1 = arith.constant 0 : i32
    return %c0_i32, %c0_i32_0 : i32, i32
  }
  func.func @transform_2(%arg0: i32) -> (i32, i32) {
    %c0_i32 = arith.constant 0 : i32
    %c0_i32_0 = arith.constant 0 : i32
    %c0_i32_1 = arith.constant 0 : i32
    return %c0_i32, %c0_i32_0 : i32, i32
  }
  func.func @transform_3(%arg0: i32) -> (i32, i32) {
    %c0_i32 = arith.constant 0 : i32
    %c0_i32_0 = arith.constant 0 : i32
    %c0_i32_1 = arith.constant 0 : i32
    return %c0_i32, %c0_i32_0 : i32, i32
  }
}

module attributes {stable_mosaic.version = 11 : i64} {
  func.func @_conv_s1_kernel(%arg0: i32, %arg1: memref<8x512xbf16, #tpu.memory_space<vmem>>, %arg2: memref<8x392xbf16, #tpu.memory_space<vmem>>, %arg3: memref<8x1xf32, #tpu.memory_space<vmem>>, %arg4: memref<49x512xf32, #tpu.memory_space<vmem>>, %arg5: memref<8x512xf32, #tpu.memory_space<vmem>>, %arg6: memref<8x614xf32, #tpu.memory_space<vmem>>, %arg7: memref<392x512xf32, #tpu.memory_space<vmem>>) attributes {dimension_semantics = [#tpu.dimension_semantics<arbitrary>], iteration_bounds = array<i64: 1>, scalar_prefetch = 0 : i64, scratch_operands = 2 : i64, tpu.core_type = #tpu.core_type<tc>, window_params = [{pipeline_mode = #tpu.pipeline_mode<synchronous>, transform_indices = @transform_0, window_bounds = array<i64: 8, 512>}, {pipeline_mode = #tpu.pipeline_mode<synchronous>, transform_indices = @transform_1, window_bounds = array<i64: 8, 392>}, {pipeline_mode = #tpu.pipeline_mode<synchronous>, transform_indices = @transform_2, window_bounds = array<i64: 8, 1>}, {pipeline_mode = #tpu.pipeline_mode<synchronous>, transform_indices = @transform_3, window_bounds = array<i64: 49, 512>}, {pipeline_mode = #tpu.pipeline_mode<synchronous>, transform_indices = @transform_4, window_bounds = array<i64: 8, 512>}]} {
    %cst = arith.constant 0.000000e+00 : f32
    %0 = vector.broadcast %cst : f32 to vector<8x614xf32>
    %c0 = arith.constant 0 : index
    %c0_0 = arith.constant 0 : index
    %1 = vector.load %arg6[%c0, %c0_0] : memref<8x614xf32, #tpu.memory_space<vmem>>, vector<8x614xf32>
    tpu.vector_store %arg6[%c0, %c0_0], %0 {strides = array<i32>} : memref<8x614xf32, #tpu.memory_space<vmem>>, vector<8x614xf32>,
    %c0_1 = arith.constant 0 : index
    %c0_2 = arith.constant 0 : index
    %2 = vector.load %arg1[%c0_1, %c0_2] : memref<8x512xbf16, #tpu.memory_space<vmem>>, vector<8x512xbf16>
    %3 = arith.extf %2 : vector<8x512xbf16> to vector<8x512xf32>
    %c0_3 = arith.constant 0 : index
    %c51 = arith.constant 51 : index
    %4 = vector.load %arg6[%c0_3, %c51] : memref<8x614xf32, #tpu.memory_space<vmem>>, vector<8x512xf32>
    tpu.vector_store %arg6[%c0_3, %c51], %3 {strides = array<i32>} : memref<8x614xf32, #tpu.memory_space<vmem>>, vector<8x512xf32>,
    %c0_4 = arith.constant 0 : index
    %c0_5 = arith.constant 0 : index
    %5 = vector.load %arg6[%c0_4, %c0_5] : memref<8x614xf32, #tpu.memory_space<vmem>>, vector<8x512xf32>
    %c0_6 = arith.constant 0 : index
    %c0_7 = arith.constant 0 : index
    %6 = vector.load %arg4[%c0_6, %c0_7] : memref<49x512xf32, #tpu.memory_space<vmem>>, vector<1x512xf32>
    %7 = vector.broadcast %6 : vector<1x512xf32> to vector<8x512xf32>
    %8 = arith.mulf %5, %7 : vector<8x512xf32>
    %c0_8 = arith.constant 0 : index
    %c0_9 = arith.constant 0 : index
    %9 = vector.load %arg7[%c0_8, %c0_9] : memref<392x512xf32, #tpu.memory_space<vmem>>, vector<8x512xf32>
    tpu.vector_store %arg7[%c0_8, %c0_9], %8 {strides = array<i32>} : memref<392x512xf32, #tpu.memory_space<vmem>>, vector<8x512xf32>,
    %c0_10 = arith.constant 0 : index
    %c1 = arith.constant 1 : index
    %10 = vector.load %arg6[%c0_10, %c1] : memref<8x614xf32, #tpu.memory_space<vmem>>, vector<8x512xf32>
    %c1_11 = arith.constant 1 : index
    %c0_12 = arith.constant 0 : index
    %11 = vector.load %arg4[%c1_11, %c0_12] : memref<49x512xf32, #tpu.memory_space<vmem>>, vector<1x512xf32>
    %12 = vector.broadcast %11 : vector<1x512xf32> to vector<8x512xf32>
    %13 = arith.mulf %10, %12 : vector<8x512xf32>
    %c8 = arith.constant 8 : index
    %c0_13 = arith.constant 0 : index
    %14 = vector.load %arg7[%c8, %c0_13] : memref<392x512xf32, #tpu.memory_space<vmem>>, vector<8x512xf32>
    tpu.vector_store %arg7[%c8, %c0_13], %13 {strides = array<i32>} : memref<392x512xf32, #tpu.memory_space<vmem>>, vector<8x512xf32>,
    %c0_14 = arith.constant 0 : index
    %c2 = arith.constant 2 : index
    %15 = vector.load %arg6[%c0_14, %c2] : memref<8x614xf32, #tpu.memory_space<vmem>>, vector<8x512xf32>
    %c2_15 = arith.constant 2 : index
    %c0_16 = arith.constant 0 : index
    %16 = vector.load %arg4[%c2_15, %c0_16] : memref<49x512xf32, #tpu.memory_space<vmem>>, vector<1x512xf32>
    %17 = vector.broadcast %16 : vector<1x512xf32> to vector<8x512xf32>
    %18 = arith.mulf %15, %17 : vector<8x512xf32>
    %c16 = arith.constant 16 : index
    %c0_17 = arith.constant 0 : index
    %19 = vector.load %arg7[%c16, %c0_17] : memref<392x512xf32, #tpu.memory_space<vmem>>, vector<8x512xf32>
    tpu.vector_store %arg7[%c16, %c0_17], %18 {strides = array<i32>} : memref<392x512xf32, #tpu.memory_space<vmem>>, vector<8x512xf32>,
    %c0_18 = arith.constant 0 : index
    %c3 = arith.constant 3 : index
    %20 = vector.load %arg6[%c0_18, %c3] : memref<8x614xf32, #tpu.memory_space<vmem>>, vector<8x512xf32>
    %c3_19 = arith.constant 3 : index
    %c0_20 = arith.constant 0 : index
    %21 = vector.load %arg4[%c3_19, %c0_20] : memref<49x512xf32, #tpu.memory_space<vmem>>, vector<1x512xf32>
    %22 = vector.broadcast %21 : vector<1x512xf32> to vector<8x512xf32>
    %23 = arith.mulf %20, %22 : vector<8x512xf32>
    %c24 = arith.constant 24 : index
    %c0_21 = arith.constant 0 : index
    %24 = vector.load %arg7[%c24, %c0_21] : memref<392x512xf32, #tpu.memory_space<vmem>>, vector<8x512xf32>
    tpu.vector_store %arg7[%c24, %c0_21], %23 {strides = array<i32>} : memref<392x512xf32, #tpu.memory_space<vmem>>, vector<8x512xf32>,
    %c0_22 = arith.constant 0 : index
    %c4 = arith.constant 4 : index
    %25 = vector.load %arg6[%c0_22, %c4] : memref<8x614xf32, #tpu.memory_space<vmem>>, vector<8x512xf32>
    %c4_23 = arith.constant 4 : index
    %c0_24 = arith.constant 0 : index
    %26 = vector.load %arg4[%c4_23, %c0_24] : memref<49x512xf32, #tpu.memory_space<vmem>>, vector<1x512xf32>
    %27 = vector.broadcast %26 : vector<1x512xf32> to vector<8x512xf32>
    %28 = arith.mulf %25, %27 : vector<8x512xf32>
    %c32 = arith.constant 32 : index
    %c0_25 = arith.constant 0 : index
    %29 = vector.load %arg7[%c32, %c0_25] : memref<392x512xf32, #tpu.memory_space<vmem>>, vector<8x512xf32>
    tpu.vector_store %arg7[%c32, %c0_25], %28 {strides = array<i32>} : memref<392x512xf32, #tpu.memory_space<vmem>>, vector<8x512xf32>,
    %c0_26 = arith.constant 0 : index
    %c5 = arith.constant 5 : index
    %30 = vector.load %arg6[%c0_26, %c5] : memref<8x614xf32, #tpu.memory_space<vmem>>, vector<8x512xf32>
    %c5_27 = arith.constant 5 : index
    %c0_28 = arith.constant 0 : index
    %31 = vector.load %arg4[%c5_27, %c0_28] : memref<49x512xf32, #tpu.memory_space<vmem>>, vector<1x512xf32>
    %32 = vector.broadcast %31 : vector<1x512xf32> to vector<8x512xf32>
    %33 = arith.mulf %30, %32 : vector<8x512xf32>
    %c40 = arith.constant 40 : index
    %c0_29 = arith.constant 0 : index
    %34 = vector.load %arg7[%c40, %c0_29] : memref<392x512xf32, #tpu.memory_space<vmem>>, vector<8x512xf32>
    tpu.vector_store %arg7[%c40, %c0_29], %33 {strides = array<i32>} : memref<392x512xf32, #tpu.memory_space<vmem>>, vector<8x512xf32>,
    %c0_30 = arith.constant 0 : index
    %c6 = arith.constant 6 : index
    %35 = vector.load %arg6[%c0_30, %c6] : memref<8x614xf32, #tpu.memory_space<vmem>>, vector<8x512xf32>
    %c6_31 = arith.constant 6 : index
    %c0_32 = arith.constant 0 : index
    %36 = vector.load %arg4[%c6_31, %c0_32] : memref<49x512xf32, #tpu.memory_space<vmem>>, vector<1x512xf32>
    %37 = vector.broadcast %36 : vector<1x512xf32> to vector<8x512xf32>
    %38 = arith.mulf %35, %37 : vector<8x512xf32>
    %c48 = arith.constant 48 : index
    %c0_33 = arith.constant 0 : index
    %39 = vector.load %arg7[%c48, %c0_33] : memref<392x512xf32, #tpu.memory_space<vmem>>, vector<8x512xf32>
    tpu.vector_store %arg7[%c48, %c0_33], %38 {strides = array<i32>} : memref<392x512xf32, #tpu.memory_space<vmem>>, vector<8x512xf32>,
    %c0_34 = arith.constant 0 : index
    %c16_35 = arith.constant 16 : index
    %40 = vector.load %arg6[%c0_34, %c16_35] : memref<8x614xf32, #tpu.memory_space<vmem>>, vector<8x512xf32>
    %c7 = arith.constant 7 : index
    %c0_36 = arith.constant 0 : index
    %41 = vector.load %arg4[%c7, %c0_36] : memref<49x512xf32, #tpu.memory_space<vmem>>, vector<1x512xf32>
    %42 = vector.broadcast %41 : vector<1x512xf32> to vector<8x512xf32>
    %43 = arith.mulf %40, %42 : vector<8x512xf32>
    %c56 = arith.constant 56 : index
    %c0_37 = arith.constant 0 : index
    %44 = vector.load %arg7[%c56, %c0_37] : memref<392x512xf32, #tpu.memory_space<vmem>>, vector<8x512xf32>
    tpu.vector_store %arg7[%c56, %c0_37], %43 {strides = array<i32>} : memref<392x512xf32, #tpu.memory_space<vmem>>, vector<8x512xf32>,
    %c0_38 = arith.constant 0 : index
    %c17 = arith.constant 17 : index
    %45 = vector.load %arg6[%c0_38, %c17] : memref<8x614xf32, #tpu.memory_space<vmem>>, vector<8x512xf32>
    %c8_39 = arith.constant 8 : index
    %c0_40 = arith.constant 0 : index
    %46 = vector.load %arg4[%c8_39, %c0_40] : memref<49x512xf32, #tpu.memory_space<vmem>>, vector<1x512xf32>
    %47 = vector.broadcast %46 : vector<1x512xf32> to vector<8x512xf32>
    %48 = arith.mulf %45, %47 : vector<8x512xf32>
    %c64 = arith.constant 64 : index
    %c0_41 = arith.constant 0 : index
    %49 = vector.load %arg7[%c64, %c0_41] : memref<392x512xf32, #tpu.memory_space<vmem>>, vector<8x512xf32>
    tpu.vector_store %arg7[%c64, %c0_41], %48 {strides = array<i32>} : memref<392x512xf32, #tpu.memory_space<vmem>>, vector<8x512xf32>,
    %c0_42 = arith.constant 0 : index
    %c18 = arith.constant 18 : index
    %50 = vector.load %arg6[%c0_42, %c18] : memref<8x614xf32, #tpu.memory_space<vmem>>, vector<8x512xf32>
    %c9 = arith.constant 9 : index
    %c0_43 = arith.constant 0 : index
    %51 = vector.load %arg4[%c9, %c0_43] : memref<49x512xf32, #tpu.memory_space<vmem>>, vector<1x512xf32>
    %52 = vector.broadcast %51 : vector<1x512xf32> to vector<8x512xf32>
    %53 = arith.mulf %50, %52 : vector<8x512xf32>
    %c72 = arith.constant 72 : index
    %c0_44 = arith.constant 0 : index
    %54 = vector.load %arg7[%c72, %c0_44] : memref<392x512xf32, #tpu.memory_space<vmem>>, vector<8x512xf32>
    tpu.vector_store %arg7[%c72, %c0_44], %53 {strides = array<i32>} : memref<392x512xf32, #tpu.memory_space<vmem>>, vector<8x512xf32>,
    %c0_45 = arith.constant 0 : index
    %c19 = arith.constant 19 : index
    %55 = vector.load %arg6[%c0_45, %c19] : memref<8x614xf32, #tpu.memory_space<vmem>>, vector<8x512xf32>
    %c10 = arith.constant 10 : index
    %c0_46 = arith.constant 0 : index
    %56 = vector.load %arg4[%c10, %c0_46] : memref<49x512xf32, #tpu.memory_space<vmem>>, vector<1x512xf32>
    %57 = vector.broadcast %56 : vector<1x512xf32> to vector<8x512xf32>
    %58 = arith.mulf %55, %57 : vector<8x512xf32>
    %c80 = arith.constant 80 : index
    %c0_47 = arith.constant 0 : index
    %59 = vector.load %arg7[%c80, %c0_47] : memref<392x512xf32, #tpu.memory_space<vmem>>, vector<8x512xf32>
    tpu.vector_store %arg7[%c80, %c0_47], %58 {strides = array<i32>} : memref<392x512xf32, #tpu.memory_space<vmem>>, vector<8x512xf32>,
    %c0_48 = arith.constant 0 : index
    %c20 = arith.constant 20 : index
    %60 = vector.load %arg6[%c0_48, %c20] : memref<8x614xf32, #tpu.memory_space<vmem>>, vector<8x512xf32>
    %c11 = arith.constant 11 : index
    %c0_49 = arith.constant 0 : index
    %61 = vector.load %arg4[%c11, %c0_49] : memref<49x512xf32, #tpu.memory_space<vmem>>, vector<1x512xf32>
    %62 = vector.broadcast %61 : vector<1x512xf32> to vector<8x512xf32>
    %63 = arith.mulf %60, %62 : vector<8x512xf32>
    %c88 = arith.constant 88 : index
    %c0_50 = arith.constant 0 : index
    %64 = vector.load %arg7[%c88, %c0_50] : memref<392x512xf32, #tpu.memory_space<vmem>>, vector<8x512xf32>
    tpu.vector_store %arg7[%c88, %c0_50], %63 {strides = array<i32>} : memref<392x512xf32, #tpu.memory_space<vmem>>, vector<8x512xf32>,
    %c0_51 = arith.constant 0 : index
    %c21 = arith.constant 21 : index
    %65 = vector.load %arg6[%c0_51, %c21] : memref<8x614xf32, #tpu.memory_space<vmem>>, vector<8x512xf32>
    %c12 = arith.constant 12 : index
    %c0_52 = arith.constant 0 : index
    %66 = vector.load %arg4[%c12, %c0_52] : memref<49x512xf32, #tpu.memory_space<vmem>>, vector<1x512xf32>
    %67 = vector.broadcast %66 : vector<1x512xf32> to vector<8x512xf32>
    %68 = arith.mulf %65, %67 : vector<8x512xf32>
    %c96 = arith.constant 96 : index
    %c0_53 = arith.constant 0 : index
    %69 = vector.load %arg7[%c96, %c0_53] : memref<392x512xf32, #tpu.memory_space<vmem>>, vector<8x512xf32>
    tpu.vector_store %arg7[%c96, %c0_53], %68 {strides = array<i32>} : memref<392x512xf32, #tpu.memory_space<vmem>>, vector<8x512xf32>,
    %c0_54 = arith.constant 0 : index
    %c22 = arith.constant 22 : index
    %70 = vector.load %arg6[%c0_54, %c22] : memref<8x614xf32, #tpu.memory_space<vmem>>, vector<8x512xf32>
    %c13 = arith.constant 13 : index
    %c0_55 = arith.constant 0 : index
    %71 = vector.load %arg4[%c13, %c0_55] : memref<49x512xf32, #tpu.memory_space<vmem>>, vector<1x512xf32>
    %72 = vector.broadcast %71 : vector<1x512xf32> to vector<8x512xf32>
    %73 = arith.mulf %70, %72 : vector<8x512xf32>
    %c104 = arith.constant 104 : index
    %c0_56 = arith.constant 0 : index
    %74 = vector.load %arg7[%c104, %c0_56] : memref<392x512xf32, #tpu.memory_space<vmem>>, vector<8x512xf32>
    tpu.vector_store %arg7[%c104, %c0_56], %73 {strides = array<i32>} : memref<392x512xf32, #tpu.memory_space<vmem>>, vector<8x512xf32>,
    %c0_57 = arith.constant 0 : index
    %c32_58 = arith.constant 32 : index
    %75 = vector.load %arg6[%c0_57, %c32_58] : memref<8x614xf32, #tpu.memory_space<vmem>>, vector<8x512xf32>
    %c14 = arith.constant 14 : index
    %c0_59 = arith.constant 0 : index
    %76 = vector.load %arg4[%c14, %c0_59] : memref<49x512xf32, #tpu.memory_space<vmem>>, vector<1x512xf32>
    %77 = vector.broadcast %76 : vector<1x512xf32> to vector<8x512xf32>
    %78 = arith.mulf %75, %77 : vector<8x512xf32>
    %c112 = arith.constant 112 : index
    %c0_60 = arith.constant 0 : index
    %79 = vector.load %arg7[%c112, %c0_60] : memref<392x512xf32, #tpu.memory_space<vmem>>, vector<8x512xf32>
    tpu.vector_store %arg7[%c112, %c0_60], %78 {strides = array<i32>} : memref<392x512xf32, #tpu.memory_space<vmem>>, vector<8x512xf32>,
    %c0_61 = arith.constant 0 : index
    %c33 = arith.constant 33 : index
    %80 = vector.load %arg6[%c0_61, %c33] : memref<8x614xf32, #tpu.memory_space<vmem>>, vector<8x512xf32>
    %c15 = arith.constant 15 : index
    %c0_62 = arith.constant 0 : index
    %81 = vector.load %arg4[%c15, %c0_62] : memref<49x512xf32, #tpu.memory_space<vmem>>, vector<1x512xf32>
    %82 = vector.broadcast %81 : vector<1x512xf32> to vector<8x512xf32>
    %83 = arith.mulf %80, %82 : vector<8x512xf32>
    %c120 = arith.constant 120 : index
    %c0_63 = arith.constant 0 : index
    %84 = vector.load %arg7[%c120, %c0_63] : memref<392x512xf32, #tpu.memory_space<vmem>>, vector<8x512xf32>
    tpu.vector_store %arg7[%c120, %c0_63], %83 {strides = array<i32>} : memref<392x512xf32, #tpu.memory_space<vmem>>, vector<8x512xf32>,
    %c0_64 = arith.constant 0 : index
    %c34 = arith.constant 34 : index
    %85 = vector.load %arg6[%c0_64, %c34] : memref<8x614xf32, #tpu.memory_space<vmem>>, vector<8x512xf32>
    %c16_65 = arith.constant 16 : index
    %c0_66 = arith.constant 0 : index
    %86 = vector.load %arg4[%c16_65, %c0_66] : memref<49x512xf32, #tpu.memory_space<vmem>>, vector<1x512xf32>
    %87 = vector.broadcast %86 : vector<1x512xf32> to vector<8x512xf32>
    %88 = arith.mulf %85, %87 : vector<8x512xf32>
    %c128 = arith.constant 128 : index
    %c0_67 = arith.constant 0 : index
    %89 = vector.load %arg7[%c128, %c0_67] : memref<392x512xf32, #tpu.memory_space<vmem>>, vector<8x512xf32>
    tpu.vector_store %arg7[%c128, %c0_67], %88 {strides = array<i32>} : memref<392x512xf32, #tpu.memory_space<vmem>>, vector<8x512xf32>,
    %c0_68 = arith.constant 0 : index
    %c35 = arith.constant 35 : index
    %90 = vector.load %arg6[%c0_68, %c35] : memref<8x614xf32, #tpu.memory_space<vmem>>, vector<8x512xf32>
    %c17_69 = arith.constant 17 : index
    %c0_70 = arith.constant 0 : index
    %91 = vector.load %arg4[%c17_69, %c0_70] : memref<49x512xf32, #tpu.memory_space<vmem>>, vector<1x512xf32>
    %92 = vector.broadcast %91 : vector<1x512xf32> to vector<8x512xf32>
    %93 = arith.mulf %90, %92 : vector<8x512xf32>
    %c136 = arith.constant 136 : index
    %c0_71 = arith.constant 0 : index
    %94 = vector.load %arg7[%c136, %c0_71] : memref<392x512xf32, #tpu.memory_space<vmem>>, vector<8x512xf32>
    tpu.vector_store %arg7[%c136, %c0_71], %93 {strides = array<i32>} : memref<392x512xf32, #tpu.memory_space<vmem>>, vector<8x512xf32>,
    %c0_72 = arith.constant 0 : index
    %c36 = arith.constant 36 : index
    %95 = vector.load %arg6[%c0_72, %c36] : memref<8x614xf32, #tpu.memory_space<vmem>>, vector<8x512xf32>
    %c18_73 = arith.constant 18 : index
    %c0_74 = arith.constant 0 : index
    %96 = vector.load %arg4[%c18_73, %c0_74] : memref<49x512xf32, #tpu.memory_space<vmem>>, vector<1x512xf32>
    %97 = vector.broadcast %96 : vector<1x512xf32> to vector<8x512xf32>
    %98 = arith.mulf %95, %97 : vector<8x512xf32>
    %c144 = arith.constant 144 : index
    %c0_75 = arith.constant 0 : index
    %99 = vector.load %arg7[%c144, %c0_75] : memref<392x512xf32, #tpu.memory_space<vmem>>, vector<8x512xf32>
    tpu.vector_store %arg7[%c144, %c0_75], %98 {strides = array<i32>} : memref<392x512xf32, #tpu.memory_space<vmem>>, vector<8x512xf32>,
    %c0_76 = arith.constant 0 : index
    %c37 = arith.constant 37 : index
    %100 = vector.load %arg6[%c0_76, %c37] : memref<8x614xf32, #tpu.memory_space<vmem>>, vector<8x512xf32>
    %c19_77 = arith.constant 19 : index
    %c0_78 = arith.constant 0 : index
    %101 = vector.load %arg4[%c19_77, %c0_78] : memref<49x512xf32, #tpu.memory_space<vmem>>, vector<1x512xf32>
    %102 = vector.broadcast %101 : vector<1x512xf32> to vector<8x512xf32>
    %103 = arith.mulf %100, %102 : vector<8x512xf32>
    %c152 = arith.constant 152 : index
    %c0_79 = arith.constant 0 : index
    %104 = vector.load %arg7[%c152, %c0_79] : memref<392x512xf32, #tpu.memory_space<vmem>>, vector<8x512xf32>
    tpu.vector_store %arg7[%c152, %c0_79], %103 {strides = array<i32>} : memref<392x512xf32, #tpu.memory_space<vmem>>, vector<8x512xf32>,
    %c0_80 = arith.constant 0 : index
    %c38 = arith.constant 38 : index
    %105 = vector.load %arg6[%c0_80, %c38] : memref<8x614xf32, #tpu.memory_space<vmem>>, vector<8x512xf32>
    %c20_81 = arith.constant 20 : index
    %c0_82 = arith.constant 0 : index
    %106 = vector.load %arg4[%c20_81, %c0_82] : memref<49x512xf32, #tpu.memory_space<vmem>>, vector<1x512xf32>
    %107 = vector.broadcast %106 : vector<1x512xf32> to vector<8x512xf32>
    %108 = arith.mulf %105, %107 : vector<8x512xf32>
    %c160 = arith.constant 160 : index
    %c0_83 = arith.constant 0 : index
    %109 = vector.load %arg7[%c160, %c0_83] : memref<392x512xf32, #tpu.memory_space<vmem>>, vector<8x512xf32>
    tpu.vector_store %arg7[%c160, %c0_83], %108 {strides = array<i32>} : memref<392x512xf32, #tpu.memory_space<vmem>>, vector<8x512xf32>,
    %c0_84 = arith.constant 0 : index
    %c48_85 = arith.constant 48 : index
    %110 = vector.load %arg6[%c0_84, %c48_85] : memref<8x614xf32, #tpu.memory_space<vmem>>, vector<8x512xf32>
    %c21_86 = arith.constant 21 : index
    %c0_87 = arith.constant 0 : index
    %111 = vector.load %arg4[%c21_86, %c0_87] : memref<49x512xf32, #tpu.memory_space<vmem>>, vector<1x512xf32>
    %112 = vector.broadcast %111 : vector<1x512xf32> to vector<8x512xf32>
    %113 = arith.mulf %110, %112 : vector<8x512xf32>
    %c168 = arith.constant 168 : index
    %c0_88 = arith.constant 0 : index
    %114 = vector.load %arg7[%c168, %c0_88] : memref<392x512xf32, #tpu.memory_space<vmem>>, vector<8x512xf32>
    tpu.vector_store %arg7[%c168, %c0_88], %113 {strides = array<i32>} : memref<392x512xf32, #tpu.memory_space<vmem>>, vector<8x512xf32>,
    %c0_89 = arith.constant 0 : index
    %c49 = arith.constant 49 : index
    %115 = vector.load %arg6[%c0_89, %c49] : memref<8x614xf32, #tpu.memory_space<vmem>>, vector<8x512xf32>
    %c22_90 = arith.constant 22 : index
    %c0_91 = arith.constant 0 : index
    %116 = vector.load %arg4[%c22_90, %c0_91] : memref<49x512xf32, #tpu.memory_space<vmem>>, vector<1x512xf32>
    %117 = vector.broadcast %116 : vector<1x512xf32> to vector<8x512xf32>
    %118 = arith.mulf %115, %117 : vector<8x512xf32>
    %c176 = arith.constant 176 : index
    %c0_92 = arith.constant 0 : index
    %119 = vector.load %arg7[%c176, %c0_92] : memref<392x512xf32, #tpu.memory_space<vmem>>, vector<8x512xf32>
    tpu.vector_store %arg7[%c176, %c0_92], %118 {strides = array<i32>} : memref<392x512xf32, #tpu.memory_space<vmem>>, vector<8x512xf32>,
    %c0_93 = arith.constant 0 : index
    %c50 = arith.constant 50 : index
    %120 = vector.load %arg6[%c0_93, %c50] : memref<8x614xf32, #tpu.memory_space<vmem>>, vector<8x512xf32>
    %c23 = arith.constant 23 : index
    %c0_94 = arith.constant 0 : index
    %121 = vector.load %arg4[%c23, %c0_94] : memref<49x512xf32, #tpu.memory_space<vmem>>, vector<1x512xf32>
    %122 = vector.broadcast %121 : vector<1x512xf32> to vector<8x512xf32>
    %123 = arith.mulf %120, %122 : vector<8x512xf32>
    %c184 = arith.constant 184 : index
    %c0_95 = arith.constant 0 : index
    %124 = vector.load %arg7[%c184, %c0_95] : memref<392x512xf32, #tpu.memory_space<vmem>>, vector<8x512xf32>
    tpu.vector_store %arg7[%c184, %c0_95], %123 {strides = array<i32>} : memref<392x512xf32, #tpu.memory_space<vmem>>, vector<8x512xf32>,
    %c0_96 = arith.constant 0 : index
    %c51_97 = arith.constant 51 : index
    %125 = vector.load %arg6[%c0_96, %c51_97] : memref<8x614xf32, #tpu.memory_space<vmem>>, vector<8x512xf32>
    %c24_98 = arith.constant 24 : index
    %c0_99 = arith.constant 0 : index
    %126 = vector.load %arg4[%c24_98, %c0_99] : memref<49x512xf32, #tpu.memory_space<vmem>>, vector<1x512xf32>
    %127 = vector.broadcast %126 : vector<1x512xf32> to vector<8x512xf32>
    %128 = arith.mulf %125, %127 : vector<8x512xf32>
    %c192 = arith.constant 192 : index
    %c0_100 = arith.constant 0 : index
    %129 = vector.load %arg7[%c192, %c0_100] : memref<392x512xf32, #tpu.memory_space<vmem>>, vector<8x512xf32>
    tpu.vector_store %arg7[%c192, %c0_100], %128 {strides = array<i32>} : memref<392x512xf32, #tpu.memory_space<vmem>>, vector<8x512xf32>,
    %c0_101 = arith.constant 0 : index
    %c52 = arith.constant 52 : index
    %130 = vector.load %arg6[%c0_101, %c52] : memref<8x614xf32, #tpu.memory_space<vmem>>, vector<8x512xf32>
    %c25 = arith.constant 25 : index
    %c0_102 = arith.constant 0 : index
    %131 = vector.load %arg4[%c25, %c0_102] : memref<49x512xf32, #tpu.memory_space<vmem>>, vector<1x512xf32>
    %132 = vector.broadcast %131 : vector<1x512xf32> to vector<8x512xf32>
    %133 = arith.mulf %130, %132 : vector<8x512xf32>
    %c200 = arith.constant 200 : index
    %c0_103 = arith.constant 0 : index
    %134 = vector.load %arg7[%c200, %c0_103] : memref<392x512xf32, #tpu.memory_space<vmem>>, vector<8x512xf32>
    tpu.vector_store %arg7[%c200, %c0_103], %133 {strides = array<i32>} : memref<392x512xf32, #tpu.memory_space<vmem>>, vector<8x512xf32>,
    %c0_104 = arith.constant 0 : index
    %c53 = arith.constant 53 : index
    %135 = vector.load %arg6[%c0_104, %c53] : memref<8x614xf32, #tpu.memory_space<vmem>>, vector<8x512xf32>
    %c26 = arith.constant 26 : index
    %c0_105 = arith.constant 0 : index
    %136 = vector.load %arg4[%c26, %c0_105] : memref<49x512xf32, #tpu.memory_space<vmem>>, vector<1x512xf32>
    %137 = vector.broadcast %136 : vector<1x512xf32> to vector<8x512xf32>
    %138 = arith.mulf %135, %137 : vector<8x512xf32>
    %c208 = arith.constant 208 : index
    %c0_106 = arith.constant 0 : index
    %139 = vector.load %arg7[%c208, %c0_106] : memref<392x512xf32, #tpu.memory_space<vmem>>, vector<8x512xf32>
    tpu.vector_store %arg7[%c208, %c0_106], %138 {strides = array<i32>} : memref<392x512xf32, #tpu.memory_space<vmem>>, vector<8x512xf32>,
    %c0_107 = arith.constant 0 : index
    %c54 = arith.constant 54 : index
    %140 = vector.load %arg6[%c0_107, %c54] : memref<8x614xf32, #tpu.memory_space<vmem>>, vector<8x512xf32>
    %c27 = arith.constant 27 : index
    %c0_108 = arith.constant 0 : index
    %141 = vector.load %arg4[%c27, %c0_108] : memref<49x512xf32, #tpu.memory_space<vmem>>, vector<1x512xf32>
    %142 = vector.broadcast %141 : vector<1x512xf32> to vector<8x512xf32>
    %143 = arith.mulf %140, %142 : vector<8x512xf32>
    %c216 = arith.constant 216 : index
    %c0_109 = arith.constant 0 : index
    %144 = vector.load %arg7[%c216, %c0_109] : memref<392x512xf32, #tpu.memory_space<vmem>>, vector<8x512xf32>
    tpu.vector_store %arg7[%c216, %c0_109], %143 {strides = array<i32>} : memref<392x512xf32, #tpu.memory_space<vmem>>, vector<8x512xf32>,
    %c0_110 = arith.constant 0 : index
    %c64_111 = arith.constant 64 : index
    %145 = vector.load %arg6[%c0_110, %c64_111] : memref<8x614xf32, #tpu.memory_space<vmem>>, vector<8x512xf32>
    %c28 = arith.constant 28 : index
    %c0_112 = arith.constant 0 : index
    %146 = vector.load %arg4[%c28, %c0_112] : memref<49x512xf32, #tpu.memory_space<vmem>>, vector<1x512xf32>
    %147 = vector.broadcast %146 : vector<1x512xf32> to vector<8x512xf32>
    %148 = arith.mulf %145, %147 : vector<8x512xf32>
    %c224 = arith.constant 224 : index
    %c0_113 = arith.constant 0 : index
    %149 = vector.load %arg7[%c224, %c0_113] : memref<392x512xf32, #tpu.memory_space<vmem>>, vector<8x512xf32>
    tpu.vector_store %arg7[%c224, %c0_113], %148 {strides = array<i32>} : memref<392x512xf32, #tpu.memory_space<vmem>>, vector<8x512xf32>,
    %c0_114 = arith.constant 0 : index
    %c65 = arith.constant 65 : index
    %150 = vector.load %arg6[%c0_114, %c65] : memref<8x614xf32, #tpu.memory_space<vmem>>, vector<8x512xf32>
    %c29 = arith.constant 29 : index
    %c0_115 = arith.constant 0 : index
    %151 = vector.load %arg4[%c29, %c0_115] : memref<49x512xf32, #tpu.memory_space<vmem>>, vector<1x512xf32>
    %152 = vector.broadcast %151 : vector<1x512xf32> to vector<8x512xf32>
    %153 = arith.mulf %150, %152 : vector<8x512xf32>
    %c232 = arith.constant 232 : index
    %c0_116 = arith.constant 0 : index
    %154 = vector.load %arg7[%c232, %c0_116] : memref<392x512xf32, #tpu.memory_space<vmem>>, vector<8x512xf32>
    tpu.vector_store %arg7[%c232, %c0_116], %153 {strides = array<i32>} : memref<392x512xf32, #tpu.memory_space<vmem>>, vector<8x512xf32>,
    %c0_117 = arith.constant 0 : index
    %c66 = arith.constant 66 : index
    %155 = vector.load %arg6[%c0_117, %c66] : memref<8x614xf32, #tpu.memory_space<vmem>>, vector<8x512xf32>
    %c30 = arith.constant 30 : index
    %c0_118 = arith.constant 0 : index
    %156 = vector.load %arg4[%c30, %c0_118] : memref<49x512xf32, #tpu.memory_space<vmem>>, vector<1x512xf32>
    %157 = vector.broadcast %156 : vector<1x512xf32> to vector<8x512xf32>
    %158 = arith.mulf %155, %157 : vector<8x512xf32>
    %c240 = arith.constant 240 : index
    %c0_119 = arith.constant 0 : index
    %159 = vector.load %arg7[%c240, %c0_119] : memref<392x512xf32, #tpu.memory_space<vmem>>, vector<8x512xf32>
    tpu.vector_store %arg7[%c240, %c0_119], %158 {strides = array<i32>} : memref<392x512xf32, #tpu.memory_space<vmem>>, vector<8x512xf32>,
    %c0_120 = arith.constant 0 : index
    %c67 = arith.constant 67 : index
    %160 = vector.load %arg6[%c0_120, %c67] : memref<8x614xf32, #tpu.memory_space<vmem>>, vector<8x512xf32>
    %c31 = arith.constant 31 : index
    %c0_121 = arith.constant 0 : index
    %161 = vector.load %arg4[%c31, %c0_121] : memref<49x512xf32, #tpu.memory_space<vmem>>, vector<1x512xf32>
    %162 = vector.broadcast %161 : vector<1x512xf32> to vector<8x512xf32>
    %163 = arith.mulf %160, %162 : vector<8x512xf32>
    %c248 = arith.constant 248 : index
    %c0_122 = arith.constant 0 : index
    %164 = vector.load %arg7[%c248, %c0_122] : memref<392x512xf32, #tpu.memory_space<vmem>>, vector<8x512xf32>
    tpu.vector_store %arg7[%c248, %c0_122], %163 {strides = array<i32>} : memref<392x512xf32, #tpu.memory_space<vmem>>, vector<8x512xf32>,
    %c0_123 = arith.constant 0 : index
    %c68 = arith.constant 68 : index
    %165 = vector.load %arg6[%c0_123, %c68] : memref<8x614xf32, #tpu.memory_space<vmem>>, vector<8x512xf32>
    %c32_124 = arith.constant 32 : index
    %c0_125 = arith.constant 0 : index
    %166 = vector.load %arg4[%c32_124, %c0_125] : memref<49x512xf32, #tpu.memory_space<vmem>>, vector<1x512xf32>
    %167 = vector.broadcast %166 : vector<1x512xf32> to vector<8x512xf32>
    %168 = arith.mulf %165, %167 : vector<8x512xf32>
    %c256 = arith.constant 256 : index
    %c0_126 = arith.constant 0 : index
    %169 = vector.load %arg7[%c256, %c0_126] : memref<392x512xf32, #tpu.memory_space<vmem>>, vector<8x512xf32>
    tpu.vector_store %arg7[%c256, %c0_126], %168 {strides = array<i32>} : memref<392x512xf32, #tpu.memory_space<vmem>>, vector<8x512xf32>,
    %c0_127 = arith.constant 0 : index
    %c69 = arith.constant 69 : index
    %170 = vector.load %arg6[%c0_127, %c69] : memref<8x614xf32, #tpu.memory_space<vmem>>, vector<8x512xf32>
    %c33_128 = arith.constant 33 : index
    %c0_129 = arith.constant 0 : index
    %171 = vector.load %arg4[%c33_128, %c0_129] : memref<49x512xf32, #tpu.memory_space<vmem>>, vector<1x512xf32>
    %172 = vector.broadcast %171 : vector<1x512xf32> to vector<8x512xf32>
    %173 = arith.mulf %170, %172 : vector<8x512xf32>
    %c264 = arith.constant 264 : index
    %c0_130 = arith.constant 0 : index
    %174 = vector.load %arg7[%c264, %c0_130] : memref<392x512xf32, #tpu.memory_space<vmem>>, vector<8x512xf32>
    tpu.vector_store %arg7[%c264, %c0_130], %173 {strides = array<i32>} : memref<392x512xf32, #tpu.memory_space<vmem>>, vector<8x512xf32>,
    %c0_131 = arith.constant 0 : index
    %c70 = arith.constant 70 : index
    %175 = vector.load %arg6[%c0_131, %c70] : memref<8x614xf32, #tpu.memory_space<vmem>>, vector<8x512xf32>
    %c34_132 = arith.constant 34 : index
    %c0_133 = arith.constant 0 : index
    %176 = vector.load %arg4[%c34_132, %c0_133] : memref<49x512xf32, #tpu.memory_space<vmem>>, vector<1x512xf32>
    %177 = vector.broadcast %176 : vector<1x512xf32> to vector<8x512xf32>
    %178 = arith.mulf %175, %177 : vector<8x512xf32>
    %c272 = arith.constant 272 : index
    %c0_134 = arith.constant 0 : index
    %179 = vector.load %arg7[%c272, %c0_134] : memref<392x512xf32, #tpu.memory_space<vmem>>, vector<8x512xf32>
    tpu.vector_store %arg7[%c272, %c0_134], %178 {strides = array<i32>} : memref<392x512xf32, #tpu.memory_space<vmem>>, vector<8x512xf32>,
    %c0_135 = arith.constant 0 : index
    %c80_136 = arith.constant 80 : index
    %180 = vector.load %arg6[%c0_135, %c80_136] : memref<8x614xf32, #tpu.memory_space<vmem>>, vector<8x512xf32>
    %c35_137 = arith.constant 35 : index
    %c0_138 = arith.constant 0 : index
    %181 = vector.load %arg4[%c35_137, %c0_138] : memref<49x512xf32, #tpu.memory_space<vmem>>, vector<1x512xf32>
    %182 = vector.broadcast %181 : vector<1x512xf32> to vector<8x512xf32>
    %183 = arith.mulf %180, %182 : vector<8x512xf32>
    %c280 = arith.constant 280 : index
    %c0_139 = arith.constant 0 : index
    %184 = vector.load %arg7[%c280, %c0_139] : memref<392x512xf32, #tpu.memory_space<vmem>>, vector<8x512xf32>
    tpu.vector_store %arg7[%c280, %c0_139], %183 {strides = array<i32>} : memref<392x512xf32, #tpu.memory_space<vmem>>, vector<8x512xf32>,
    %c0_140 = arith.constant 0 : index
    %c81 = arith.constant 81 : index
    %185 = vector.load %arg6[%c0_140, %c81] : memref<8x614xf32, #tpu.memory_space<vmem>>, vector<8x512xf32>
    %c36_141 = arith.constant 36 : index
    %c0_142 = arith.constant 0 : index
    %186 = vector.load %arg4[%c36_141, %c0_142] : memref<49x512xf32, #tpu.memory_space<vmem>>, vector<1x512xf32>
    %187 = vector.broadcast %186 : vector<1x512xf32> to vector<8x512xf32>
    %188 = arith.mulf %185, %187 : vector<8x512xf32>
    %c288 = arith.constant 288 : index
    %c0_143 = arith.constant 0 : index
    %189 = vector.load %arg7[%c288, %c0_143] : memref<392x512xf32, #tpu.memory_space<vmem>>, vector<8x512xf32>
    tpu.vector_store %arg7[%c288, %c0_143], %188 {strides = array<i32>} : memref<392x512xf32, #tpu.memory_space<vmem>>, vector<8x512xf32>,
    %c0_144 = arith.constant 0 : index
    %c82 = arith.constant 82 : index
    %190 = vector.load %arg6[%c0_144, %c82] : memref<8x614xf32, #tpu.memory_space<vmem>>, vector<8x512xf32>
    %c37_145 = arith.constant 37 : index
    %c0_146 = arith.constant 0 : index
    %191 = vector.load %arg4[%c37_145, %c0_146] : memref<49x512xf32, #tpu.memory_space<vmem>>, vector<1x512xf32>
    %192 = vector.broadcast %191 : vector<1x512xf32> to vector<8x512xf32>
    %193 = arith.mulf %190, %192 : vector<8x512xf32>
    %c296 = arith.constant 296 : index
    %c0_147 = arith.constant 0 : index
    %194 = vector.load %arg7[%c296, %c0_147] : memref<392x512xf32, #tpu.memory_space<vmem>>, vector<8x512xf32>
    tpu.vector_store %arg7[%c296, %c0_147], %193 {strides = array<i32>} : memref<392x512xf32, #tpu.memory_space<vmem>>, vector<8x512xf32>,
    %c0_148 = arith.constant 0 : index
    %c83 = arith.constant 83 : index
    %195 = vector.load %arg6[%c0_148, %c83] : memref<8x614xf32, #tpu.memory_space<vmem>>, vector<8x512xf32>
    %c38_149 = arith.constant 38 : index
    %c0_150 = arith.constant 0 : index
    %196 = vector.load %arg4[%c38_149, %c0_150] : memref<49x512xf32, #tpu.memory_space<vmem>>, vector<1x512xf32>
    %197 = vector.broadcast %196 : vector<1x512xf32> to vector<8x512xf32>
    %198 = arith.mulf %195, %197 : vector<8x512xf32>
    %c304 = arith.constant 304 : index
    %c0_151 = arith.constant 0 : index
    %199 = vector.load %arg7[%c304, %c0_151] : memref<392x512xf32, #tpu.memory_space<vmem>>, vector<8x512xf32>
    tpu.vector_store %arg7[%c304, %c0_151], %198 {strides = array<i32>} : memref<392x512xf32, #tpu.memory_space<vmem>>, vector<8x512xf32>,
    %c0_152 = arith.constant 0 : index
    %c84 = arith.constant 84 : index
    %200 = vector.load %arg6[%c0_152, %c84] : memref<8x614xf32, #tpu.memory_space<vmem>>, vector<8x512xf32>
    %c39 = arith.constant 39 : index
    %c0_153 = arith.constant 0 : index
    %201 = vector.load %arg4[%c39, %c0_153] : memref<49x512xf32, #tpu.memory_space<vmem>>, vector<1x512xf32>
    %202 = vector.broadcast %201 : vector<1x512xf32> to vector<8x512xf32>
    %203 = arith.mulf %200, %202 : vector<8x512xf32>
    %c312 = arith.constant 312 : index
    %c0_154 = arith.constant 0 : index
    %204 = vector.load %arg7[%c312, %c0_154] : memref<392x512xf32, #tpu.memory_space<vmem>>, vector<8x512xf32>
    tpu.vector_store %arg7[%c312, %c0_154], %203 {strides = array<i32>} : memref<392x512xf32, #tpu.memory_space<vmem>>, vector<8x512xf32>,
    %c0_155 = arith.constant 0 : index
    %c85 = arith.constant 85 : index
    %205 = vector.load %arg6[%c0_155, %c85] : memref<8x614xf32, #tpu.memory_space<vmem>>, vector<8x512xf32>
    %c40_156 = arith.constant 40 : index
    %c0_157 = arith.constant 0 : index
    %206 = vector.load %arg4[%c40_156, %c0_157] : memref<49x512xf32, #tpu.memory_space<vmem>>, vector<1x512xf32>
    %207 = vector.broadcast %206 : vector<1x512xf32> to vector<8x512xf32>
    %208 = arith.mulf %205, %207 : vector<8x512xf32>
    %c320 = arith.constant 320 : index
    %c0_158 = arith.constant 0 : index
    %209 = vector.load %arg7[%c320, %c0_158] : memref<392x512xf32, #tpu.memory_space<vmem>>, vector<8x512xf32>
    tpu.vector_store %arg7[%c320, %c0_158], %208 {strides = array<i32>} : memref<392x512xf32, #tpu.memory_space<vmem>>, vector<8x512xf32>,
    %c0_159 = arith.constant 0 : index
    %c86 = arith.constant 86 : index
    %210 = vector.load %arg6[%c0_159, %c86] : memref<8x614xf32, #tpu.memory_space<vmem>>, vector<8x512xf32>
    %c41 = arith.constant 41 : index
    %c0_160 = arith.constant 0 : index
    %211 = vector.load %arg4[%c41, %c0_160] : memref<49x512xf32, #tpu.memory_space<vmem>>, vector<1x512xf32>
    %212 = vector.broadcast %211 : vector<1x512xf32> to vector<8x512xf32>
    %213 = arith.mulf %210, %212 : vector<8x512xf32>
    %c328 = arith.constant 328 : index
    %c0_161 = arith.constant 0 : index
    %214 = vector.load %arg7[%c328, %c0_161] : memref<392x512xf32, #tpu.memory_space<vmem>>, vector<8x512xf32>
    tpu.vector_store %arg7[%c328, %c0_161], %213 {strides = array<i32>} : memref<392x512xf32, #tpu.memory_space<vmem>>, vector<8x512xf32>,
    %c0_162 = arith.constant 0 : index
    %c96_163 = arith.constant 96 : index
    %215 = vector.load %arg6[%c0_162, %c96_163] : memref<8x614xf32, #tpu.memory_space<vmem>>, vector<8x512xf32>
    %c42 = arith.constant 42 : index
    %c0_164 = arith.constant 0 : index
    %216 = vector.load %arg4[%c42, %c0_164] : memref<49x512xf32, #tpu.memory_space<vmem>>, vector<1x512xf32>
    %217 = vector.broadcast %216 : vector<1x512xf32> to vector<8x512xf32>
    %218 = arith.mulf %215, %217 : vector<8x512xf32>
    %c336 = arith.constant 336 : index
    %c0_165 = arith.constant 0 : index
    %219 = vector.load %arg7[%c336, %c0_165] : memref<392x512xf32, #tpu.memory_space<vmem>>, vector<8x512xf32>
    tpu.vector_store %arg7[%c336, %c0_165], %218 {strides = array<i32>} : memref<392x512xf32, #tpu.memory_space<vmem>>, vector<8x512xf32>,
    %c0_166 = arith.constant 0 : index
    %c97 = arith.constant 97 : index
    %220 = vector.load %arg6[%c0_166, %c97] : memref<8x614xf32, #tpu.memory_space<vmem>>, vector<8x512xf32>
    %c43 = arith.constant 43 : index
    %c0_167 = arith.constant 0 : index
    %221 = vector.load %arg4[%c43, %c0_167] : memref<49x512xf32, #tpu.memory_space<vmem>>, vector<1x512xf32>
    %222 = vector.broadcast %221 : vector<1x512xf32> to vector<8x512xf32>
    %223 = arith.mulf %220, %222 : vector<8x512xf32>
    %c344 = arith.constant 344 : index
    %c0_168 = arith.constant 0 : index
    %224 = vector.load %arg7[%c344, %c0_168] : memref<392x512xf32, #tpu.memory_space<vmem>>, vector<8x512xf32>
    tpu.vector_store %arg7[%c344, %c0_168], %223 {strides = array<i32>} : memref<392x512xf32, #tpu.memory_space<vmem>>, vector<8x512xf32>,
    %c0_169 = arith.constant 0 : index
    %c98 = arith.constant 98 : index
    %225 = vector.load %arg6[%c0_169, %c98] : memref<8x614xf32, #tpu.memory_space<vmem>>, vector<8x512xf32>
    %c44 = arith.constant 44 : index
    %c0_170 = arith.constant 0 : index
    %226 = vector.load %arg4[%c44, %c0_170] : memref<49x512xf32, #tpu.memory_space<vmem>>, vector<1x512xf32>
    %227 = vector.broadcast %226 : vector<1x512xf32> to vector<8x512xf32>
    %228 = arith.mulf %225, %227 : vector<8x512xf32>
    %c352 = arith.constant 352 : index
    %c0_171 = arith.constant 0 : index
    %229 = vector.load %arg7[%c352, %c0_171] : memref<392x512xf32, #tpu.memory_space<vmem>>, vector<8x512xf32>
    tpu.vector_store %arg7[%c352, %c0_171], %228 {strides = array<i32>} : memref<392x512xf32, #tpu.memory_space<vmem>>, vector<8x512xf32>,
    %c0_172 = arith.constant 0 : index
    %c99 = arith.constant 99 : index
    %230 = vector.load %arg6[%c0_172, %c99] : memref<8x614xf32, #tpu.memory_space<vmem>>, vector<8x512xf32>
    %c45 = arith.constant 45 : index
    %c0_173 = arith.constant 0 : index
    %231 = vector.load %arg4[%c45, %c0_173] : memref<49x512xf32, #tpu.memory_space<vmem>>, vector<1x512xf32>
    %232 = vector.broadcast %231 : vector<1x512xf32> to vector<8x512xf32>
    %233 = arith.mulf %230, %232 : vector<8x512xf32>
    %c360 = arith.constant 360 : index
    %c0_174 = arith.constant 0 : index
    %234 = vector.load %arg7[%c360, %c0_174] : memref<392x512xf32, #tpu.memory_space<vmem>>, vector<8x512xf32>
    tpu.vector_store %arg7[%c360, %c0_174], %233 {strides = array<i32>} : memref<392x512xf32, #tpu.memory_space<vmem>>, vector<8x512xf32>,
    %c0_175 = arith.constant 0 : index
    %c100 = arith.constant 100 : index
    %235 = vector.load %arg6[%c0_175, %c100] : memref<8x614xf32, #tpu.memory_space<vmem>>, vector<8x512xf32>
    %c46 = arith.constant 46 : index
    %c0_176 = arith.constant 0 : index
    %236 = vector.load %arg4[%c46, %c0_176] : memref<49x512xf32, #tpu.memory_space<vmem>>, vector<1x512xf32>
    %237 = vector.broadcast %236 : vector<1x512xf32> to vector<8x512xf32>
    %238 = arith.mulf %235, %237 : vector<8x512xf32>
    %c368 = arith.constant 368 : index
    %c0_177 = arith.constant 0 : index
    %239 = vector.load %arg7[%c368, %c0_177] : memref<392x512xf32, #tpu.memory_space<vmem>>, vector<8x512xf32>
    tpu.vector_store %arg7[%c368, %c0_177], %238 {strides = array<i32>} : memref<392x512xf32, #tpu.memory_space<vmem>>, vector<8x512xf32>,
    %c0_178 = arith.constant 0 : index
    %c101 = arith.constant 101 : index
    %240 = vector.load %arg6[%c0_178, %c101] : memref<8x614xf32, #tpu.memory_space<vmem>>, vector<8x512xf32>
    %c47 = arith.constant 47 : index
    %c0_179 = arith.constant 0 : index
    %241 = vector.load %arg4[%c47, %c0_179] : memref<49x512xf32, #tpu.memory_space<vmem>>, vector<1x512xf32>
    %242 = vector.broadcast %241 : vector<1x512xf32> to vector<8x512xf32>
    %243 = arith.mulf %240, %242 : vector<8x512xf32>
    %c376 = arith.constant 376 : index
    %c0_180 = arith.constant 0 : index
    %244 = vector.load %arg7[%c376, %c0_180] : memref<392x512xf32, #tpu.memory_space<vmem>>, vector<8x512xf32>
    tpu.vector_store %arg7[%c376, %c0_180], %243 {strides = array<i32>} : memref<392x512xf32, #tpu.memory_space<vmem>>, vector<8x512xf32>,
    %c0_181 = arith.constant 0 : index
    %c102 = arith.constant 102 : index
    %245 = vector.load %arg6[%c0_181, %c102] : memref<8x614xf32, #tpu.memory_space<vmem>>, vector<8x512xf32>
    %c48_182 = arith.constant 48 : index
    %c0_183 = arith.constant 0 : index
    %246 = vector.load %arg4[%c48_182, %c0_183] : memref<49x512xf32, #tpu.memory_space<vmem>>, vector<1x512xf32>
    %247 = vector.broadcast %246 : vector<1x512xf32> to vector<8x512xf32>
    %248 = arith.mulf %245, %247 : vector<8x512xf32>
    %c384 = arith.constant 384 : index
    %c0_184 = arith.constant 0 : index
    %249 = vector.load %arg7[%c384, %c0_184] : memref<392x512xf32, #tpu.memory_space<vmem>>, vector<8x512xf32>
    tpu.vector_store %arg7[%c384, %c0_184], %248 {strides = array<i32>} : memref<392x512xf32, #tpu.memory_space<vmem>>, vector<8x512xf32>,
    %c0_185 = arith.constant 0 : index
    %c0_186 = arith.constant 0 : index
    %250 = vector.load %arg2[%c0_185, %c0_186] : memref<8x392xbf16, #tpu.memory_space<vmem>>, vector<8x392xbf16>
    %251 = arith.extf %250 : vector<8x392xbf16> to vector<8x392xf32>
    %c0_187 = arith.constant 0 : index
    %c0_188 = arith.constant 0 : index
    %252 = vector.load %arg7[%c0_187, %c0_188] : memref<392x512xf32, #tpu.memory_space<vmem>>, vector<392x512xf32>
    %cst_189 = arith.constant dense<0.000000e+00> : vector<8x512xf32>
    %253 = tpu.matmul %251, %252, %cst_189 {dimension_numbers = #tpu.dot_dimension_numbers<[1], [0], [0], [1], [0, 0, 1, 1], [], []>} : vector<8x392xf32>, vector<392x512xf32>, vector<8x512xf32> -> vector<8x512xf32>
    %c0_190 = arith.constant 0 : index
    %c0_191 = arith.constant 0 : index
    %254 = vector.load %arg3[%c0_190, %c0_191] : memref<8x1xf32, #tpu.memory_space<vmem>>, vector<8x1xf32>
    %255 = vector.broadcast %254 : vector<8x1xf32> to vector<8x512xf32>
    %256 = arith.addf %253, %255 : vector<8x512xf32>
    %257 = math.tanh %256 : vector<8x512xf32>
    %c0_192 = arith.constant 0 : index
    %c0_193 = arith.constant 0 : index
    %258 = vector.load %arg5[%c0_192, %c0_193] : memref<8x512xf32, #tpu.memory_space<vmem>>, vector<8x512xf32>
    tpu.vector_store %arg5[%c0_192, %c0_193], %257 {strides = array<i32>} : memref<8x512xf32, #tpu.memory_space<vmem>>, vector<8x512xf32>,
    return
  }
  func.func @transform_0(%arg0: i32) -> (i32, i32) {
    %c0_i32 = arith.constant 0 : i32
    %c0_i32_0 = arith.constant 0 : i32
    %c0_i32_1 = arith.constant 0 : i32
    return %c0_i32, %c0_i32_0 : i32, i32
  }
  func.func @transform_1(%arg0: i32) -> (i32, i32) {
    %c0_i32 = arith.constant 0 : i32
    %c0_i32_0 = arith.constant 0 : i32
    %c0_i32_1 = arith.constant 0 : i32
    return %c0_i32, %c0_i32_0 : i32, i32
  }
  func.func @transform_2(%arg0: i32) -> (i32, i32) {
    %c0_i32 = arith.constant 0 : i32
    %c0_i32_0 = arith.constant 0 : i32
    %c0_i32_1 = arith.constant 0 : i32
    return %c0_i32, %c0_i32_0 : i32, i32
  }
  func.func @transform_3(%arg0: i32) -> (i32, i32) {
    %c0_i32 = arith.constant 0 : i32
    %c0_i32_0 = arith.constant 0 : i32
    %c0_i32_1 = arith.constant 0 : i32
    return %c0_i32, %c0_i32_0 : i32, i32
  }
  func.func @transform_4(%arg0: i32) -> (i32, i32) {
    %c0_i32 = arith.constant 0 : i32
    %c0_i32_0 = arith.constant 0 : i32
    %c0_i32_1 = arith.constant 0 : i32
    return %c0_i32, %c0_i32_0 : i32, i32
  }
}

</mosaic_0001>

<llo_original>
// kernel: resnet_generator_forward.8
$region0: #{resnet_generator_forward.8}
  #allocation0 [shape = 'u32[]', space=smem, size = 0x4, offset = 0x4, fixed_abs, tag = 'smem constant byte address 0x4 - core index']
  #allocation1 [shape = 'u32[144,128]{1,0:T(1,128)}', space=vmem, size = 0x12000, scoped, tag = 'internal scratch']
  %s0 = inlined_call_operand.vmem [shape: bf16[16,72], index: 0, kind: input, shape index: {}]
  %s1 = inlined_call_operand.vmem [shape: bf16[72,128], index: 1, kind: input, shape index: {}]
  %s2 = inlined_call_operand.vmem [shape: bf16[16,128], index: 2, kind: output, shape index: {}]
  %s3 = sld [smem:[#allocation0]]
  $region18: #{resnet_generator_forward.8} parent=0
    _
  %s5 = ssub.s32 1, %s3
  %s6 = scalar_select 0, %s5, %s3
  // Predicated region
  $region2: #{resnet_generator_forward.8} parent=0 // pred_check
    _
  $region3: #{resnet_generator_forward.8} parent=0 // pred_check_branch
    %8 = sbr.rel (0) target = $region5
  $region4: #{resnet_generator_forward.8} parent=0 // pred_region
    _
  $region5: #{resnet_generator_forward.8} parent=0 // pred_fallthru
    _
  // Predicated region
  $region6: #{resnet_generator_forward.8} parent=0 // pred_check
    _
  $region7: #{resnet_generator_forward.8} parent=0 // pred_check_branch
    %10 = sbr.rel (0) target = $region9
  $region8: #{resnet_generator_forward.8} parent=0 // pred_region
    _
  $region9: #{resnet_generator_forward.8} parent=0 // pred_fallthru
    _
  %v11 = vld [vmem:[%s0] sm:$0xf]
  %v12 = vld [vmem:[%s0 + $0x4] sm:$0xf]
  %v13 = vunpack.c.l.bf16 %v11
  %v14 = vunpack.c.l.bf16 %v12
  %v15 = vld [vmem:[%s1] sm:$0xf]
  %v16 = vld [vmem:[%s1 + $0x4] sm:$0xf]
  %v17 = vld [vmem:[%s1 + $0x8] sm:$0xf]
  %v18 = vld [vmem:[%s1 + $0xc] sm:$0xf]
  %v19 = vld [vmem:[%s1 + $0x10] sm:$0xf]
  %v20 = vld [vmem:[%s1 + $0x14] sm:$0xf]
  %v21 = vld [vmem:[%s1 + $0x18] sm:$0xf]
  %v22 = vld [vmem:[%s1 + $0x1c] sm:$0xf]
  %v23 = vld [vmem:[%s1 + $0x20] sm:$0xf]
  %v24 = vunpack.c.l.bf16 %v15
  %v25 = vunpack.c.l.bf16 %v16
  %v26 = vunpack.c.l.bf16 %v17
  %v27 = vunpack.c.l.bf16 %v18
  %v28 = vunpack.c.l.bf16 %v19
  %v29 = vunpack.c.l.bf16 %v20
  %v30 = vunpack.c.l.bf16 %v21
  %v31 = vunpack.c.l.bf16 %v22
  %v32 = vunpack.c.l.bf16 %v23
  %vm33 = vcmask 588800
  %v35 = vsel %vm33, %v13, 0
  %v38 = vsel %vm33, %v14, 0
  %40 = vmatprep.subr.mxu0 0.0
  %41 = vmatpush1.msra.mxu0 %v24
  %42 = vmatprep.subr.mxu0 0.0
  %43 = vmatpush1.msra.mxu0 %v25
  %44 = vmatprep.subr.mxu0 0.0
  %45 = vmatpush1.msra.mxu0 %v26
  %46 = vmatprep.subr.mxu0 0.0
  %47 = vmatpush1.msra.mxu0 %v27
  %48 = vmatprep.subr.mxu0 0.0
  %49 = vmatpush1.msra.mxu0 %v28
  %50 = vmatprep.subr.mxu0 0.0
  %51 = vmatpush1.msra.mxu0 %v29
  %52 = vmatprep.subr.mxu0 0.0
  %53 = vmatpush1.msra.mxu0 %v30
  %54 = vmatprep.subr.mxu0 0.0
  %55 = vmatpush1.msra.mxu0 %v31
  %56 = vmatprep.subr.mxu0 0.0
  %57 = vmatpush1.msra.mxu0 %v32
  %58 = vmatprep.subr.mxu0 0.0
  %59 = vmatpush1.msra.mxu0 0.0
  %60 = vmatprep.subr.mxu0 0.0
  %61 = vmatpush1.msra.mxu0 0.0
  %62 = vmatprep.subr.mxu0 0.0
  %63 = vmatpush1.msra.mxu0 0.0
  %64 = vmatprep.subr.mxu0 0.0
  %65 = vmatpush1.msra.mxu0 0.0
  %66 = vmatprep.subr.mxu0 0.0
  %67 = vmatpush1.msra.mxu0 0.0
  %68 = vmatprep.subr.mxu0 0.0
  %69 = vmatpush1.msra.mxu0 0.0
  %70 = vmatprep.subr.mxu0 0.0
  %71 = vmatpush1.msra.mxu0 0.0
  %72 = vmatprep.subr.mxu0 0.0
  %73 = vmatpush1.msra.mxu0 0.0
  %74 = vmatprep.subr.mxu0 0.0
  %75 = vmatpush1.msra.mxu0 0.0
  %76 = vmatprep.subr.mxu0 0.0
  %77 = vmatpush1.msra.mxu0 0.0
  %78 = vmatprep.subr.mxu0 0.0
  %79 = vmatpush1.msra.mxu0 0.0
  %80 = vmatprep.subr.mxu0 0.0
  %81 = vmatpush1.msra.mxu0 0.0
  %82 = vmatprep.subr.mxu0 0.0
  %83 = vmatpush1.msra.mxu0 0.0
  %84 = vmatprep.subr.mxu0 0.0
  %85 = vmatpush1.msra.mxu0 0.0
  %86 = vmatprep.subr.mxu0 0.0
  %87 = vmatpush1.msra.mxu0 0.0
  %88 = vmatprep.subr.mxu0 0.0
  %89 = vmatpush1.msra.mxu0 0.0
  %90 = vmatprep.subr.mxu0 0.0
  %91 = vmatpush1.msra.mxu0 0.0
  %92 = vmatprep.subr.mxu0 0.0
  %93 = vmatpush1.msra.mxu0 0.0
  %94 = vmatprep.subr.mxu0 0.0
  %95 = vmatpush1.msra.mxu0 0.0
  %96 = vmatprep.subr.mxu0 0.0
  %97 = vmatpush1.msra.mxu0 0.0
  %98 = vmatprep.subr.mxu0 0.0
  %99 = vmatpush1.msra.mxu0 0.0
  %100 = vmatprep.subr.mxu0 0.0
  %101 = vmatpush1.msra.mxu0 0.0
  %102 = vmatprep.subr.mxu0 0.0
  %103 = vmatpush1.msra.mxu0 0.0
  %104 = vmatprep.mubr.f32.mxu0 0.0
  %105 = vmatmul.mubr.f32.gmra.mrb[0].mxu0 %v35
  %v106 = vpop.f32.mrb[0].mxu0
  %v107 = vadd.f32 0.0, %v106
  %v108 = vpop.f32.mrb[0].mxu0
  %109 = vmatprep.mubr.f32.mxu0 0.0
  %110 = vmatmul.mubr.f32.gmra.mrb[0].mxu0 %v38
  %v111 = vpop.f32.mrb[0].mxu0
  %v112 = vadd.f32 0.0, %v111
  %v113 = vpop.f32.mrb[0].mxu0
  %114 = vdwg.mxu0
  %v115 = vmax.f32 %v107, 0.0
  %v116 = vmax.f32 %v112, 0.0
  %v117 = vpack.c.bf16 %v116, %v115
  %v119 = vunpack.c.l.b16 %v117
  %v120 = vunpack.c.h.b16 %v117
  %v121 = vpack.c.b16 %v119, %v119
  %v122 = vpack.c.b16 %v120, %v120
  %125 = vst [vmem:[%s2] sm:$0xf] %v121
  %126 = vst [vmem:[%s2 + $0x4] sm:$0xf] %v122
  // Predicated region
  $region10: #{resnet_generator_forward.8} parent=0 // pred_check
    _
  $region11: #{resnet_generator_forward.8} parent=0 // pred_check_branch
    %128 = sbr.rel (0) target = $region13
  $region12: #{resnet_generator_forward.8} parent=0 // pred_region
    _
  $region13: #{resnet_generator_forward.8} parent=0 // pred_fallthru
    _
  // Predicated region
  $region14: #{resnet_generator_forward.8} parent=0 // pred_check
    _
  $region15: #{resnet_generator_forward.8} parent=0 // pred_check_branch
    %130 = sbr.rel (0) target = $region17
  $region16: #{resnet_generator_forward.8} parent=0 // pred_region
    _
  $region17: #{resnet_generator_forward.8} parent=0 // pred_fallthru
    _

// kernel: resnet_generator_forward.7
$region0: #{resnet_generator_forward.7}
  #allocation0 [shape = 'u32[]', space=smem, size = 0x4, offset = 0x4, fixed_abs, tag = 'smem constant byte address 0x4 - core index']
  #allocation1 [shape = 'u32[144,128]{1,0:T(1,128)}', space=vmem, size = 0x12000, scoped, tag = 'internal scratch']
  #allocation2 [shape = 'f32[8,614]{1,0:T(8,128)}', space=vmem, size = 0x5000, scoped, tag = 'scratch operand']
  #allocation3 [shape = 'f32[392,512]{1,0:T(8,128)}', space=vmem, size = 0xc4000, scoped, tag = 'scratch operand']
  %s0 = inlined_call_operand.vmem [shape: bf16[8,512], index: 0, kind: input, shape index: {}]
  %s1 = inlined_call_operand.vmem [shape: bf16[8,392], index: 1, kind: input, shape index: {}]
  %s2 = inlined_call_operand.vmem [shape: f32[49,512], index: 2, kind: input, shape index: {}]
  %s3 = inlined_call_operand.vmem [shape: bf16[8,512], index: 3, kind: output, shape index: {}]
  %s4 = sld [smem:[#allocation0]]
  $region22: #{resnet_generator_forward.7} parent=0
    _
  %s6 = ssub.s32 1, %s4
  %s7 = scalar_select 0, %s6, %s4
  // Predicated region
  $region2: #{resnet_generator_forward.7} parent=0 // pred_check
    _
  $region3: #{resnet_generator_forward.7} parent=0 // pred_check_branch
    %9 = sbr.rel (0) target = $region5
  $region4: #{resnet_generator_forward.7} parent=0 // pred_region
    _
  $region5: #{resnet_generator_forward.7} parent=0 // pred_fallthru
    _
  // Predicated region
  $region6: #{resnet_generator_forward.7} parent=0 // pred_check
    _
  $region7: #{resnet_generator_forward.7} parent=0 // pred_check_branch
    %11 = sbr.rel (0) target = $region9
  $region8: #{resnet_generator_forward.7} parent=0 // pred_region
    _
  $region9: #{resnet_generator_forward.7} parent=0 // pred_fallthru
    _
  // Predicated region
  $region10: #{resnet_generator_forward.7} parent=0 // pred_check
    _
  $region11: #{resnet_generator_forward.7} parent=0 // pred_check_branch
    %13 = sbr.rel (0) target = $region13
  $region12: #{resnet_generator_forward.7} parent=0 // pred_region
    _
  $region13: #{resnet_generator_forward.7} parent=0 // pred_fallthru
    _
  %14 = vst [vmem:[#allocation2] sm:$0xff] 0.0
  %15 = vst [vmem:[#allocation2 + $0x8] sm:$0xff] 0.0
  %16 = vst [vmem:[#allocation2 + $0x10] sm:$0xff] 0.0
  %17 = vst [vmem:[#allocation2 + $0x18] sm:$0xff] 0.0
  %vm18 = vcmask 834560
  %19 = vst.msk [vmem:[#allocation2 + $0x20] sm:$0xff] %vm18, 0.0
  %v20 = vld [vmem:[%s0] sm:$0xff]
  %v21 = vld [vmem:[%s0 + $0x8] sm:$0xff]
  %v22 = vunpack.c.l.bf16 %v20
  %v23 = vunpack.c.h.bf16 %v20
  %v24 = vunpack.c.l.bf16 %v21
  %v25 = vunpack.c.h.bf16 %v21
  %30 = vrot.lane.b32.xlu0 %v22, 51
  %v31 = vpop.permute.xlu0 %30
  %32 = vrot.lane.b32.xlu0 %v23, 51
  %v33 = vpop.permute.xlu0 %32
  %34 = vrot.lane.b32.xlu0 %v24, 51
  %v35 = vpop.permute.xlu0 %34
  %36 = vrot.lane.b32.xlu0 %v25, 51
  %v37 = vpop.permute.xlu0 %36
  %vm38 = vcmask 416768
  %v39 = vsel %vm38, %v31, %v33
  %v40 = vsel %vm38, %v33, %v35
  %v41 = vsel %vm38, %v35, %v37
  %vm47 = vcmask 1047960
  %48 = vst.msk [vmem:[#allocation2] sm:$0xff] %vm47, %v31
  %49 = vst [vmem:[#allocation2 + $0x8] sm:$0xff] %v39
  %50 = vst [vmem:[#allocation2 + $0x10] sm:$0xff] %v40
  %51 = vst [vmem:[#allocation2 + $0x18] sm:$0xff] %v41
  %52 = vst.msk [vmem:[#allocation2 + $0x20] sm:$0xff] %vm38, %v37
  %v53 = vld [vmem:[#allocation2] sm:$0xff]
  %v54 = vld [vmem:[#allocation2 + $0x8] sm:$0xff]
  %v55 = vld [vmem:[#allocation2 + $0x10] sm:$0xff]
  %v56 = vld [vmem:[#allocation2 + $0x18] sm:$0xff]
  %v57 = vld [vmem:[%s2] ss:$8 sm:$0xf]
  %v59 = vlaneseq
  %v60 = vshrl.u32 %v59, 7
  %v61 = vsub.s32 0, %v60
  %v62 = vrot.slane %v57, %v61
  %v63 = vlaneseq
  %v64 = vshrl.u32 %v63, 7
  %v65 = vsub.s32 1, %v64
  %v66 = vrot.slane %v57, %v65
  %v67 = vlaneseq
  %v68 = vshrl.u32 %v67, 7
  %v69 = vsub.s32 2, %v68
  %v70 = vrot.slane %v57, %v69
  %v71 = vlaneseq
  %v72 = vshrl.u32 %v71, 7
  %v73 = vsub.s32 3, %v72
  %v74 = vrot.slane %v57, %v73
  %v79 = vmul.f32 %v53, %v62
  %v80 = vmul.f32 %v54, %v66
  %v81 = vmul.f32 %v55, %v70
  %v82 = vmul.f32 %v56, %v74
  %83 = vst [vmem:[#allocation3] sm:$0xff] %v79
  %84 = vst [vmem:[#allocation3 + $0x8] sm:$0xff] %v80
  %85 = vst [vmem:[#allocation3 + $0x10] sm:$0xff] %v81
  %86 = vst [vmem:[#allocation3 + $0x18] sm:$0xff] %v82
  %v87 = vld [vmem:[#allocation2] sm:$0xff]
  %v88 = vld [vmem:[#allocation2 + $0x8] sm:$0xff]
  %v89 = vld [vmem:[#allocation2 + $0x10] sm:$0xff]
  %v90 = vld [vmem:[#allocation2 + $0x18] sm:$0xff]
  %v91 = vld [vmem:[#allocation2 + $0x20] sm:$0xff]
  %s92 = scalar_lea.vmem %s2, 1
  %v93 = vld [vmem:[%s92] ss:$8 sm:$0xf]
  %v95 = vlaneseq
  %v96 = vshrl.u32 %v95, 7
  %v97 = vsub.s32 0, %v96
  %v98 = vrot.slane %v93, %v97
  %v99 = vlaneseq
  %v100 = vshrl.u32 %v99, 7
  %v101 = vsub.s32 1, %v100
  %v102 = vrot.slane %v93, %v101
  %v103 = vlaneseq
  %v104 = vshrl.u32 %v103, 7
  %v105 = vsub.s32 2, %v104
  %v106 = vrot.slane %v93, %v105
  %v107 = vlaneseq
  %v108 = vshrl.u32 %v107, 7
  %v109 = vsub.s32 3, %v108
  %v110 = vrot.slane %v93, %v109
  %111 = vrot.lane.b32.xlu0 %v98, 1
  %v112 = vpop.permute.xlu0 %111
  %113 = vrot.lane.b32.xlu0 %v102, 1
  %v114 = vpop.permute.xlu0 %113
  %115 = vrot.lane.b32.xlu0 %v106, 1
  %v116 = vpop.permute.xlu0 %115
  %117 = vrot.lane.b32.xlu0 %v110, 1
  %v118 = vpop.permute.xlu0 %117
  %vm119 = vcmask 7168
  %v120 = vsel %vm119, %v112, %v114
  %v121 = vsel %vm119, %v114, %v116
  %v122 = vsel %vm119, %v116, %v118
  %v128 = vmul.f32 %v87, %v112
  %v129 = vmul.f32 %v88, %v120
  %v130 = vmul.f32 %v89, %v121
  %v131 = vmul.f32 %v90, %v122
  %v132 = vmul.f32 %v91, %v118
  %138 = vrot.lane.b32.xlu0 %v128, 127
  %v139 = vpop.permute.xlu0 %138
  %140 = vrot.lane.b32.xlu0 %v129, 127
  %v141 = vpop.permute.xlu0 %140
  %142 = vrot.lane.b32.xlu0 %v130, 127
  %v143 = vpop.permute.xlu0 %142
  %144 = vrot.lane.b32.xlu0 %v131, 127
  %v145 = vpop.permute.xlu0 %144
  %146 = vrot.lane.b32.xlu0 %v132, 127
  %v147 = vpop.permute.xlu0 %146
  %vm148 = vcmask 1039360
  %v149 = vsel %vm148, %v139, %v141
  %v150 = vsel %vm148, %v141, %v143
  %v151 = vsel %vm148, %v143, %v145
  %v152 = vsel %vm148, %v145, %v147
  %157 = vst [vmem:[#allocation3 + $0x20] sm:$0xff] %v149
  %158 = vst [vmem:[#allocation3 + $0x28] sm:$0xff] %v150
  %159 = vst [vmem:[#allocation3 + $0x30] sm:$0xff] %v151
  %160 = vst [vmem:[#allocation3 + $0x38] sm:$0xff] %v152
  %v161 = vld [vmem:[#allocation2] sm:$0xff]
  %v162 = vld [vmem:[#allocation2 + $0x8] sm:$0xff]
  %v163 = vld [vmem:[#allocation2 + $0x10] sm:$0xff]
  %v164 = vld [vmem:[#allocation2 + $0x18] sm:$0xff]
  %v165 = vld [vmem:[#allocation2 + $0x20] sm:$0xff]
  %s166 = scalar_lea.vmem %s2, 2
  %v167 = vld [vmem:[%s166] ss:$8 sm:$0xf]
  %v169 = vlaneseq
  %v170 = vshrl.u32 %v169, 7
  %v171 = vsub.s32 0, %v170
  %v172 = vrot.slane %v167, %v171
  %v173 = vlaneseq
  %v174 = vshrl.u32 %v173, 7
  %v175 = vsub.s32 1, %v174
  %v176 = vrot.slane %v167, %v175
  %v177 = vlaneseq
  %v178 = vshrl.u32 %v177, 7
  %v179 = vsub.s32 2, %v178
  %v180 = vrot.slane %v167, %v179
  %v181 = vlaneseq
  %v182 = vshrl.u32 %v181, 7
  %v183 = vsub.s32 3, %v182
  %v184 = vrot.slane %v167, %v183
  %185 = vrot.lane.b32.xlu0 %v172, 2
  %v186 = vpop.permute.xlu0 %185
  %187 = vrot.lane.b32.xlu0 %v176, 2
  %v188 = vpop.permute.xlu0 %187
  %189 = vrot.lane.b32.xlu0 %v180, 2
  %v190 = vpop.permute.xlu0 %189
  %191 = vrot.lane.b32.xlu0 %v184, 2
  %v192 = vpop.permute.xlu0 %191
  %vm193 = vcmask 15360
  %v194 = vsel %vm193, %v186, %v188
  %v195 = vsel %vm193, %v188, %v190
  %v196 = vsel %vm193, %v190, %v192
  %v202 = vmul.f32 %v161, %v186
  %v203 = vmul.f32 %v162, %v194
  %v204 = vmul.f32 %v163, %v195
  %v205 = vmul.f32 %v164, %v196
  %v206 = vmul.f32 %v165, %v192
  %212 = vrot.lane.b32.xlu0 %v202, 126
  %v213 = vpop.permute.xlu0 %212
  %214 = vrot.lane.b32.xlu0 %v203, 126
  %v215 = vpop.permute.xlu0 %214
  %216 = vrot.lane.b32.xlu0 %v204, 126
  %v217 = vpop.permute.xlu0 %216
  %218 = vrot.lane.b32.xlu0 %v205, 126
  %v219 = vpop.permute.xlu0 %218
  %220 = vrot.lane.b32.xlu0 %v206, 126
  %v221 = vpop.permute.xlu0 %220
  %vm222 = vcmask 1031168
  %v223 = vsel %vm222, %v213, %v215
  %v224 = vsel %vm222, %v215, %v217
  %v225 = vsel %vm222, %v217, %v219
  %v226 = vsel %vm222, %v219, %v221
  %231 = vst [vmem:[#allocation3 + $0x40] sm:$0xff] %v223
  %232 = vst [vmem:[#allocation3 + $0x48] sm:$0xff] %v224
  %233 = vst [vmem:[#allocation3 + $0x50] sm:$0xff] %v225
  %234 = vst [vmem:[#allocation3 + $0x58] sm:$0xff] %v226
  %v235 = vld [vmem:[#allocation2] sm:$0xff]
  %v236 = vld [vmem:[#allocation2 + $0x8] sm:$0xff]
  %v237 = vld [vmem:[#allocation2 + $0x10] sm:$0xff]
  %v238 = vld [vmem:[#allocation2 + $0x18] sm:$0xff]
  %v239 = vld [vmem:[#allocation2 + $0x20] sm:$0xff]
  %s240 = scalar_lea.vmem %s2, 3
  %v241 = vld [vmem:[%s240] ss:$8 sm:$0xf]
  %v243 = vlaneseq
  %v244 = vshrl.u32 %v243, 7
  %v245 = vsub.s32 0, %v244
  %v246 = vrot.slane %v241, %v245
  %v247 = vlaneseq
  %v248 = vshrl.u32 %v247, 7
  %v249 = vsub.s32 1, %v248
  %v250 = vrot.slane %v241, %v249
  %v251 = vlaneseq
  %v252 = vshrl.u32 %v251, 7
  %v253 = vsub.s32 2, %v252
  %v254 = vrot.slane %v241, %v253
  %v255 = vlaneseq
  %v256 = vshrl.u32 %v255, 7
  %v257 = vsub.s32 3, %v256
  %v258 = vrot.slane %v241, %v257
  %259 = vrot.lane.b32.xlu0 %v246, 3
  %v260 = vpop.permute.xlu0 %259
  %261 = vrot.lane.b32.xlu0 %v250, 3
  %v262 = vpop.permute.xlu0 %261
  %263 = vrot.lane.b32.xlu0 %v254, 3
  %v264 = vpop.permute.xlu0 %263
  %265 = vrot.lane.b32.xlu0 %v258, 3
  %v266 = vpop.permute.xlu0 %265
  %vm267 = vcmask 23552
  %v268 = vsel %vm267, %v260, %v262
  %v269 = vsel %vm267, %v262, %v264
  %v270 = vsel %vm267, %v264, %v266
  %v276 = vmul.f32 %v235, %v260
  %v277 = vmul.f32 %v236, %v268
  %v278 = vmul.f32 %v237, %v269
  %v279 = vmul.f32 %v238, %v270
  %v280 = vmul.f32 %v239, %v266
  %286 = vrot.lane.b32.xlu0 %v276, 125
  %v287 = vpop.permute.xlu0 %286
  %288 = vrot.lane.b32.xlu0 %v277, 125
  %v289 = vpop.permute.xlu0 %288
  %290 = vrot.lane.b32.xlu0 %v278, 125
  %v291 = vpop.permute.xlu0 %290
  %292 = vrot.lane.b32.xlu0 %v279, 125
  %v293 = vpop.permute.xlu0 %292
  %294 = vrot.lane.b32.xlu0 %v280, 125
  %v295 = vpop.permute.xlu0 %294
  %vm296 = vcmask 1022976
  %v297 = vsel %vm296, %v287, %v289
  %v298 = vsel %vm296, %v289, %v291
  %v299 = vsel %vm296, %v291, %v293
  %v300 = vsel %vm296, %v293, %v295
  %305 = vst [vmem:[#allocation3 + $0x60] sm:$0xff] %v297
  %306 = vst [vmem:[#allocation3 + $0x68] sm:$0xff] %v298
  %307 = vst [vmem:[#allocation3 + $0x70] sm:$0xff] %v299
  %308 = vst [vmem:[#allocation3 + $0x78] sm:$0xff] %v300
  %v309 = vld [vmem:[#allocation2] sm:$0xff]
  %v310 = vld [vmem:[#allocation2 + $0x8] sm:$0xff]
  %v311 = vld [vmem:[#allocation2 + $0x10] sm:$0xff]
  %v312 = vld [vmem:[#allocation2 + $0x18] sm:$0xff]
  %v313 = vld [vmem:[#allocation2 + $0x20] sm:$0xff]
  %s314 = scalar_lea.vmem %s2, 4
  %v315 = vld [vmem:[%s314] ss:$8 sm:$0xf]
  %v317 = vlaneseq
  %v318 = vshrl.u32 %v317, 7
  %v319 = vsub.s32 0, %v318
  %v320 = vrot.slane %v315, %v319
  %v321 = vlaneseq
  %v322 = vshrl.u32 %v321, 7
  %v323 = vsub.s32 1, %v322
  %v324 = vrot.slane %v315, %v323
  %v325 = vlaneseq
  %v326 = vshrl.u32 %v325, 7
  %v327 = vsub.s32 2, %v326
  %v328 = vrot.slane %v315, %v327
  %v329 = vlaneseq
  %v330 = vshrl.u32 %v329, 7
  %v331 = vsub.s32 3, %v330
  %v332 = vrot.slane %v315, %v331
  %333 = vrot.lane.b32.xlu0 %v320, 4
  %v334 = vpop.permute.xlu0 %333
  %335 = vrot.lane.b32.xlu0 %v324, 4
  %v336 = vpop.permute.xlu0 %335
  %337 = vrot.lane.b32.xlu0 %v328, 4
  %v338 = vpop.permute.xlu0 %337
  %339 = vrot.lane.b32.xlu0 %v332, 4
  %v340 = vpop.permute.xlu0 %339
  %vm341 = vcmask 31744
  %v342 = vsel %vm341, %v334, %v336
  %v343 = vsel %vm341, %v336, %v338
  %v344 = vsel %vm341, %v338, %v340
  %v350 = vmul.f32 %v309, %v334
  %v351 = vmul.f32 %v310, %v342
  %v352 = vmul.f32 %v311, %v343
  %v353 = vmul.f32 %v312, %v344
  %v354 = vmul.f32 %v313, %v340
  %360 = vrot.lane.b32.xlu0 %v350, 124
  %v361 = vpop.permute.xlu0 %360
  %362 = vrot.lane.b32.xlu0 %v351, 124
  %v363 = vpop.permute.xlu0 %362
  %364 = vrot.lane.b32.xlu0 %v352, 124
  %v365 = vpop.permute.xlu0 %364
  %366 = vrot.lane.b32.xlu0 %v353, 124
  %v367 = vpop.permute.xlu0 %366
  %368 = vrot.lane.b32.xlu0 %v354, 124
  %v369 = vpop.permute.xlu0 %368
  %vm370 = vcmask 1014784
  %v371 = vsel %vm370, %v361, %v363
  %v372 = vsel %vm370, %v363, %v365
  %v373 = vsel %vm370, %v365, %v367
  %v374 = vsel %vm370, %v367, %v369
  %379 = vst [vmem:[#allocation3 + $0x80] sm:$0xff] %v371
  %380 = vst [vmem:[#allocation3 + $0x88] sm:$0xff] %v372
  %381 = vst [vmem:[#allocation3 + $0x90] sm:$0xff] %v373
  %382 = vst [vmem:[#allocation3 + $0x98] sm:$0xff] %v374
  %v383 = vld [vmem:[#allocation2] sm:$0xff]
  %v384 = vld [vmem:[#allocation2 + $0x8] sm:$0xff]
  %v385 = vld [vmem:[#allocation2 + $0x10] sm:$0xff]
  %v386 = vld [vmem:[#allocation2 + $0x18] sm:$0xff]
  %v387 = vld [vmem:[#allocation2 + $0x20] sm:$0xff]
  %s388 = scalar_lea.vmem %s2, 5
  %v389 = vld [vmem:[%s388] ss:$8 sm:$0xf]
  %v391 = vlaneseq
  %v392 = vshrl.u32 %v391, 7
  %v393 = vsub.s32 0, %v392
  %v394 = vrot.slane %v389, %v393
  %v395 = vlaneseq
  %v396 = vshrl.u32 %v395, 7
  %v397 = vsub.s32 1, %v396
  %v398 = vrot.slane %v389, %v397
  %v399 = vlaneseq
  %v400 = vshrl.u32 %v399, 7
  %v401 = vsub.s32 2, %v400
  %v402 = vrot.slane %v389, %v401
  %v403 = vlaneseq
  %v404 = vshrl.u32 %v403, 7
  %v405 = vsub.s32 3, %v404
  %v406 = vrot.slane %v389, %v405
  %407 = vrot.lane.b32.xlu0 %v394, 5
  %v408 = vpop.permute.xlu0 %407
  %409 = vrot.lane.b32.xlu0 %v398, 5
  %v410 = vpop.permute.xlu0 %409
  %411 = vrot.lane.b32.xlu0 %v402, 5
  %v412 = vpop.permute.xlu0 %411
  %413 = vrot.lane.b32.xlu0 %v406, 5
  %v414 = vpop.permute.xlu0 %413
  %vm415 = vcmask 39936
  %v416 = vsel %vm415, %v408, %v410
  %v417 = vsel %vm415, %v410, %v412
  %v418 = vsel %vm415, %v412, %v414
  %v424 = vmul.f32 %v383, %v408
  %v425 = vmul.f32 %v384, %v416
  %v426 = vmul.f32 %v385, %v417
  %v427 = vmul.f32 %v386, %v418
  %v428 = vmul.f32 %v387, %v414
  %434 = vrot.lane.b32.xlu0 %v424, 123
  %v435 = vpop.permute.xlu0 %434
  %436 = vrot.lane.b32.xlu0 %v425, 123
  %v437 = vpop.permute.xlu0 %436
  %438 = vrot.lane.b32.xlu0 %v426, 123
  %v439 = vpop.permute.xlu0 %438
  %440 = vrot.lane.b32.xlu0 %v427, 123
  %v441 = vpop.permute.xlu0 %440
  %442 = vrot.lane.b32.xlu0 %v428, 123
  %v443 = vpop.permute.xlu0 %442
  %vm444 = vcmask 1006592
  %v445 = vsel %vm444, %v435, %v437
  %v446 = vsel %vm444, %v437, %v439
  %v447 = vsel %vm444, %v439, %v441
  %v448 = vsel %vm444, %v441, %v443
  %453 = vst [vmem:[#allocation3 + $0xa0] sm:$0xff] %v445
  %454 = vst [vmem:[#allocation3 + $0xa8] sm:$0xff] %v446
  %455 = vst [vmem:[#allocation3 + $0xb0] sm:$0xff] %v447
  %456 = vst [vmem:[#allocation3 + $0xb8] sm:$0xff] %v448
  %v457 = vld [vmem:[#allocation2] sm:$0xff]
  %v458 = vld [vmem:[#allocation2 + $0x8] sm:$0xff]
  %v459 = vld [vmem:[#allocation2 + $0x10] sm:$0xff]
  %v460 = vld [vmem:[#allocation2 + $0x18] sm:$0xff]
  %v461 = vld [vmem:[#allocation2 + $0x20] sm:$0xff]
  %s462 = scalar_lea.vmem %s2, 6
  %v463 = vld [vmem:[%s462] ss:$8 sm:$0xf]
  %v465 = vlaneseq
  %v466 = vshrl.u32 %v465, 7
  %v467 = vsub.s32 0, %v466
  %v468 = vrot.slane %v463, %v467
  %v469 = vlaneseq
  %v470 = vshrl.u32 %v469, 7
  %v471 = vsub.s32 1, %v470
  %v472 = vrot.slane %v463, %v471
  %v473 = vlaneseq
  %v474 = vshrl.u32 %v473, 7
  %v475 = vsub.s32 2, %v474
  %v476 = vrot.slane %v463, %v475
  %v477 = vlaneseq
  %v478 = vshrl.u32 %v477, 7
  %v479 = vsub.s32 3, %v478
  %v480 = vrot.slane %v463, %v479
  %481 = vrot.lane.b32.xlu0 %v468, 6
  %v482 = vpop.permute.xlu0 %481
  %483 = vrot.lane.b32.xlu0 %v472, 6
  %v484 = vpop.permute.xlu0 %483
  %485 = vrot.lane.b32.xlu0 %v476, 6
  %v486 = vpop.permute.xlu0 %485
  %487 = vrot.lane.b32.xlu0 %v480, 6
  %v488 = vpop.permute.xlu0 %487
  %vm489 = vcmask 48128
  %v490 = vsel %vm489, %v482, %v484
  %v491 = vsel %vm489, %v484, %v486
  %v492 = vsel %vm489, %v486, %v488
  %v498 = vmul.f32 %v457, %v482
  %v499 = vmul.f32 %v458, %v490
  %v500 = vmul.f32 %v459, %v491
  %v501 = vmul.f32 %v460, %v492
  %v502 = vmul.f32 %v461, %v488
  %508 = vrot.lane.b32.xlu0 %v498, 122
  %v509 = vpop.permute.xlu0 %508
  %510 = vrot.lane.b32.xlu0 %v499, 122
  %v511 = vpop.permute.xlu0 %510
  %512 = vrot.lane.b32.xlu0 %v500, 122
  %v513 = vpop.permute.xlu0 %512
  %514 = vrot.lane.b32.xlu0 %v501, 122
  %v515 = vpop.permute.xlu0 %514
  %516 = vrot.lane.b32.xlu0 %v502, 122
  %v517 = vpop.permute.xlu0 %516
  %vm518 = vcmask 998400
  %v519 = vsel %vm518, %v509, %v511
  %v520 = vsel %vm518, %v511, %v513
  %v521 = vsel %vm518, %v513, %v515
  %v522 = vsel %vm518, %v515, %v517
  %527 = vst [vmem:[#allocation3 + $0xc0] sm:$0xff] %v519
  %528 = vst [vmem:[#allocation3 + $0xc8] sm:$0xff] %v520
  %529 = vst [vmem:[#allocation3 + $0xd0] sm:$0xff] %v521
  %530 = vst [vmem:[#allocation3 + $0xd8] sm:$0xff] %v522
  %v531 = vld [vmem:[#allocation2] sm:$0xff]
  %v532 = vld [vmem:[#allocation2 + $0x8] sm:$0xff]
  %v533 = vld [vmem:[#allocation2 + $0x10] sm:$0xff]
  %v534 = vld [vmem:[#allocation2 + $0x18] sm:$0xff]
  %v535 = vld [vmem:[#allocation2 + $0x20] sm:$0xff]
  %s536 = scalar_lea.vmem %s2, 7
  %v537 = vld [vmem:[%s536] ss:$8 sm:$0xf]
  %v539 = vlaneseq
  %v540 = vshrl.u32 %v539, 7
  %v541 = vsub.s32 0, %v540
  %v542 = vrot.slane %v537, %v541
  %v543 = vlaneseq
  %v544 = vshrl.u32 %v543, 7
  %v545 = vsub.s32 1, %v544
  %v546 = vrot.slane %v537, %v545
  %v547 = vlaneseq
  %v548 = vshrl.u32 %v547, 7
  %v549 = vsub.s32 2, %v548
  %v550 = vrot.slane %v537, %v549
  %v551 = vlaneseq
  %v552 = vshrl.u32 %v551, 7
  %v553 = vsub.s32 3, %v552
  %v554 = vrot.slane %v537, %v553
  %555 = vrot.lane.b32.xlu0 %v542, 16
  %v556 = vpop.permute.xlu0 %555
  %557 = vrot.lane.b32.xlu0 %v546, 16
  %v558 = vpop.permute.xlu0 %557
  %559 = vrot.lane.b32.xlu0 %v550, 16
  %v560 = vpop.permute.xlu0 %559
  %561 = vrot.lane.b32.xlu0 %v554, 16
  %v562 = vpop.permute.xlu0 %561
  %vm563 = vcmask 130048
  %v564 = vsel %vm563, %v556, %v558
  %v565 = vsel %vm563, %v558, %v560
  %v566 = vsel %vm563, %v560, %v562
  %v572 = vmul.f32 %v531, %v556
  %v573 = vmul.f32 %v532, %v564
  %v574 = vmul.f32 %v533, %v565
  %v575 = vmul.f32 %v534, %v566
  %v576 = vmul.f32 %v535, %v562
  %582 = vrot.lane.b32.xlu0 %v572, 112
  %v583 = vpop.permute.xlu0 %582
  %584 = vrot.lane.b32.xlu0 %v573, 112
  %v585 = vpop.permute.xlu0 %584
  %586 = vrot.lane.b32.xlu0 %v574, 112
  %v587 = vpop.permute.xlu0 %586
  %588 = vrot.lane.b32.xlu0 %v575, 112
  %v589 = vpop.permute.xlu0 %588
  %590 = vrot.lane.b32.xlu0 %v576, 112
  %v591 = vpop.permute.xlu0 %590
  %vm592 = vcmask 916480
  %v593 = vsel %vm592, %v583, %v585
  %v594 = vsel %vm592, %v585, %v587
  %v595 = vsel %vm592, %v587, %v589
  %v596 = vsel %vm592, %v589, %v591
  %601 = vst [vmem:[#allocation3 + $0xe0] sm:$0xff] %v593
  %602 = vst [vmem:[#allocation3 + $0xe8] sm:$0xff] %v594
  %603 = vst [vmem:[#allocation3 + $0xf0] sm:$0xff] %v595
  %604 = vst [vmem:[#allocation3 + $0xf8] sm:$0xff] %v596
  %v605 = vld [vmem:[#allocation2] sm:$0xff]
  %v606 = vld [vmem:[#allocation2 + $0x8] sm:$0xff]
  %v607 = vld [vmem:[#allocation2 + $0x10] sm:$0xff]
  %v608 = vld [vmem:[#allocation2 + $0x18] sm:$0xff]
  %v609 = vld [vmem:[#allocation2 + $0x20] sm:$0xff]
  %s610 = scalar_lea.vmem %s2, 32
  %v611 = vld [vmem:[%s610] ss:$8 sm:$0xf]
  %v613 = vlaneseq
  %v614 = vshrl.u32 %v613, 7
  %v615 = vsub.s32 0, %v614
  %v616 = vrot.slane %v611, %v615
  %v617 = vlaneseq
  %v618 = vshrl.u32 %v617, 7
  %v619 = vsub.s32 1, %v618
  %v620 = vrot.slane %v611, %v619
  %v621 = vlaneseq
  %v622 = vshrl.u32 %v621, 7
  %v623 = vsub.s32 2, %v622
  %v624 = vrot.slane %v611, %v623
  %v625 = vlaneseq
  %v626 = vshrl.u32 %v625, 7
  %v627 = vsub.s32 3, %v626
  %v628 = vrot.slane %v611, %v627
  %629 = vrot.lane.b32.xlu0 %v616, 17
  %v630 = vpop.permute.xlu0 %629
  %631 = vrot.lane.b32.xlu0 %v620, 17
  %v632 = vpop.permute.xlu0 %631
  %633 = vrot.lane.b32.xlu0 %v624, 17
  %v634 = vpop.permute.xlu0 %633
  %635 = vrot.lane.b32.xlu0 %v628, 17
  %v636 = vpop.permute.xlu0 %635
  %vm637 = vcmask 138240
  %v638 = vsel %vm637, %v630, %v632
  %v639 = vsel %vm637, %v632, %v634
  %v640 = vsel %vm637, %v634, %v636
  %v646 = vmul.f32 %v605, %v630
  %v647 = vmul.f32 %v606, %v638
  %v648 = vmul.f32 %v607, %v639
  %v649 = vmul.f32 %v608, %v640
  %v650 = vmul.f32 %v609, %v636
  %656 = vrot.lane.b32.xlu0 %v646, 111
  %v657 = vpop.permute.xlu0 %656
  %658 = vrot.lane.b32.xlu0 %v647, 111
  %v659 = vpop.permute.xlu0 %658
  %660 = vrot.lane.b32.xlu0 %v648, 111
  %v661 = vpop.permute.xlu0 %660
  %662 = vrot.lane.b32.xlu0 %v649, 111
  %v663 = vpop.permute.xlu0 %662
  %664 = vrot.lane.b32.xlu0 %v650, 111
  %v665 = vpop.permute.xlu0 %664
  %vm666 = vcmask 908288
  %v667 = vsel %vm666, %v657, %v659
  %v668 = vsel %vm666, %v659, %v661
  %v669 = vsel %vm666, %v661, %v663
  %v670 = vsel %vm666, %v663, %v665
  %675 = vst [vmem:[#allocation3 + $0x100] sm:$0xff] %v667
  %676 = vst [vmem:[#allocation3 + $0x108] sm:$0xff] %v668
  %677 = vst [vmem:[#allocation3 + $0x110] sm:$0xff] %v669
  %678 = vst [vmem:[#allocation3 + $0x118] sm:$0xff] %v670
  %v679 = vld [vmem:[#allocation2] sm:$0xff]
  %v680 = vld [vmem:[#allocation2 + $0x8] sm:$0xff]
  %v681 = vld [vmem:[#allocation2 + $0x10] sm:$0xff]
  %v682 = vld [vmem:[#allocation2 + $0x18] sm:$0xff]
  %v683 = vld [vmem:[#allocation2 + $0x20] sm:$0xff]
  %s684 = scalar_lea.vmem %s2, 33
  %v685 = vld [vmem:[%s684] ss:$8 sm:$0xf]
  %v687 = vlaneseq
  %v688 = vshrl.u32 %v687, 7
  %v689 = vsub.s32 0, %v688
  %v690 = vrot.slane %v685, %v689
  %v691 = vlaneseq
  %v692 = vshrl.u32 %v691, 7
  %v693 = vsub.s32 1, %v692
  %v694 = vrot.slane %v685, %v693
  %v695 = vlaneseq
  %v696 = vshrl.u32 %v695, 7
  %v697 = vsub.s32 2, %v696
  %v698 = vrot.slane %v685, %v697
  %v699 = vlaneseq
  %v700 = vshrl.u32 %v699, 7
  %v701 = vsub.s32 3, %v700
  %v702 = vrot.slane %v685, %v701
  %703 = vrot.lane.b32.xlu0 %v690, 18
  %v704 = vpop.permute.xlu0 %703
  %705 = vrot.lane.b32.xlu0 %v694, 18
  %v706 = vpop.permute.xlu0 %705
  %707 = vrot.lane.b32.xlu0 %v698, 18
  %v708 = vpop.permute.xlu0 %707
  %709 = vrot.lane.b32.xlu0 %v702, 18
  %v710 = vpop.permute.xlu0 %709
  %vm711 = vcmask 146432
  %v712 = vsel %vm711, %v704, %v706
  %v713 = vsel %vm711, %v706, %v708
  %v714 = vsel %vm711, %v708, %v710
  %v720 = vmul.f32 %v679, %v704
  %v721 = vmul.f32 %v680, %v712
  %v722 = vmul.f32 %v681, %v713
  %v723 = vmul.f32 %v682, %v714
  %v724 = vmul.f32 %v683, %v710
  %730 = vrot.lane.b32.xlu0 %v720, 110
  %v731 = vpop.permute.xlu0 %730
  %732 = vrot.lane.b32.xlu0 %v721, 110
  %v733 = vpop.permute.xlu0 %732
  %734 = vrot.lane.b32.xlu0 %v722, 110
  %v735 = vpop.permute.xlu0 %734
  %736 = vrot.lane.b32.xlu0 %v723, 110
  %v737 = vpop.permute.xlu0 %736
  %738 = vrot.lane.b32.xlu0 %v724, 110
  %v739 = vpop.permute.xlu0 %738
  %vm740 = vcmask 900096
  %v741 = vsel %vm740, %v731, %v733
  %v742 = vsel %vm740, %v733, %v735
  %v743 = vsel %vm740, %v735, %v737
  %v744 = vsel %vm740, %v737, %v739
  %749 = vst [vmem:[#allocation3 + $0x120] sm:$0xff] %v741
  %750 = vst [vmem:[#allocation3 + $0x128] sm:$0xff] %v742
  %751 = vst [vmem:[#allocation3 + $0x130] sm:$0xff] %v743
  %752 = vst [vmem:[#allocation3 + $0x138] sm:$0xff] %v744
  %v753 = vld [vmem:[#allocation2] sm:$0xff]
  %v754 = vld [vmem:[#allocation2 + $0x8] sm:$0xff]
  %v755 = vld [vmem:[#allocation2 + $0x10] sm:$0xff]
  %v756 = vld [vmem:[#allocation2 + $0x18] sm:$0xff]
  %v757 = vld [vmem:[#allocation2 + $0x20] sm:$0xff]
  %s758 = scalar_lea.vmem %s2, 34
  %v759 = vld [vmem:[%s758] ss:$8 sm:$0xf]
  %v761 = vlaneseq
  %v762 = vshrl.u32 %v761, 7
  %v763 = vsub.s32 0, %v762
  %v764 = vrot.slane %v759, %v763
  %v765 = vlaneseq
  %v766 = vshrl.u32 %v765, 7
  %v767 = vsub.s32 1, %v766
  %v768 = vrot.slane %v759, %v767
  %v769 = vlaneseq
  %v770 = vshrl.u32 %v769, 7
  %v771 = vsub.s32 2, %v770
  %v772 = vrot.slane %v759, %v771
  %v773 = vlaneseq
  %v774 = vshrl.u32 %v773, 7
  %v775 = vsub.s32 3, %v774
  %v776 = vrot.slane %v759, %v775
  %777 = vrot.lane.b32.xlu0 %v764, 19
  %v778 = vpop.permute.xlu0 %777
  %779 = vrot.lane.b32.xlu0 %v768, 19
  %v780 = vpop.permute.xlu0 %779
  %781 = vrot.lane.b32.xlu0 %v772, 19
  %v782 = vpop.permute.xlu0 %781
  %783 = vrot.lane.b32.xlu0 %v776, 19
  %v784 = vpop.permute.xlu0 %783
  %vm785 = vcmask 154624
  %v786 = vsel %vm785, %v778, %v780
  %v787 = vsel %vm785, %v780, %v782
  %v788 = vsel %vm785, %v782, %v784
  %v794 = vmul.f32 %v753, %v778
  %v795 = vmul.f32 %v754, %v786
  %v796 = vmul.f32 %v755, %v787
  %v797 = vmul.f32 %v756, %v788
  %v798 = vmul.f32 %v757, %v784
  %804 = vrot.lane.b32.xlu0 %v794, 109
  %v805 = vpop.permute.xlu0 %804
  %806 = vrot.lane.b32.xlu0 %v795, 109
  %v807 = vpop.permute.xlu0 %806
  %808 = vrot.lane.b32.xlu0 %v796, 109
  %v809 = vpop.permute.xlu0 %808
  %810 = vrot.lane.b32.xlu0 %v797, 109
  %v811 = vpop.permute.xlu0 %810
  %812 = vrot.lane.b32.xlu0 %v798, 109
  %v813 = vpop.permute.xlu0 %812
  %vm814 = vcmask 891904
  %v815 = vsel %vm814, %v805, %v807
  %v816 = vsel %vm814, %v807, %v809
  %v817 = vsel %vm814, %v809, %v811
  %v818 = vsel %vm814, %v811, %v813
  %823 = vst [vmem:[#allocation3 + $0x140] sm:$0xff] %v815
  %824 = vst [vmem:[#allocation3 + $0x148] sm:$0xff] %v816
  %825 = vst [vmem:[#allocation3 + $0x150] sm:$0xff] %v817
  %826 = vst [vmem:[#allocation3 + $0x158] sm:$0xff] %v818
  %v827 = vld [vmem:[#allocation2] sm:$0xff]
  %v828 = vld [vmem:[#allocation2 + $0x8] sm:$0xff]
  %v829 = vld [vmem:[#allocation2 + $0x10] sm:$0xff]
  %v830 = vld [vmem:[#allocation2 + $0x18] sm:$0xff]
  %v831 = vld [vmem:[#allocation2 + $0x20] sm:$0xff]
  %s832 = scalar_lea.vmem %s2, 35
  %v833 = vld [vmem:[%s832] ss:$8 sm:$0xf]
  %v835 = vlaneseq
  %v836 = vshrl.u32 %v835, 7
  %v837 = vsub.s32 0, %v836
  %v838 = vrot.slane %v833, %v837
  %v839 = vlaneseq
  %v840 = vshrl.u32 %v839, 7
  %v841 = vsub.s32 1, %v840
  %v842 = vrot.slane %v833, %v841
  %v843 = vlaneseq
  %v844 = vshrl.u32 %v843, 7
  %v845 = vsub.s32 2, %v844
  %v846 = vrot.slane %v833, %v845
  %v847 = vlaneseq
  %v848 = vshrl.u32 %v847, 7
  %v849 = vsub.s32 3, %v848
  %v850 = vrot.slane %v833, %v849
  %851 = vrot.lane.b32.xlu0 %v838, 20
  %v852 = vpop.permute.xlu0 %851
  %853 = vrot.lane.b32.xlu0 %v842, 20
  %v854 = vpop.permute.xlu0 %853
  %855 = vrot.lane.b32.xlu0 %v846, 20
  %v856 = vpop.permute.xlu0 %855
  %857 = vrot.lane.b32.xlu0 %v850, 20
  %v858 = vpop.permute.xlu0 %857
  %vm859 = vcmask 162816
  %v860 = vsel %vm859, %v852, %v854
  %v861 = vsel %vm859, %v854, %v856
  %v862 = vsel %vm859, %v856, %v858
  %v868 = vmul.f32 %v827, %v852
  %v869 = vmul.f32 %v828, %v860
  %v870 = vmul.f32 %v829, %v861
  %v871 = vmul.f32 %v830, %v862
  %v872 = vmul.f32 %v831, %v858
  %878 = vrot.lane.b32.xlu0 %v868, 108
  %v879 = vpop.permute.xlu0 %878
  %880 = vrot.lane.b32.xlu0 %v869, 108
  %v881 = vpop.permute.xlu0 %880
  %882 = vrot.lane.b32.xlu0 %v870, 108
  %v883 = vpop.permute.xlu0 %882
  %884 = vrot.lane.b32.xlu0 %v871, 108
  %v885 = vpop.permute.xlu0 %884
  %886 = vrot.lane.b32.xlu0 %v872, 108
  %v887 = vpop.permute.xlu0 %886
  %vm888 = vcmask 883712
  %v889 = vsel %vm888, %v879, %v881
  %v890 = vsel %vm888, %v881, %v883
  %v891 = vsel %vm888, %v883, %v885
  %v892 = vsel %vm888, %v885, %v887
  %897 = vst [vmem:[#allocation3 + $0x160] sm:$0xff] %v889
  %898 = vst [vmem:[#allocation3 + $0x168] sm:$0xff] %v890
  %899 = vst [vmem:[#allocation3 + $0x170] sm:$0xff] %v891
  %900 = vst [vmem:[#allocation3 + $0x178] sm:$0xff] %v892
  %v901 = vld [vmem:[#allocation2] sm:$0xff]
  %v902 = vld [vmem:[#allocation2 + $0x8] sm:$0xff]
  %v903 = vld [vmem:[#allocation2 + $0x10] sm:$0xff]
  %v904 = vld [vmem:[#allocation2 + $0x18] sm:$0xff]
  %v905 = vld [vmem:[#allocation2 + $0x20] sm:$0xff]
  %s906 = scalar_lea.vmem %s2, 36
  %v907 = vld [vmem:[%s906] ss:$8 sm:$0xf]
  %v909 = vlaneseq
  %v910 = vshrl.u32 %v909, 7
  %v911 = vsub.s32 0, %v910
  %v912 = vrot.slane %v907, %v911
  %v913 = vlaneseq
  %v914 = vshrl.u32 %v913, 7
  %v915 = vsub.s32 1, %v914
  %v916 = vrot.slane %v907, %v915
  %v917 = vlaneseq
  %v918 = vshrl.u32 %v917, 7
  %v919 = vsub.s32 2, %v918
  %v920 = vrot.slane %v907, %v919
  %v921 = vlaneseq
  %v922 = vshrl.u32 %v921, 7
  %v923 = vsub.s32 3, %v922
  %v924 = vrot.slane %v907, %v923
  %925 = vrot.lane.b32.xlu0 %v912, 21
  %v926 = vpop.permute.xlu0 %925
  %927 = vrot.lane.b32.xlu0 %v916, 21
  %v928 = vpop.permute.xlu0 %927
  %929 = vrot.lane.b32.xlu0 %v920, 21
  %v930 = vpop.permute.xlu0 %929
  %931 = vrot.lane.b32.xlu0 %v924, 21
  %v932 = vpop.permute.xlu0 %931
  %vm933 = vcmask 171008
  %v934 = vsel %vm933, %v926, %v928
  %v935 = vsel %vm933, %v928, %v930
  %v936 = vsel %vm933, %v930, %v932
  %v942 = vmul.f32 %v901, %v926
  %v943 = vmul.f32 %v902, %v934
  %v944 = vmul.f32 %v903, %v935
  %v945 = vmul.f32 %v904, %v936
  %v946 = vmul.f32 %v905, %v932
  %952 = vrot.lane.b32.xlu0 %v942, 107
  %v953 = vpop.permute.xlu0 %952
  %954 = vrot.lane.b32.xlu0 %v943, 107
  %v955 = vpop.permute.xlu0 %954
  %956 = vrot.lane.b32.xlu0 %v944, 107
  %v957 = vpop.permute.xlu0 %956
  %958 = vrot.lane.b32.xlu0 %v945, 107
  %v959 = vpop.permute.xlu0 %958
  %960 = vrot.lane.b32.xlu0 %v946, 107
  %v961 = vpop.permute.xlu0 %960
  %vm962 = vcmask 875520
  %v963 = vsel %vm962, %v953, %v955
  %v964 = vsel %vm962, %v955, %v957
  %v965 = vsel %vm962, %v957, %v959
  %v966 = vsel %vm962, %v959, %v961
  %971 = vst [vmem:[#allocation3 + $0x180] sm:$0xff] %v963
  %972 = vst [vmem:[#allocation3 + $0x188] sm:$0xff] %v964
  %973 = vst [vmem:[#allocation3 + $0x190] sm:$0xff] %v965
  %974 = vst [vmem:[#allocation3 + $0x198] sm:$0xff] %v966
  %v975 = vld [vmem:[#allocation2] sm:$0xff]
  %v976 = vld [vmem:[#allocation2 + $0x8] sm:$0xff]
  %v977 = vld [vmem:[#allocation2 + $0x10] sm:$0xff]
  %v978 = vld [vmem:[#allocation2 + $0x18] sm:$0xff]
  %v979 = vld [vmem:[#allocation2 + $0x20] sm:$0xff]
  %s980 = scalar_lea.vmem %s2, 37
  %v981 = vld [vmem:[%s980] ss:$8 sm:$0xf]
  %v983 = vlaneseq
  %v984 = vshrl.u32 %v983, 7
  %v985 = vsub.s32 0, %v984
  %v986 = vrot.slane %v981, %v985
  %v987 = vlaneseq
  %v988 = vshrl.u32 %v987, 7
  %v989 = vsub.s32 1, %v988
  %v990 = vrot.slane %v981, %v989
  %v991 = vlaneseq
  %v992 = vshrl.u32 %v991, 7
  %v993 = vsub.s32 2, %v992
  %v994 = vrot.slane %v981, %v993
  %v995 = vlaneseq
  %v996 = vshrl.u32 %v995, 7
  %v997 = vsub.s32 3, %v996
  %v998 = vrot.slane %v981, %v997
  %999 = vrot.lane.b32.xlu0 %v986, 22
  %v1000 = vpop.permute.xlu0 %999
  %1001 = vrot.lane.b32.xlu0 %v990, 22
  %v1002 = vpop.permute.xlu0 %1001
  %1003 = vrot.lane.b32.xlu0 %v994, 22
  %v1004 = vpop.permute.xlu0 %1003
  %1005 = vrot.lane.b32.xlu0 %v998, 22
  %v1006 = vpop.permute.xlu0 %1005
  %vm1007 = vcmask 179200
  %v1008 = vsel %vm1007, %v1000, %v1002
  %v1009 = vsel %vm1007, %v1002, %v1004
  %v1010 = vsel %vm1007, %v1004, %v1006
  %v1016 = vmul.f32 %v975, %v1000
  %v1017 = vmul.f32 %v976, %v1008
  %v1018 = vmul.f32 %v977, %v1009
  %v1019 = vmul.f32 %v978, %v1010
  %v1020 = vmul.f32 %v979, %v1006
  %1026 = vrot.lane.b32.xlu0 %v1016, 106
  %v1027 = vpop.permute.xlu0 %1026
  %1028 = vrot.lane.b32.xlu0 %v1017, 106
  %v1029 = vpop.permute.xlu0 %1028
  %1030 = vrot.lane.b32.xlu0 %v1018, 106
  %v1031 = vpop.permute.xlu0 %1030
  %1032 = vrot.lane.b32.xlu0 %v1019, 106
  %v1033 = vpop.permute.xlu0 %1032
  %1034 = vrot.lane.b32.xlu0 %v1020, 106
  %v1035 = vpop.permute.xlu0 %1034
  %vm1036 = vcmask 867328
  %v1037 = vsel %vm1036, %v1027, %v1029
  %v1038 = vsel %vm1036, %v1029, %v1031
  %v1039 = vsel %vm1036, %v1031, %v1033
  %v1040 = vsel %vm1036, %v1033, %v1035
  %1045 = vst [vmem:[#allocation3 + $0x1a0] sm:$0xff] %v1037
  %1046 = vst [vmem:[#allocation3 + $0x1a8] sm:$0xff] %v1038
  %1047 = vst [vmem:[#allocation3 + $0x1b0] sm:$0xff] %v1039
  %1048 = vst [vmem:[#allocation3 + $0x1b8] sm:$0xff] %v1040
  %v1049 = vld [vmem:[#allocation2] sm:$0xff]
  %v1050 = vld [vmem:[#allocation2 + $0x8] sm:$0xff]
  %v1051 = vld [vmem:[#allocation2 + $0x10] sm:$0xff]
  %v1052 = vld [vmem:[#allocation2 + $0x18] sm:$0xff]
  %v1053 = vld [vmem:[#allocation2 + $0x20] sm:$0xff]
  %s1054 = scalar_lea.vmem %s2, 38
  %v1055 = vld [vmem:[%s1054] ss:$8 sm:$0xf]
  %v1057 = vlaneseq
  %v1058 = vshrl.u32 %v1057, 7
  %v1059 = vsub.s32 0, %v1058
  %v1060 = vrot.slane %v1055, %v1059
  %v1061 = vlaneseq
  %v1062 = vshrl.u32 %v1061, 7
  %v1063 = vsub.s32 1, %v1062
  %v1064 = vrot.slane %v1055, %v1063
  %v1065 = vlaneseq
  %v1066 = vshrl.u32 %v1065, 7
  %v1067 = vsub.s32 2, %v1066
  %v1068 = vrot.slane %v1055, %v1067
  %v1069 = vlaneseq
  %v1070 = vshrl.u32 %v1069, 7
  %v1071 = vsub.s32 3, %v1070
  %v1072 = vrot.slane %v1055, %v1071
  %1073 = vrot.lane.b32.xlu0 %v1060, 32
  %v1074 = vpop.permute.xlu0 %1073
  %1075 = vrot.lane.b32.xlu0 %v1064, 32
  %v1076 = vpop.permute.xlu0 %1075
  %1077 = vrot.lane.b32.xlu0 %v1068, 32
  %v1078 = vpop.permute.xlu0 %1077
  %1079 = vrot.lane.b32.xlu0 %v1072, 32
  %v1080 = vpop.permute.xlu0 %1079
  %vm1081 = vcmask 261120
  %v1082 = vsel %vm1081, %v1074, %v1076
  %v1083 = vsel %vm1081, %v1076, %v1078
  %v1084 = vsel %vm1081, %v1078, %v1080
  %v1090 = vmul.f32 %v1049, %v1074
  %v1091 = vmul.f32 %v1050, %v1082
  %v1092 = vmul.f32 %v1051, %v1083
  %v1093 = vmul.f32 %v1052, %v1084
  %v1094 = vmul.f32 %v1053, %v1080
  %1100 = vrot.lane.b32.xlu0 %v1090, 96
  %v1101 = vpop.permute.xlu0 %1100
  %1102 = vrot.lane.b32.xlu0 %v1091, 96
  %v1103 = vpop.permute.xlu0 %1102
  %1104 = vrot.lane.b32.xlu0 %v1092, 96
  %v1105 = vpop.permute.xlu0 %1104
  %1106 = vrot.lane.b32.xlu0 %v1093, 96
  %v1107 = vpop.permute.xlu0 %1106
  %1108 = vrot.lane.b32.xlu0 %v1094, 96
  %v1109 = vpop.permute.xlu0 %1108
  %vm1110 = vcmask 785408
  %v1111 = vsel %vm1110, %v1101, %v1103
  %v1112 = vsel %vm1110, %v1103, %v1105
  %v1113 = vsel %vm1110, %v1105, %v1107
  %v1114 = vsel %vm1110, %v1107, %v1109
  %1119 = vst [vmem:[#allocation3 + $0x1c0] sm:$0xff] %v1111
  %1120 = vst [vmem:[#allocation3 + $0x1c8] sm:$0xff] %v1112
  %1121 = vst [vmem:[#allocation3 + $0x1d0] sm:$0xff] %v1113
  %1122 = vst [vmem:[#allocation3 + $0x1d8] sm:$0xff] %v1114
  %v1123 = vld [vmem:[#allocation2] sm:$0xff]
  %v1124 = vld [vmem:[#allocation2 + $0x8] sm:$0xff]
  %v1125 = vld [vmem:[#allocation2 + $0x10] sm:$0xff]
  %v1126 = vld [vmem:[#allocation2 + $0x18] sm:$0xff]
  %v1127 = vld [vmem:[#allocation2 + $0x20] sm:$0xff]
  %s1128 = scalar_lea.vmem %s2, 39
  %v1129 = vld [vmem:[%s1128] ss:$8 sm:$0xf]
  %v1131 = vlaneseq
  %v1132 = vshrl.u32 %v1131, 7
  %v1133 = vsub.s32 0, %v1132
  %v1134 = vrot.slane %v1129, %v1133
  %v1135 = vlaneseq
  %v1136 = vshrl.u32 %v1135, 7
  %v1137 = vsub.s32 1, %v1136
  %v1138 = vrot.slane %v1129, %v1137
  %v1139 = vlaneseq
  %v1140 = vshrl.u32 %v1139, 7
  %v1141 = vsub.s32 2, %v1140
  %v1142 = vrot.slane %v1129, %v1141
  %v1143 = vlaneseq
  %v1144 = vshrl.u32 %v1143, 7
  %v1145 = vsub.s32 3, %v1144
  %v1146 = vrot.slane %v1129, %v1145
  %1147 = vrot.lane.b32.xlu0 %v1134, 33
  %v1148 = vpop.permute.xlu0 %1147
  %1149 = vrot.lane.b32.xlu0 %v1138, 33
  %v1150 = vpop.permute.xlu0 %1149
  %1151 = vrot.lane.b32.xlu0 %v1142, 33
  %v1152 = vpop.permute.xlu0 %1151
  %1153 = vrot.lane.b32.xlu0 %v1146, 33
  %v1154 = vpop.permute.xlu0 %1153
  %vm1155 = vcmask 269312
  %v1156 = vsel %vm1155, %v1148, %v1150
  %v1157 = vsel %vm1155, %v1150, %v1152
  %v1158 = vsel %vm1155, %v1152, %v1154
  %v1164 = vmul.f32 %v1123, %v1148
  %v1165 = vmul.f32 %v1124, %v1156
  %v1166 = vmul.f32 %v1125, %v1157
  %v1167 = vmul.f32 %v1126, %v1158
  %v1168 = vmul.f32 %v1127, %v1154
  %1174 = vrot.lane.b32.xlu0 %v1164, 95
  %v1175 = vpop.permute.xlu0 %1174
  %1176 = vrot.lane.b32.xlu0 %v1165, 95
  %v1177 = vpop.permute.xlu0 %1176
  %1178 = vrot.lane.b32.xlu0 %v1166, 95
  %v1179 = vpop.permute.xlu0 %1178
  %1180 = vrot.lane.b32.xlu0 %v1167, 95
  %v1181 = vpop.permute.xlu0 %1180
  %1182 = vrot.lane.b32.xlu0 %v1168, 95
  %v1183 = vpop.permute.xlu0 %1182
  %vm1184 = vcmask 777216
  %v1185 = vsel %vm1184, %v1175, %v1177
  %v1186 = vsel %vm1184, %v1177, %v1179
  %v1187 = vsel %vm1184, %v1179, %v1181
  %v1188 = vsel %vm1184, %v1181, %v1183
  %1193 = vst [vmem:[#allocation3 + $0x1e0] sm:$0xff] %v1185
  %1194 = vst [vmem:[#allocation3 + $0x1e8] sm:$0xff] %v1186
  %1195 = vst [vmem:[#allocation3 + $0x1f0] sm:$0xff] %v1187
  %1196 = vst [vmem:[#allocation3 + $0x1f8] sm:$0xff] %v1188
  %v1197 = vld [vmem:[#allocation2] sm:$0xff]
  %v1198 = vld [vmem:[#allocation2 + $0x8] sm:$0xff]
  %v1199 = vld [vmem:[#allocation2 + $0x10] sm:$0xff]
  %v1200 = vld [vmem:[#allocation2 + $0x18] sm:$0xff]
  %v1201 = vld [vmem:[#allocation2 + $0x20] sm:$0xff]
  %s1202 = scalar_lea.vmem %s2, 64
  %v1203 = vld [vmem:[%s1202] ss:$8 sm:$0xf]
  %v1205 = vlaneseq
  %v1206 = vshrl.u32 %v1205, 7
  %v1207 = vsub.s32 0, %v1206
  %v1208 = vrot.slane %v1203, %v1207
  %v1209 = vlaneseq
  %v1210 = vshrl.u32 %v1209, 7
  %v1211 = vsub.s32 1, %v1210
  %v1212 = vrot.slane %v1203, %v1211
  %v1213 = vlaneseq
  %v1214 = vshrl.u32 %v1213, 7
  %v1215 = vsub.s32 2, %v1214
  %v1216 = vrot.slane %v1203, %v1215
  %v1217 = vlaneseq
  %v1218 = vshrl.u32 %v1217, 7
  %v1219 = vsub.s32 3, %v1218
  %v1220 = vrot.slane %v1203, %v1219
  %1221 = vrot.lane.b32.xlu0 %v1208, 34
  %v1222 = vpop.permute.xlu0 %1221
  %1223 = vrot.lane.b32.xlu0 %v1212, 34
  %v1224 = vpop.permute.xlu0 %1223
  %1225 = vrot.lane.b32.xlu0 %v1216, 34
  %v1226 = vpop.permute.xlu0 %1225
  %1227 = vrot.lane.b32.xlu0 %v1220, 34
  %v1228 = vpop.permute.xlu0 %1227
  %vm1229 = vcmask 277504
  %v1230 = vsel %vm1229, %v1222, %v1224
  %v1231 = vsel %vm1229, %v1224, %v1226
  %v1232 = vsel %vm1229, %v1226, %v1228
  %v1238 = vmul.f32 %v1197, %v1222
  %v1239 = vmul.f32 %v1198, %v1230
  %v1240 = vmul.f32 %v1199, %v1231
  %v1241 = vmul.f32 %v1200, %v1232
  %v1242 = vmul.f32 %v1201, %v1228
  %1248 = vrot.lane.b32.xlu0 %v1238, 94
  %v1249 = vpop.permute.xlu0 %1248
  %1250 = vrot.lane.b32.xlu0 %v1239, 94
  %v1251 = vpop.permute.xlu0 %1250
  %1252 = vrot.lane.b32.xlu0 %v1240, 94
  %v1253 = vpop.permute.xlu0 %1252
  %1254 = vrot.lane.b32.xlu0 %v1241, 94
  %v1255 = vpop.permute.xlu0 %1254
  %1256 = vrot.lane.b32.xlu0 %v1242, 94
  %v1257 = vpop.permute.xlu0 %1256
  %vm1258 = vcmask 769024
  %v1259 = vsel %vm1258, %v1249, %v1251
  %v1260 = vsel %vm1258, %v1251, %v1253
  %v1261 = vsel %vm1258, %v1253, %v1255
  %v1262 = vsel %vm1258, %v1255, %v1257
  %1267 = vst [vmem:[#allocation3 + $0x200] sm:$0xff] %v1259
  %1268 = vst [vmem:[#allocation3 + $0x208] sm:$0xff] %v1260
  %1269 = vst [vmem:[#allocation3 + $0x210] sm:$0xff] %v1261
  %1270 = vst [vmem:[#allocation3 + $0x218] sm:$0xff] %v1262
  %v1271 = vld [vmem:[#allocation2] sm:$0xff]
  %v1272 = vld [vmem:[#allocation2 + $0x8] sm:$0xff]
  %v1273 = vld [vmem:[#allocation2 + $0x10] sm:$0xff]
  %v1274 = vld [vmem:[#allocation2 + $0x18] sm:$0xff]
  %v1275 = vld [vmem:[#allocation2 + $0x20] sm:$0xff]
  %s1276 = scalar_lea.vmem %s2, 65
  %v1277 = vld [vmem:[%s1276] ss:$8 sm:$0xf]
  %v1279 = vlaneseq
  %v1280 = vshrl.u32 %v1279, 7
  %v1281 = vsub.s32 0, %v1280
  %v1282 = vrot.slane %v1277, %v1281
  %v1283 = vlaneseq
  %v1284 = vshrl.u32 %v1283, 7
  %v1285 = vsub.s32 1, %v1284
  %v1286 = vrot.slane %v1277, %v1285
  %v1287 = vlaneseq
  %v1288 = vshrl.u32 %v1287, 7
  %v1289 = vsub.s32 2, %v1288
  %v1290 = vrot.slane %v1277, %v1289
  %v1291 = vlaneseq
  %v1292 = vshrl.u32 %v1291, 7
  %v1293 = vsub.s32 3, %v1292
  %v1294 = vrot.slane %v1277, %v1293
  %1295 = vrot.lane.b32.xlu0 %v1282, 35
  %v1296 = vpop.permute.xlu0 %1295
  %1297 = vrot.lane.b32.xlu0 %v1286, 35
  %v1298 = vpop.permute.xlu0 %1297
  %1299 = vrot.lane.b32.xlu0 %v1290, 35
  %v1300 = vpop.permute.xlu0 %1299
  %1301 = vrot.lane.b32.xlu0 %v1294, 35
  %v1302 = vpop.permute.xlu0 %1301
  %vm1303 = vcmask 285696
  %v1304 = vsel %vm1303, %v1296, %v1298
  %v1305 = vsel %vm1303, %v1298, %v1300
  %v1306 = vsel %vm1303, %v1300, %v1302
  %v1312 = vmul.f32 %v1271, %v1296
  %v1313 = vmul.f32 %v1272, %v1304
  %v1314 = vmul.f32 %v1273, %v1305
  %v1315 = vmul.f32 %v1274, %v1306
  %v1316 = vmul.f32 %v1275, %v1302
  %1322 = vrot.lane.b32.xlu0 %v1312, 93
  %v1323 = vpop.permute.xlu0 %1322
  %1324 = vrot.lane.b32.xlu0 %v1313, 93
  %v1325 = vpop.permute.xlu0 %1324
  %1326 = vrot.lane.b32.xlu0 %v1314, 93
  %v1327 = vpop.permute.xlu0 %1326
  %1328 = vrot.lane.b32.xlu0 %v1315, 93
  %v1329 = vpop.permute.xlu0 %1328
  %1330 = vrot.lane.b32.xlu0 %v1316, 93
  %v1331 = vpop.permute.xlu0 %1330
  %vm1332 = vcmask 760832
  %v1333 = vsel %vm1332, %v1323, %v1325
  %v1334 = vsel %vm1332, %v1325, %v1327
  %v1335 = vsel %vm1332, %v1327, %v1329
  %v1336 = vsel %vm1332, %v1329, %v1331
  %1341 = vst [vmem:[#allocation3 + $0x220] sm:$0xff] %v1333
  %1342 = vst [vmem:[#allocation3 + $0x228] sm:$0xff] %v1334
  %1343 = vst [vmem:[#allocation3 + $0x230] sm:$0xff] %v1335
  %1344 = vst [vmem:[#allocation3 + $0x238] sm:$0xff] %v1336
  %v1345 = vld [vmem:[#allocation2] sm:$0xff]
  %v1346 = vld [vmem:[#allocation2 + $0x8] sm:$0xff]
  %v1347 = vld [vmem:[#allocation2 + $0x10] sm:$0xff]
  %v1348 = vld [vmem:[#allocation2 + $0x18] sm:$0xff]
  %v1349 = vld [vmem:[#allocation2 + $0x20] sm:$0xff]
  %s1350 = scalar_lea.vmem %s2, 66
  %v1351 = vld [vmem:[%s1350] ss:$8 sm:$0xf]
  %v1353 = vlaneseq
  %v1354 = vshrl.u32 %v1353, 7
  %v1355 = vsub.s32 0, %v1354
  %v1356 = vrot.slane %v1351, %v1355
  %v1357 = vlaneseq
  %v1358 = vshrl.u32 %v1357, 7
  %v1359 = vsub.s32 1, %v1358
  %v1360 = vrot.slane %v1351, %v1359
  %v1361 = vlaneseq
  %v1362 = vshrl.u32 %v1361, 7
  %v1363 = vsub.s32 2, %v1362
  %v1364 = vrot.slane %v1351, %v1363
  %v1365 = vlaneseq
  %v1366 = vshrl.u32 %v1365, 7
  %v1367 = vsub.s32 3, %v1366
  %v1368 = vrot.slane %v1351, %v1367
  %1369 = vrot.lane.b32.xlu0 %v1356, 36
  %v1370 = vpop.permute.xlu0 %1369
  %1371 = vrot.lane.b32.xlu0 %v1360, 36
  %v1372 = vpop.permute.xlu0 %1371
  %1373 = vrot.lane.b32.xlu0 %v1364, 36
  %v1374 = vpop.permute.xlu0 %1373
  %1375 = vrot.lane.b32.xlu0 %v1368, 36
  %v1376 = vpop.permute.xlu0 %1375
  %vm1377 = vcmask 293888
  %v1378 = vsel %vm1377, %v1370, %v1372
  %v1379 = vsel %vm1377, %v1372, %v1374
  %v1380 = vsel %vm1377, %v1374, %v1376
  %v1386 = vmul.f32 %v1345, %v1370
  %v1387 = vmul.f32 %v1346, %v1378
  %v1388 = vmul.f32 %v1347, %v1379
  %v1389 = vmul.f32 %v1348, %v1380
  %v1390 = vmul.f32 %v1349, %v1376
  %1396 = vrot.lane.b32.xlu0 %v1386, 92
  %v1397 = vpop.permute.xlu0 %1396
  %1398 = vrot.lane.b32.xlu0 %v1387, 92
  %v1399 = vpop.permute.xlu0 %1398
  %1400 = vrot.lane.b32.xlu0 %v1388, 92
  %v1401 = vpop.permute.xlu0 %1400
  %1402 = vrot.lane.b32.xlu0 %v1389, 92
  %v1403 = vpop.permute.xlu0 %1402
  %1404 = vrot.lane.b32.xlu0 %v1390, 92
  %v1405 = vpop.permute.xlu0 %1404
  %vm1406 = vcmask 752640
  %v1407 = vsel %vm1406, %v1397, %v1399
  %v1408 = vsel %vm1406, %v1399, %v1401
  %v1409 = vsel %vm1406, %v1401, %v1403
  %v1410 = vsel %vm1406, %v1403, %v1405
  %1415 = vst [vmem:[#allocation3 + $0x240] sm:$0xff] %v1407
  %1416 = vst [vmem:[#allocation3 + $0x248] sm:$0xff] %v1408
  %1417 = vst [vmem:[#allocation3 + $0x250] sm:$0xff] %v1409
  %1418 = vst [vmem:[#allocation3 + $0x258] sm:$0xff] %v1410
  %v1419 = vld [vmem:[#allocation2] sm:$0xff]
  %v1420 = vld [vmem:[#allocation2 + $0x8] sm:$0xff]
  %v1421 = vld [vmem:[#allocation2 + $0x10] sm:$0xff]
  %v1422 = vld [vmem:[#allocation2 + $0x18] sm:$0xff]
  %v1423 = vld [vmem:[#allocation2 + $0x20] sm:$0xff]
  %s1424 = scalar_lea.vmem %s2, 67
  %v1425 = vld [vmem:[%s1424] ss:$8 sm:$0xf]
  %v1427 = vlaneseq
  %v1428 = vshrl.u32 %v1427, 7
  %v1429 = vsub.s32 0, %v1428
  %v1430 = vrot.slane %v1425, %v1429
  %v1431 = vlaneseq
  %v1432 = vshrl.u32 %v1431, 7
  %v1433 = vsub.s32 1, %v1432
  %v1434 = vrot.slane %v1425, %v1433
  %v1435 = vlaneseq
  %v1436 = vshrl.u32 %v1435, 7
  %v1437 = vsub.s32 2, %v1436
  %v1438 = vrot.slane %v1425, %v1437
  %v1439 = vlaneseq
  %v1440 = vshrl.u32 %v1439, 7
  %v1441 = vsub.s32 3, %v1440
  %v1442 = vrot.slane %v1425, %v1441
  %1443 = vrot.lane.b32.xlu0 %v1430, 37
  %v1444 = vpop.permute.xlu0 %1443
  %1445 = vrot.lane.b32.xlu0 %v1434, 37
  %v1446 = vpop.permute.xlu0 %1445
  %1447 = vrot.lane.b32.xlu0 %v1438, 37
  %v1448 = vpop.permute.xlu0 %1447
  %1449 = vrot.lane.b32.xlu0 %v1442, 37
  %v1450 = vpop.permute.xlu0 %1449
  %vm1451 = vcmask 302080
  %v1452 = vsel %vm1451, %v1444, %v1446
  %v1453 = vsel %vm1451, %v1446, %v1448
  %v1454 = vsel %vm1451, %v1448, %v1450
  %v1460 = vmul.f32 %v1419, %v1444
  %v1461 = vmul.f32 %v1420, %v1452
  %v1462 = vmul.f32 %v1421, %v1453
  %v1463 = vmul.f32 %v1422, %v1454
  %v1464 = vmul.f32 %v1423, %v1450
  %1470 = vrot.lane.b32.xlu0 %v1460, 91
  %v1471 = vpop.permute.xlu0 %1470
  %1472 = vrot.lane.b32.xlu0 %v1461, 91
  %v1473 = vpop.permute.xlu0 %1472
  %1474 = vrot.lane.b32.xlu0 %v1462, 91
  %v1475 = vpop.permute.xlu0 %1474
  %1476 = vrot.lane.b32.xlu0 %v1463, 91
  %v1477 = vpop.permute.xlu0 %1476
  %1478 = vrot.lane.b32.xlu0 %v1464, 91
  %v1479 = vpop.permute.xlu0 %1478
  %vm1480 = vcmask 744448
  %v1481 = vsel %vm1480, %v1471, %v1473
  %v1482 = vsel %vm1480, %v1473, %v1475
  %v1483 = vsel %vm1480, %v1475, %v1477
  %v1484 = vsel %vm1480, %v1477, %v1479
  %1489 = vst [vmem:[#allocation3 + $0x260] sm:$0xff] %v1481
  %1490 = vst [vmem:[#allocation3 + $0x268] sm:$0xff] %v1482
  %1491 = vst [vmem:[#allocation3 + $0x270] sm:$0xff] %v1483
  %1492 = vst [vmem:[#allocation3 + $0x278] sm:$0xff] %v1484
  %v1493 = vld [vmem:[#allocation2] sm:$0xff]
  %v1494 = vld [vmem:[#allocation2 + $0x8] sm:$0xff]
  %v1495 = vld [vmem:[#allocation2 + $0x10] sm:$0xff]
  %v1496 = vld [vmem:[#allocation2 + $0x18] sm:$0xff]
  %v1497 = vld [vmem:[#allocation2 + $0x20] sm:$0xff]
  %s1498 = scalar_lea.vmem %s2, 68
  %v1499 = vld [vmem:[%s1498] ss:$8 sm:$0xf]
  %v1501 = vlaneseq
  %v1502 = vshrl.u32 %v1501, 7
  %v1503 = vsub.s32 0, %v1502
  %v1504 = vrot.slane %v1499, %v1503
  %v1505 = vlaneseq
  %v1506 = vshrl.u32 %v1505, 7
  %v1507 = vsub.s32 1, %v1506
  %v1508 = vrot.slane %v1499, %v1507
  %v1509 = vlaneseq
  %v1510 = vshrl.u32 %v1509, 7
  %v1511 = vsub.s32 2, %v1510
  %v1512 = vrot.slane %v1499, %v1511
  %v1513 = vlaneseq
  %v1514 = vshrl.u32 %v1513, 7
  %v1515 = vsub.s32 3, %v1514
  %v1516 = vrot.slane %v1499, %v1515
  %1517 = vrot.lane.b32.xlu0 %v1504, 38
  %v1518 = vpop.permute.xlu0 %1517
  %1519 = vrot.lane.b32.xlu0 %v1508, 38
  %v1520 = vpop.permute.xlu0 %1519
  %1521 = vrot.lane.b32.xlu0 %v1512, 38
  %v1522 = vpop.permute.xlu0 %1521
  %1523 = vrot.lane.b32.xlu0 %v1516, 38
  %v1524 = vpop.permute.xlu0 %1523
  %vm1525 = vcmask 310272
  %v1526 = vsel %vm1525, %v1518, %v1520
  %v1527 = vsel %vm1525, %v1520, %v1522
  %v1528 = vsel %vm1525, %v1522, %v1524
  %v1534 = vmul.f32 %v1493, %v1518
  %v1535 = vmul.f32 %v1494, %v1526
  %v1536 = vmul.f32 %v1495, %v1527
  %v1537 = vmul.f32 %v1496, %v1528
  %v1538 = vmul.f32 %v1497, %v1524
  %1544 = vrot.lane.b32.xlu0 %v1534, 90
  %v1545 = vpop.permute.xlu0 %1544
  %1546 = vrot.lane.b32.xlu0 %v1535, 90
  %v1547 = vpop.permute.xlu0 %1546
  %1548 = vrot.lane.b32.xlu0 %v1536, 90
  %v1549 = vpop.permute.xlu0 %1548
  %1550 = vrot.lane.b32.xlu0 %v1537, 90
  %v1551 = vpop.permute.xlu0 %1550
  %1552 = vrot.lane.b32.xlu0 %v1538, 90
  %v1553 = vpop.permute.xlu0 %1552
  %vm1554 = vcmask 736256
  %v1555 = vsel %vm1554, %v1545, %v1547
  %v1556 = vsel %vm1554, %v1547, %v1549
  %v1557 = vsel %vm1554, %v1549, %v1551
  %v1558 = vsel %vm1554, %v1551, %v1553
  %1563 = vst [vmem:[#allocation3 + $0x280] sm:$0xff] %v1555
  %1564 = vst [vmem:[#allocation3 + $0x288] sm:$0xff] %v1556
  %1565 = vst [vmem:[#allocation3 + $0x290] sm:$0xff] %v1557
  %1566 = vst [vmem:[#allocation3 + $0x298] sm:$0xff] %v1558
  %v1567 = vld [vmem:[#allocation2] sm:$0xff]
  %v1568 = vld [vmem:[#allocation2 + $0x8] sm:$0xff]
  %v1569 = vld [vmem:[#allocation2 + $0x10] sm:$0xff]
  %v1570 = vld [vmem:[#allocation2 + $0x18] sm:$0xff]
  %v1571 = vld [vmem:[#allocation2 + $0x20] sm:$0xff]
  %s1572 = scalar_lea.vmem %s2, 69
  %v1573 = vld [vmem:[%s1572] ss:$8 sm:$0xf]
  %v1575 = vlaneseq
  %v1576 = vshrl.u32 %v1575, 7
  %v1577 = vsub.s32 0, %v1576
  %v1578 = vrot.slane %v1573, %v1577
  %v1579 = vlaneseq
  %v1580 = vshrl.u32 %v1579, 7
  %v1581 = vsub.s32 1, %v1580
  %v1582 = vrot.slane %v1573, %v1581
  %v1583 = vlaneseq
  %v1584 = vshrl.u32 %v1583, 7
  %v1585 = vsub.s32 2, %v1584
  %v1586 = vrot.slane %v1573, %v1585
  %v1587 = vlaneseq
  %v1588 = vshrl.u32 %v1587, 7
  %v1589 = vsub.s32 3, %v1588
  %v1590 = vrot.slane %v1573, %v1589
  %1591 = vrot.lane.b32.xlu0 %v1578, 48
  %v1592 = vpop.permute.xlu0 %1591
  %1593 = vrot.lane.b32.xlu0 %v1582, 48
  %v1594 = vpop.permute.xlu0 %1593
  %1595 = vrot.lane.b32.xlu0 %v1586, 48
  %v1596 = vpop.permute.xlu0 %1595
  %1597 = vrot.lane.b32.xlu0 %v1590, 48
  %v1598 = vpop.permute.xlu0 %1597
  %vm1599 = vcmask 392192
  %v1600 = vsel %vm1599, %v1592, %v1594
  %v1601 = vsel %vm1599, %v1594, %v1596
  %v1602 = vsel %vm1599, %v1596, %v1598
  %v1608 = vmul.f32 %v1567, %v1592
  %v1609 = vmul.f32 %v1568, %v1600
  %v1610 = vmul.f32 %v1569, %v1601
  %v1611 = vmul.f32 %v1570, %v1602
  %v1612 = vmul.f32 %v1571, %v1598
  %1618 = vrot.lane.b32.xlu0 %v1608, 80
  %v1619 = vpop.permute.xlu0 %1618
  %1620 = vrot.lane.b32.xlu0 %v1609, 80
  %v1621 = vpop.permute.xlu0 %1620
  %1622 = vrot.lane.b32.xlu0 %v1610, 80
  %v1623 = vpop.permute.xlu0 %1622
  %1624 = vrot.lane.b32.xlu0 %v1611, 80
  %v1625 = vpop.permute.xlu0 %1624
  %1626 = vrot.lane.b32.xlu0 %v1612, 80
  %v1627 = vpop.permute.xlu0 %1626
  %vm1628 = vcmask 654336
  %v1629 = vsel %vm1628, %v1619, %v1621
  %v1630 = vsel %vm1628, %v1621, %v1623
  %v1631 = vsel %vm1628, %v1623, %v1625
  %v1632 = vsel %vm1628, %v1625, %v1627
  %1637 = vst [vmem:[#allocation3 + $0x2a0] sm:$0xff] %v1629
  %1638 = vst [vmem:[#allocation3 + $0x2a8] sm:$0xff] %v1630
  %1639 = vst [vmem:[#allocation3 + $0x2b0] sm:$0xff] %v1631
  %1640 = vst [vmem:[#allocation3 + $0x2b8] sm:$0xff] %v1632
  %v1641 = vld [vmem:[#allocation2] sm:$0xff]
  %v1642 = vld [vmem:[#allocation2 + $0x8] sm:$0xff]
  %v1643 = vld [vmem:[#allocation2 + $0x10] sm:$0xff]
  %v1644 = vld [vmem:[#allocation2 + $0x18] sm:$0xff]
  %v1645 = vld [vmem:[#allocation2 + $0x20] sm:$0xff]
  %s1646 = scalar_lea.vmem %s2, 70
  %v1647 = vld [vmem:[%s1646] ss:$8 sm:$0xf]
  %v1649 = vlaneseq
  %v1650 = vshrl.u32 %v1649, 7
  %v1651 = vsub.s32 0, %v1650
  %v1652 = vrot.slane %v1647, %v1651
  %v1653 = vlaneseq
  %v1654 = vshrl.u32 %v1653, 7
  %v1655 = vsub.s32 1, %v1654
  %v1656 = vrot.slane %v1647, %v1655
  %v1657 = vlaneseq
  %v1658 = vshrl.u32 %v1657, 7
  %v1659 = vsub.s32 2, %v1658
  %v1660 = vrot.slane %v1647, %v1659
  %v1661 = vlaneseq
  %v1662 = vshrl.u32 %v1661, 7
  %v1663 = vsub.s32 3, %v1662
  %v1664 = vrot.slane %v1647, %v1663
  %1665 = vrot.lane.b32.xlu0 %v1652, 49
  %v1666 = vpop.permute.xlu0 %1665
  %1667 = vrot.lane.b32.xlu0 %v1656, 49
  %v1668 = vpop.permute.xlu0 %1667
  %1669 = vrot.lane.b32.xlu0 %v1660, 49
  %v1670 = vpop.permute.xlu0 %1669
  %1671 = vrot.lane.b32.xlu0 %v1664, 49
  %v1672 = vpop.permute.xlu0 %1671
  %vm1673 = vcmask 400384
  %v1674 = vsel %vm1673, %v1666, %v1668
  %v1675 = vsel %vm1673, %v1668, %v1670
  %v1676 = vsel %vm1673, %v1670, %v1672
  %v1682 = vmul.f32 %v1641, %v1666
  %v1683 = vmul.f32 %v1642, %v1674
  %v1684 = vmul.f32 %v1643, %v1675
  %v1685 = vmul.f32 %v1644, %v1676
  %v1686 = vmul.f32 %v1645, %v1672
  %1692 = vrot.lane.b32.xlu0 %v1682, 79
  %v1693 = vpop.permute.xlu0 %1692
  %1694 = vrot.lane.b32.xlu0 %v1683, 79
  %v1695 = vpop.permute.xlu0 %1694
  %1696 = vrot.lane.b32.xlu0 %v1684, 79
  %v1697 = vpop.permute.xlu0 %1696
  %1698 = vrot.lane.b32.xlu0 %v1685, 79
  %v1699 = vpop.permute.xlu0 %1698
  %1700 = vrot.lane.b32.xlu0 %v1686, 79
  %v1701 = vpop.permute.xlu0 %1700
  %vm1702 = vcmask 646144
  %v1703 = vsel %vm1702, %v1693, %v1695
  %v1704 = vsel %vm1702, %v1695, %v1697
  %v1705 = vsel %vm1702, %v1697, %v1699
  %v1706 = vsel %vm1702, %v1699, %v1701
  %1711 = vst [vmem:[#allocation3 + $0x2c0] sm:$0xff] %v1703
  %1712 = vst [vmem:[#allocation3 + $0x2c8] sm:$0xff] %v1704
  %1713 = vst [vmem:[#allocation3 + $0x2d0] sm:$0xff] %v1705
  %1714 = vst [vmem:[#allocation3 + $0x2d8] sm:$0xff] %v1706
  %v1715 = vld [vmem:[#allocation2] sm:$0xff]
  %v1716 = vld [vmem:[#allocation2 + $0x8] sm:$0xff]
  %v1717 = vld [vmem:[#allocation2 + $0x10] sm:$0xff]
  %v1718 = vld [vmem:[#allocation2 + $0x18] sm:$0xff]
  %v1719 = vld [vmem:[#allocation2 + $0x20] sm:$0xff]
  %s1720 = scalar_lea.vmem %s2, 71
  %v1721 = vld [vmem:[%s1720] ss:$8 sm:$0xf]
  %v1723 = vlaneseq
  %v1724 = vshrl.u32 %v1723, 7
  %v1725 = vsub.s32 0, %v1724
  %v1726 = vrot.slane %v1721, %v1725
  %v1727 = vlaneseq
  %v1728 = vshrl.u32 %v1727, 7
  %v1729 = vsub.s32 1, %v1728
  %v1730 = vrot.slane %v1721, %v1729
  %v1731 = vlaneseq
  %v1732 = vshrl.u32 %v1731, 7
  %v1733 = vsub.s32 2, %v1732
  %v1734 = vrot.slane %v1721, %v1733
  %v1735 = vlaneseq
  %v1736 = vshrl.u32 %v1735, 7
  %v1737 = vsub.s32 3, %v1736
  %v1738 = vrot.slane %v1721, %v1737
  %1739 = vrot.lane.b32.xlu0 %v1726, 50
  %v1740 = vpop.permute.xlu0 %1739
  %1741 = vrot.lane.b32.xlu0 %v1730, 50
  %v1742 = vpop.permute.xlu0 %1741
  %1743 = vrot.lane.b32.xlu0 %v1734, 50
  %v1744 = vpop.permute.xlu0 %1743
  %1745 = vrot.lane.b32.xlu0 %v1738, 50
  %v1746 = vpop.permute.xlu0 %1745
  %vm1747 = vcmask 408576
  %v1748 = vsel %vm1747, %v1740, %v1742
  %v1749 = vsel %vm1747, %v1742, %v1744
  %v1750 = vsel %vm1747, %v1744, %v1746
  %v1756 = vmul.f32 %v1715, %v1740
  %v1757 = vmul.f32 %v1716, %v1748
  %v1758 = vmul.f32 %v1717, %v1749
  %v1759 = vmul.f32 %v1718, %v1750
  %v1760 = vmul.f32 %v1719, %v1746
  %1766 = vrot.lane.b32.xlu0 %v1756, 78
  %v1767 = vpop.permute.xlu0 %1766
  %1768 = vrot.lane.b32.xlu0 %v1757, 78
  %v1769 = vpop.permute.xlu0 %1768
  %1770 = vrot.lane.b32.xlu0 %v1758, 78
  %v1771 = vpop.permute.xlu0 %1770
  %1772 = vrot.lane.b32.xlu0 %v1759, 78
  %v1773 = vpop.permute.xlu0 %1772
  %1774 = vrot.lane.b32.xlu0 %v1760, 78
  %v1775 = vpop.permute.xlu0 %1774
  %vm1776 = vcmask 637952
  %v1777 = vsel %vm1776, %v1767, %v1769
  %v1778 = vsel %vm1776, %v1769, %v1771
  %v1779 = vsel %vm1776, %v1771, %v1773
  %v1780 = vsel %vm1776, %v1773, %v1775
  %1785 = vst [vmem:[#allocation3 + $0x2e0] sm:$0xff] %v1777
  %1786 = vst [vmem:[#allocation3 + $0x2e8] sm:$0xff] %v1778
  %1787 = vst [vmem:[#allocation3 + $0x2f0] sm:$0xff] %v1779
  %1788 = vst [vmem:[#allocation3 + $0x2f8] sm:$0xff] %v1780
  %v1789 = vld [vmem:[#allocation2] sm:$0xff]
  %v1790 = vld [vmem:[#allocation2 + $0x8] sm:$0xff]
  %v1791 = vld [vmem:[#allocation2 + $0x10] sm:$0xff]
  %v1792 = vld [vmem:[#allocation2 + $0x18] sm:$0xff]
  %v1793 = vld [vmem:[#allocation2 + $0x20] sm:$0xff]
  %s1794 = scalar_lea.vmem %s2, 96
  %v1795 = vld [vmem:[%s1794] ss:$8 sm:$0xf]
  %v1797 = vlaneseq
  %v1798 = vshrl.u32 %v1797, 7
  %v1799 = vsub.s32 0, %v1798
  %v1800 = vrot.slane %v1795, %v1799
  %v1801 = vlaneseq
  %v1802 = vshrl.u32 %v1801, 7
  %v1803 = vsub.s32 1, %v1802
  %v1804 = vrot.slane %v1795, %v1803
  %v1805 = vlaneseq
  %v1806 = vshrl.u32 %v1805, 7
  %v1807 = vsub.s32 2, %v1806
  %v1808 = vrot.slane %v1795, %v1807
  %v1809 = vlaneseq
  %v1810 = vshrl.u32 %v1809, 7
  %v1811 = vsub.s32 3, %v1810
  %v1812 = vrot.slane %v1795, %v1811
  %1813 = vrot.lane.b32.xlu0 %v1800, 51
  %v1814 = vpop.permute.xlu0 %1813
  %1815 = vrot.lane.b32.xlu0 %v1804, 51
  %v1816 = vpop.permute.xlu0 %1815
  %1817 = vrot.lane.b32.xlu0 %v1808, 51
  %v1818 = vpop.permute.xlu0 %1817
  %1819 = vrot.lane.b32.xlu0 %v1812, 51
  %v1820 = vpop.permute.xlu0 %1819
  %v1821 = vsel %vm38, %v1814, %v1816
  %v1822 = vsel %vm38, %v1816, %v1818
  %v1823 = vsel %vm38, %v1818, %v1820
  %v1829 = vmul.f32 %v1789, %v1814
  %v1830 = vmul.f32 %v1790, %v1821
  %v1831 = vmul.f32 %v1791, %v1822
  %v1832 = vmul.f32 %v1792, %v1823
  %v1833 = vmul.f32 %v1793, %v1820
  %1839 = vrot.lane.b32.xlu0 %v1829, 77
  %v1840 = vpop.permute.xlu0 %1839
  %1841 = vrot.lane.b32.xlu0 %v1830, 77
  %v1842 = vpop.permute.xlu0 %1841
  %1843 = vrot.lane.b32.xlu0 %v1831, 77
  %v1844 = vpop.permute.xlu0 %1843
  %1845 = vrot.lane.b32.xlu0 %v1832, 77
  %v1846 = vpop.permute.xlu0 %1845
  %1847 = vrot.lane.b32.xlu0 %v1833, 77
  %v1848 = vpop.permute.xlu0 %1847
  %vm1849 = vcmask 629760
  %v1850 = vsel %vm1849, %v1840, %v1842
  %v1851 = vsel %vm1849, %v1842, %v1844
  %v1852 = vsel %vm1849, %v1844, %v1846
  %v1853 = vsel %vm1849, %v1846, %v1848
  %1858 = vst [vmem:[#allocation3 + $0x300] sm:$0xff] %v1850
  %1859 = vst [vmem:[#allocation3 + $0x308] sm:$0xff] %v1851
  %1860 = vst [vmem:[#allocation3 + $0x310] sm:$0xff] %v1852
  %1861 = vst [vmem:[#allocation3 + $0x318] sm:$0xff] %v1853
  %v1862 = vld [vmem:[#allocation2] sm:$0xff]
  %v1863 = vld [vmem:[#allocation2 + $0x8] sm:$0xff]
  %v1864 = vld [vmem:[#allocation2 + $0x10] sm:$0xff]
  %v1865 = vld [vmem:[#allocation2 + $0x18] sm:$0xff]
  %v1866 = vld [vmem:[#allocation2 + $0x20] sm:$0xff]
  %s1867 = scalar_lea.vmem %s2, 97
  %v1868 = vld [vmem:[%s1867] ss:$8 sm:$0xf]
  %v1870 = vlaneseq
  %v1871 = vshrl.u32 %v1870, 7
  %v1872 = vsub.s32 0, %v1871
  %v1873 = vrot.slane %v1868, %v1872
  %v1874 = vlaneseq
  %v1875 = vshrl.u32 %v1874, 7
  %v1876 = vsub.s32 1, %v1875
  %v1877 = vrot.slane %v1868, %v1876
  %v1878 = vlaneseq
  %v1879 = vshrl.u32 %v1878, 7
  %v1880 = vsub.s32 2, %v1879
  %v1881 = vrot.slane %v1868, %v1880
  %v1882 = vlaneseq
  %v1883 = vshrl.u32 %v1882, 7
  %v1884 = vsub.s32 3, %v1883
  %v1885 = vrot.slane %v1868, %v1884
  %1886 = vrot.lane.b32.xlu0 %v1873, 52
  %v1887 = vpop.permute.xlu0 %1886
  %1888 = vrot.lane.b32.xlu0 %v1877, 52
  %v1889 = vpop.permute.xlu0 %1888
  %1890 = vrot.lane.b32.xlu0 %v1881, 52
  %v1891 = vpop.permute.xlu0 %1890
  %1892 = vrot.lane.b32.xlu0 %v1885, 52
  %v1893 = vpop.permute.xlu0 %1892
  %vm1894 = vcmask 424960
  %v1895 = vsel %vm1894, %v1887, %v1889
  %v1896 = vsel %vm1894, %v1889, %v1891
  %v1897 = vsel %vm1894, %v1891, %v1893
  %v1903 = vmul.f32 %v1862, %v1887
  %v1904 = vmul.f32 %v1863, %v1895
  %v1905 = vmul.f32 %v1864, %v1896
  %v1906 = vmul.f32 %v1865, %v1897
  %v1907 = vmul.f32 %v1866, %v1893
  %1913 = vrot.lane.b32.xlu0 %v1903, 76
  %v1914 = vpop.permute.xlu0 %1913
  %1915 = vrot.lane.b32.xlu0 %v1904, 76
  %v1916 = vpop.permute.xlu0 %1915
  %1917 = vrot.lane.b32.xlu0 %v1905, 76
  %v1918 = vpop.permute.xlu0 %1917
  %1919 = vrot.lane.b32.xlu0 %v1906, 76
  %v1920 = vpop.permute.xlu0 %1919
  %1921 = vrot.lane.b32.xlu0 %v1907, 76
  %v1922 = vpop.permute.xlu0 %1921
  %vm1923 = vcmask 621568
  %v1924 = vsel %vm1923, %v1914, %v1916
  %v1925 = vsel %vm1923, %v1916, %v1918
  %v1926 = vsel %vm1923, %v1918, %v1920
  %v1927 = vsel %vm1923, %v1920, %v1922
  %1932 = vst [vmem:[#allocation3 + $0x320] sm:$0xff] %v1924
  %1933 = vst [vmem:[#allocation3 + $0x328] sm:$0xff] %v1925
  %1934 = vst [vmem:[#allocation3 + $0x330] sm:$0xff] %v1926
  %1935 = vst [vmem:[#allocation3 + $0x338] sm:$0xff] %v1927
  %v1936 = vld [vmem:[#allocation2] sm:$0xff]
  %v1937 = vld [vmem:[#allocation2 + $0x8] sm:$0xff]
  %v1938 = vld [vmem:[#allocation2 + $0x10] sm:$0xff]
  %v1939 = vld [vmem:[#allocation2 + $0x18] sm:$0xff]
  %v1940 = vld [vmem:[#allocation2 + $0x20] sm:$0xff]
  %s1941 = scalar_lea.vmem %s2, 98
  %v1942 = vld [vmem:[%s1941] ss:$8 sm:$0xf]
  %v1944 = vlaneseq
  %v1945 = vshrl.u32 %v1944, 7
  %v1946 = vsub.s32 0, %v1945
  %v1947 = vrot.slane %v1942, %v1946
  %v1948 = vlaneseq
  %v1949 = vshrl.u32 %v1948, 7
  %v1950 = vsub.s32 1, %v1949
  %v1951 = vrot.slane %v1942, %v1950
  %v1952 = vlaneseq
  %v1953 = vshrl.u32 %v1952, 7
  %v1954 = vsub.s32 2, %v1953
  %v1955 = vrot.slane %v1942, %v1954
  %v1956 = vlaneseq
  %v1957 = vshrl.u32 %v1956, 7
  %v1958 = vsub.s32 3, %v1957
  %v1959 = vrot.slane %v1942, %v1958
  %1960 = vrot.lane.b32.xlu0 %v1947, 53
  %v1961 = vpop.permute.xlu0 %1960
  %1962 = vrot.lane.b32.xlu0 %v1951, 53
  %v1963 = vpop.permute.xlu0 %1962
  %1964 = vrot.lane.b32.xlu0 %v1955, 53
  %v1965 = vpop.permute.xlu0 %1964
  %1966 = vrot.lane.b32.xlu0 %v1959, 53
  %v1967 = vpop.permute.xlu0 %1966
  %vm1968 = vcmask 433152
  %v1969 = vsel %vm1968, %v1961, %v1963
  %v1970 = vsel %vm1968, %v1963, %v1965
  %v1971 = vsel %vm1968, %v1965, %v1967
  %v1977 = vmul.f32 %v1936, %v1961
  %v1978 = vmul.f32 %v1937, %v1969
  %v1979 = vmul.f32 %v1938, %v1970
  %v1980 = vmul.f32 %v1939, %v1971
  %v1981 = vmul.f32 %v1940, %v1967
  %1987 = vrot.lane.b32.xlu0 %v1977, 75
  %v1988 = vpop.permute.xlu0 %1987
  %1989 = vrot.lane.b32.xlu0 %v1978, 75
  %v1990 = vpop.permute.xlu0 %1989
  %1991 = vrot.lane.b32.xlu0 %v1979, 75
  %v1992 = vpop.permute.xlu0 %1991
  %1993 = vrot.lane.b32.xlu0 %v1980, 75
  %v1994 = vpop.permute.xlu0 %1993
  %1995 = vrot.lane.b32.xlu0 %v1981, 75
  %v1996 = vpop.permute.xlu0 %1995
  %vm1997 = vcmask 613376
  %v1998 = vsel %vm1997, %v1988, %v1990
  %v1999 = vsel %vm1997, %v1990, %v1992
  %v2000 = vsel %vm1997, %v1992, %v1994
  %v2001 = vsel %vm1997, %v1994, %v1996
  %2006 = vst [vmem:[#allocation3 + $0x340] sm:$0xff] %v1998
  %2007 = vst [vmem:[#allocation3 + $0x348] sm:$0xff] %v1999
  %2008 = vst [vmem:[#allocation3 + $0x350] sm:$0xff] %v2000
  %2009 = vst [vmem:[#allocation3 + $0x358] sm:$0xff] %v2001
  %v2010 = vld [vmem:[#allocation2] sm:$0xff]
  %v2011 = vld [vmem:[#allocation2 + $0x8] sm:$0xff]
  %v2012 = vld [vmem:[#allocation2 + $0x10] sm:$0xff]
  %v2013 = vld [vmem:[#allocation2 + $0x18] sm:$0xff]
  %v2014 = vld [vmem:[#allocation2 + $0x20] sm:$0xff]
  %s2015 = scalar_lea.vmem %s2, 99
  %v2016 = vld [vmem:[%s2015] ss:$8 sm:$0xf]
  %v2018 = vlaneseq
  %v2019 = vshrl.u32 %v2018, 7
  %v2020 = vsub.s32 0, %v2019
  %v2021 = vrot.slane %v2016, %v2020
  %v2022 = vlaneseq
  %v2023 = vshrl.u32 %v2022, 7
  %v2024 = vsub.s32 1, %v2023
  %v2025 = vrot.slane %v2016, %v2024
  %v2026 = vlaneseq
  %v2027 = vshrl.u32 %v2026, 7
  %v2028 = vsub.s32 2, %v2027
  %v2029 = vrot.slane %v2016, %v2028
  %v2030 = vlaneseq
  %v2031 = vshrl.u32 %v2030, 7
  %v2032 = vsub.s32 3, %v2031
  %v2033 = vrot.slane %v2016, %v2032
  %2034 = vrot.lane.b32.xlu0 %v2021, 54
  %v2035 = vpop.permute.xlu0 %2034
  %2036 = vrot.lane.b32.xlu0 %v2025, 54
  %v2037 = vpop.permute.xlu0 %2036
  %2038 = vrot.lane.b32.xlu0 %v2029, 54
  %v2039 = vpop.permute.xlu0 %2038
  %2040 = vrot.lane.b32.xlu0 %v2033, 54
  %v2041 = vpop.permute.xlu0 %2040
  %vm2042 = vcmask 441344
  %v2043 = vsel %vm2042, %v2035, %v2037
  %v2044 = vsel %vm2042, %v2037, %v2039
  %v2045 = vsel %vm2042, %v2039, %v2041
  %v2051 = vmul.f32 %v2010, %v2035
  %v2052 = vmul.f32 %v2011, %v2043
  %v2053 = vmul.f32 %v2012, %v2044
  %v2054 = vmul.f32 %v2013, %v2045
  %v2055 = vmul.f32 %v2014, %v2041
  %2061 = vrot.lane.b32.xlu0 %v2051, 74
  %v2062 = vpop.permute.xlu0 %2061
  %2063 = vrot.lane.b32.xlu0 %v2052, 74
  %v2064 = vpop.permute.xlu0 %2063
  %2065 = vrot.lane.b32.xlu0 %v2053, 74
  %v2066 = vpop.permute.xlu0 %2065
  %2067 = vrot.lane.b32.xlu0 %v2054, 74
  %v2068 = vpop.permute.xlu0 %2067
  %2069 = vrot.lane.b32.xlu0 %v2055, 74
  %v2070 = vpop.permute.xlu0 %2069
  %vm2071 = vcmask 605184
  %v2072 = vsel %vm2071, %v2062, %v2064
  %v2073 = vsel %vm2071, %v2064, %v2066
  %v2074 = vsel %vm2071, %v2066, %v2068
  %v2075 = vsel %vm2071, %v2068, %v2070
  %2080 = vst [vmem:[#allocation3 + $0x360] sm:$0xff] %v2072
  %2081 = vst [vmem:[#allocation3 + $0x368] sm:$0xff] %v2073
  %2082 = vst [vmem:[#allocation3 + $0x370] sm:$0xff] %v2074
  %2083 = vst [vmem:[#allocation3 + $0x378] sm:$0xff] %v2075
  %v2084 = vld [vmem:[#allocation2] sm:$0xff]
  %v2085 = vld [vmem:[#allocation2 + $0x8] sm:$0xff]
  %v2086 = vld [vmem:[#allocation2 + $0x10] sm:$0xff]
  %v2087 = vld [vmem:[#allocation2 + $0x18] sm:$0xff]
  %v2088 = vld [vmem:[#allocation2 + $0x20] sm:$0xff]
  %s2089 = scalar_lea.vmem %s2, 100
  %v2090 = vld [vmem:[%s2089] ss:$8 sm:$0xf]
  %v2092 = vlaneseq
  %v2093 = vshrl.u32 %v2092, 7
  %v2094 = vsub.s32 0, %v2093
  %v2095 = vrot.slane %v2090, %v2094
  %v2096 = vlaneseq
  %v2097 = vshrl.u32 %v2096, 7
  %v2098 = vsub.s32 1, %v2097
  %v2099 = vrot.slane %v2090, %v2098
  %v2100 = vlaneseq
  %v2101 = vshrl.u32 %v2100, 7
  %v2102 = vsub.s32 2, %v2101
  %v2103 = vrot.slane %v2090, %v2102
  %v2104 = vlaneseq
  %v2105 = vshrl.u32 %v2104, 7
  %v2106 = vsub.s32 3, %v2105
  %v2107 = vrot.slane %v2090, %v2106
  %2108 = vrot.lane.b32.xlu0 %v2095, 64
  %v2109 = vpop.permute.xlu0 %2108
  %2110 = vrot.lane.b32.xlu0 %v2099, 64
  %v2111 = vpop.permute.xlu0 %2110
  %2112 = vrot.lane.b32.xlu0 %v2103, 64
  %v2113 = vpop.permute.xlu0 %2112
  %2114 = vrot.lane.b32.xlu0 %v2107, 64
  %v2115 = vpop.permute.xlu0 %2114
  %vm2116 = vcmask 523264
  %v2117 = vsel %vm2116, %v2109, %v2111
  %v2118 = vsel %vm2116, %v2111, %v2113
  %v2119 = vsel %vm2116, %v2113, %v2115
  %v2125 = vmul.f32 %v2084, %v2109
  %v2126 = vmul.f32 %v2085, %v2117
  %v2127 = vmul.f32 %v2086, %v2118
  %v2128 = vmul.f32 %v2087, %v2119
  %v2129 = vmul.f32 %v2088, %v2115
  %2135 = vrot.lane.b32.xlu0 %v2125, 64
  %v2136 = vpop.permute.xlu0 %2135
  %2137 = vrot.lane.b32.xlu0 %v2126, 64
  %v2138 = vpop.permute.xlu0 %2137
  %2139 = vrot.lane.b32.xlu0 %v2127, 64
  %v2140 = vpop.permute.xlu0 %2139
  %2141 = vrot.lane.b32.xlu0 %v2128, 64
  %v2142 = vpop.permute.xlu0 %2141
  %2143 = vrot.lane.b32.xlu0 %v2129, 64
  %v2144 = vpop.permute.xlu0 %2143
  %v2145 = vsel %vm2116, %v2136, %v2138
  %v2146 = vsel %vm2116, %v2138, %v2140
  %v2147 = vsel %vm2116, %v2140, %v2142
  %v2148 = vsel %vm2116, %v2142, %v2144
  %2153 = vst [vmem:[#allocation3 + $0x380] sm:$0xff] %v2145
  %2154 = vst [vmem:[#allocation3 + $0x388] sm:$0xff] %v2146
  %2155 = vst [vmem:[#allocation3 + $0x390] sm:$0xff] %v2147
  %2156 = vst [vmem:[#allocation3 + $0x398] sm:$0xff] %v2148
  %v2157 = vld [vmem:[#allocation2] sm:$0xff]
  %v2158 = vld [vmem:[#allocation2 + $0x8] sm:$0xff]
  %v2159 = vld [vmem:[#allocation2 + $0x10] sm:$0xff]
  %v2160 = vld [vmem:[#allocation2 + $0x18] sm:$0xff]
  %v2161 = vld [vmem:[#allocation2 + $0x20] sm:$0xff]
  %s2162 = scalar_lea.vmem %s2, 101
  %v2163 = vld [vmem:[%s2162] ss:$8 sm:$0xf]
  %v2165 = vlaneseq
  %v2166 = vshrl.u32 %v2165, 7
  %v2167 = vsub.s32 0, %v2166
  %v2168 = vrot.slane %v2163, %v2167
  %v2169 = vlaneseq
  %v2170 = vshrl.u32 %v2169, 7
  %v2171 = vsub.s32 1, %v2170
  %v2172 = vrot.slane %v2163, %v2171
  %v2173 = vlaneseq
  %v2174 = vshrl.u32 %v2173, 7
  %v2175 = vsub.s32 2, %v2174
  %v2176 = vrot.slane %v2163, %v2175
  %v2177 = vlaneseq
  %v2178 = vshrl.u32 %v2177, 7
  %v2179 = vsub.s32 3, %v2178
  %v2180 = vrot.slane %v2163, %v2179
  %2181 = vrot.lane.b32.xlu0 %v2168, 65
  %v2182 = vpop.permute.xlu0 %2181
  %2183 = vrot.lane.b32.xlu0 %v2172, 65
  %v2184 = vpop.permute.xlu0 %2183
  %2185 = vrot.lane.b32.xlu0 %v2176, 65
  %v2186 = vpop.permute.xlu0 %2185
  %2187 = vrot.lane.b32.xlu0 %v2180, 65
  %v2188 = vpop.permute.xlu0 %2187
  %vm2189 = vcmask 531456
  %v2190 = vsel %vm2189, %v2182, %v2184
  %v2191 = vsel %vm2189, %v2184, %v2186
  %v2192 = vsel %vm2189, %v2186, %v2188
  %v2198 = vmul.f32 %v2157, %v2182
  %v2199 = vmul.f32 %v2158, %v2190
  %v2200 = vmul.f32 %v2159, %v2191
  %v2201 = vmul.f32 %v2160, %v2192
  %v2202 = vmul.f32 %v2161, %v2188
  %2208 = vrot.lane.b32.xlu0 %v2198, 63
  %v2209 = vpop.permute.xlu0 %2208
  %2210 = vrot.lane.b32.xlu0 %v2199, 63
  %v2211 = vpop.permute.xlu0 %2210
  %2212 = vrot.lane.b32.xlu0 %v2200, 63
  %v2213 = vpop.permute.xlu0 %2212
  %2214 = vrot.lane.b32.xlu0 %v2201, 63
  %v2215 = vpop.permute.xlu0 %2214
  %2216 = vrot.lane.b32.xlu0 %v2202, 63
  %v2217 = vpop.permute.xlu0 %2216
  %vm2218 = vcmask 515072
  %v2219 = vsel %vm2218, %v2209, %v2211
  %v2220 = vsel %vm2218, %v2211, %v2213
  %v2221 = vsel %vm2218, %v2213, %v2215
  %v2222 = vsel %vm2218, %v2215, %v2217
  %2227 = vst [vmem:[#allocation3 + $0x3a0] sm:$0xff] %v2219
  %2228 = vst [vmem:[#allocation3 + $0x3a8] sm:$0xff] %v2220
  %2229 = vst [vmem:[#allocation3 + $0x3b0] sm:$0xff] %v2221
  %2230 = vst [vmem:[#allocation3 + $0x3b8] sm:$0xff] %v2222
  %v2231 = vld [vmem:[#allocation2] sm:$0xff]
  %v2232 = vld [vmem:[#allocation2 + $0x8] sm:$0xff]
  %v2233 = vld [vmem:[#allocation2 + $0x10] sm:$0xff]
  %v2234 = vld [vmem:[#allocation2 + $0x18] sm:$0xff]
  %v2235 = vld [vmem:[#allocation2 + $0x20] sm:$0xff]
  %s2236 = scalar_lea.vmem %s2, 102
  %v2237 = vld [vmem:[%s2236] ss:$8 sm:$0xf]
  %v2239 = vlaneseq
  %v2240 = vshrl.u32 %v2239, 7
  %v2241 = vsub.s32 0, %v2240
  %v2242 = vrot.slane %v2237, %v2241
  %v2243 = vlaneseq
  %v2244 = vshrl.u32 %v2243, 7
  %v2245 = vsub.s32 1, %v2244
  %v2246 = vrot.slane %v2237, %v2245
  %v2247 = vlaneseq
  %v2248 = vshrl.u32 %v2247, 7
  %v2249 = vsub.s32 2, %v2248
  %v2250 = vrot.slane %v2237, %v2249
  %v2251 = vlaneseq
  %v2252 = vshrl.u32 %v2251, 7
  %v2253 = vsub.s32 3, %v2252
  %v2254 = vrot.slane %v2237, %v2253
  %2255 = vrot.lane.b32.xlu0 %v2242, 66
  %v2256 = vpop.permute.xlu0 %2255
  %2257 = vrot.lane.b32.xlu0 %v2246, 66
  %v2258 = vpop.permute.xlu0 %2257
  %2259 = vrot.lane.b32.xlu0 %v2250, 66
  %v2260 = vpop.permute.xlu0 %2259
  %2261 = vrot.lane.b32.xlu0 %v2254, 66
  %v2262 = vpop.permute.xlu0 %2261
  %vm2263 = vcmask 539648
  %v2264 = vsel %vm2263, %v2256, %v2258
  %v2265 = vsel %vm2263, %v2258, %v2260
  %v2266 = vsel %vm2263, %v2260, %v2262
  %v2272 = vmul.f32 %v2231, %v2256
  %v2273 = vmul.f32 %v2232, %v2264
  %v2274 = vmul.f32 %v2233, %v2265
  %v2275 = vmul.f32 %v2234, %v2266
  %v2276 = vmul.f32 %v2235, %v2262
  %2282 = vrot.lane.b32.xlu0 %v2272, 62
  %v2283 = vpop.permute.xlu0 %2282
  %2284 = vrot.lane.b32.xlu0 %v2273, 62
  %v2285 = vpop.permute.xlu0 %2284
  %2286 = vrot.lane.b32.xlu0 %v2274, 62
  %v2287 = vpop.permute.xlu0 %2286
  %2288 = vrot.lane.b32.xlu0 %v2275, 62
  %v2289 = vpop.permute.xlu0 %2288
  %2290 = vrot.lane.b32.xlu0 %v2276, 62
  %v2291 = vpop.permute.xlu0 %2290
  %vm2292 = vcmask 506880
  %v2293 = vsel %vm2292, %v2283, %v2285
  %v2294 = vsel %vm2292, %v2285, %v2287
  %v2295 = vsel %vm2292, %v2287, %v2289
  %v2296 = vsel %vm2292, %v2289, %v2291
  %2301 = vst [vmem:[#allocation3 + $0x3c0] sm:$0xff] %v2293
  %2302 = vst [vmem:[#allocation3 + $0x3c8] sm:$0xff] %v2294
  %2303 = vst [vmem:[#allocation3 + $0x3d0] sm:$0xff] %v2295
  %2304 = vst [vmem:[#allocation3 + $0x3d8] sm:$0xff] %v2296
  %v2305 = vld [vmem:[#allocation2] sm:$0xff]
  %v2306 = vld [vmem:[#allocation2 + $0x8] sm:$0xff]
  %v2307 = vld [vmem:[#allocation2 + $0x10] sm:$0xff]
  %v2308 = vld [vmem:[#allocation2 + $0x18] sm:$0xff]
  %v2309 = vld [vmem:[#allocation2 + $0x20] sm:$0xff]
  %s2310 = scalar_lea.vmem %s2, 103
  %v2311 = vld [vmem:[%s2310] ss:$8 sm:$0xf]
  %v2313 = vlaneseq
  %v2314 = vshrl.u32 %v2313, 7
  %v2315 = vsub.s32 0, %v2314
  %v2316 = vrot.slane %v2311, %v2315
  %v2317 = vlaneseq
  %v2318 = vshrl.u32 %v2317, 7
  %v2319 = vsub.s32 1, %v2318
  %v2320 = vrot.slane %v2311, %v2319
  %v2321 = vlaneseq
  %v2322 = vshrl.u32 %v2321, 7
  %v2323 = vsub.s32 2, %v2322
  %v2324 = vrot.slane %v2311, %v2323
  %v2325 = vlaneseq
  %v2326 = vshrl.u32 %v2325, 7
  %v2327 = vsub.s32 3, %v2326
  %v2328 = vrot.slane %v2311, %v2327
  %2329 = vrot.lane.b32.xlu0 %v2316, 67
  %v2330 = vpop.permute.xlu0 %2329
  %2331 = vrot.lane.b32.xlu0 %v2320, 67
  %v2332 = vpop.permute.xlu0 %2331
  %2333 = vrot.lane.b32.xlu0 %v2324, 67
  %v2334 = vpop.permute.xlu0 %2333
  %2335 = vrot.lane.b32.xlu0 %v2328, 67
  %v2336 = vpop.permute.xlu0 %2335
  %vm2337 = vcmask 547840
  %v2338 = vsel %vm2337, %v2330, %v2332
  %v2339 = vsel %vm2337, %v2332, %v2334
  %v2340 = vsel %vm2337, %v2334, %v2336
  %v2346 = vmul.f32 %v2305, %v2330
  %v2347 = vmul.f32 %v2306, %v2338
  %v2348 = vmul.f32 %v2307, %v2339
  %v2349 = vmul.f32 %v2308, %v2340
  %v2350 = vmul.f32 %v2309, %v2336
  %2356 = vrot.lane.b32.xlu0 %v2346, 61
  %v2357 = vpop.permute.xlu0 %2356
  %2358 = vrot.lane.b32.xlu0 %v2347, 61
  %v2359 = vpop.permute.xlu0 %2358
  %2360 = vrot.lane.b32.xlu0 %v2348, 61
  %v2361 = vpop.permute.xlu0 %2360
  %2362 = vrot.lane.b32.xlu0 %v2349, 61
  %v2363 = vpop.permute.xlu0 %2362
  %2364 = vrot.lane.b32.xlu0 %v2350, 61
  %v2365 = vpop.permute.xlu0 %2364
  %vm2366 = vcmask 498688
  %v2367 = vsel %vm2366, %v2357, %v2359
  %v2368 = vsel %vm2366, %v2359, %v2361
  %v2369 = vsel %vm2366, %v2361, %v2363
  %v2370 = vsel %vm2366, %v2363, %v2365
  %2375 = vst [vmem:[#allocation3 + $0x3e0] sm:$0xff] %v2367
  %2376 = vst [vmem:[#allocation3 + $0x3e8] sm:$0xff] %v2368
  %2377 = vst [vmem:[#allocation3 + $0x3f0] sm:$0xff] %v2369
  %2378 = vst [vmem:[#allocation3 + $0x3f8] sm:$0xff] %v2370
  %v2379 = vld [vmem:[#allocation2] sm:$0xff]
  %v2380 = vld [vmem:[#allocation2 + $0x8] sm:$0xff]
  %v2381 = vld [vmem:[#allocation2 + $0x10] sm:$0xff]
  %v2382 = vld [vmem:[#allocation2 + $0x18] sm:$0xff]
  %v2383 = vld [vmem:[#allocation2 + $0x20] sm:$0xff]
  %s2384 = scalar_lea.vmem %s2, 128
  %v2385 = vld [vmem:[%s2384] ss:$8 sm:$0xf]
  %v2387 = vlaneseq
  %v2388 = vshrl.u32 %v2387, 7
  %v2389 = vsub.s32 0, %v2388
  %v2390 = vrot.slane %v2385, %v2389
  %v2391 = vlaneseq
  %v2392 = vshrl.u32 %v2391, 7
  %v2393 = vsub.s32 1, %v2392
  %v2394 = vrot.slane %v2385, %v2393
  %v2395 = vlaneseq
  %v2396 = vshrl.u32 %v2395, 7
  %v2397 = vsub.s32 2, %v2396
  %v2398 = vrot.slane %v2385, %v2397
  %v2399 = vlaneseq
  %v2400 = vshrl.u32 %v2399, 7
  %v2401 = vsub.s32 3, %v2400
  %v2402 = vrot.slane %v2385, %v2401
  %2403 = vrot.lane.b32.xlu0 %v2390, 68
  %v2404 = vpop.permute.xlu0 %2403
  %2405 = vrot.lane.b32.xlu0 %v2394, 68
  %v2406 = vpop.permute.xlu0 %2405
  %2407 = vrot.lane.b32.xlu0 %v2398, 68
  %v2408 = vpop.permute.xlu0 %2407
  %2409 = vrot.lane.b32.xlu0 %v2402, 68
  %v2410 = vpop.permute.xlu0 %2409
  %vm2411 = vcmask 556032
  %v2412 = vsel %vm2411, %v2404, %v2406
  %v2413 = vsel %vm2411, %v2406, %v2408
  %v2414 = vsel %vm2411, %v2408, %v2410
  %v2420 = vmul.f32 %v2379, %v2404
  %v2421 = vmul.f32 %v2380, %v2412
  %v2422 = vmul.f32 %v2381, %v2413
  %v2423 = vmul.f32 %v2382, %v2414
  %v2424 = vmul.f32 %v2383, %v2410
  %2430 = vrot.lane.b32.xlu0 %v2420, 60
  %v2431 = vpop.permute.xlu0 %2430
  %2432 = vrot.lane.b32.xlu0 %v2421, 60
  %v2433 = vpop.permute.xlu0 %2432
  %2434 = vrot.lane.b32.xlu0 %v2422, 60
  %v2435 = vpop.permute.xlu0 %2434
  %2436 = vrot.lane.b32.xlu0 %v2423, 60
  %v2437 = vpop.permute.xlu0 %2436
  %2438 = vrot.lane.b32.xlu0 %v2424, 60
  %v2439 = vpop.permute.xlu0 %2438
  %vm2440 = vcmask 490496
  %v2441 = vsel %vm2440, %v2431, %v2433
  %v2442 = vsel %vm2440, %v2433, %v2435
  %v2443 = vsel %vm2440, %v2435, %v2437
  %v2444 = vsel %vm2440, %v2437, %v2439
  %2449 = vst [vmem:[#allocation3 + $0x400] sm:$0xff] %v2441
  %2450 = vst [vmem:[#allocation3 + $0x408] sm:$0xff] %v2442
  %2451 = vst [vmem:[#allocation3 + $0x410] sm:$0xff] %v2443
  %2452 = vst [vmem:[#allocation3 + $0x418] sm:$0xff] %v2444
  %v2453 = vld [vmem:[#allocation2] sm:$0xff]
  %v2454 = vld [vmem:[#allocation2 + $0x8] sm:$0xff]
  %v2455 = vld [vmem:[#allocation2 + $0x10] sm:$0xff]
  %v2456 = vld [vmem:[#allocation2 + $0x18] sm:$0xff]
  %v2457 = vld [vmem:[#allocation2 + $0x20] sm:$0xff]
  %s2458 = scalar_lea.vmem %s2, 129
  %v2459 = vld [vmem:[%s2458] ss:$8 sm:$0xf]
  %v2461 = vlaneseq
  %v2462 = vshrl.u32 %v2461, 7
  %v2463 = vsub.s32 0, %v2462
  %v2464 = vrot.slane %v2459, %v2463
  %v2465 = vlaneseq
  %v2466 = vshrl.u32 %v2465, 7
  %v2467 = vsub.s32 1, %v2466
  %v2468 = vrot.slane %v2459, %v2467
  %v2469 = vlaneseq
  %v2470 = vshrl.u32 %v2469, 7
  %v2471 = vsub.s32 2, %v2470
  %v2472 = vrot.slane %v2459, %v2471
  %v2473 = vlaneseq
  %v2474 = vshrl.u32 %v2473, 7
  %v2475 = vsub.s32 3, %v2474
  %v2476 = vrot.slane %v2459, %v2475
  %2477 = vrot.lane.b32.xlu0 %v2464, 69
  %v2478 = vpop.permute.xlu0 %2477
  %2479 = vrot.lane.b32.xlu0 %v2468, 69
  %v2480 = vpop.permute.xlu0 %2479
  %2481 = vrot.lane.b32.xlu0 %v2472, 69
  %v2482 = vpop.permute.xlu0 %2481
  %2483 = vrot.lane.b32.xlu0 %v2476, 69
  %v2484 = vpop.permute.xlu0 %2483
  %vm2485 = vcmask 564224
  %v2486 = vsel %vm2485, %v2478, %v2480
  %v2487 = vsel %vm2485, %v2480, %v2482
  %v2488 = vsel %vm2485, %v2482, %v2484
  %v2494 = vmul.f32 %v2453, %v2478
  %v2495 = vmul.f32 %v2454, %v2486
  %v2496 = vmul.f32 %v2455, %v2487
  %v2497 = vmul.f32 %v2456, %v2488
  %v2498 = vmul.f32 %v2457, %v2484
  %2504 = vrot.lane.b32.xlu0 %v2494, 59
  %v2505 = vpop.permute.xlu0 %2504
  %2506 = vrot.lane.b32.xlu0 %v2495, 59
  %v2507 = vpop.permute.xlu0 %2506
  %2508 = vrot.lane.b32.xlu0 %v2496, 59
  %v2509 = vpop.permute.xlu0 %2508
  %2510 = vrot.lane.b32.xlu0 %v2497, 59
  %v2511 = vpop.permute.xlu0 %2510
  %2512 = vrot.lane.b32.xlu0 %v2498, 59
  %v2513 = vpop.permute.xlu0 %2512
  %vm2514 = vcmask 482304
  %v2515 = vsel %vm2514, %v2505, %v2507
  %v2516 = vsel %vm2514, %v2507, %v2509
  %v2517 = vsel %vm2514, %v2509, %v2511
  %v2518 = vsel %vm2514, %v2511, %v2513
  %2523 = vst [vmem:[#allocation3 + $0x420] sm:$0xff] %v2515
  %2524 = vst [vmem:[#allocation3 + $0x428] sm:$0xff] %v2516
  %2525 = vst [vmem:[#allocation3 + $0x430] sm:$0xff] %v2517
  %2526 = vst [vmem:[#allocation3 + $0x438] sm:$0xff] %v2518
  %v2527 = vld [vmem:[#allocation2] sm:$0xff]
  %v2528 = vld [vmem:[#allocation2 + $0x8] sm:$0xff]
  %v2529 = vld [vmem:[#allocation2 + $0x10] sm:$0xff]
  %v2530 = vld [vmem:[#allocation2 + $0x18] sm:$0xff]
  %v2531 = vld [vmem:[#allocation2 + $0x20] sm:$0xff]
  %s2532 = scalar_lea.vmem %s2, 130
  %v2533 = vld [vmem:[%s2532] ss:$8 sm:$0xf]
  %v2535 = vlaneseq
  %v2536 = vshrl.u32 %v2535, 7
  %v2537 = vsub.s32 0, %v2536
  %v2538 = vrot.slane %v2533, %v2537
  %v2539 = vlaneseq
  %v2540 = vshrl.u32 %v2539, 7
  %v2541 = vsub.s32 1, %v2540
  %v2542 = vrot.slane %v2533, %v2541
  %v2543 = vlaneseq
  %v2544 = vshrl.u32 %v2543, 7
  %v2545 = vsub.s32 2, %v2544
  %v2546 = vrot.slane %v2533, %v2545
  %v2547 = vlaneseq
  %v2548 = vshrl.u32 %v2547, 7
  %v2549 = vsub.s32 3, %v2548
  %v2550 = vrot.slane %v2533, %v2549
  %2551 = vrot.lane.b32.xlu0 %v2538, 70
  %v2552 = vpop.permute.xlu0 %2551
  %2553 = vrot.lane.b32.xlu0 %v2542, 70
  %v2554 = vpop.permute.xlu0 %2553
  %2555 = vrot.lane.b32.xlu0 %v2546, 70
  %v2556 = vpop.permute.xlu0 %2555
  %2557 = vrot.lane.b32.xlu0 %v2550, 70
  %v2558 = vpop.permute.xlu0 %2557
  %vm2559 = vcmask 572416
  %v2560 = vsel %vm2559, %v2552, %v2554
  %v2561 = vsel %vm2559, %v2554, %v2556
  %v2562 = vsel %vm2559, %v2556, %v2558
  %v2568 = vmul.f32 %v2527, %v2552
  %v2569 = vmul.f32 %v2528, %v2560
  %v2570 = vmul.f32 %v2529, %v2561
  %v2571 = vmul.f32 %v2530, %v2562
  %v2572 = vmul.f32 %v2531, %v2558
  %2578 = vrot.lane.b32.xlu0 %v2568, 58
  %v2579 = vpop.permute.xlu0 %2578
  %2580 = vrot.lane.b32.xlu0 %v2569, 58
  %v2581 = vpop.permute.xlu0 %2580
  %2582 = vrot.lane.b32.xlu0 %v2570, 58
  %v2583 = vpop.permute.xlu0 %2582
  %2584 = vrot.lane.b32.xlu0 %v2571, 58
  %v2585 = vpop.permute.xlu0 %2584
  %2586 = vrot.lane.b32.xlu0 %v2572, 58
  %v2587 = vpop.permute.xlu0 %2586
  %vm2588 = vcmask 474112
  %v2589 = vsel %vm2588, %v2579, %v2581
  %v2590 = vsel %vm2588, %v2581, %v2583
  %v2591 = vsel %vm2588, %v2583, %v2585
  %v2592 = vsel %vm2588, %v2585, %v2587
  %2597 = vst [vmem:[#allocation3 + $0x440] sm:$0xff] %v2589
  %2598 = vst [vmem:[#allocation3 + $0x448] sm:$0xff] %v2590
  %2599 = vst [vmem:[#allocation3 + $0x450] sm:$0xff] %v2591
  %2600 = vst [vmem:[#allocation3 + $0x458] sm:$0xff] %v2592
  %v2601 = vld [vmem:[#allocation2] sm:$0xff]
  %v2602 = vld [vmem:[#allocation2 + $0x8] sm:$0xff]
  %v2603 = vld [vmem:[#allocation2 + $0x10] sm:$0xff]
  %v2604 = vld [vmem:[#allocation2 + $0x18] sm:$0xff]
  %v2605 = vld [vmem:[#allocation2 + $0x20] sm:$0xff]
  %s2606 = scalar_lea.vmem %s2, 131
  %v2607 = vld [vmem:[%s2606] ss:$8 sm:$0xf]
  %v2609 = vlaneseq
  %v2610 = vshrl.u32 %v2609, 7
  %v2611 = vsub.s32 0, %v2610
  %v2612 = vrot.slane %v2607, %v2611
  %v2613 = vlaneseq
  %v2614 = vshrl.u32 %v2613, 7
  %v2615 = vsub.s32 1, %v2614
  %v2616 = vrot.slane %v2607, %v2615
  %v2617 = vlaneseq
  %v2618 = vshrl.u32 %v2617, 7
  %v2619 = vsub.s32 2, %v2618
  %v2620 = vrot.slane %v2607, %v2619
  %v2621 = vlaneseq
  %v2622 = vshrl.u32 %v2621, 7
  %v2623 = vsub.s32 3, %v2622
  %v2624 = vrot.slane %v2607, %v2623
  %2625 = vrot.lane.b32.xlu0 %v2612, 80
  %v2626 = vpop.permute.xlu0 %2625
  %2627 = vrot.lane.b32.xlu0 %v2616, 80
  %v2628 = vpop.permute.xlu0 %2627
  %2629 = vrot.lane.b32.xlu0 %v2620, 80
  %v2630 = vpop.permute.xlu0 %2629
  %2631 = vrot.lane.b32.xlu0 %v2624, 80
  %v2632 = vpop.permute.xlu0 %2631
  %v2633 = vsel %vm1628, %v2626, %v2628
  %v2634 = vsel %vm1628, %v2628, %v2630
  %v2635 = vsel %vm1628, %v2630, %v2632
  %v2641 = vmul.f32 %v2601, %v2626
  %v2642 = vmul.f32 %v2602, %v2633
  %v2643 = vmul.f32 %v2603, %v2634
  %v2644 = vmul.f32 %v2604, %v2635
  %v2645 = vmul.f32 %v2605, %v2632
  %2651 = vrot.lane.b32.xlu0 %v2641, 48
  %v2652 = vpop.permute.xlu0 %2651
  %2653 = vrot.lane.b32.xlu0 %v2642, 48
  %v2654 = vpop.permute.xlu0 %2653
  %2655 = vrot.lane.b32.xlu0 %v2643, 48
  %v2656 = vpop.permute.xlu0 %2655
  %2657 = vrot.lane.b32.xlu0 %v2644, 48
  %v2658 = vpop.permute.xlu0 %2657
  %2659 = vrot.lane.b32.xlu0 %v2645, 48
  %v2660 = vpop.permute.xlu0 %2659
  %v2661 = vsel %vm1599, %v2652, %v2654
  %v2662 = vsel %vm1599, %v2654, %v2656
  %v2663 = vsel %vm1599, %v2656, %v2658
  %v2664 = vsel %vm1599, %v2658, %v2660
  %2669 = vst [vmem:[#allocation3 + $0x460] sm:$0xff] %v2661
  %2670 = vst [vmem:[#allocation3 + $0x468] sm:$0xff] %v2662
  %2671 = vst [vmem:[#allocation3 + $0x470] sm:$0xff] %v2663
  %2672 = vst [vmem:[#allocation3 + $0x478] sm:$0xff] %v2664
  %v2673 = vld [vmem:[#allocation2] sm:$0xff]
  %v2674 = vld [vmem:[#allocation2 + $0x8] sm:$0xff]
  %v2675 = vld [vmem:[#allocation2 + $0x10] sm:$0xff]
  %v2676 = vld [vmem:[#allocation2 + $0x18] sm:$0xff]
  %v2677 = vld [vmem:[#allocation2 + $0x20] sm:$0xff]
  %s2678 = scalar_lea.vmem %s2, 132
  %v2679 = vld [vmem:[%s2678] ss:$8 sm:$0xf]
  %v2681 = vlaneseq
  %v2682 = vshrl.u32 %v2681, 7
  %v2683 = vsub.s32 0, %v2682
  %v2684 = vrot.slane %v2679, %v2683
  %v2685 = vlaneseq
  %v2686 = vshrl.u32 %v2685, 7
  %v2687 = vsub.s32 1, %v2686
  %v2688 = vrot.slane %v2679, %v2687
  %v2689 = vlaneseq
  %v2690 = vshrl.u32 %v2689, 7
  %v2691 = vsub.s32 2, %v2690
  %v2692 = vrot.slane %v2679, %v2691
  %v2693 = vlaneseq
  %v2694 = vshrl.u32 %v2693, 7
  %v2695 = vsub.s32 3, %v2694
  %v2696 = vrot.slane %v2679, %v2695
  %2697 = vrot.lane.b32.xlu0 %v2684, 81
  %v2698 = vpop.permute.xlu0 %2697
  %2699 = vrot.lane.b32.xlu0 %v2688, 81
  %v2700 = vpop.permute.xlu0 %2699
  %2701 = vrot.lane.b32.xlu0 %v2692, 81
  %v2702 = vpop.permute.xlu0 %2701
  %2703 = vrot.lane.b32.xlu0 %v2696, 81
  %v2704 = vpop.permute.xlu0 %2703
  %vm2705 = vcmask 662528
  %v2706 = vsel %vm2705, %v2698, %v2700
  %v2707 = vsel %vm2705, %v2700, %v2702
  %v2708 = vsel %vm2705, %v2702, %v2704
  %v2714 = vmul.f32 %v2673, %v2698
  %v2715 = vmul.f32 %v2674, %v2706
  %v2716 = vmul.f32 %v2675, %v2707
  %v2717 = vmul.f32 %v2676, %v2708
  %v2718 = vmul.f32 %v2677, %v2704
  %2724 = vrot.lane.b32.xlu0 %v2714, 47
  %v2725 = vpop.permute.xlu0 %2724
  %2726 = vrot.lane.b32.xlu0 %v2715, 47
  %v2727 = vpop.permute.xlu0 %2726
  %2728 = vrot.lane.b32.xlu0 %v2716, 47
  %v2729 = vpop.permute.xlu0 %2728
  %2730 = vrot.lane.b32.xlu0 %v2717, 47
  %v2731 = vpop.permute.xlu0 %2730
  %2732 = vrot.lane.b32.xlu0 %v2718, 47
  %v2733 = vpop.permute.xlu0 %2732
  %vm2734 = vcmask 384000
  %v2735 = vsel %vm2734, %v2725, %v2727
  %v2736 = vsel %vm2734, %v2727, %v2729
  %v2737 = vsel %vm2734, %v2729, %v2731
  %v2738 = vsel %vm2734, %v2731, %v2733
  %2743 = vst [vmem:[#allocation3 + $0x480] sm:$0xff] %v2735
  %2744 = vst [vmem:[#allocation3 + $0x488] sm:$0xff] %v2736
  %2745 = vst [vmem:[#allocation3 + $0x490] sm:$0xff] %v2737
  %2746 = vst [vmem:[#allocation3 + $0x498] sm:$0xff] %v2738
  %v2747 = vld [vmem:[#allocation2] sm:$0xff]
  %v2748 = vld [vmem:[#allocation2 + $0x8] sm:$0xff]
  %v2749 = vld [vmem:[#allocation2 + $0x10] sm:$0xff]
  %v2750 = vld [vmem:[#allocation2 + $0x18] sm:$0xff]
  %v2751 = vld [vmem:[#allocation2 + $0x20] sm:$0xff]
  %s2752 = scalar_lea.vmem %s2, 133
  %v2753 = vld [vmem:[%s2752] ss:$8 sm:$0xf]
  %v2755 = vlaneseq
  %v2756 = vshrl.u32 %v2755, 7
  %v2757 = vsub.s32 0, %v2756
  %v2758 = vrot.slane %v2753, %v2757
  %v2759 = vlaneseq
  %v2760 = vshrl.u32 %v2759, 7
  %v2761 = vsub.s32 1, %v2760
  %v2762 = vrot.slane %v2753, %v2761
  %v2763 = vlaneseq
  %v2764 = vshrl.u32 %v2763, 7
  %v2765 = vsub.s32 2, %v2764
  %v2766 = vrot.slane %v2753, %v2765
  %v2767 = vlaneseq
  %v2768 = vshrl.u32 %v2767, 7
  %v2769 = vsub.s32 3, %v2768
  %v2770 = vrot.slane %v2753, %v2769
  %2771 = vrot.lane.b32.xlu0 %v2758, 82
  %v2772 = vpop.permute.xlu0 %2771
  %2773 = vrot.lane.b32.xlu0 %v2762, 82
  %v2774 = vpop.permute.xlu0 %2773
  %2775 = vrot.lane.b32.xlu0 %v2766, 82
  %v2776 = vpop.permute.xlu0 %2775
  %2777 = vrot.lane.b32.xlu0 %v2770, 82
  %v2778 = vpop.permute.xlu0 %2777
  %vm2779 = vcmask 670720
  %v2780 = vsel %vm2779, %v2772, %v2774
  %v2781 = vsel %vm2779, %v2774, %v2776
  %v2782 = vsel %vm2779, %v2776, %v2778
  %v2788 = vmul.f32 %v2747, %v2772
  %v2789 = vmul.f32 %v2748, %v2780
  %v2790 = vmul.f32 %v2749, %v2781
  %v2791 = vmul.f32 %v2750, %v2782
  %v2792 = vmul.f32 %v2751, %v2778
  %2798 = vrot.lane.b32.xlu0 %v2788, 46
  %v2799 = vpop.permute.xlu0 %2798
  %2800 = vrot.lane.b32.xlu0 %v2789, 46
  %v2801 = vpop.permute.xlu0 %2800
  %2802 = vrot.lane.b32.xlu0 %v2790, 46
  %v2803 = vpop.permute.xlu0 %2802
  %2804 = vrot.lane.b32.xlu0 %v2791, 46
  %v2805 = vpop.permute.xlu0 %2804
  %2806 = vrot.lane.b32.xlu0 %v2792, 46
  %v2807 = vpop.permute.xlu0 %2806
  %vm2808 = vcmask 375808
  %v2809 = vsel %vm2808, %v2799, %v2801
  %v2810 = vsel %vm2808, %v2801, %v2803
  %v2811 = vsel %vm2808, %v2803, %v2805
  %v2812 = vsel %vm2808, %v2805, %v2807
  %2817 = vst [vmem:[#allocation3 + $0x4a0] sm:$0xff] %v2809
  %2818 = vst [vmem:[#allocation3 + $0x4a8] sm:$0xff] %v2810
  %2819 = vst [vmem:[#allocation3 + $0x4b0] sm:$0xff] %v2811
  %2820 = vst [vmem:[#allocation3 + $0x4b8] sm:$0xff] %v2812
  %v2821 = vld [vmem:[#allocation2] sm:$0xff]
  %v2822 = vld [vmem:[#allocation2 + $0x8] sm:$0xff]
  %v2823 = vld [vmem:[#allocation2 + $0x10] sm:$0xff]
  %v2824 = vld [vmem:[#allocation2 + $0x18] sm:$0xff]
  %v2825 = vld [vmem:[#allocation2 + $0x20] sm:$0xff]
  %s2826 = scalar_lea.vmem %s2, 134
  %v2827 = vld [vmem:[%s2826] ss:$8 sm:$0xf]
  %v2829 = vlaneseq
  %v2830 = vshrl.u32 %v2829, 7
  %v2831 = vsub.s32 0, %v2830
  %v2832 = vrot.slane %v2827, %v2831
  %v2833 = vlaneseq
  %v2834 = vshrl.u32 %v2833, 7
  %v2835 = vsub.s32 1, %v2834
  %v2836 = vrot.slane %v2827, %v2835
  %v2837 = vlaneseq
  %v2838 = vshrl.u32 %v2837, 7
  %v2839 = vsub.s32 2, %v2838
  %v2840 = vrot.slane %v2827, %v2839
  %v2841 = vlaneseq
  %v2842 = vshrl.u32 %v2841, 7
  %v2843 = vsub.s32 3, %v2842
  %v2844 = vrot.slane %v2827, %v2843
  %2845 = vrot.lane.b32.xlu0 %v2832, 83
  %v2846 = vpop.permute.xlu0 %2845
  %2847 = vrot.lane.b32.xlu0 %v2836, 83
  %v2848 = vpop.permute.xlu0 %2847
  %2849 = vrot.lane.b32.xlu0 %v2840, 83
  %v2850 = vpop.permute.xlu0 %2849
  %2851 = vrot.lane.b32.xlu0 %v2844, 83
  %v2852 = vpop.permute.xlu0 %2851
  %vm2853 = vcmask 678912
  %v2854 = vsel %vm2853, %v2846, %v2848
  %v2855 = vsel %vm2853, %v2848, %v2850
  %v2856 = vsel %vm2853, %v2850, %v2852
  %v2862 = vmul.f32 %v2821, %v2846
  %v2863 = vmul.f32 %v2822, %v2854
  %v2864 = vmul.f32 %v2823, %v2855
  %v2865 = vmul.f32 %v2824, %v2856
  %v2866 = vmul.f32 %v2825, %v2852
  %2872 = vrot.lane.b32.xlu0 %v2862, 45
  %v2873 = vpop.permute.xlu0 %2872
  %2874 = vrot.lane.b32.xlu0 %v2863, 45
  %v2875 = vpop.permute.xlu0 %2874
  %2876 = vrot.lane.b32.xlu0 %v2864, 45
  %v2877 = vpop.permute.xlu0 %2876
  %2878 = vrot.lane.b32.xlu0 %v2865, 45
  %v2879 = vpop.permute.xlu0 %2878
  %2880 = vrot.lane.b32.xlu0 %v2866, 45
  %v2881 = vpop.permute.xlu0 %2880
  %vm2882 = vcmask 367616
  %v2883 = vsel %vm2882, %v2873, %v2875
  %v2884 = vsel %vm2882, %v2875, %v2877
  %v2885 = vsel %vm2882, %v2877, %v2879
  %v2886 = vsel %vm2882, %v2879, %v2881
  %2891 = vst [vmem:[#allocation3 + $0x4c0] sm:$0xff] %v2883
  %2892 = vst [vmem:[#allocation3 + $0x4c8] sm:$0xff] %v2884
  %2893 = vst [vmem:[#allocation3 + $0x4d0] sm:$0xff] %v2885
  %2894 = vst [vmem:[#allocation3 + $0x4d8] sm:$0xff] %v2886
  %v2895 = vld [vmem:[#allocation2] sm:$0xff]
  %v2896 = vld [vmem:[#allocation2 + $0x8] sm:$0xff]
  %v2897 = vld [vmem:[#allocation2 + $0x10] sm:$0xff]
  %v2898 = vld [vmem:[#allocation2 + $0x18] sm:$0xff]
  %v2899 = vld [vmem:[#allocation2 + $0x20] sm:$0xff]
  %s2900 = scalar_lea.vmem %s2, 135
  %v2901 = vld [vmem:[%s2900] ss:$8 sm:$0xf]
  %v2903 = vlaneseq
  %v2904 = vshrl.u32 %v2903, 7
  %v2905 = vsub.s32 0, %v2904
  %v2906 = vrot.slane %v2901, %v2905
  %v2907 = vlaneseq
  %v2908 = vshrl.u32 %v2907, 7
  %v2909 = vsub.s32 1, %v2908
  %v2910 = vrot.slane %v2901, %v2909
  %v2911 = vlaneseq
  %v2912 = vshrl.u32 %v2911, 7
  %v2913 = vsub.s32 2, %v2912
  %v2914 = vrot.slane %v2901, %v2913
  %v2915 = vlaneseq
  %v2916 = vshrl.u32 %v2915, 7
  %v2917 = vsub.s32 3, %v2916
  %v2918 = vrot.slane %v2901, %v2917
  %2919 = vrot.lane.b32.xlu0 %v2906, 84
  %v2920 = vpop.permute.xlu0 %2919
  %2921 = vrot.lane.b32.xlu0 %v2910, 84
  %v2922 = vpop.permute.xlu0 %2921
  %2923 = vrot.lane.b32.xlu0 %v2914, 84
  %v2924 = vpop.permute.xlu0 %2923
  %2925 = vrot.lane.b32.xlu0 %v2918, 84
  %v2926 = vpop.permute.xlu0 %2925
  %vm2927 = vcmask 687104
  %v2928 = vsel %vm2927, %v2920, %v2922
  %v2929 = vsel %vm2927, %v2922, %v2924
  %v2930 = vsel %vm2927, %v2924, %v2926
  %v2936 = vmul.f32 %v2895, %v2920
  %v2937 = vmul.f32 %v2896, %v2928
  %v2938 = vmul.f32 %v2897, %v2929
  %v2939 = vmul.f32 %v2898, %v2930
  %v2940 = vmul.f32 %v2899, %v2926
  %2946 = vrot.lane.b32.xlu0 %v2936, 44
  %v2947 = vpop.permute.xlu0 %2946
  %2948 = vrot.lane.b32.xlu0 %v2937, 44
  %v2949 = vpop.permute.xlu0 %2948
  %2950 = vrot.lane.b32.xlu0 %v2938, 44
  %v2951 = vpop.permute.xlu0 %2950
  %2952 = vrot.lane.b32.xlu0 %v2939, 44
  %v2953 = vpop.permute.xlu0 %2952
  %2954 = vrot.lane.b32.xlu0 %v2940, 44
  %v2955 = vpop.permute.xlu0 %2954
  %vm2956 = vcmask 359424
  %v2957 = vsel %vm2956, %v2947, %v2949
  %v2958 = vsel %vm2956, %v2949, %v2951
  %v2959 = vsel %vm2956, %v2951, %v2953
  %v2960 = vsel %vm2956, %v2953, %v2955
  %2965 = vst [vmem:[#allocation3 + $0x4e0] sm:$0xff] %v2957
  %2966 = vst [vmem:[#allocation3 + $0x4e8] sm:$0xff] %v2958
  %2967 = vst [vmem:[#allocation3 + $0x4f0] sm:$0xff] %v2959
  %2968 = vst [vmem:[#allocation3 + $0x4f8] sm:$0xff] %v2960
  %v2969 = vld [vmem:[#allocation2] sm:$0xff]
  %v2970 = vld [vmem:[#allocation2 + $0x8] sm:$0xff]
  %v2971 = vld [vmem:[#allocation2 + $0x10] sm:$0xff]
  %v2972 = vld [vmem:[#allocation2 + $0x18] sm:$0xff]
  %v2973 = vld [vmem:[#allocation2 + $0x20] sm:$0xff]
  %s2974 = scalar_lea.vmem %s2, 160
  %v2975 = vld [vmem:[%s2974] ss:$8 sm:$0xf]
  %v2977 = vlaneseq
  %v2978 = vshrl.u32 %v2977, 7
  %v2979 = vsub.s32 0, %v2978
  %v2980 = vrot.slane %v2975, %v2979
  %v2981 = vlaneseq
  %v2982 = vshrl.u32 %v2981, 7
  %v2983 = vsub.s32 1, %v2982
  %v2984 = vrot.slane %v2975, %v2983
  %v2985 = vlaneseq
  %v2986 = vshrl.u32 %v2985, 7
  %v2987 = vsub.s32 2, %v2986
  %v2988 = vrot.slane %v2975, %v2987
  %v2989 = vlaneseq
  %v2990 = vshrl.u32 %v2989, 7
  %v2991 = vsub.s32 3, %v2990
  %v2992 = vrot.slane %v2975, %v2991
  %2993 = vrot.lane.b32.xlu0 %v2980, 85
  %v2994 = vpop.permute.xlu0 %2993
  %2995 = vrot.lane.b32.xlu0 %v2984, 85
  %v2996 = vpop.permute.xlu0 %2995
  %2997 = vrot.lane.b32.xlu0 %v2988, 85
  %v2998 = vpop.permute.xlu0 %2997
  %2999 = vrot.lane.b32.xlu0 %v2992, 85
  %v3000 = vpop.permute.xlu0 %2999
  %vm3001 = vcmask 695296
  %v3002 = vsel %vm3001, %v2994, %v2996
  %v3003 = vsel %vm3001, %v2996, %v2998
  %v3004 = vsel %vm3001, %v2998, %v3000
  %v3010 = vmul.f32 %v2969, %v2994
  %v3011 = vmul.f32 %v2970, %v3002
  %v3012 = vmul.f32 %v2971, %v3003
  %v3013 = vmul.f32 %v2972, %v3004
  %v3014 = vmul.f32 %v2973, %v3000
  %3020 = vrot.lane.b32.xlu0 %v3010, 43
  %v3021 = vpop.permute.xlu0 %3020
  %3022 = vrot.lane.b32.xlu0 %v3011, 43
  %v3023 = vpop.permute.xlu0 %3022
  %3024 = vrot.lane.b32.xlu0 %v3012, 43
  %v3025 = vpop.permute.xlu0 %3024
  %3026 = vrot.lane.b32.xlu0 %v3013, 43
  %v3027 = vpop.permute.xlu0 %3026
  %3028 = vrot.lane.b32.xlu0 %v3014, 43
  %v3029 = vpop.permute.xlu0 %3028
  %vm3030 = vcmask 351232
  %v3031 = vsel %vm3030, %v3021, %v3023
  %v3032 = vsel %vm3030, %v3023, %v3025
  %v3033 = vsel %vm3030, %v3025, %v3027
  %v3034 = vsel %vm3030, %v3027, %v3029
  %3039 = vst [vmem:[#allocation3 + $0x500] sm:$0xff] %v3031
  %3040 = vst [vmem:[#allocation3 + $0x508] sm:$0xff] %v3032
  %3041 = vst [vmem:[#allocation3 + $0x510] sm:$0xff] %v3033
  %3042 = vst [vmem:[#allocation3 + $0x518] sm:$0xff] %v3034
  %v3043 = vld [vmem:[#allocation2] sm:$0xff]
  %v3044 = vld [vmem:[#allocation2 + $0x8] sm:$0xff]
  %v3045 = vld [vmem:[#allocation2 + $0x10] sm:$0xff]
  %v3046 = vld [vmem:[#allocation2 + $0x18] sm:$0xff]
  %v3047 = vld [vmem:[#allocation2 + $0x20] sm:$0xff]
  %s3048 = scalar_lea.vmem %s2, 161
  %v3049 = vld [vmem:[%s3048] ss:$8 sm:$0xf]
  %v3051 = vlaneseq
  %v3052 = vshrl.u32 %v3051, 7
  %v3053 = vsub.s32 0, %v3052
  %v3054 = vrot.slane %v3049, %v3053
  %v3055 = vlaneseq
  %v3056 = vshrl.u32 %v3055, 7
  %v3057 = vsub.s32 1, %v3056
  %v3058 = vrot.slane %v3049, %v3057
  %v3059 = vlaneseq
  %v3060 = vshrl.u32 %v3059, 7
  %v3061 = vsub.s32 2, %v3060
  %v3062 = vrot.slane %v3049, %v3061
  %v3063 = vlaneseq
  %v3064 = vshrl.u32 %v3063, 7
  %v3065 = vsub.s32 3, %v3064
  %v3066 = vrot.slane %v3049, %v3065
  %3067 = vrot.lane.b32.xlu0 %v3054, 86
  %v3068 = vpop.permute.xlu0 %3067
  %3069 = vrot.lane.b32.xlu0 %v3058, 86
  %v3070 = vpop.permute.xlu0 %3069
  %3071 = vrot.lane.b32.xlu0 %v3062, 86
  %v3072 = vpop.permute.xlu0 %3071
  %3073 = vrot.lane.b32.xlu0 %v3066, 86
  %v3074 = vpop.permute.xlu0 %3073
  %vm3075 = vcmask 703488
  %v3076 = vsel %vm3075, %v3068, %v3070
  %v3077 = vsel %vm3075, %v3070, %v3072
  %v3078 = vsel %vm3075, %v3072, %v3074
  %v3084 = vmul.f32 %v3043, %v3068
  %v3085 = vmul.f32 %v3044, %v3076
  %v3086 = vmul.f32 %v3045, %v3077
  %v3087 = vmul.f32 %v3046, %v3078
  %v3088 = vmul.f32 %v3047, %v3074
  %3094 = vrot.lane.b32.xlu0 %v3084, 42
  %v3095 = vpop.permute.xlu0 %3094
  %3096 = vrot.lane.b32.xlu0 %v3085, 42
  %v3097 = vpop.permute.xlu0 %3096
  %3098 = vrot.lane.b32.xlu0 %v3086, 42
  %v3099 = vpop.permute.xlu0 %3098
  %3100 = vrot.lane.b32.xlu0 %v3087, 42
  %v3101 = vpop.permute.xlu0 %3100
  %3102 = vrot.lane.b32.xlu0 %v3088, 42
  %v3103 = vpop.permute.xlu0 %3102
  %vm3104 = vcmask 343040
  %v3105 = vsel %vm3104, %v3095, %v3097
  %v3106 = vsel %vm3104, %v3097, %v3099
  %v3107 = vsel %vm3104, %v3099, %v3101
  %v3108 = vsel %vm3104, %v3101, %v3103
  %3113 = vst [vmem:[#allocation3 + $0x520] sm:$0xff] %v3105
  %3114 = vst [vmem:[#allocation3 + $0x528] sm:$0xff] %v3106
  %3115 = vst [vmem:[#allocation3 + $0x530] sm:$0xff] %v3107
  %3116 = vst [vmem:[#allocation3 + $0x538] sm:$0xff] %v3108
  %v3117 = vld [vmem:[#allocation2] sm:$0xff]
  %v3118 = vld [vmem:[#allocation2 + $0x8] sm:$0xff]
  %v3119 = vld [vmem:[#allocation2 + $0x10] sm:$0xff]
  %v3120 = vld [vmem:[#allocation2 + $0x18] sm:$0xff]
  %v3121 = vld [vmem:[#allocation2 + $0x20] sm:$0xff]
  %s3122 = scalar_lea.vmem %s2, 162
  %v3123 = vld [vmem:[%s3122] ss:$8 sm:$0xf]
  %v3125 = vlaneseq
  %v3126 = vshrl.u32 %v3125, 7
  %v3127 = vsub.s32 0, %v3126
  %v3128 = vrot.slane %v3123, %v3127
  %v3129 = vlaneseq
  %v3130 = vshrl.u32 %v3129, 7
  %v3131 = vsub.s32 1, %v3130
  %v3132 = vrot.slane %v3123, %v3131
  %v3133 = vlaneseq
  %v3134 = vshrl.u32 %v3133, 7
  %v3135 = vsub.s32 2, %v3134
  %v3136 = vrot.slane %v3123, %v3135
  %v3137 = vlaneseq
  %v3138 = vshrl.u32 %v3137, 7
  %v3139 = vsub.s32 3, %v3138
  %v3140 = vrot.slane %v3123, %v3139
  %3141 = vrot.lane.b32.xlu0 %v3128, 96
  %v3142 = vpop.permute.xlu0 %3141
  %3143 = vrot.lane.b32.xlu0 %v3132, 96
  %v3144 = vpop.permute.xlu0 %3143
  %3145 = vrot.lane.b32.xlu0 %v3136, 96
  %v3146 = vpop.permute.xlu0 %3145
  %3147 = vrot.lane.b32.xlu0 %v3140, 96
  %v3148 = vpop.permute.xlu0 %3147
  %v3149 = vsel %vm1110, %v3142, %v3144
  %v3150 = vsel %vm1110, %v3144, %v3146
  %v3151 = vsel %vm1110, %v3146, %v3148
  %v3157 = vmul.f32 %v3117, %v3142
  %v3158 = vmul.f32 %v3118, %v3149
  %v3159 = vmul.f32 %v3119, %v3150
  %v3160 = vmul.f32 %v3120, %v3151
  %v3161 = vmul.f32 %v3121, %v3148
  %3167 = vrot.lane.b32.xlu0 %v3157, 32
  %v3168 = vpop.permute.xlu0 %3167
  %3169 = vrot.lane.b32.xlu0 %v3158, 32
  %v3170 = vpop.permute.xlu0 %3169
  %3171 = vrot.lane.b32.xlu0 %v3159, 32
  %v3172 = vpop.permute.xlu0 %3171
  %3173 = vrot.lane.b32.xlu0 %v3160, 32
  %v3174 = vpop.permute.xlu0 %3173
  %3175 = vrot.lane.b32.xlu0 %v3161, 32
  %v3176 = vpop.permute.xlu0 %3175
  %v3177 = vsel %vm1081, %v3168, %v3170
  %v3178 = vsel %vm1081, %v3170, %v3172
  %v3179 = vsel %vm1081, %v3172, %v3174
  %v3180 = vsel %vm1081, %v3174, %v3176
  %3185 = vst [vmem:[#allocation3 + $0x540] sm:$0xff] %v3177
  %3186 = vst [vmem:[#allocation3 + $0x548] sm:$0xff] %v3178
  %3187 = vst [vmem:[#allocation3 + $0x550] sm:$0xff] %v3179
  %3188 = vst [vmem:[#allocation3 + $0x558] sm:$0xff] %v3180
  %v3189 = vld [vmem:[#allocation2] sm:$0xff]
  %v3190 = vld [vmem:[#allocation2 + $0x8] sm:$0xff]
  %v3191 = vld [vmem:[#allocation2 + $0x10] sm:$0xff]
  %v3192 = vld [vmem:[#allocation2 + $0x18] sm:$0xff]
  %v3193 = vld [vmem:[#allocation2 + $0x20] sm:$0xff]
  %s3194 = scalar_lea.vmem %s2, 163
  %v3195 = vld [vmem:[%s3194] ss:$8 sm:$0xf]
  %v3197 = vlaneseq
  %v3198 = vshrl.u32 %v3197, 7
  %v3199 = vsub.s32 0, %v3198
  %v3200 = vrot.slane %v3195, %v3199
  %v3201 = vlaneseq
  %v3202 = vshrl.u32 %v3201, 7
  %v3203 = vsub.s32 1, %v3202
  %v3204 = vrot.slane %v3195, %v3203
  %v3205 = vlaneseq
  %v3206 = vshrl.u32 %v3205, 7
  %v3207 = vsub.s32 2, %v3206
  %v3208 = vrot.slane %v3195, %v3207
  %v3209 = vlaneseq
  %v3210 = vshrl.u32 %v3209, 7
  %v3211 = vsub.s32 3, %v3210
  %v3212 = vrot.slane %v3195, %v3211
  %3213 = vrot.lane.b32.xlu0 %v3200, 97
  %v3214 = vpop.permute.xlu0 %3213
  %3215 = vrot.lane.b32.xlu0 %v3204, 97
  %v3216 = vpop.permute.xlu0 %3215
  %3217 = vrot.lane.b32.xlu0 %v3208, 97
  %v3218 = vpop.permute.xlu0 %3217
  %3219 = vrot.lane.b32.xlu0 %v3212, 97
  %v3220 = vpop.permute.xlu0 %3219
  %vm3221 = vcmask 793600
  %v3222 = vsel %vm3221, %v3214, %v3216
  %v3223 = vsel %vm3221, %v3216, %v3218
  %v3224 = vsel %vm3221, %v3218, %v3220
  %v3230 = vmul.f32 %v3189, %v3214
  %v3231 = vmul.f32 %v3190, %v3222
  %v3232 = vmul.f32 %v3191, %v3223
  %v3233 = vmul.f32 %v3192, %v3224
  %v3234 = vmul.f32 %v3193, %v3220
  %3240 = vrot.lane.b32.xlu0 %v3230, 31
  %v3241 = vpop.permute.xlu0 %3240
  %3242 = vrot.lane.b32.xlu0 %v3231, 31
  %v3243 = vpop.permute.xlu0 %3242
  %3244 = vrot.lane.b32.xlu0 %v3232, 31
  %v3245 = vpop.permute.xlu0 %3244
  %3246 = vrot.lane.b32.xlu0 %v3233, 31
  %v3247 = vpop.permute.xlu0 %3246
  %3248 = vrot.lane.b32.xlu0 %v3234, 31
  %v3249 = vpop.permute.xlu0 %3248
  %vm3250 = vcmask 252928
  %v3251 = vsel %vm3250, %v3241, %v3243
  %v3252 = vsel %vm3250, %v3243, %v3245
  %v3253 = vsel %vm3250, %v3245, %v3247
  %v3254 = vsel %vm3250, %v3247, %v3249
  %3259 = vst [vmem:[#allocation3 + $0x560] sm:$0xff] %v3251
  %3260 = vst [vmem:[#allocation3 + $0x568] sm:$0xff] %v3252
  %3261 = vst [vmem:[#allocation3 + $0x570] sm:$0xff] %v3253
  %3262 = vst [vmem:[#allocation3 + $0x578] sm:$0xff] %v3254
  %v3263 = vld [vmem:[#allocation2] sm:$0xff]
  %v3264 = vld [vmem:[#allocation2 + $0x8] sm:$0xff]
  %v3265 = vld [vmem:[#allocation2 + $0x10] sm:$0xff]
  %v3266 = vld [vmem:[#allocation2 + $0x18] sm:$0xff]
  %v3267 = vld [vmem:[#allocation2 + $0x20] sm:$0xff]
  %s3268 = scalar_lea.vmem %s2, 164
  %v3269 = vld [vmem:[%s3268] ss:$8 sm:$0xf]
  %v3271 = vlaneseq
  %v3272 = vshrl.u32 %v3271, 7
  %v3273 = vsub.s32 0, %v3272
  %v3274 = vrot.slane %v3269, %v3273
  %v3275 = vlaneseq
  %v3276 = vshrl.u32 %v3275, 7
  %v3277 = vsub.s32 1, %v3276
  %v3278 = vrot.slane %v3269, %v3277
  %v3279 = vlaneseq
  %v3280 = vshrl.u32 %v3279, 7
  %v3281 = vsub.s32 2, %v3280
  %v3282 = vrot.slane %v3269, %v3281
  %v3283 = vlaneseq
  %v3284 = vshrl.u32 %v3283, 7
  %v3285 = vsub.s32 3, %v3284
  %v3286 = vrot.slane %v3269, %v3285
  %3287 = vrot.lane.b32.xlu0 %v3274, 98
  %v3288 = vpop.permute.xlu0 %3287
  %3289 = vrot.lane.b32.xlu0 %v3278, 98
  %v3290 = vpop.permute.xlu0 %3289
  %3291 = vrot.lane.b32.xlu0 %v3282, 98
  %v3292 = vpop.permute.xlu0 %3291
  %3293 = vrot.lane.b32.xlu0 %v3286, 98
  %v3294 = vpop.permute.xlu0 %3293
  %vm3295 = vcmask 801792
  %v3296 = vsel %vm3295, %v3288, %v3290
  %v3297 = vsel %vm3295, %v3290, %v3292
  %v3298 = vsel %vm3295, %v3292, %v3294
  %v3304 = vmul.f32 %v3263, %v3288
  %v3305 = vmul.f32 %v3264, %v3296
  %v3306 = vmul.f32 %v3265, %v3297
  %v3307 = vmul.f32 %v3266, %v3298
  %v3308 = vmul.f32 %v3267, %v3294
  %3314 = vrot.lane.b32.xlu0 %v3304, 30
  %v3315 = vpop.permute.xlu0 %3314
  %3316 = vrot.lane.b32.xlu0 %v3305, 30
  %v3317 = vpop.permute.xlu0 %3316
  %3318 = vrot.lane.b32.xlu0 %v3306, 30
  %v3319 = vpop.permute.xlu0 %3318
  %3320 = vrot.lane.b32.xlu0 %v3307, 30
  %v3321 = vpop.permute.xlu0 %3320
  %3322 = vrot.lane.b32.xlu0 %v3308, 30
  %v3323 = vpop.permute.xlu0 %3322
  %vm3324 = vcmask 244736
  %v3325 = vsel %vm3324, %v3315, %v3317
  %v3326 = vsel %vm3324, %v3317, %v3319
  %v3327 = vsel %vm3324, %v3319, %v3321
  %v3328 = vsel %vm3324, %v3321, %v3323
  %3333 = vst [vmem:[#allocation3 + $0x580] sm:$0xff] %v3325
  %3334 = vst [vmem:[#allocation3 + $0x588] sm:$0xff] %v3326
  %3335 = vst [vmem:[#allocation3 + $0x590] sm:$0xff] %v3327
  %3336 = vst [vmem:[#allocation3 + $0x598] sm:$0xff] %v3328
  %v3337 = vld [vmem:[#allocation2] sm:$0xff]
  %v3338 = vld [vmem:[#allocation2 + $0x8] sm:$0xff]
  %v3339 = vld [vmem:[#allocation2 + $0x10] sm:$0xff]
  %v3340 = vld [vmem:[#allocation2 + $0x18] sm:$0xff]
  %v3341 = vld [vmem:[#allocation2 + $0x20] sm:$0xff]
  %s3342 = scalar_lea.vmem %s2, 165
  %v3343 = vld [vmem:[%s3342] ss:$8 sm:$0xf]
  %v3345 = vlaneseq
  %v3346 = vshrl.u32 %v3345, 7
  %v3347 = vsub.s32 0, %v3346
  %v3348 = vrot.slane %v3343, %v3347
  %v3349 = vlaneseq
  %v3350 = vshrl.u32 %v3349, 7
  %v3351 = vsub.s32 1, %v3350
  %v3352 = vrot.slane %v3343, %v3351
  %v3353 = vlaneseq
  %v3354 = vshrl.u32 %v3353, 7
  %v3355 = vsub.s32 2, %v3354
  %v3356 = vrot.slane %v3343, %v3355
  %v3357 = vlaneseq
  %v3358 = vshrl.u32 %v3357, 7
  %v3359 = vsub.s32 3, %v3358
  %v3360 = vrot.slane %v3343, %v3359
  %3361 = vrot.lane.b32.xlu0 %v3348, 99
  %v3362 = vpop.permute.xlu0 %3361
  %3363 = vrot.lane.b32.xlu0 %v3352, 99
  %v3364 = vpop.permute.xlu0 %3363
  %3365 = vrot.lane.b32.xlu0 %v3356, 99
  %v3366 = vpop.permute.xlu0 %3365
  %3367 = vrot.lane.b32.xlu0 %v3360, 99
  %v3368 = vpop.permute.xlu0 %3367
  %vm3369 = vcmask 809984
  %v3370 = vsel %vm3369, %v3362, %v3364
  %v3371 = vsel %vm3369, %v3364, %v3366
  %v3372 = vsel %vm3369, %v3366, %v3368
  %v3378 = vmul.f32 %v3337, %v3362
  %v3379 = vmul.f32 %v3338, %v3370
  %v3380 = vmul.f32 %v3339, %v3371
  %v3381 = vmul.f32 %v3340, %v3372
  %v3382 = vmul.f32 %v3341, %v3368
  %3388 = vrot.lane.b32.xlu0 %v3378, 29
  %v3389 = vpop.permute.xlu0 %3388
  %3390 = vrot.lane.b32.xlu0 %v3379, 29
  %v3391 = vpop.permute.xlu0 %3390
  %3392 = vrot.lane.b32.xlu0 %v3380, 29
  %v3393 = vpop.permute.xlu0 %3392
  %3394 = vrot.lane.b32.xlu0 %v3381, 29
  %v3395 = vpop.permute.xlu0 %3394
  %3396 = vrot.lane.b32.xlu0 %v3382, 29
  %v3397 = vpop.permute.xlu0 %3396
  %vm3398 = vcmask 236544
  %v3399 = vsel %vm3398, %v3389, %v3391
  %v3400 = vsel %vm3398, %v3391, %v3393
  %v3401 = vsel %vm3398, %v3393, %v3395
  %v3402 = vsel %vm3398, %v3395, %v3397
  %3407 = vst [vmem:[#allocation3 + $0x5a0] sm:$0xff] %v3399
  %3408 = vst [vmem:[#allocation3 + $0x5a8] sm:$0xff] %v3400
  %3409 = vst [vmem:[#allocation3 + $0x5b0] sm:$0xff] %v3401
  %3410 = vst [vmem:[#allocation3 + $0x5b8] sm:$0xff] %v3402
  %v3411 = vld [vmem:[#allocation2] sm:$0xff]
  %v3412 = vld [vmem:[#allocation2 + $0x8] sm:$0xff]
  %v3413 = vld [vmem:[#allocation2 + $0x10] sm:$0xff]
  %v3414 = vld [vmem:[#allocation2 + $0x18] sm:$0xff]
  %v3415 = vld [vmem:[#allocation2 + $0x20] sm:$0xff]
  %s3416 = scalar_lea.vmem %s2, 166
  %v3417 = vld [vmem:[%s3416] ss:$8 sm:$0xf]
  %v3419 = vlaneseq
  %v3420 = vshrl.u32 %v3419, 7
  %v3421 = vsub.s32 0, %v3420
  %v3422 = vrot.slane %v3417, %v3421
  %v3423 = vlaneseq
  %v3424 = vshrl.u32 %v3423, 7
  %v3425 = vsub.s32 1, %v3424
  %v3426 = vrot.slane %v3417, %v3425
  %v3427 = vlaneseq
  %v3428 = vshrl.u32 %v3427, 7
  %v3429 = vsub.s32 2, %v3428
  %v3430 = vrot.slane %v3417, %v3429
  %v3431 = vlaneseq
  %v3432 = vshrl.u32 %v3431, 7
  %v3433 = vsub.s32 3, %v3432
  %v3434 = vrot.slane %v3417, %v3433
  %3435 = vrot.lane.b32.xlu0 %v3422, 100
  %v3436 = vpop.permute.xlu0 %3435
  %3437 = vrot.lane.b32.xlu0 %v3426, 100
  %v3438 = vpop.permute.xlu0 %3437
  %3439 = vrot.lane.b32.xlu0 %v3430, 100
  %v3440 = vpop.permute.xlu0 %3439
  %3441 = vrot.lane.b32.xlu0 %v3434, 100
  %v3442 = vpop.permute.xlu0 %3441
  %vm3443 = vcmask 818176
  %v3444 = vsel %vm3443, %v3436, %v3438
  %v3445 = vsel %vm3443, %v3438, %v3440
  %v3446 = vsel %vm3443, %v3440, %v3442
  %v3452 = vmul.f32 %v3411, %v3436
  %v3453 = vmul.f32 %v3412, %v3444
  %v3454 = vmul.f32 %v3413, %v3445
  %v3455 = vmul.f32 %v3414, %v3446
  %v3456 = vmul.f32 %v3415, %v3442
  %3462 = vrot.lane.b32.xlu0 %v3452, 28
  %v3463 = vpop.permute.xlu0 %3462
  %3464 = vrot.lane.b32.xlu0 %v3453, 28
  %v3465 = vpop.permute.xlu0 %3464
  %3466 = vrot.lane.b32.xlu0 %v3454, 28
  %v3467 = vpop.permute.xlu0 %3466
  %3468 = vrot.lane.b32.xlu0 %v3455, 28
  %v3469 = vpop.permute.xlu0 %3468
  %3470 = vrot.lane.b32.xlu0 %v3456, 28
  %v3471 = vpop.permute.xlu0 %3470
  %vm3472 = vcmask 228352
  %v3473 = vsel %vm3472, %v3463, %v3465
  %v3474 = vsel %vm3472, %v3465, %v3467
  %v3475 = vsel %vm3472, %v3467, %v3469
  %v3476 = vsel %vm3472, %v3469, %v3471
  %3481 = vst [vmem:[#allocation3 + $0x5c0] sm:$0xff] %v3473
  %3482 = vst [vmem:[#allocation3 + $0x5c8] sm:$0xff] %v3474
  %3483 = vst [vmem:[#allocation3 + $0x5d0] sm:$0xff] %v3475
  %3484 = vst [vmem:[#allocation3 + $0x5d8] sm:$0xff] %v3476
  %v3485 = vld [vmem:[#allocation2] sm:$0xff]
  %v3486 = vld [vmem:[#allocation2 + $0x8] sm:$0xff]
  %v3487 = vld [vmem:[#allocation2 + $0x10] sm:$0xff]
  %v3488 = vld [vmem:[#allocation2 + $0x18] sm:$0xff]
  %v3489 = vld [vmem:[#allocation2 + $0x20] sm:$0xff]
  %s3490 = scalar_lea.vmem %s2, 167
  %v3491 = vld [vmem:[%s3490] ss:$8 sm:$0xf]
  %v3493 = vlaneseq
  %v3494 = vshrl.u32 %v3493, 7
  %v3495 = vsub.s32 0, %v3494
  %v3496 = vrot.slane %v3491, %v3495
  %v3497 = vlaneseq
  %v3498 = vshrl.u32 %v3497, 7
  %v3499 = vsub.s32 1, %v3498
  %v3500 = vrot.slane %v3491, %v3499
  %v3501 = vlaneseq
  %v3502 = vshrl.u32 %v3501, 7
  %v3503 = vsub.s32 2, %v3502
  %v3504 = vrot.slane %v3491, %v3503
  %v3505 = vlaneseq
  %v3506 = vshrl.u32 %v3505, 7
  %v3507 = vsub.s32 3, %v3506
  %v3508 = vrot.slane %v3491, %v3507
  %3509 = vrot.lane.b32.xlu0 %v3496, 101
  %v3510 = vpop.permute.xlu0 %3509
  %3511 = vrot.lane.b32.xlu0 %v3500, 101
  %v3512 = vpop.permute.xlu0 %3511
  %3513 = vrot.lane.b32.xlu0 %v3504, 101
  %v3514 = vpop.permute.xlu0 %3513
  %3515 = vrot.lane.b32.xlu0 %v3508, 101
  %v3516 = vpop.permute.xlu0 %3515
  %vm3517 = vcmask 826368
  %v3518 = vsel %vm3517, %v3510, %v3512
  %v3519 = vsel %vm3517, %v3512, %v3514
  %v3520 = vsel %vm3517, %v3514, %v3516
  %v3526 = vmul.f32 %v3485, %v3510
  %v3527 = vmul.f32 %v3486, %v3518
  %v3528 = vmul.f32 %v3487, %v3519
  %v3529 = vmul.f32 %v3488, %v3520
  %v3530 = vmul.f32 %v3489, %v3516
  %3536 = vrot.lane.b32.xlu0 %v3526, 27
  %v3537 = vpop.permute.xlu0 %3536
  %3538 = vrot.lane.b32.xlu0 %v3527, 27
  %v3539 = vpop.permute.xlu0 %3538
  %3540 = vrot.lane.b32.xlu0 %v3528, 27
  %v3541 = vpop.permute.xlu0 %3540
  %3542 = vrot.lane.b32.xlu0 %v3529, 27
  %v3543 = vpop.permute.xlu0 %3542
  %3544 = vrot.lane.b32.xlu0 %v3530, 27
  %v3545 = vpop.permute.xlu0 %3544
  %vm3546 = vcmask 220160
  %v3547 = vsel %vm3546, %v3537, %v3539
  %v3548 = vsel %vm3546, %v3539, %v3541
  %v3549 = vsel %vm3546, %v3541, %v3543
  %v3550 = vsel %vm3546, %v3543, %v3545
  %3555 = vst [vmem:[#allocation3 + $0x5e0] sm:$0xff] %v3547
  %3556 = vst [vmem:[#allocation3 + $0x5e8] sm:$0xff] %v3548
  %3557 = vst [vmem:[#allocation3 + $0x5f0] sm:$0xff] %v3549
  %3558 = vst [vmem:[#allocation3 + $0x5f8] sm:$0xff] %v3550
  %v3559 = vld [vmem:[#allocation2] sm:$0xff]
  %v3560 = vld [vmem:[#allocation2 + $0x8] sm:$0xff]
  %v3561 = vld [vmem:[#allocation2 + $0x10] sm:$0xff]
  %v3562 = vld [vmem:[#allocation2 + $0x18] sm:$0xff]
  %v3563 = vld [vmem:[#allocation2 + $0x20] sm:$0xff]
  %s3564 = scalar_lea.vmem %s2, 192
  %v3565 = vld [vmem:[%s3564] ss:$8 sm:$0xf]
  %v3567 = vlaneseq
  %v3568 = vshrl.u32 %v3567, 7
  %v3569 = vsub.s32 0, %v3568
  %v3570 = vrot.slane %v3565, %v3569
  %v3571 = vlaneseq
  %v3572 = vshrl.u32 %v3571, 7
  %v3573 = vsub.s32 1, %v3572
  %v3574 = vrot.slane %v3565, %v3573
  %v3575 = vlaneseq
  %v3576 = vshrl.u32 %v3575, 7
  %v3577 = vsub.s32 2, %v3576
  %v3578 = vrot.slane %v3565, %v3577
  %v3579 = vlaneseq
  %v3580 = vshrl.u32 %v3579, 7
  %v3581 = vsub.s32 3, %v3580
  %v3582 = vrot.slane %v3565, %v3581
  %3583 = vrot.lane.b32.xlu0 %v3570, 102
  %v3584 = vpop.permute.xlu0 %3583
  %3585 = vrot.lane.b32.xlu0 %v3574, 102
  %v3586 = vpop.permute.xlu0 %3585
  %3587 = vrot.lane.b32.xlu0 %v3578, 102
  %v3588 = vpop.permute.xlu0 %3587
  %3589 = vrot.lane.b32.xlu0 %v3582, 102
  %v3590 = vpop.permute.xlu0 %3589
  %v3591 = vsel %vm18, %v3584, %v3586
  %v3592 = vsel %vm18, %v3586, %v3588
  %v3593 = vsel %vm18, %v3588, %v3590
  %v3599 = vmul.f32 %v3559, %v3584
  %v3600 = vmul.f32 %v3560, %v3591
  %v3601 = vmul.f32 %v3561, %v3592
  %v3602 = vmul.f32 %v3562, %v3593
  %v3603 = vmul.f32 %v3563, %v3590
  %3609 = vrot.lane.b32.xlu0 %v3599, 26
  %v3610 = vpop.permute.xlu0 %3609
  %3611 = vrot.lane.b32.xlu0 %v3600, 26
  %v3612 = vpop.permute.xlu0 %3611
  %3613 = vrot.lane.b32.xlu0 %v3601, 26
  %v3614 = vpop.permute.xlu0 %3613
  %3615 = vrot.lane.b32.xlu0 %v3602, 26
  %v3616 = vpop.permute.xlu0 %3615
  %3617 = vrot.lane.b32.xlu0 %v3603, 26
  %v3618 = vpop.permute.xlu0 %3617
  %vm3619 = vcmask 211968
  %v3620 = vsel %vm3619, %v3610, %v3612
  %v3621 = vsel %vm3619, %v3612, %v3614
  %v3622 = vsel %vm3619, %v3614, %v3616
  %v3623 = vsel %vm3619, %v3616, %v3618
  %3628 = vst [vmem:[#allocation3 + $0x600] sm:$0xff] %v3620
  %3629 = vst [vmem:[#allocation3 + $0x608] sm:$0xff] %v3621
  %3630 = vst [vmem:[#allocation3 + $0x610] sm:$0xff] %v3622
  %3631 = vst [vmem:[#allocation3 + $0x618] sm:$0xff] %v3623
  %v3632 = vld [vmem:[%s1] sm:$0xff]
  %v3633 = vld [vmem:[%s1 + $0x8] sm:$0xff]
  %v3634 = vunpack.c.l.bf16 %v3632
  %v3635 = vunpack.c.h.bf16 %v3632
  %v3636 = vunpack.c.l.bf16 %v3633
  %v3637 = vunpack.c.h.bf16 %v3633
  %v3638 = vld [vmem:[#allocation3] sm:$0xff]
  %v3639 = vld [vmem:[#allocation3 + $0x8] sm:$0xff]
  %v3640 = vld [vmem:[#allocation3 + $0x10] sm:$0xff]
  %v3641 = vld [vmem:[#allocation3 + $0x18] sm:$0xff]
  %v3642 = vld [vmem:[#allocation3 + $0x20] sm:$0xff]
  %v3643 = vld [vmem:[#allocation3 + $0x28] sm:$0xff]
  %v3644 = vld [vmem:[#allocation3 + $0x30] sm:$0xff]
  %v3645 = vld [vmem:[#allocation3 + $0x38] sm:$0xff]
  %v3646 = vld [vmem:[#allocation3 + $0x40] sm:$0xff]
  %v3647 = vld [vmem:[#allocation3 + $0x48] sm:$0xff]
  %v3648 = vld [vmem:[#allocation3 + $0x50] sm:$0xff]
  %v3649 = vld [vmem:[#allocation3 + $0x58] sm:$0xff]
  %v3650 = vld [vmem:[#allocation3 + $0x60] sm:$0xff]
  %v3651 = vld [vmem:[#allocation3 + $0x68] sm:$0xff]
  %v3652 = vld [vmem:[#allocation3 + $0x70] sm:$0xff]
  %v3653 = vld [vmem:[#allocation3 + $0x78] sm:$0xff]
  %v3654 = vld [vmem:[#allocation3 + $0x80] sm:$0xff]
  %v3655 = vld [vmem:[#allocation3 + $0x88] sm:$0xff]
  %v3656 = vld [vmem:[#allocation3 + $0x90] sm:$0xff]
  %v3657 = vld [vmem:[#allocation3 + $0x98] sm:$0xff]
  %v3658 = vld [vmem:[#allocation3 + $0xa0] sm:$0xff]
  %v3659 = vld [vmem:[#allocation3 + $0xa8] sm:$0xff]
  %v3660 = vld [vmem:[#allocation3 + $0xb0] sm:$0xff]
  %v3661 = vld [vmem:[#allocation3 + $0xb8] sm:$0xff]
  %v3662 = vld [vmem:[#allocation3 + $0xc0] sm:$0xff]
  %v3663 = vld [vmem:[#allocation3 + $0xc8] sm:$0xff]
  %v3664 = vld [vmem:[#allocation3 + $0xd0] sm:$0xff]
  %v3665 = vld [vmem:[#allocation3 + $0xd8] sm:$0xff]
  %v3666 = vld [vmem:[#allocation3 + $0xe0] sm:$0xff]
  %v3667 = vld [vmem:[#allocation3 + $0xe8] sm:$0xff]
  %v3668 = vld [vmem:[#allocation3 + $0xf0] sm:$0xff]
  %v3669 = vld [vmem:[#allocation3 + $0xf8] sm:$0xff]
  %v3670 = vld [vmem:[#allocation3 + $0x100] sm:$0xff]
  %v3671 = vld [vmem:[#allocation3 + $0x108] sm:$0xff]
  %v3672 = vld [vmem:[#allocation3 + $0x110] sm:$0xff]
  %v3673 = vld [vmem:[#allocation3 + $0x118] sm:$0xff]
  %v3674 = vld [vmem:[#allocation3 + $0x120] sm:$0xff]
  %v3675 = vld [vmem:[#allocation3 + $0x128] sm:$0xff]
  %v3676 = vld [vmem:[#allocation3 + $0x130] sm:$0xff]
  %v3677 = vld [vmem:[#allocation3 + $0x138] sm:$0xff]
  %v3678 = vld [vmem:[#allocation3 + $0x140] sm:$0xff]
  %v3679 = vld [vmem:[#allocation3 + $0x148] sm:$0xff]
  %v3680 = vld [vmem:[#allocation3 + $0x150] sm:$0xff]
  %v3681 = vld [vmem:[#allocation3 + $0x158] sm:$0xff]
  %v3682 = vld [vmem:[#allocation3 + $0x160] sm:$0xff]
  %v3683 = vld [vmem:[#allocation3 + $0x168] sm:$0xff]
  %v3684 = vld [vmem:[#allocation3 + $0x170] sm:$0xff]
  %v3685 = vld [vmem:[#allocation3 + $0x178] sm:$0xff]
  %v3686 = vld [vmem:[#allocation3 + $0x180] sm:$0xff]
  %v3687 = vld [vmem:[#allocation3 + $0x188] sm:$0xff]
  %v3688 = vld [vmem:[#allocation3 + $0x190] sm:$0xff]
  %v3689 = vld [vmem:[#allocation3 + $0x198] sm:$0xff]
  %v3690 = vld [vmem:[#allocation3 + $0x1a0] sm:$0xff]
  %v3691 = vld [vmem:[#allocation3 + $0x1a8] sm:$0xff]
  %v3692 = vld [vmem:[#allocation3 + $0x1b0] sm:$0xff]
  %v3693 = vld [vmem:[#allocation3 + $0x1b8] sm:$0xff]
  %v3694 = vld [vmem:[#allocation3 + $0x1c0] sm:$0xff]
  %v3695 = vld [vmem:[#allocation3 + $0x1c8] sm:$0xff]
  %v3696 = vld [vmem:[#allocation3 + $0x1d0] sm:$0xff]
  %v3697 = vld [vmem:[#allocation3 + $0x1d8] sm:$0xff]
  %v3698 = vld [vmem:[#allocation3 + $0x1e0] sm:$0xff]
  %v3699 = vld [vmem:[#allocation3 + $0x1e8] sm:$0xff]
  %v3700 = vld [vmem:[#allocation3 + $0x1f0] sm:$0xff]
  %v3701 = vld [vmem:[#allocation3 + $0x1f8] sm:$0xff]
  %v3702 = vld [vmem:[#allocation3 + $0x200] sm:$0xff]
  %v3703 = vld [vmem:[#allocation3 + $0x208] sm:$0xff]
  %v3704 = vld [vmem:[#allocation3 + $0x210] sm:$0xff]
  %v3705 = vld [vmem:[#allocation3 + $0x218] sm:$0xff]
  %v3706 = vld [vmem:[#allocation3 + $0x220] sm:$0xff]
  %v3707 = vld [vmem:[#allocation3 + $0x228] sm:$0xff]
  %v3708 = vld [vmem:[#allocation3 + $0x230] sm:$0xff]
  %v3709 = vld [vmem:[#allocation3 + $0x238] sm:$0xff]
  %v3710 = vld [vmem:[#allocation3 + $0x240] sm:$0xff]
  %v3711 = vld [vmem:[#allocation3 + $0x248] sm:$0xff]
  %v3712 = vld [vmem:[#allocation3 + $0x250] sm:$0xff]
  %v3713 = vld [vmem:[#allocation3 + $0x258] sm:$0xff]
  %v3714 = vld [vmem:[#allocation3 + $0x260] sm:$0xff]
  %v3715 = vld [vmem:[#allocation3 + $0x268] sm:$0xff]
  %v3716 = vld [vmem:[#allocation3 + $0x270] sm:$0xff]
  %v3717 = vld [vmem:[#allocation3 + $0x278] sm:$0xff]
  %v3718 = vld [vmem:[#allocation3 + $0x280] sm:$0xff]
  %v3719 = vld [vmem:[#allocation3 + $0x288] sm:$0xff]
  %v3720 = vld [vmem:[#allocation3 + $0x290] sm:$0xff]
  %v3721 = vld [vmem:[#allocation3 + $0x298] sm:$0xff]
  %v3722 = vld [vmem:[#allocation3 + $0x2a0] sm:$0xff]
  %v3723 = vld [vmem:[#allocation3 + $0x2a8] sm:$0xff]
  %v3724 = vld [vmem:[#allocation3 + $0x2b0] sm:$0xff]
  %v3725 = vld [vmem:[#allocation3 + $0x2b8] sm:$0xff]
  %v3726 = vld [vmem:[#allocation3 + $0x2c0] sm:$0xff]
  %v3727 = vld [vmem:[#allocation3 + $0x2c8] sm:$0xff]
  %v3728 = vld [vmem:[#allocation3 + $0x2d0] sm:$0xff]
  %v3729 = vld [vmem:[#allocation3 + $0x2d8] sm:$0xff]
  %v3730 = vld [vmem:[#allocation3 + $0x2e0] sm:$0xff]
  %v3731 = vld [vmem:[#allocation3 + $0x2e8] sm:$0xff]
  %v3732 = vld [vmem:[#allocation3 + $0x2f0] sm:$0xff]
  %v3733 = vld [vmem:[#allocation3 + $0x2f8] sm:$0xff]
  %v3734 = vld [vmem:[#allocation3 + $0x300] sm:$0xff]
  %v3735 = vld [vmem:[#allocation3 + $0x308] sm:$0xff]
  %v3736 = vld [vmem:[#allocation3 + $0x310] sm:$0xff]
  %v3737 = vld [vmem:[#allocation3 + $0x318] sm:$0xff]
  %v3738 = vld [vmem:[#allocation3 + $0x320] sm:$0xff]
  %v3739 = vld [vmem:[#allocation3 + $0x328] sm:$0xff]
  %v3740 = vld [vmem:[#allocation3 + $0x330] sm:$0xff]
  %v3741 = vld [vmem:[#allocation3 + $0x338] sm:$0xff]
  %v3742 = vld [vmem:[#allocation3 + $0x340] sm:$0xff]
  %v3743 = vld [vmem:[#allocation3 + $0x348] sm:$0xff]
  %v3744 = vld [vmem:[#allocation3 + $0x350] sm:$0xff]
  %v3745 = vld [vmem:[#allocation3 + $0x358] sm:$0xff]
  %v3746 = vld [vmem:[#allocation3 + $0x360] sm:$0xff]
  %v3747 = vld [vmem:[#allocation3 + $0x368] sm:$0xff]
  %v3748 = vld [vmem:[#allocation3 + $0x370] sm:$0xff]
  %v3749 = vld [vmem:[#allocation3 + $0x378] sm:$0xff]
  %v3750 = vld [vmem:[#allocation3 + $0x380] sm:$0xff]
  %v3751 = vld [vmem:[#allocation3 + $0x388] sm:$0xff]
  %v3752 = vld [vmem:[#allocation3 + $0x390] sm:$0xff]
  %v3753 = vld [vmem:[#allocation3 + $0x398] sm:$0xff]
  %v3754 = vld [vmem:[#allocation3 + $0x3a0] sm:$0xff]
  %v3755 = vld [vmem:[#allocation3 + $0x3a8] sm:$0xff]
  %v3756 = vld [vmem:[#allocation3 + $0x3b0] sm:$0xff]
  %v3757 = vld [vmem:[#allocation3 + $0x3b8] sm:$0xff]
  %v3758 = vld [vmem:[#allocation3 + $0x3c0] sm:$0xff]
  %v3759 = vld [vmem:[#allocation3 + $0x3c8] sm:$0xff]
  %v3760 = vld [vmem:[#allocation3 + $0x3d0] sm:$0xff]
  %v3761 = vld [vmem:[#allocation3 + $0x3d8] sm:$0xff]
  %v3762 = vld [vmem:[#allocation3 + $0x3e0] sm:$0xff]
  %v3763 = vld [vmem:[#allocation3 + $0x3e8] sm:$0xff]
  %v3764 = vld [vmem:[#allocation3 + $0x3f0] sm:$0xff]
  %v3765 = vld [vmem:[#allocation3 + $0x3f8] sm:$0xff]
  %v3766 = vld [vmem:[#allocation3 + $0x400] sm:$0xff]
  %v3767 = vld [vmem:[#allocation3 + $0x408] sm:$0xff]
  %v3768 = vld [vmem:[#allocation3 + $0x410] sm:$0xff]
  %v3769 = vld [vmem:[#allocation3 + $0x418] sm:$0xff]
  %v3770 = vld [vmem:[#allocation3 + $0x420] sm:$0xff]
  %v3771 = vld [vmem:[#allocation3 + $0x428] sm:$0xff]
  %v3772 = vld [vmem:[#allocation3 + $0x430] sm:$0xff]
  %v3773 = vld [vmem:[#allocation3 + $0x438] sm:$0xff]
  %v3774 = vld [vmem:[#allocation3 + $0x440] sm:$0xff]
  %v3775 = vld [vmem:[#allocation3 + $0x448] sm:$0xff]
  %v3776 = vld [vmem:[#allocation3 + $0x450] sm:$0xff]
  %v3777 = vld [vmem:[#allocation3 + $0x458] sm:$0xff]
  %v3778 = vld [vmem:[#allocation3 + $0x460] sm:$0xff]
  %v3779 = vld [vmem:[#allocation3 + $0x468] sm:$0xff]
  %v3780 = vld [vmem:[#allocation3 + $0x470] sm:$0xff]
  %v3781 = vld [vmem:[#allocation3 + $0x478] sm:$0xff]
  %v3782 = vld [vmem:[#allocation3 + $0x480] sm:$0xff]
  %v3783 = vld [vmem:[#allocation3 + $0x488] sm:$0xff]
  %v3784 = vld [vmem:[#allocation3 + $0x490] sm:$0xff]
  %v3785 = vld [vmem:[#allocation3 + $0x498] sm:$0xff]
  %v3786 = vld [vmem:[#allocation3 + $0x4a0] sm:$0xff]
  %v3787 = vld [vmem:[#allocation3 + $0x4a8] sm:$0xff]
  %v3788 = vld [vmem:[#allocation3 + $0x4b0] sm:$0xff]
  %v3789 = vld [vmem:[#allocation3 + $0x4b8] sm:$0xff]
  %v3790 = vld [vmem:[#allocation3 + $0x4c0] sm:$0xff]
  %v3791 = vld [vmem:[#allocation3 + $0x4c8] sm:$0xff]
  %v3792 = vld [vmem:[#allocation3 + $0x4d0] sm:$0xff]
  %v3793 = vld [vmem:[#allocation3 + $0x4d8] sm:$0xff]
  %v3794 = vld [vmem:[#allocation3 + $0x4e0] sm:$0xff]
  %v3795 = vld [vmem:[#allocation3 + $0x4e8] sm:$0xff]
  %v3796 = vld [vmem:[#allocation3 + $0x4f0] sm:$0xff]
  %v3797 = vld [vmem:[#allocation3 + $0x4f8] sm:$0xff]
  %v3798 = vld [vmem:[#allocation3 + $0x500] sm:$0xff]
  %v3799 = vld [vmem:[#allocation3 + $0x508] sm:$0xff]
  %v3800 = vld [vmem:[#allocation3 + $0x510] sm:$0xff]
  %v3801 = vld [vmem:[#allocation3 + $0x518] sm:$0xff]
  %v3802 = vld [vmem:[#allocation3 + $0x520] sm:$0xff]
  %v3803 = vld [vmem:[#allocation3 + $0x528] sm:$0xff]
  %v3804 = vld [vmem:[#allocation3 + $0x530] sm:$0xff]
  %v3805 = vld [vmem:[#allocation3 + $0x538] sm:$0xff]
  %v3806 = vld [vmem:[#allocation3 + $0x540] sm:$0xff]
  %v3807 = vld [vmem:[#allocation3 + $0x548] sm:$0xff]
  %v3808 = vld [vmem:[#allocation3 + $0x550] sm:$0xff]
  %v3809 = vld [vmem:[#allocation3 + $0x558] sm:$0xff]
  %v3810 = vld [vmem:[#allocation3 + $0x560] sm:$0xff]
  %v3811 = vld [vmem:[#allocation3 + $0x568] sm:$0xff]
  %v3812 = vld [vmem:[#allocation3 + $0x570] sm:$0xff]
  %v3813 = vld [vmem:[#allocation3 + $0x578] sm:$0xff]
  %v3814 = vld [vmem:[#allocation3 + $0x580] sm:$0xff]
  %v3815 = vld [vmem:[#allocation3 + $0x588] sm:$0xff]
  %v3816 = vld [vmem:[#allocation3 + $0x590] sm:$0xff]
  %v3817 = vld [vmem:[#allocation3 + $0x598] sm:$0xff]
  %v3818 = vld [vmem:[#allocation3 + $0x5a0] sm:$0xff]
  %v3819 = vld [vmem:[#allocation3 + $0x5a8] sm:$0xff]
  %v3820 = vld [vmem:[#allocation3 + $0x5b0] sm:$0xff]
  %v3821 = vld [vmem:[#allocation3 + $0x5b8] sm:$0xff]
  %v3822 = vld [vmem:[#allocation3 + $0x5c0] sm:$0xff]
  %v3823 = vld [vmem:[#allocation3 + $0x5c8] sm:$0xff]
  %v3824 = vld [vmem:[#allocation3 + $0x5d0] sm:$0xff]
  %v3825 = vld [vmem:[#allocation3 + $0x5d8] sm:$0xff]
  %v3826 = vld [vmem:[#allocation3 + $0x5e0] sm:$0xff]
  %v3827 = vld [vmem:[#allocation3 + $0x5e8] sm:$0xff]
  %v3828 = vld [vmem:[#allocation3 + $0x5f0] sm:$0xff]
  %v3829 = vld [vmem:[#allocation3 + $0x5f8] sm:$0xff]
  %v3830 = vld [vmem:[#allocation3 + $0x600] sm:$0xff]
  %v3831 = vld [vmem:[#allocation3 + $0x608] sm:$0xff]
  %v3832 = vld [vmem:[#allocation3 + $0x610] sm:$0xff]
  %v3833 = vld [vmem:[#allocation3 + $0x618] sm:$0xff]
  %vm3834 = vcmask 64512
  %v3836 = vsel %vm3834, %v3637, 0
  %3838 = vmatprep.subr.mxu0 %v3639
  %3839 = vmatpush1.msra.mxu0 %v3638
  %3840 = vmatprep.subr.mxu0 %v3643
  %3841 = vmatpush1.msra.mxu0 %v3642
  %3842 = vmatprep.subr.mxu0 %v3647
  %3843 = vmatpush1.msra.mxu0 %v3646
  %3844 = vmatprep.subr.mxu0 %v3651
  %3845 = vmatpush1.msra.mxu0 %v3650
  %3846 = vmatprep.subr.mxu0 %v3655
  %3847 = vmatpush1.msra.mxu0 %v3654
  %3848 = vmatprep.subr.mxu0 %v3659
  %3849 = vmatpush1.msra.mxu0 %v3658
  %3850 = vmatprep.subr.mxu0 %v3663
  %3851 = vmatpush1.msra.mxu0 %v3662
  %3852 = vmatprep.subr.mxu0 %v3667
  %3853 = vmatpush1.msra.mxu0 %v3666
  %3854 = vmatprep.subr.mxu0 %v3671
  %3855 = vmatpush1.msra.mxu0 %v3670
  %3856 = vmatprep.subr.mxu0 %v3675
  %3857 = vmatpush1.msra.mxu0 %v3674
  %3858 = vmatprep.subr.mxu0 %v3679
  %3859 = vmatpush1.msra.mxu0 %v3678
  %3860 = vmatprep.subr.mxu0 %v3683
  %3861 = vmatpush1.msra.mxu0 %v3682
  %3862 = vmatprep.subr.mxu0 %v3687
  %3863 = vmatpush1.msra.mxu0 %v3686
  %3864 = vmatprep.subr.mxu0 %v3691
  %3865 = vmatpush1.msra.mxu0 %v3690
  %3866 = vmatprep.subr.mxu0 %v3695
  %3867 = vmatpush1.msra.mxu0 %v3694
  %3868 = vmatprep.subr.mxu0 %v3699
  %3869 = vmatpush1.msra.mxu0 %v3698
  %3870 = vmatprep.subr.mxu0 %v3703
  %3871 = vmatpush1.msra.mxu0 %v3702
  %3872 = vmatprep.subr.mxu0 %v3707
  %3873 = vmatpush1.msra.mxu0 %v3706
  %3874 = vmatprep.subr.mxu0 %v3711
  %3875 = vmatpush1.msra.mxu0 %v3710
  %3876 = vmatprep.subr.mxu0 %v3715
  %3877 = vmatpush1.msra.mxu0 %v3714
  %3878 = vmatprep.subr.mxu0 %v3719
  %3879 = vmatpush1.msra.mxu0 %v3718
  %3880 = vmatprep.subr.mxu0 %v3723
  %3881 = vmatpush1.msra.mxu0 %v3722
  %3882 = vmatprep.subr.mxu0 %v3727
  %3883 = vmatpush1.msra.mxu0 %v3726
  %3884 = vmatprep.subr.mxu0 %v3731
  %3885 = vmatpush1.msra.mxu0 %v3730
  %3886 = vmatprep.subr.mxu0 %v3735
  %3887 = vmatpush1.msra.mxu0 %v3734
  %3888 = vmatprep.subr.mxu0 %v3739
  %3889 = vmatpush1.msra.mxu0 %v3738
  %3890 = vmatprep.subr.mxu0 %v3743
  %3891 = vmatpush1.msra.mxu0 %v3742
  %3892 = vmatprep.subr.mxu0 %v3747
  %3893 = vmatpush1.msra.mxu0 %v3746
  %3894 = vmatprep.subr.mxu0 %v3751
  %3895 = vmatpush1.msra.mxu0 %v3750
  %3896 = vmatprep.subr.mxu0 %v3755
  %3897 = vmatpush1.msra.mxu0 %v3754
  %3898 = vmatprep.subr.mxu0 %v3759
  %3899 = vmatpush1.msra.mxu0 %v3758
  %3900 = vmatprep.subr.mxu0 %v3763
  %3901 = vmatpush1.msra.mxu0 %v3762
  %3902 = vmatprep.mubr.f32.mxu0 %v3635
  %3903 = vmatmul.mubr.f32.gmra.mrb[0].mxu0 %v3634
  %v3904 = vpop.f32.mrb[0].mxu0
  %v3905 = vadd.f32 0.0, %v3904
  %v3906 = vpop.f32.mrb[0].mxu0
  %v3907 = vadd.f32 0.0, %v3906
  %3908 = vdwg.mxu0
  %3909 = vmatprep.subr.mxu0 %v3767
  %3910 = vmatpush1.msra.mxu0 %v3766
  %3911 = vmatprep.subr.mxu0 %v3771
  %3912 = vmatpush1.msra.mxu0 %v3770
  %3913 = vmatprep.subr.mxu0 %v3775
  %3914 = vmatpush1.msra.mxu0 %v3774
  %3915 = vmatprep.subr.mxu0 %v3779
  %3916 = vmatpush1.msra.mxu0 %v3778
  %3917 = vmatprep.subr.mxu0 %v3783
  %3918 = vmatpush1.msra.mxu0 %v3782
  %3919 = vmatprep.subr.mxu0 %v3787
  %3920 = vmatpush1.msra.mxu0 %v3786
  %3921 = vmatprep.subr.mxu0 %v3791
  %3922 = vmatpush1.msra.mxu0 %v3790
  %3923 = vmatprep.subr.mxu0 %v3795
  %3924 = vmatpush1.msra.mxu0 %v3794
  %3925 = vmatprep.subr.mxu0 %v3799
  %3926 = vmatpush1.msra.mxu0 %v3798
  %3927 = vmatprep.subr.mxu0 %v3803
  %3928 = vmatpush1.msra.mxu0 %v3802
  %3929 = vmatprep.subr.mxu0 %v3807
  %3930 = vmatpush1.msra.mxu0 %v3806
  %3931 = vmatprep.subr.mxu0 %v3811
  %3932 = vmatpush1.msra.mxu0 %v3810
  %3933 = vmatprep.subr.mxu0 %v3815
  %3934 = vmatpush1.msra.mxu0 %v3814
  %3935 = vmatprep.subr.mxu0 %v3819
  %3936 = vmatpush1.msra.mxu0 %v3818
  %3937 = vmatprep.subr.mxu0 %v3823
  %3938 = vmatpush1.msra.mxu0 %v3822
  %3939 = vmatprep.subr.mxu0 %v3827
  %3940 = vmatpush1.msra.mxu0 %v3826
  %3941 = vmatprep.subr.mxu0 %v3831
  %3942 = vmatpush1.msra.mxu0 %v3830
  %3943 = vmatprep.subr.mxu0 0.0
  %3944 = vmatpush1.msra.mxu0 0.0
  %3945 = vmatprep.subr.mxu0 0.0
  %3946 = vmatpush1.msra.mxu0 0.0
  %3947 = vmatprep.subr.mxu0 0.0
  %3948 = vmatpush1.msra.mxu0 0.0
  %3949 = vmatprep.subr.mxu0 0.0
  %3950 = vmatpush1.msra.mxu0 0.0
  %3951 = vmatprep.subr.mxu0 0.0
  %3952 = vmatpush1.msra.mxu0 0.0
  %3953 = vmatprep.subr.mxu0 0.0
  %3954 = vmatpush1.msra.mxu0 0.0
  %3955 = vmatprep.subr.mxu0 0.0
  %3956 = vmatpush1.msra.mxu0 0.0
  %3957 = vmatprep.subr.mxu0 0.0
  %3958 = vmatpush1.msra.mxu0 0.0
  %3959 = vmatprep.subr.mxu0 0.0
  %3960 = vmatpush1.msra.mxu0 0.0
  %3961 = vmatprep.subr.mxu0 0.0
  %3962 = vmatpush1.msra.mxu0 0.0
  %3963 = vmatprep.subr.mxu0 0.0
  %3964 = vmatpush1.msra.mxu0 0.0
  %3965 = vmatprep.subr.mxu0 0.0
  %3966 = vmatpush1.msra.mxu0 0.0
  %3967 = vmatprep.subr.mxu0 0.0
  %3968 = vmatpush1.msra.mxu0 0.0
  %3969 = vmatprep.subr.mxu0 0.0
  %3970 = vmatpush1.msra.mxu0 0.0
  %3971 = vmatprep.subr.mxu0 0.0
  %3972 = vmatpush1.msra.mxu0 0.0
  %3973 = vmatprep.mubr.f32.mxu0 %v3836
  %3974 = vmatmul.mubr.f32.gmra.mrb[0].mxu0 %v3636
  %v3975 = vpop.f32.mrb[0].mxu0
  %v3976 = vadd.f32 %v3905, %v3975
  %v3977 = vpop.f32.mrb[0].mxu0
  %v3978 = vadd.f32 %v3907, %v3977
  %3979 = vdwg.mxu0
  %3980 = vmatprep.subr.mxu0 %v3641
  %3981 = vmatpush1.msra.mxu0 %v3640
  %3982 = vmatprep.subr.mxu0 %v3645
  %3983 = vmatpush1.msra.mxu0 %v3644
  %3984 = vmatprep.subr.mxu0 %v3649
  %3985 = vmatpush1.msra.mxu0 %v3648
  %3986 = vmatprep.subr.mxu0 %v3653
  %3987 = vmatpush1.msra.mxu0 %v3652
  %3988 = vmatprep.subr.mxu0 %v3657
  %3989 = vmatpush1.msra.mxu0 %v3656
  %3990 = vmatprep.subr.mxu0 %v3661
  %3991 = vmatpush1.msra.mxu0 %v3660
  %3992 = vmatprep.subr.mxu0 %v3665
  %3993 = vmatpush1.msra.mxu0 %v3664
  %3994 = vmatprep.subr.mxu0 %v3669
  %3995 = vmatpush1.msra.mxu0 %v3668
  %3996 = vmatprep.subr.mxu0 %v3673
  %3997 = vmatpush1.msra.mxu0 %v3672
  %3998 = vmatprep.subr.mxu0 %v3677
  %3999 = vmatpush1.msra.mxu0 %v3676
  %4000 = vmatprep.subr.mxu0 %v3681
  %4001 = vmatpush1.msra.mxu0 %v3680
  %4002 = vmatprep.subr.mxu0 %v3685
  %4003 = vmatpush1.msra.mxu0 %v3684
  %4004 = vmatprep.subr.mxu0 %v3689
  %4005 = vmatpush1.msra.mxu0 %v3688
  %4006 = vmatprep.subr.mxu0 %v3693
  %4007 = vmatpush1.msra.mxu0 %v3692
  %4008 = vmatprep.subr.mxu0 %v3697
  %4009 = vmatpush1.msra.mxu0 %v3696
  %4010 = vmatprep.subr.mxu0 %v3701
  %4011 = vmatpush1.msra.mxu0 %v3700
  %4012 = vmatprep.subr.mxu0 %v3705
  %4013 = vmatpush1.msra.mxu0 %v3704
  %4014 = vmatprep.subr.mxu0 %v3709
  %4015 = vmatpush1.msra.mxu0 %v3708
  %4016 = vmatprep.subr.mxu0 %v3713
  %4017 = vmatpush1.msra.mxu0 %v3712
  %4018 = vmatprep.subr.mxu0 %v3717
  %4019 = vmatpush1.msra.mxu0 %v3716
  %4020 = vmatprep.subr.mxu0 %v3721
  %4021 = vmatpush1.msra.mxu0 %v3720
  %4022 = vmatprep.subr.mxu0 %v3725
  %4023 = vmatpush1.msra.mxu0 %v3724
  %4024 = vmatprep.subr.mxu0 %v3729
  %4025 = vmatpush1.msra.mxu0 %v3728
  %4026 = vmatprep.subr.mxu0 %v3733
  %4027 = vmatpush1.msra.mxu0 %v3732
  %4028 = vmatprep.subr.mxu0 %v3737
  %4029 = vmatpush1.msra.mxu0 %v3736
  %4030 = vmatprep.subr.mxu0 %v3741
  %4031 = vmatpush1.msra.mxu0 %v3740
  %4032 = vmatprep.subr.mxu0 %v3745
  %4033 = vmatpush1.msra.mxu0 %v3744
  %4034 = vmatprep.subr.mxu0 %v3749
  %4035 = vmatpush1.msra.mxu0 %v3748
  %4036 = vmatprep.subr.mxu0 %v3753
  %4037 = vmatpush1.msra.mxu0 %v3752
  %4038 = vmatprep.subr.mxu0 %v3757
  %4039 = vmatpush1.msra.mxu0 %v3756
  %4040 = vmatprep.subr.mxu0 %v3761
  %4041 = vmatpush1.msra.mxu0 %v3760
  %4042 = vmatprep.subr.mxu0 %v3765
  %4043 = vmatpush1.msra.mxu0 %v3764
  %4044 = vmatprep.mubr.f32.mxu0 %v3635
  %4045 = vmatmul.mubr.f32.gmra.mrb[0].mxu0 %v3634
  %v4046 = vpop.f32.mrb[0].mxu0
  %v4047 = vadd.f32 0.0, %v4046
  %v4048 = vpop.f32.mrb[0].mxu0
  %v4049 = vadd.f32 0.0, %v4048
  %4050 = vdwg.mxu0
  %4051 = vmatprep.subr.mxu0 %v3769
  %4052 = vmatpush1.msra.mxu0 %v3768
  %4053 = vmatprep.subr.mxu0 %v3773
  %4054 = vmatpush1.msra.mxu0 %v3772
  %4055 = vmatprep.subr.mxu0 %v3777
  %4056 = vmatpush1.msra.mxu0 %v3776
  %4057 = vmatprep.subr.mxu0 %v3781
  %4058 = vmatpush1.msra.mxu0 %v3780
  %4059 = vmatprep.subr.mxu0 %v3785
  %4060 = vmatpush1.msra.mxu0 %v3784
  %4061 = vmatprep.subr.mxu0 %v3789
  %4062 = vmatpush1.msra.mxu0 %v3788
  %4063 = vmatprep.subr.mxu0 %v3793
  %4064 = vmatpush1.msra.mxu0 %v3792
  %4065 = vmatprep.subr.mxu0 %v3797
  %4066 = vmatpush1.msra.mxu0 %v3796
  %4067 = vmatprep.subr.mxu0 %v3801
  %4068 = vmatpush1.msra.mxu0 %v3800
  %4069 = vmatprep.subr.mxu0 %v3805
  %4070 = vmatpush1.msra.mxu0 %v3804
  %4071 = vmatprep.subr.mxu0 %v3809
  %4072 = vmatpush1.msra.mxu0 %v3808
  %4073 = vmatprep.subr.mxu0 %v3813
  %4074 = vmatpush1.msra.mxu0 %v3812
  %4075 = vmatprep.subr.mxu0 %v3817
  %4076 = vmatpush1.msra.mxu0 %v3816
  %4077 = vmatprep.subr.mxu0 %v3821
  %4078 = vmatpush1.msra.mxu0 %v3820
  %4079 = vmatprep.subr.mxu0 %v3825
  %4080 = vmatpush1.msra.mxu0 %v3824
  %4081 = vmatprep.subr.mxu0 %v3829
  %4082 = vmatpush1.msra.mxu0 %v3828
  %4083 = vmatprep.subr.mxu0 %v3833
  %4084 = vmatpush1.msra.mxu0 %v3832
  %4085 = vmatprep.subr.mxu0 0.0
  %4086 = vmatpush1.msra.mxu0 0.0
  %4087 = vmatprep.subr.mxu0 0.0
  %4088 = vmatpush1.msra.mxu0 0.0
  %4089 = vmatprep.subr.mxu0 0.0
  %4090 = vmatpush1.msra.mxu0 0.0
  %4091 = vmatprep.subr.mxu0 0.0
  %4092 = vmatpush1.msra.mxu0 0.0
  %4093 = vmatprep.subr.mxu0 0.0
  %4094 = vmatpush1.msra.mxu0 0.0
  %4095 = vmatprep.subr.mxu0 0.0
  %4096 = vmatpush1.msra.mxu0 0.0
  %4097 = vmatprep.subr.mxu0 0.0
  %4098 = vmatpush1.msra.mxu0 0.0
  %4099 = vmatprep.subr.mxu0 0.0
  %4100 = vmatpush1.msra.mxu0 0.0
  %4101 = vmatprep.subr.mxu0 0.0
  %4102 = vmatpush1.msra.mxu0 0.0
  %4103 = vmatprep.subr.mxu0 0.0
  %4104 = vmatpush1.msra.mxu0 0.0
  %4105 = vmatprep.subr.mxu0 0.0
  %4106 = vmatpush1.msra.mxu0 0.0
  %4107 = vmatprep.subr.mxu0 0.0
  %4108 = vmatpush1.msra.mxu0 0.0
  %4109 = vmatprep.subr.mxu0 0.0
  %4110 = vmatpush1.msra.mxu0 0.0
  %4111 = vmatprep.subr.mxu0 0.0
  %4112 = vmatpush1.msra.mxu0 0.0
  %4113 = vmatprep.subr.mxu0 0.0
  %4114 = vmatpush1.msra.mxu0 0.0
  %4115 = vmatprep.mubr.f32.mxu0 %v3836
  %4116 = vmatmul.mubr.f32.gmra.mrb[0].mxu0 %v3636
  %v4117 = vpop.f32.mrb[0].mxu0
  %v4118 = vadd.f32 %v4047, %v4117
  %v4119 = vpop.f32.mrb[0].mxu0
  %v4120 = vadd.f32 %v4049, %v4119
  %4121 = vdwg.mxu0
  %v4122 = vmax.f32 %v3976, 0.0
  %v4123 = vmax.f32 %v3978, 0.0
  %v4124 = vmax.f32 %v4118, 0.0
  %v4125 = vmax.f32 %v4120, 0.0
  %v4126 = vpack.c.bf16 %v4122, %v4122
  %v4127 = vpack.c.bf16 %v4123, %v4123
  %v4128 = vpack.c.bf16 %v4124, %v4124
  %v4129 = vpack.c.bf16 %v4125, %v4125
  %v4134 = vunpack.c.l.b16 %v4126
  %v4135 = vunpack.c.l.b16 %v4127
  %v4136 = vunpack.c.l.b16 %v4128
  %v4137 = vunpack.c.l.b16 %v4129
  %v4138 = vpack.c.b16 %v4135, %v4134
  %v4139 = vpack.c.b16 %v4137, %v4136
  %4142 = vst [vmem:[%s3] sm:$0xff] %v4138
  %4143 = vst [vmem:[%s3 + $0x8] sm:$0xff] %v4139
  // Predicated region
  $region14: #{resnet_generator_forward.7} parent=0 // pred_check
    _
  $region15: #{resnet_generator_forward.7} parent=0 // pred_check_branch
    %4145 = sbr.rel (0) target = $region17
  $region16: #{resnet_generator_forward.7} parent=0 // pred_region
    _
  $region17: #{resnet_generator_forward.7} parent=0 // pred_fallthru
    _
  // Predicated region
  $region18: #{resnet_generator_forward.7} parent=0 // pred_check
    _
  $region19: #{resnet_generator_forward.7} parent=0 // pred_check_branch
    %4147 = sbr.rel (0) target = $region21
  $region20: #{resnet_generator_forward.7} parent=0 // pred_region
    _
  $region21: #{resnet_generator_forward.7} parent=0 // pred_fallthru
    _

// kernel: resnet_generator_forward.9
$region0: #{resnet_generator_forward.9}
  #allocation0 [shape = 'u32[]', space=smem, size = 0x4, offset = 0x4, fixed_abs, tag = 'smem constant byte address 0x4 - core index']
  #allocation1 [shape = 'u32[144,128]{1,0:T(1,128)}', space=vmem, size = 0x12000, scoped, tag = 'internal scratch']
  %s0 = inlined_call_operand.vmem [shape: bf16[32,144], index: 0, kind: input, shape index: {}]
  %s1 = inlined_call_operand.vmem [shape: bf16[144,32], index: 1, kind: input, shape index: {}]
  %s2 = inlined_call_operand.vmem [shape: f32[32,32], index: 2, kind: output, shape index: {}]
  %s3 = sld [smem:[#allocation0]]
  $region18: #{resnet_generator_forward.9} parent=0
    _
  %s5 = ssub.s32 1, %s3
  %s6 = scalar_select 0, %s5, %s3
  // Predicated region
  $region2: #{resnet_generator_forward.9} parent=0 // pred_check
    _
  $region3: #{resnet_generator_forward.9} parent=0 // pred_check_branch
    %8 = sbr.rel (0) target = $region5
  $region4: #{resnet_generator_forward.9} parent=0 // pred_region
    _
  $region5: #{resnet_generator_forward.9} parent=0 // pred_fallthru
    _
  // Predicated region
  $region6: #{resnet_generator_forward.9} parent=0 // pred_check
    _
  $region7: #{resnet_generator_forward.9} parent=0 // pred_check_branch
    %10 = sbr.rel (0) target = $region9
  $region8: #{resnet_generator_forward.9} parent=0 // pred_region
    _
  $region9: #{resnet_generator_forward.9} parent=0 // pred_fallthru
    _
  %v11 = vld [vmem:[%s0] sm:$0xff]
  %v12 = vld [vmem:[%s0 + $0x8] sm:$0xff]
  %v13 = vld [vmem:[%s0 + $0x10] sm:$0xff]
  %v14 = vld [vmem:[%s0 + $0x18] sm:$0xff]
  %v15 = vunpack.c.l.bf16 %v11
  %v16 = vunpack.c.h.bf16 %v11
  %v17 = vunpack.c.l.bf16 %v12
  %v18 = vunpack.c.h.bf16 %v12
  %v19 = vunpack.c.l.bf16 %v13
  %v20 = vunpack.c.h.bf16 %v13
  %v21 = vunpack.c.l.bf16 %v14
  %v22 = vunpack.c.h.bf16 %v14
  %v23 = vld [vmem:[%s1] sm:$0xf]
  %v24 = vld [vmem:[%s1 + $0x4] sm:$0xf]
  %v25 = vld [vmem:[%s1 + $0x8] sm:$0xf]
  %v26 = vld [vmem:[%s1 + $0xc] sm:$0xf]
  %v27 = vld [vmem:[%s1 + $0x10] sm:$0xf]
  %v28 = vld [vmem:[%s1 + $0x14] sm:$0xf]
  %v29 = vld [vmem:[%s1 + $0x18] sm:$0xf]
  %v30 = vld [vmem:[%s1 + $0x1c] sm:$0xf]
  %v31 = vld [vmem:[%s1 + $0x20] sm:$0xf]
  %v32 = vld [vmem:[%s1 + $0x24] sm:$0xf]
  %v33 = vld [vmem:[%s1 + $0x28] sm:$0xf]
  %v34 = vld [vmem:[%s1 + $0x2c] sm:$0xf]
  %v35 = vld [vmem:[%s1 + $0x30] sm:$0xf]
  %v36 = vld [vmem:[%s1 + $0x34] sm:$0xf]
  %v37 = vld [vmem:[%s1 + $0x38] sm:$0xf]
  %v38 = vld [vmem:[%s1 + $0x3c] sm:$0xf]
  %v39 = vld [vmem:[%s1 + $0x40] sm:$0xf]
  %v40 = vld [vmem:[%s1 + $0x44] sm:$0xf]
  %v41 = vunpack.c.l.bf16 %v23
  %v42 = vunpack.c.l.bf16 %v24
  %v43 = vunpack.c.l.bf16 %v25
  %v44 = vunpack.c.l.bf16 %v26
  %v45 = vunpack.c.l.bf16 %v27
  %v46 = vunpack.c.l.bf16 %v28
  %v47 = vunpack.c.l.bf16 %v29
  %v48 = vunpack.c.l.bf16 %v30
  %v49 = vunpack.c.l.bf16 %v31
  %v50 = vunpack.c.l.bf16 %v32
  %v51 = vunpack.c.l.bf16 %v33
  %v52 = vunpack.c.l.bf16 %v34
  %v53 = vunpack.c.l.bf16 %v35
  %v54 = vunpack.c.l.bf16 %v36
  %v55 = vunpack.c.l.bf16 %v37
  %v56 = vunpack.c.l.bf16 %v38
  %v57 = vunpack.c.l.bf16 %v39
  %v58 = vunpack.c.l.bf16 %v40
  %vm59 = vcmask 130048
  %v61 = vsel %vm59, %v16, 0
  %v64 = vsel %vm59, %v18, 0
  %v67 = vsel %vm59, %v20, 0
  %v70 = vsel %vm59, %v22, 0
  %72 = vmatprep.subr.mxu0 0.0
  %73 = vmatpush1.msra.mxu0 %v41
  %74 = vmatprep.subr.mxu0 0.0
  %75 = vmatpush1.msra.mxu0 %v42
  %76 = vmatprep.subr.mxu0 0.0
  %77 = vmatpush1.msra.mxu0 %v43
  %78 = vmatprep.subr.mxu0 0.0
  %79 = vmatpush1.msra.mxu0 %v44
  %80 = vmatprep.subr.mxu0 0.0
  %81 = vmatpush1.msra.mxu0 %v45
  %82 = vmatprep.subr.mxu0 0.0
  %83 = vmatpush1.msra.mxu0 %v46
  %84 = vmatprep.subr.mxu0 0.0
  %85 = vmatpush1.msra.mxu0 %v47
  %86 = vmatprep.subr.mxu0 0.0
  %87 = vmatpush1.msra.mxu0 %v48
  %88 = vmatprep.subr.mxu0 0.0
  %89 = vmatpush1.msra.mxu0 %v49
  %90 = vmatprep.subr.mxu0 0.0
  %91 = vmatpush1.msra.mxu0 %v50
  %92 = vmatprep.subr.mxu0 0.0
  %93 = vmatpush1.msra.mxu0 %v51
  %94 = vmatprep.subr.mxu0 0.0
  %95 = vmatpush1.msra.mxu0 %v52
  %96 = vmatprep.subr.mxu0 0.0
  %97 = vmatpush1.msra.mxu0 %v53
  %98 = vmatprep.subr.mxu0 0.0
  %99 = vmatpush1.msra.mxu0 %v54
  %100 = vmatprep.subr.mxu0 0.0
  %101 = vmatpush1.msra.mxu0 %v55
  %102 = vmatprep.subr.mxu0 0.0
  %103 = vmatpush1.msra.mxu0 %v56
  %104 = vmatprep.subr.mxu0 0.0
  %105 = vmatpush1.msra.mxu0 %v57
  %106 = vmatprep.subr.mxu0 0.0
  %107 = vmatpush1.msra.mxu0 %v58
  %108 = vmatprep.subr.mxu0 0.0
  %109 = vmatpush1.msra.mxu0 0.0
  %110 = vmatprep.subr.mxu0 0.0
  %111 = vmatpush1.msra.mxu0 0.0
  %112 = vmatprep.subr.mxu0 0.0
  %113 = vmatpush1.msra.mxu0 0.0
  %114 = vmatprep.subr.mxu0 0.0
  %115 = vmatpush1.msra.mxu0 0.0
  %116 = vmatprep.subr.mxu0 0.0
  %117 = vmatpush1.msra.mxu0 0.0
  %118 = vmatprep.subr.mxu0 0.0
  %119 = vmatpush1.msra.mxu0 0.0
  %120 = vmatprep.subr.mxu0 0.0
  %121 = vmatpush1.msra.mxu0 0.0
  %122 = vmatprep.subr.mxu0 0.0
  %123 = vmatpush1.msra.mxu0 0.0
  %124 = vmatprep.subr.mxu0 0.0
  %125 = vmatpush1.msra.mxu0 0.0
  %126 = vmatprep.subr.mxu0 0.0
  %127 = vmatpush1.msra.mxu0 0.0
  %128 = vmatprep.subr.mxu0 0.0
  %129 = vmatpush1.msra.mxu0 0.0
  %130 = vmatprep.subr.mxu0 0.0
  %131 = vmatpush1.msra.mxu0 0.0
  %132 = vmatprep.subr.mxu0 0.0
  %133 = vmatpush1.msra.mxu0 0.0
  %134 = vmatprep.subr.mxu0 0.0
  %135 = vmatpush1.msra.mxu0 0.0
  %136 = vmatprep.mubr.f32.mxu0 %v61
  %137 = vmatmul.mubr.f32.gmra.mrb[0].mxu0 %v15
  %v138 = vpop.f32.mrb[0].mxu0
  %v139 = vadd.f32 0.0, %v138
  %v140 = vpop.f32.mrb[0].mxu0
  %141 = vmatprep.mubr.f32.mxu0 %v64
  %142 = vmatmul.mubr.f32.gmra.mrb[0].mxu0 %v17
  %v143 = vpop.f32.mrb[0].mxu0
  %v144 = vadd.f32 0.0, %v143
  %v145 = vpop.f32.mrb[0].mxu0
  %146 = vmatprep.mubr.f32.mxu0 %v67
  %147 = vmatmul.mubr.f32.gmra.mrb[0].mxu0 %v19
  %v148 = vpop.f32.mrb[0].mxu0
  %v149 = vadd.f32 0.0, %v148
  %v150 = vpop.f32.mrb[0].mxu0
  %151 = vmatprep.mubr.f32.mxu0 %v70
  %152 = vmatmul.mubr.f32.gmra.mrb[0].mxu0 %v21
  %v153 = vpop.f32.mrb[0].mxu0
  %v154 = vadd.f32 0.0, %v153
  %v155 = vpop.f32.mrb[0].mxu0
  %156 = vdwg.mxu0
  %v157 = vmax.f32 %v139, 0.0
  %v158 = vmax.f32 %v144, 0.0
  %v159 = vmax.f32 %v149, 0.0
  %v160 = vmax.f32 %v154, 0.0
  %vm161 = vcmask 261120
  %162 = vst.msk [vmem:[%s2] sm:$0xff] %vm161, %v157
  %163 = vst.msk [vmem:[%s2 + $0x8] sm:$0xff] %vm161, %v158
  %164 = vst.msk [vmem:[%s2 + $0x10] sm:$0xff] %vm161, %v159
  %165 = vst.msk [vmem:[%s2 + $0x18] sm:$0xff] %vm161, %v160
  // Predicated region
  $region10: #{resnet_generator_forward.9} parent=0 // pred_check
    _
  $region11: #{resnet_generator_forward.9} parent=0 // pred_check_branch
    %167 = sbr.rel (0) target = $region13
  $region12: #{resnet_generator_forward.9} parent=0 // pred_region
    _
  $region13: #{resnet_generator_forward.9} parent=0 // pred_fallthru
    _
  // Predicated region
  $region14: #{resnet_generator_forward.9} parent=0 // pred_check
    _
  $region15: #{resnet_generator_forward.9} parent=0 // pred_check_branch
    %169 = sbr.rel (0) target = $region17
  $region16: #{resnet_generator_forward.9} parent=0 // pred_region
    _
  $region17: #{resnet_generator_forward.9} parent=0 // pred_fallthru
    _

// kernel: resnet_generator_forward.12
$region0: #{resnet_generator_forward.12}
  #allocation0 [shape = 'u32[]', space=smem, size = 0x4, offset = 0x4, fixed_abs, tag = 'smem constant byte address 0x4 - core index']
  #allocation1 [shape = 'u32[144,128]{1,0:T(1,128)}', space=vmem, size = 0x12000, scoped, tag = 'internal scratch']
  %s0 = inlined_call_operand.vmem [shape: f32[32,32], index: 0, kind: input, shape index: {}]
  %s1 = inlined_call_operand.vmem [shape: bf16[64,32], index: 1, kind: input, shape index: {}]
  %s2 = inlined_call_operand.vmem [shape: bf16[32,16], index: 2, kind: input, shape index: {}]
  %s3 = inlined_call_operand.vmem [shape: bf16[128,32], index: 3, kind: output, shape index: {}]
  %s4 = sld [smem:[#allocation0]]
  $region22: #{resnet_generator_forward.12} parent=0
    _
  %s6 = ssub.s32 1, %s4
  %s7 = scalar_select 0, %s6, %s4
  // Predicated region
  $region2: #{resnet_generator_forward.12} parent=0 // pred_check
    _
  $region3: #{resnet_generator_forward.12} parent=0 // pred_check_branch
    %9 = sbr.rel (0) target = $region5
  $region4: #{resnet_generator_forward.12} parent=0 // pred_region
    _
  $region5: #{resnet_generator_forward.12} parent=0 // pred_fallthru
    _
  // Predicated region
  $region6: #{resnet_generator_forward.12} parent=0 // pred_check
    _
  $region7: #{resnet_generator_forward.12} parent=0 // pred_check_branch
    %11 = sbr.rel (0) target = $region9
  $region8: #{resnet_generator_forward.12} parent=0 // pred_region
    _
  $region9: #{resnet_generator_forward.12} parent=0 // pred_fallthru
    _
  // Predicated region
  $region10: #{resnet_generator_forward.12} parent=0 // pred_check
    _
  $region11: #{resnet_generator_forward.12} parent=0 // pred_check_branch
    %13 = sbr.rel (0) target = $region13
  $region12: #{resnet_generator_forward.12} parent=0 // pred_region
    _
  $region13: #{resnet_generator_forward.12} parent=0 // pred_fallthru
    _
  %v14 = vld [vmem:[%s0] sm:$0xff]
  %v15 = vld [vmem:[%s0 + $0x8] sm:$0xff]
  %v16 = vld [vmem:[%s0 + $0x10] sm:$0xff]
  %v17 = vld [vmem:[%s0 + $0x18] sm:$0xff]
  %v18 = vld [vmem:[%s1] sm:$0xf]
  %v19 = vld [vmem:[%s1 + $0x4] sm:$0xf]
  %v20 = vld [vmem:[%s1 + $0x8] sm:$0xf]
  %v21 = vld [vmem:[%s1 + $0xc] sm:$0xf]
  %v22 = vld [vmem:[%s1 + $0x10] sm:$0xf]
  %v23 = vld [vmem:[%s1 + $0x14] sm:$0xf]
  %v24 = vld [vmem:[%s1 + $0x18] sm:$0xf]
  %v25 = vld [vmem:[%s1 + $0x1c] sm:$0xf]
  %v26 = vunpack.c.l.bf16 %v18
  %v27 = vunpack.c.l.bf16 %v19
  %v28 = vunpack.c.l.bf16 %v20
  %v29 = vunpack.c.l.bf16 %v21
  %v30 = vunpack.c.l.bf16 %v22
  %v31 = vunpack.c.l.bf16 %v23
  %v32 = vunpack.c.l.bf16 %v24
  %v33 = vunpack.c.l.bf16 %v25
  %vm34 = vcmask 261120
  %v36 = vsel %vm34, %v26, 0
  %v39 = vsel %vm34, %v27, 0
  %v42 = vsel %vm34, %v28, 0
  %v45 = vsel %vm34, %v29, 0
  %v48 = vsel %vm34, %v30, 0
  %v51 = vsel %vm34, %v31, 0
  %v54 = vsel %vm34, %v32, 0
  %v57 = vsel %vm34, %v33, 0
  %59 = vmatprep.subr.mxu0 0.0
  %60 = vmatpush1.msra.mxu0 %v14
  %61 = vmatprep.subr.mxu0 0.0
  %62 = vmatpush1.msra.mxu0 %v15
  %63 = vmatprep.subr.mxu0 0.0
  %64 = vmatpush1.msra.mxu0 %v16
  %65 = vmatprep.subr.mxu0 0.0
  %66 = vmatpush1.msra.mxu0 %v17
  %67 = vmatprep.subr.mxu0 0.0
  %68 = vmatpush1.msra.mxu0 0.0
  %69 = vmatprep.subr.mxu0 0.0
  %70 = vmatpush1.msra.mxu0 0.0
  %71 = vmatprep.subr.mxu0 0.0
  %72 = vmatpush1.msra.mxu0 0.0
  %73 = vmatprep.subr.mxu0 0.0
  %74 = vmatpush1.msra.mxu0 0.0
  %75 = vmatprep.subr.mxu0 0.0
  %76 = vmatpush1.msra.mxu0 0.0
  %77 = vmatprep.subr.mxu0 0.0
  %78 = vmatpush1.msra.mxu0 0.0
  %79 = vmatprep.subr.mxu0 0.0
  %80 = vmatpush1.msra.mxu0 0.0
  %81 = vmatprep.subr.mxu0 0.0
  %82 = vmatpush1.msra.mxu0 0.0
  %83 = vmatprep.subr.mxu0 0.0
  %84 = vmatpush1.msra.mxu0 0.0
  %85 = vmatprep.subr.mxu0 0.0
  %86 = vmatpush1.msra.mxu0 0.0
  %87 = vmatprep.subr.mxu0 0.0
  %88 = vmatpush1.msra.mxu0 0.0
  %89 = vmatprep.subr.mxu0 0.0
  %90 = vmatpush1.msra.mxu0 0.0
  %91 = vmatprep.subr.mxu0 0.0
  %92 = vmatpush1.msra.mxu0 0.0
  %93 = vmatprep.subr.mxu0 0.0
  %94 = vmatpush1.msra.mxu0 0.0
  %95 = vmatprep.subr.mxu0 0.0
  %96 = vmatpush1.msra.mxu0 0.0
  %97 = vmatprep.subr.mxu0 0.0
  %98 = vmatpush1.msra.mxu0 0.0
  %99 = vmatprep.subr.mxu0 0.0
  %100 = vmatpush1.msra.mxu0 0.0
  %101 = vmatprep.subr.mxu0 0.0
  %102 = vmatpush1.msra.mxu0 0.0
  %103 = vmatprep.subr.mxu0 0.0
  %104 = vmatpush1.msra.mxu0 0.0
  %105 = vmatprep.subr.mxu0 0.0
  %106 = vmatpush1.msra.mxu0 0.0
  %107 = vmatprep.subr.mxu0 0.0
  %108 = vmatpush1.msra.mxu0 0.0
  %109 = vmatprep.subr.mxu0 0.0
  %110 = vmatpush1.msra.mxu0 0.0
  %111 = vmatprep.subr.mxu0 0.0
  %112 = vmatpush1.msra.mxu0 0.0
  %113 = vmatprep.subr.mxu0 0.0
  %114 = vmatpush1.msra.mxu0 0.0
  %115 = vmatprep.subr.mxu0 0.0
  %116 = vmatpush1.msra.mxu0 0.0
  %117 = vmatprep.subr.mxu0 0.0
  %118 = vmatpush1.msra.mxu0 0.0
  %119 = vmatprep.subr.mxu0 0.0
  %120 = vmatpush1.msra.mxu0 0.0
  %121 = vmatprep.subr.mxu0 0.0
  %122 = vmatpush1.msra.mxu0 0.0
  %123 = vmatprep.mubr.f32.mxu0 0.0
  %124 = vmatmul.mubr.f32.gmra.mrb[0].mxu0 %v36
  %v125 = vpop.f32.mrb[0].mxu0
  %v126 = vadd.f32 0.0, %v125
  %v127 = vpop.f32.mrb[0].mxu0
  %128 = vmatprep.mubr.f32.mxu0 0.0
  %129 = vmatmul.mubr.f32.gmra.mrb[0].mxu0 %v39
  %v130 = vpop.f32.mrb[0].mxu0
  %v131 = vadd.f32 0.0, %v130
  %v132 = vpop.f32.mrb[0].mxu0
  %133 = vmatprep.mubr.f32.mxu0 0.0
  %134 = vmatmul.mubr.f32.gmra.mrb[0].mxu0 %v42
  %v135 = vpop.f32.mrb[0].mxu0
  %v136 = vadd.f32 0.0, %v135
  %v137 = vpop.f32.mrb[0].mxu0
  %138 = vmatprep.mubr.f32.mxu0 0.0
  %139 = vmatmul.mubr.f32.gmra.mrb[0].mxu0 %v45
  %v140 = vpop.f32.mrb[0].mxu0
  %v141 = vadd.f32 0.0, %v140
  %v142 = vpop.f32.mrb[0].mxu0
  %143 = vmatprep.mubr.f32.mxu0 0.0
  %144 = vmatmul.mubr.f32.gmra.mrb[0].mxu0 %v48
  %v145 = vpop.f32.mrb[0].mxu0
  %v146 = vadd.f32 0.0, %v145
  %v147 = vpop.f32.mrb[0].mxu0
  %148 = vmatprep.mubr.f32.mxu0 0.0
  %149 = vmatmul.mubr.f32.gmra.mrb[0].mxu0 %v51
  %v150 = vpop.f32.mrb[0].mxu0
  %v151 = vadd.f32 0.0, %v150
  %v152 = vpop.f32.mrb[0].mxu0
  %153 = vmatprep.mubr.f32.mxu0 0.0
  %154 = vmatmul.mubr.f32.gmra.mrb[0].mxu0 %v54
  %v155 = vpop.f32.mrb[0].mxu0
  %v156 = vadd.f32 0.0, %v155
  %v157 = vpop.f32.mrb[0].mxu0
  %158 = vmatprep.mubr.f32.mxu0 0.0
  %159 = vmatmul.mubr.f32.gmra.mrb[0].mxu0 %v57
  %v160 = vpop.f32.mrb[0].mxu0
  %v161 = vadd.f32 0.0, %v160
  %v162 = vpop.f32.mrb[0].mxu0
  %163 = vdwg.mxu0
  %v164 = vmax.f32 %v126, 0.0
  %v165 = vmax.f32 %v131, 0.0
  %v166 = vmax.f32 %v136, 0.0
  %v167 = vmax.f32 %v141, 0.0
  %v168 = vmax.f32 %v146, 0.0
  %v169 = vmax.f32 %v151, 0.0
  %v170 = vmax.f32 %v156, 0.0
  %v171 = vmax.f32 %v161, 0.0
  %v172 = vld [vmem:[%s2] sm:$0xf]
  %v173 = vld [vmem:[%s2 + $0x4] sm:$0xf]
  %v174 = vld [vmem:[%s2 + $0x8] sm:$0xf]
  %v175 = vld [vmem:[%s2 + $0xc] sm:$0xf]
  %v176 = vunpack.c.l.bf16 %v172
  %v177 = vunpack.c.l.bf16 %v173
  %v178 = vunpack.c.l.bf16 %v174
  %v179 = vunpack.c.l.bf16 %v175
  %vm180 = vcmask 130048
  %v182 = vsel %vm180, %v176, 0
  %v185 = vsel %vm180, %v177, 0
  %v188 = vsel %vm180, %v178, 0
  %v191 = vsel %vm180, %v179, 0
  %193 = vmatprep.subr.mxu0 0.0
  %194 = vmatpush1.msra.mxu0 %v164
  %195 = vmatprep.subr.mxu0 0.0
  %196 = vmatpush1.msra.mxu0 %v165
  %197 = vmatprep.subr.mxu0 0.0
  %198 = vmatpush1.msra.mxu0 0.0
  %199 = vmatprep.subr.mxu0 0.0
  %200 = vmatpush1.msra.mxu0 0.0
  %201 = vmatprep.subr.mxu0 0.0
  %202 = vmatpush1.msra.mxu0 0.0
  %203 = vmatprep.subr.mxu0 0.0
  %204 = vmatpush1.msra.mxu0 0.0
  %205 = vmatprep.subr.mxu0 0.0
  %206 = vmatpush1.msra.mxu0 0.0
  %207 = vmatprep.subr.mxu0 0.0
  %208 = vmatpush1.msra.mxu0 0.0
  %209 = vmatprep.subr.mxu0 0.0
  %210 = vmatpush1.msra.mxu0 0.0
  %211 = vmatprep.subr.mxu0 0.0
  %212 = vmatpush1.msra.mxu0 0.0
  %213 = vmatprep.subr.mxu0 0.0
  %214 = vmatpush1.msra.mxu0 0.0
  %215 = vmatprep.subr.mxu0 0.0
  %216 = vmatpush1.msra.mxu0 0.0
  %217 = vmatprep.subr.mxu0 0.0
  %218 = vmatpush1.msra.mxu0 0.0
  %219 = vmatprep.subr.mxu0 0.0
  %220 = vmatpush1.msra.mxu0 0.0
  %221 = vmatprep.subr.mxu0 0.0
  %222 = vmatpush1.msra.mxu0 0.0
  %223 = vmatprep.subr.mxu0 0.0
  %224 = vmatpush1.msra.mxu0 0.0
  %225 = vmatprep.subr.mxu0 0.0
  %226 = vmatpush1.msra.mxu0 0.0
  %227 = vmatprep.subr.mxu0 0.0
  %228 = vmatpush1.msra.mxu0 0.0
  %229 = vmatprep.subr.mxu0 0.0
  %230 = vmatpush1.msra.mxu0 0.0
  %231 = vmatprep.subr.mxu0 0.0
  %232 = vmatpush1.msra.mxu0 0.0
  %233 = vmatprep.subr.mxu0 0.0
  %234 = vmatpush1.msra.mxu0 0.0
  %235 = vmatprep.subr.mxu0 0.0
  %236 = vmatpush1.msra.mxu0 0.0
  %237 = vmatprep.subr.mxu0 0.0
  %238 = vmatpush1.msra.mxu0 0.0
  %239 = vmatprep.subr.mxu0 0.0
  %240 = vmatpush1.msra.mxu0 0.0
  %241 = vmatprep.subr.mxu0 0.0
  %242 = vmatpush1.msra.mxu0 0.0
  %243 = vmatprep.subr.mxu0 0.0
  %244 = vmatpush1.msra.mxu0 0.0
  %245 = vmatprep.subr.mxu0 0.0
  %246 = vmatpush1.msra.mxu0 0.0
  %247 = vmatprep.subr.mxu0 0.0
  %248 = vmatpush1.msra.mxu0 0.0
  %249 = vmatprep.subr.mxu0 0.0
  %250 = vmatpush1.msra.mxu0 0.0
  %251 = vmatprep.subr.mxu0 0.0
  %252 = vmatpush1.msra.mxu0 0.0
  %253 = vmatprep.subr.mxu0 0.0
  %254 = vmatpush1.msra.mxu0 0.0
  %255 = vmatprep.subr.mxu0 0.0
  %256 = vmatpush1.msra.mxu0 0.0
  %257 = vmatprep.mubr.f32.mxu0 0.0
  %258 = vmatmul.mubr.f32.gmra.mrb[0].mxu0 %v182
  %v259 = vpop.f32.mrb[0].mxu0
  %v260 = vadd.f32 0.0, %v259
  %v261 = vpop.f32.mrb[0].mxu0
  %262 = vmatprep.mubr.f32.mxu0 0.0
  %263 = vmatmul.mubr.f32.gmra.mrb[0].mxu0 %v185
  %v264 = vpop.f32.mrb[0].mxu0
  %v265 = vadd.f32 0.0, %v264
  %v266 = vpop.f32.mrb[0].mxu0
  %267 = vmatprep.mubr.f32.mxu0 0.0
  %268 = vmatmul.mubr.f32.gmra.mrb[0].mxu0 %v188
  %v269 = vpop.f32.mrb[0].mxu0
  %v270 = vadd.f32 0.0, %v269
  %v271 = vpop.f32.mrb[0].mxu0
  %272 = vmatprep.mubr.f32.mxu0 0.0
  %273 = vmatmul.mubr.f32.gmra.mrb[0].mxu0 %v191
  %v274 = vpop.f32.mrb[0].mxu0
  %v275 = vadd.f32 0.0, %v274
  %v276 = vpop.f32.mrb[0].mxu0
  %277 = vdwg.mxu0
  %v278 = vmax.f32 %v260, 0.0
  %v279 = vmax.f32 %v265, 0.0
  %v280 = vmax.f32 %v270, 0.0
  %v281 = vmax.f32 %v275, 0.0
  %v282 = vpack.c.bf16 %v279, %v278
  %v283 = vpack.c.bf16 %v281, %v280
  %v286 = vunpack.c.l.b16 %v282
  %v287 = vunpack.c.h.b16 %v282
  %v288 = vunpack.c.l.b16 %v283
  %v289 = vunpack.c.h.b16 %v283
  %v290 = vpack.c.b16 %v286, %v286
  %v291 = vpack.c.b16 %v287, %v287
  %v292 = vpack.c.b16 %v288, %v288
  %v293 = vpack.c.b16 %v289, %v289
  %vm298 = vcmask 257024
  %299 = vst.msk [vmem:[%s3] sm:$0xf] %vm298, %v290
  %300 = vst.msk [vmem:[%s3 + $0x4] sm:$0xf] %vm298, %v291
  %301 = vst.msk [vmem:[%s3 + $0x8] sm:$0xf] %vm298, %v292
  %302 = vst.msk [vmem:[%s3 + $0xc] sm:$0xf] %vm298, %v293
  %303 = vmatprep.subr.mxu0 0.0
  %304 = vmatpush1.msra.mxu0 %v166
  %305 = vmatprep.subr.mxu0 0.0
  %306 = vmatpush1.msra.mxu0 %v167
  %307 = vmatprep.subr.mxu0 0.0
  %308 = vmatpush1.msra.mxu0 0.0
  %309 = vmatprep.subr.mxu0 0.0
  %310 = vmatpush1.msra.mxu0 0.0
  %311 = vmatprep.subr.mxu0 0.0
  %312 = vmatpush1.msra.mxu0 0.0
  %313 = vmatprep.subr.mxu0 0.0
  %314 = vmatpush1.msra.mxu0 0.0
  %315 = vmatprep.subr.mxu0 0.0
  %316 = vmatpush1.msra.mxu0 0.0
  %317 = vmatprep.subr.mxu0 0.0
  %318 = vmatpush1.msra.mxu0 0.0
  %319 = vmatprep.subr.mxu0 0.0
  %320 = vmatpush1.msra.mxu0 0.0
  %321 = vmatprep.subr.mxu0 0.0
  %322 = vmatpush1.msra.mxu0 0.0
  %323 = vmatprep.subr.mxu0 0.0
  %324 = vmatpush1.msra.mxu0 0.0
  %325 = vmatprep.subr.mxu0 0.0
  %326 = vmatpush1.msra.mxu0 0.0
  %327 = vmatprep.subr.mxu0 0.0
  %328 = vmatpush1.msra.mxu0 0.0
  %329 = vmatprep.subr.mxu0 0.0
  %330 = vmatpush1.msra.mxu0 0.0
  %331 = vmatprep.subr.mxu0 0.0
  %332 = vmatpush1.msra.mxu0 0.0
  %333 = vmatprep.subr.mxu0 0.0
  %334 = vmatpush1.msra.mxu0 0.0
  %335 = vmatprep.subr.mxu0 0.0
  %336 = vmatpush1.msra.mxu0 0.0
  %337 = vmatprep.subr.mxu0 0.0
  %338 = vmatpush1.msra.mxu0 0.0
  %339 = vmatprep.subr.mxu0 0.0
  %340 = vmatpush1.msra.mxu0 0.0
  %341 = vmatprep.subr.mxu0 0.0
  %342 = vmatpush1.msra.mxu0 0.0
  %343 = vmatprep.subr.mxu0 0.0
  %344 = vmatpush1.msra.mxu0 0.0
  %345 = vmatprep.subr.mxu0 0.0
  %346 = vmatpush1.msra.mxu0 0.0
  %347 = vmatprep.subr.mxu0 0.0
  %348 = vmatpush1.msra.mxu0 0.0
  %349 = vmatprep.subr.mxu0 0.0
  %350 = vmatpush1.msra.mxu0 0.0
  %351 = vmatprep.subr.mxu0 0.0
  %352 = vmatpush1.msra.mxu0 0.0
  %353 = vmatprep.subr.mxu0 0.0
  %354 = vmatpush1.msra.mxu0 0.0
  %355 = vmatprep.subr.mxu0 0.0
  %356 = vmatpush1.msra.mxu0 0.0
  %357 = vmatprep.subr.mxu0 0.0
  %358 = vmatpush1.msra.mxu0 0.0
  %359 = vmatprep.subr.mxu0 0.0
  %360 = vmatpush1.msra.mxu0 0.0
  %361 = vmatprep.subr.mxu0 0.0
  %362 = vmatpush1.msra.mxu0 0.0
  %363 = vmatprep.subr.mxu0 0.0
  %364 = vmatpush1.msra.mxu0 0.0
  %365 = vmatprep.subr.mxu0 0.0
  %366 = vmatpush1.msra.mxu0 0.0
  %367 = vmatprep.mubr.f32.mxu0 0.0
  %368 = vmatmul.mubr.f32.gmra.mrb[0].mxu0 %v182
  %v369 = vpop.f32.mrb[0].mxu0
  %v370 = vadd.f32 0.0, %v369
  %v371 = vpop.f32.mrb[0].mxu0
  %372 = vmatprep.mubr.f32.mxu0 0.0
  %373 = vmatmul.mubr.f32.gmra.mrb[0].mxu0 %v185
  %v374 = vpop.f32.mrb[0].mxu0
  %v375 = vadd.f32 0.0, %v374
  %v376 = vpop.f32.mrb[0].mxu0
  %377 = vmatprep.mubr.f32.mxu0 0.0
  %378 = vmatmul.mubr.f32.gmra.mrb[0].mxu0 %v188
  %v379 = vpop.f32.mrb[0].mxu0
  %v380 = vadd.f32 0.0, %v379
  %v381 = vpop.f32.mrb[0].mxu0
  %382 = vmatprep.mubr.f32.mxu0 0.0
  %383 = vmatmul.mubr.f32.gmra.mrb[0].mxu0 %v191
  %v384 = vpop.f32.mrb[0].mxu0
  %v385 = vadd.f32 0.0, %v384
  %v386 = vpop.f32.mrb[0].mxu0
  %387 = vdwg.mxu0
  %v388 = vmax.f32 %v370, 0.0
  %v389 = vmax.f32 %v375, 0.0
  %v390 = vmax.f32 %v380, 0.0
  %v391 = vmax.f32 %v385, 0.0
  %v392 = vpack.c.bf16 %v389, %v388
  %v393 = vpack.c.bf16 %v391, %v390
  %v396 = vunpack.c.l.b16 %v392
  %v397 = vunpack.c.h.b16 %v392
  %v398 = vunpack.c.l.b16 %v393
  %v399 = vunpack.c.h.b16 %v393
  %v400 = vpack.c.b16 %v396, %v396
  %v401 = vpack.c.b16 %v397, %v397
  %v402 = vpack.c.b16 %v398, %v398
  %v403 = vpack.c.b16 %v399, %v399
  %408 = vst.msk [vmem:[%s3 + $0x10] sm:$0xf] %vm298, %v400
  %409 = vst.msk [vmem:[%s3 + $0x14] sm:$0xf] %vm298, %v401
  %410 = vst.msk [vmem:[%s3 + $0x18] sm:$0xf] %vm298, %v402
  %411 = vst.msk [vmem:[%s3 + $0x1c] sm:$0xf] %vm298, %v403
  %412 = vmatprep.subr.mxu0 0.0
  %413 = vmatpush1.msra.mxu0 %v168
  %414 = vmatprep.subr.mxu0 0.0
  %415 = vmatpush1.msra.mxu0 %v169
  %416 = vmatprep.subr.mxu0 0.0
  %417 = vmatpush1.msra.mxu0 0.0
  %418 = vmatprep.subr.mxu0 0.0
  %419 = vmatpush1.msra.mxu0 0.0
  %420 = vmatprep.subr.mxu0 0.0
  %421 = vmatpush1.msra.mxu0 0.0
  %422 = vmatprep.subr.mxu0 0.0
  %423 = vmatpush1.msra.mxu0 0.0
  %424 = vmatprep.subr.mxu0 0.0
  %425 = vmatpush1.msra.mxu0 0.0
  %426 = vmatprep.subr.mxu0 0.0
  %427 = vmatpush1.msra.mxu0 0.0
  %428 = vmatprep.subr.mxu0 0.0
  %429 = vmatpush1.msra.mxu0 0.0
  %430 = vmatprep.subr.mxu0 0.0
  %431 = vmatpush1.msra.mxu0 0.0
  %432 = vmatprep.subr.mxu0 0.0
  %433 = vmatpush1.msra.mxu0 0.0
  %434 = vmatprep.subr.mxu0 0.0
  %435 = vmatpush1.msra.mxu0 0.0
  %436 = vmatprep.subr.mxu0 0.0
  %437 = vmatpush1.msra.mxu0 0.0
  %438 = vmatprep.subr.mxu0 0.0
  %439 = vmatpush1.msra.mxu0 0.0
  %440 = vmatprep.subr.mxu0 0.0
  %441 = vmatpush1.msra.mxu0 0.0
  %442 = vmatprep.subr.mxu0 0.0
  %443 = vmatpush1.msra.mxu0 0.0
  %444 = vmatprep.subr.mxu0 0.0
  %445 = vmatpush1.msra.mxu0 0.0
  %446 = vmatprep.subr.mxu0 0.0
  %447 = vmatpush1.msra.mxu0 0.0
  %448 = vmatprep.subr.mxu0 0.0
  %449 = vmatpush1.msra.mxu0 0.0
  %450 = vmatprep.subr.mxu0 0.0
  %451 = vmatpush1.msra.mxu0 0.0
  %452 = vmatprep.subr.mxu0 0.0
  %453 = vmatpush1.msra.mxu0 0.0
  %454 = vmatprep.subr.mxu0 0.0
  %455 = vmatpush1.msra.mxu0 0.0
  %456 = vmatprep.subr.mxu0 0.0
  %457 = vmatpush1.msra.mxu0 0.0
  %458 = vmatprep.subr.mxu0 0.0
  %459 = vmatpush1.msra.mxu0 0.0
  %460 = vmatprep.subr.mxu0 0.0
  %461 = vmatpush1.msra.mxu0 0.0
  %462 = vmatprep.subr.mxu0 0.0
  %463 = vmatpush1.msra.mxu0 0.0
  %464 = vmatprep.subr.mxu0 0.0
  %465 = vmatpush1.msra.mxu0 0.0
  %466 = vmatprep.subr.mxu0 0.0
  %467 = vmatpush1.msra.mxu0 0.0
  %468 = vmatprep.subr.mxu0 0.0
  %469 = vmatpush1.msra.mxu0 0.0
  %470 = vmatprep.subr.mxu0 0.0
  %471 = vmatpush1.msra.mxu0 0.0
  %472 = vmatprep.subr.mxu0 0.0
  %473 = vmatpush1.msra.mxu0 0.0
  %474 = vmatprep.subr.mxu0 0.0
  %475 = vmatpush1.msra.mxu0 0.0
  %476 = vmatprep.mubr.f32.mxu0 0.0
  %477 = vmatmul.mubr.f32.gmra.mrb[0].mxu0 %v182
  %v478 = vpop.f32.mrb[0].mxu0
  %v479 = vadd.f32 0.0, %v478
  %v480 = vpop.f32.mrb[0].mxu0
  %481 = vmatprep.mubr.f32.mxu0 0.0
  %482 = vmatmul.mubr.f32.gmra.mrb[0].mxu0 %v185
  %v483 = vpop.f32.mrb[0].mxu0
  %v484 = vadd.f32 0.0, %v483
  %v485 = vpop.f32.mrb[0].mxu0
  %486 = vmatprep.mubr.f32.mxu0 0.0
  %487 = vmatmul.mubr.f32.gmra.mrb[0].mxu0 %v188
  %v488 = vpop.f32.mrb[0].mxu0
  %v489 = vadd.f32 0.0, %v488
  %v490 = vpop.f32.mrb[0].mxu0
  %491 = vmatprep.mubr.f32.mxu0 0.0
  %492 = vmatmul.mubr.f32.gmra.mrb[0].mxu0 %v191
  %v493 = vpop.f32.mrb[0].mxu0
  %v494 = vadd.f32 0.0, %v493
  %v495 = vpop.f32.mrb[0].mxu0
  %496 = vdwg.mxu0
  %v497 = vmax.f32 %v479, 0.0
  %v498 = vmax.f32 %v484, 0.0
  %v499 = vmax.f32 %v489, 0.0
  %v500 = vmax.f32 %v494, 0.0
  %v501 = vpack.c.bf16 %v498, %v497
  %v502 = vpack.c.bf16 %v500, %v499
  %v505 = vunpack.c.l.b16 %v501
  %v506 = vunpack.c.h.b16 %v501
  %v507 = vunpack.c.l.b16 %v502
  %v508 = vunpack.c.h.b16 %v502
  %v509 = vpack.c.b16 %v505, %v505
  %v510 = vpack.c.b16 %v506, %v506
  %v511 = vpack.c.b16 %v507, %v507
  %v512 = vpack.c.b16 %v508, %v508
  %517 = vst.msk [vmem:[%s3 + $0x20] sm:$0xf] %vm298, %v509
  %518 = vst.msk [vmem:[%s3 + $0x24] sm:$0xf] %vm298, %v510
  %519 = vst.msk [vmem:[%s3 + $0x28] sm:$0xf] %vm298, %v511
  %520 = vst.msk [vmem:[%s3 + $0x2c] sm:$0xf] %vm298, %v512
  %521 = vmatprep.subr.mxu0 0.0
  %522 = vmatpush1.msra.mxu0 %v170
  %523 = vmatprep.subr.mxu0 0.0
  %524 = vmatpush1.msra.mxu0 %v171
  %525 = vmatprep.subr.mxu0 0.0
  %526 = vmatpush1.msra.mxu0 0.0
  %527 = vmatprep.subr.mxu0 0.0
  %528 = vmatpush1.msra.mxu0 0.0
  %529 = vmatprep.subr.mxu0 0.0
  %530 = vmatpush1.msra.mxu0 0.0
  %531 = vmatprep.subr.mxu0 0.0
  %532 = vmatpush1.msra.mxu0 0.0
  %533 = vmatprep.subr.mxu0 0.0
  %534 = vmatpush1.msra.mxu0 0.0
  %535 = vmatprep.subr.mxu0 0.0
  %536 = vmatpush1.msra.mxu0 0.0
  %537 = vmatprep.subr.mxu0 0.0
  %538 = vmatpush1.msra.mxu0 0.0
  %539 = vmatprep.subr.mxu0 0.0
  %540 = vmatpush1.msra.mxu0 0.0
  %541 = vmatprep.subr.mxu0 0.0
  %542 = vmatpush1.msra.mxu0 0.0
  %543 = vmatprep.subr.mxu0 0.0
  %544 = vmatpush1.msra.mxu0 0.0
  %545 = vmatprep.subr.mxu0 0.0
  %546 = vmatpush1.msra.mxu0 0.0
  %547 = vmatprep.subr.mxu0 0.0
  %548 = vmatpush1.msra.mxu0 0.0
  %549 = vmatprep.subr.mxu0 0.0
  %550 = vmatpush1.msra.mxu0 0.0
  %551 = vmatprep.subr.mxu0 0.0
  %552 = vmatpush1.msra.mxu0 0.0
  %553 = vmatprep.subr.mxu0 0.0
  %554 = vmatpush1.msra.mxu0 0.0
  %555 = vmatprep.subr.mxu0 0.0
  %556 = vmatpush1.msra.mxu0 0.0
  %557 = vmatprep.subr.mxu0 0.0
  %558 = vmatpush1.msra.mxu0 0.0
  %559 = vmatprep.subr.mxu0 0.0
  %560 = vmatpush1.msra.mxu0 0.0
  %561 = vmatprep.subr.mxu0 0.0
  %562 = vmatpush1.msra.mxu0 0.0
  %563 = vmatprep.subr.mxu0 0.0
  %564 = vmatpush1.msra.mxu0 0.0
  %565 = vmatprep.subr.mxu0 0.0
  %566 = vmatpush1.msra.mxu0 0.0
  %567 = vmatprep.subr.mxu0 0.0
  %568 = vmatpush1.msra.mxu0 0.0
  %569 = vmatprep.subr.mxu0 0.0
  %570 = vmatpush1.msra.mxu0 0.0
  %571 = vmatprep.subr.mxu0 0.0
  %572 = vmatpush1.msra.mxu0 0.0
  %573 = vmatprep.subr.mxu0 0.0
  %574 = vmatpush1.msra.mxu0 0.0
  %575 = vmatprep.subr.mxu0 0.0
  %576 = vmatpush1.msra.mxu0 0.0
  %577 = vmatprep.subr.mxu0 0.0
  %578 = vmatpush1.msra.mxu0 0.0
  %579 = vmatprep.subr.mxu0 0.0
  %580 = vmatpush1.msra.mxu0 0.0
  %581 = vmatprep.subr.mxu0 0.0
  %582 = vmatpush1.msra.mxu0 0.0
  %583 = vmatprep.subr.mxu0 0.0
  %584 = vmatpush1.msra.mxu0 0.0
  %585 = vmatprep.mubr.f32.mxu0 0.0
  %586 = vmatmul.mubr.f32.gmra.mrb[0].mxu0 %v182
  %v587 = vpop.f32.mrb[0].mxu0
  %v588 = vadd.f32 0.0, %v587
  %v589 = vpop.f32.mrb[0].mxu0
  %590 = vmatprep.mubr.f32.mxu0 0.0
  %591 = vmatmul.mubr.f32.gmra.mrb[0].mxu0 %v185
  %v592 = vpop.f32.mrb[0].mxu0
  %v593 = vadd.f32 0.0, %v592
  %v594 = vpop.f32.mrb[0].mxu0
  %595 = vmatprep.mubr.f32.mxu0 0.0
  %596 = vmatmul.mubr.f32.gmra.mrb[0].mxu0 %v188
  %v597 = vpop.f32.mrb[0].mxu0
  %v598 = vadd.f32 0.0, %v597
  %v599 = vpop.f32.mrb[0].mxu0
  %600 = vmatprep.mubr.f32.mxu0 0.0
  %601 = vmatmul.mubr.f32.gmra.mrb[0].mxu0 %v191
  %v602 = vpop.f32.mrb[0].mxu0
  %v603 = vadd.f32 0.0, %v602
  %v604 = vpop.f32.mrb[0].mxu0
  %605 = vdwg.mxu0
  %v606 = vmax.f32 %v588, 0.0
  %v607 = vmax.f32 %v593, 0.0
  %v608 = vmax.f32 %v598, 0.0
  %v609 = vmax.f32 %v603, 0.0
  %v610 = vpack.c.bf16 %v607, %v606
  %v611 = vpack.c.bf16 %v609, %v608
  %v614 = vunpack.c.l.b16 %v610
  %v615 = vunpack.c.h.b16 %v610
  %v616 = vunpack.c.l.b16 %v611
  %v617 = vunpack.c.h.b16 %v611
  %v618 = vpack.c.b16 %v614, %v614
  %v619 = vpack.c.b16 %v615, %v615
  %v620 = vpack.c.b16 %v616, %v616
  %v621 = vpack.c.b16 %v617, %v617
  %626 = vst.msk [vmem:[%s3 + $0x30] sm:$0xf] %vm298, %v618
  %627 = vst.msk [vmem:[%s3 + $0x34] sm:$0xf] %vm298, %v619
  %628 = vst.msk [vmem:[%s3 + $0x38] sm:$0xf] %vm298, %v620
  %629 = vst.msk [vmem:[%s3 + $0x3c] sm:$0xf] %vm298, %v621
  // Predicated region
  $region14: #{resnet_generator_forward.12} parent=0 // pred_check
    _
  $region15: #{resnet_generator_forward.12} parent=0 // pred_check_branch
    %631 = sbr.rel (0) target = $region17
  $region16: #{resnet_generator_forward.12} parent=0 // pred_region
    _
  $region17: #{resnet_generator_forward.12} parent=0 // pred_fallthru
    _
  // Predicated region
  $region18: #{resnet_generator_forward.12} parent=0 // pred_check
    _
  $region19: #{resnet_generator_forward.12} parent=0 // pred_check_branch
    %633 = sbr.rel (0) target = $region21
  $region20: #{resnet_generator_forward.12} parent=0 // pred_region
    _
  $region21: #{resnet_generator_forward.12} parent=0 // pred_fallthru
    _

// kernel: resnet_generator_forward.10
$region0: #{resnet_generator_forward.10}
  #allocation0 [shape = 'u32[]', space=smem, size = 0x4, offset = 0x4, fixed_abs, tag = 'smem constant byte address 0x4 - core index']
  #allocation1 [shape = 'u32[144,128]{1,0:T(1,128)}', space=vmem, size = 0x12000, scoped, tag = 'internal scratch']
  #allocation2 [shape = 'f32[32,42]{1,0:T(8,128)}', space=vmem, size = 0x4000, scoped, tag = 'scratch operand']
  #allocation3 [shape = 'f32[288,32]{1,0:T(8,128)}', space=vmem, size = 0x24000, scoped, tag = 'scratch operand']
  %s0 = inlined_call_operand.vmem [shape: f32[32,32], index: 0, kind: input, shape index: {}]
  %s1 = inlined_call_operand.vmem [shape: bf16[32,288], index: 1, kind: input, shape index: {}]
  %s2 = inlined_call_operand.vmem [shape: bf16[32,288], index: 2, kind: input, shape index: {}]
  %s3 = inlined_call_operand.vmem [shape: f32[9,32], index: 3, kind: input, shape index: {}]
  %s4 = inlined_call_operand.vmem [shape: f32[32,32], index: 4, kind: output, shape index: {}]
  %s5 = sld [smem:[#allocation0]]
  $region26: #{resnet_generator_forward.10} parent=0
    _
  %s7 = ssub.s32 1, %s5
  %s8 = scalar_select 0, %s7, %s5
  // Predicated region
  $region2: #{resnet_generator_forward.10} parent=0 // pred_check
    _
  $region3: #{resnet_generator_forward.10} parent=0 // pred_check_branch
    %10 = sbr.rel (0) target = $region5
  $region4: #{resnet_generator_forward.10} parent=0 // pred_region
    _
  $region5: #{resnet_generator_forward.10} parent=0 // pred_fallthru
    _
  // Predicated region
  $region6: #{resnet_generator_forward.10} parent=0 // pred_check
    _
  $region7: #{resnet_generator_forward.10} parent=0 // pred_check_branch
    %12 = sbr.rel (0) target = $region9
  $region8: #{resnet_generator_forward.10} parent=0 // pred_region
    _
  $region9: #{resnet_generator_forward.10} parent=0 // pred_fallthru
    _
  // Predicated region
  $region10: #{resnet_generator_forward.10} parent=0 // pred_check
    _
  $region11: #{resnet_generator_forward.10} parent=0 // pred_check_branch
    %14 = sbr.rel (0) target = $region13
  $region12: #{resnet_generator_forward.10} parent=0 // pred_region
    _
  $region13: #{resnet_generator_forward.10} parent=0 // pred_fallthru
    _
  // Predicated region
  $region14: #{resnet_generator_forward.10} parent=0 // pred_check
    _
  $region15: #{resnet_generator_forward.10} parent=0 // pred_check_branch
    %16 = sbr.rel (0) target = $region17
  $region16: #{resnet_generator_forward.10} parent=0 // pred_region
    _
  $region17: #{resnet_generator_forward.10} parent=0 // pred_fallthru
    _
  %v17 = vld [vmem:[%s0] sm:$0xff]
  %v18 = vld [vmem:[%s0 + $0x8] sm:$0xff]
  %v19 = vld [vmem:[%s0 + $0x10] sm:$0xff]
  %v20 = vld [vmem:[%s0 + $0x18] sm:$0xff]
  %vm21 = vcmask 343040
  %22 = vst.msk [vmem:[#allocation2] sm:$0xff] %vm21, 0.0
  %23 = vst.msk [vmem:[#allocation2 + $0x8] sm:$0xff] %vm21, 0.0
  %24 = vst.msk [vmem:[#allocation2 + $0x10] sm:$0xff] %vm21, 0.0
  %25 = vst.msk [vmem:[#allocation2 + $0x18] sm:$0xff] %vm21, 0.0
  %30 = vrot.lane.b32.xlu0 %v17, 5
  %v31 = vpop.permute.xlu0 %30
  %32 = vrot.lane.b32.xlu0 %v18, 5
  %v33 = vpop.permute.xlu0 %32
  %34 = vrot.lane.b32.xlu0 %v19, 5
  %v35 = vpop.permute.xlu0 %34
  %36 = vrot.lane.b32.xlu0 %v20, 5
  %v37 = vpop.permute.xlu0 %36
  %vm42 = vcmask 302120
  %43 = vst.msk [vmem:[#allocation2] sm:$0xff] %vm42, %v31
  %44 = vst.msk [vmem:[#allocation2 + $0x8] sm:$0xff] %vm42, %v33
  %45 = vst.msk [vmem:[#allocation2 + $0x10] sm:$0xff] %vm42, %v35
  %46 = vst.msk [vmem:[#allocation2 + $0x18] sm:$0xff] %vm42, %v37
  %v47 = vld [vmem:[#allocation2] sm:$0xff]
  %v48 = vld [vmem:[#allocation2 + $0x8] sm:$0xff]
  %v49 = vld [vmem:[#allocation2 + $0x10] sm:$0xff]
  %v50 = vld [vmem:[#allocation2 + $0x18] sm:$0xff]
  %v51 = vld [vmem:[%s3] sm:$0x1]
  %v52 = vlaneseq
  %v53 = vshrl.u32 %v52, 7
  %v54 = vsub.s32 0, %v53
  %v55 = vrot.slane %v51, %v54
  %v56 = vmul.f32 %v47, %v55
  %v57 = vmul.f32 %v48, %v55
  %v58 = vmul.f32 %v49, %v55
  %v59 = vmul.f32 %v50, %v55
  %vm60 = vcmask 261120
  %61 = vst.msk [vmem:[#allocation3] sm:$0xff] %vm60, %v56
  %62 = vst.msk [vmem:[#allocation3 + $0x8] sm:$0xff] %vm60, %v57
  %63 = vst.msk [vmem:[#allocation3 + $0x10] sm:$0xff] %vm60, %v58
  %64 = vst.msk [vmem:[#allocation3 + $0x18] sm:$0xff] %vm60, %v59
  %v65 = vld [vmem:[#allocation2] sm:$0xff]
  %v66 = vld [vmem:[#allocation2 + $0x8] sm:$0xff]
  %v67 = vld [vmem:[#allocation2 + $0x10] sm:$0xff]
  %v68 = vld [vmem:[#allocation2 + $0x18] sm:$0xff]
  %v69 = vld [vmem:[%s3 + $0x1] sm:$0x1]
  %v70 = vlaneseq
  %v71 = vshrl.u32 %v70, 7
  %v72 = vsub.s32 0, %v71
  %v73 = vrot.slane %v69, %v72
  %75 = vrot.lane.b32.xlu0 %v73, 1
  %v76 = vpop.permute.xlu0 %75
  %v78 = vmul.f32 %v65, %v76
  %v79 = vmul.f32 %v66, %v76
  %v80 = vmul.f32 %v67, %v76
  %v81 = vmul.f32 %v68, %v76
  %86 = vrot.lane.b32.xlu0 %v78, 127
  %v87 = vpop.permute.xlu0 %86
  %88 = vrot.lane.b32.xlu0 %v79, 127
  %v89 = vpop.permute.xlu0 %88
  %90 = vrot.lane.b32.xlu0 %v80, 127
  %v91 = vpop.permute.xlu0 %90
  %92 = vrot.lane.b32.xlu0 %v81, 127
  %v93 = vpop.permute.xlu0 %92
  %98 = vst.msk [vmem:[#allocation3 + $0x20] sm:$0xff] %vm60, %v87
  %99 = vst.msk [vmem:[#allocation3 + $0x28] sm:$0xff] %vm60, %v89
  %100 = vst.msk [vmem:[#allocation3 + $0x30] sm:$0xff] %vm60, %v91
  %101 = vst.msk [vmem:[#allocation3 + $0x38] sm:$0xff] %vm60, %v93
  %v102 = vld [vmem:[#allocation2] sm:$0xff]
  %v103 = vld [vmem:[#allocation2 + $0x8] sm:$0xff]
  %v104 = vld [vmem:[#allocation2 + $0x10] sm:$0xff]
  %v105 = vld [vmem:[#allocation2 + $0x18] sm:$0xff]
  %v106 = vld [vmem:[%s3 + $0x2] sm:$0x1]
  %v107 = vlaneseq
  %v108 = vshrl.u32 %v107, 7
  %v109 = vsub.s32 0, %v108
  %v110 = vrot.slane %v106, %v109
  %112 = vrot.lane.b32.xlu0 %v110, 2
  %v113 = vpop.permute.xlu0 %112
  %v115 = vmul.f32 %v102, %v113
  %v116 = vmul.f32 %v103, %v113
  %v117 = vmul.f32 %v104, %v113
  %v118 = vmul.f32 %v105, %v113
  %123 = vrot.lane.b32.xlu0 %v115, 126
  %v124 = vpop.permute.xlu0 %123
  %125 = vrot.lane.b32.xlu0 %v116, 126
  %v126 = vpop.permute.xlu0 %125
  %127 = vrot.lane.b32.xlu0 %v117, 126
  %v128 = vpop.permute.xlu0 %127
  %129 = vrot.lane.b32.xlu0 %v118, 126
  %v130 = vpop.permute.xlu0 %129
  %135 = vst.msk [vmem:[#allocation3 + $0x40] sm:$0xff] %vm60, %v124
  %136 = vst.msk [vmem:[#allocation3 + $0x48] sm:$0xff] %vm60, %v126
  %137 = vst.msk [vmem:[#allocation3 + $0x50] sm:$0xff] %vm60, %v128
  %138 = vst.msk [vmem:[#allocation3 + $0x58] sm:$0xff] %vm60, %v130
  %v139 = vld [vmem:[#allocation2] sm:$0xff]
  %v140 = vld [vmem:[#allocation2 + $0x8] sm:$0xff]
  %v141 = vld [vmem:[#allocation2 + $0x10] sm:$0xff]
  %v142 = vld [vmem:[#allocation2 + $0x18] sm:$0xff]
  %v143 = vld [vmem:[%s3 + $0x3] sm:$0x1]
  %v144 = vlaneseq
  %v145 = vshrl.u32 %v144, 7
  %v146 = vsub.s32 0, %v145
  %v147 = vrot.slane %v143, %v146
  %149 = vrot.lane.b32.xlu0 %v147, 4
  %v150 = vpop.permute.xlu0 %149
  %v152 = vmul.f32 %v139, %v150
  %v153 = vmul.f32 %v140, %v150
  %v154 = vmul.f32 %v141, %v150
  %v155 = vmul.f32 %v142, %v150
  %160 = vrot.lane.b32.xlu0 %v152, 124
  %v161 = vpop.permute.xlu0 %160
  %162 = vrot.lane.b32.xlu0 %v153, 124
  %v163 = vpop.permute.xlu0 %162
  %164 = vrot.lane.b32.xlu0 %v154, 124
  %v165 = vpop.permute.xlu0 %164
  %166 = vrot.lane.b32.xlu0 %v155, 124
  %v167 = vpop.permute.xlu0 %166
  %172 = vst.msk [vmem:[#allocation3 + $0x60] sm:$0xff] %vm60, %v161
  %173 = vst.msk [vmem:[#allocation3 + $0x68] sm:$0xff] %vm60, %v163
  %174 = vst.msk [vmem:[#allocation3 + $0x70] sm:$0xff] %vm60, %v165
  %175 = vst.msk [vmem:[#allocation3 + $0x78] sm:$0xff] %vm60, %v167
  %v176 = vld [vmem:[#allocation2] sm:$0xff]
  %v177 = vld [vmem:[#allocation2 + $0x8] sm:$0xff]
  %v178 = vld [vmem:[#allocation2 + $0x10] sm:$0xff]
  %v179 = vld [vmem:[#allocation2 + $0x18] sm:$0xff]
  %v180 = vld [vmem:[%s3 + $0x4] sm:$0x1]
  %v181 = vlaneseq
  %v182 = vshrl.u32 %v181, 7
  %v183 = vsub.s32 0, %v182
  %v184 = vrot.slane %v180, %v183
  %186 = vrot.lane.b32.xlu0 %v184, 5
  %v187 = vpop.permute.xlu0 %186
  %v189 = vmul.f32 %v176, %v187
  %v190 = vmul.f32 %v177, %v187
  %v191 = vmul.f32 %v178, %v187
  %v192 = vmul.f32 %v179, %v187
  %197 = vrot.lane.b32.xlu0 %v189, 123
  %v198 = vpop.permute.xlu0 %197
  %199 = vrot.lane.b32.xlu0 %v190, 123
  %v200 = vpop.permute.xlu0 %199
  %201 = vrot.lane.b32.xlu0 %v191, 123
  %v202 = vpop.permute.xlu0 %201
  %203 = vrot.lane.b32.xlu0 %v192, 123
  %v204 = vpop.permute.xlu0 %203
  %209 = vst.msk [vmem:[#allocation3 + $0x80] sm:$0xff] %vm60, %v198
  %210 = vst.msk [vmem:[#allocation3 + $0x88] sm:$0xff] %vm60, %v200
  %211 = vst.msk [vmem:[#allocation3 + $0x90] sm:$0xff] %vm60, %v202
  %212 = vst.msk [vmem:[#allocation3 + $0x98] sm:$0xff] %vm60, %v204
  %v213 = vld [vmem:[#allocation2] sm:$0xff]
  %v214 = vld [vmem:[#allocation2 + $0x8] sm:$0xff]
  %v215 = vld [vmem:[#allocation2 + $0x10] sm:$0xff]
  %v216 = vld [vmem:[#allocation2 + $0x18] sm:$0xff]
  %v217 = vld [vmem:[%s3 + $0x5] sm:$0x1]
  %v218 = vlaneseq
  %v219 = vshrl.u32 %v218, 7
  %v220 = vsub.s32 0, %v219
  %v221 = vrot.slane %v217, %v220
  %223 = vrot.lane.b32.xlu0 %v221, 6
  %v224 = vpop.permute.xlu0 %223
  %v226 = vmul.f32 %v213, %v224
  %v227 = vmul.f32 %v214, %v224
  %v228 = vmul.f32 %v215, %v224
  %v229 = vmul.f32 %v216, %v224
  %234 = vrot.lane.b32.xlu0 %v226, 122
  %v235 = vpop.permute.xlu0 %234
  %236 = vrot.lane.b32.xlu0 %v227, 122
  %v237 = vpop.permute.xlu0 %236
  %238 = vrot.lane.b32.xlu0 %v228, 122
  %v239 = vpop.permute.xlu0 %238
  %240 = vrot.lane.b32.xlu0 %v229, 122
  %v241 = vpop.permute.xlu0 %240
  %246 = vst.msk [vmem:[#allocation3 + $0xa0] sm:$0xff] %vm60, %v235
  %247 = vst.msk [vmem:[#allocation3 + $0xa8] sm:$0xff] %vm60, %v237
  %248 = vst.msk [vmem:[#allocation3 + $0xb0] sm:$0xff] %vm60, %v239
  %249 = vst.msk [vmem:[#allocation3 + $0xb8] sm:$0xff] %vm60, %v241
  %v250 = vld [vmem:[#allocation2] sm:$0xff]
  %v251 = vld [vmem:[#allocation2 + $0x8] sm:$0xff]
  %v252 = vld [vmem:[#allocation2 + $0x10] sm:$0xff]
  %v253 = vld [vmem:[#allocation2 + $0x18] sm:$0xff]
  %v254 = vld [vmem:[%s3 + $0x6] sm:$0x1]
  %v255 = vlaneseq
  %v256 = vshrl.u32 %v255, 7
  %v257 = vsub.s32 0, %v256
  %v258 = vrot.slane %v254, %v257
  %260 = vrot.lane.b32.xlu0 %v258, 8
  %v261 = vpop.permute.xlu0 %260
  %v263 = vmul.f32 %v250, %v261
  %v264 = vmul.f32 %v251, %v261
  %v265 = vmul.f32 %v252, %v261
  %v266 = vmul.f32 %v253, %v261
  %271 = vrot.lane.b32.xlu0 %v263, 120
  %v272 = vpop.permute.xlu0 %271
  %273 = vrot.lane.b32.xlu0 %v264, 120
  %v274 = vpop.permute.xlu0 %273
  %275 = vrot.lane.b32.xlu0 %v265, 120
  %v276 = vpop.permute.xlu0 %275
  %277 = vrot.lane.b32.xlu0 %v266, 120
  %v278 = vpop.permute.xlu0 %277
  %283 = vst.msk [vmem:[#allocation3 + $0xc0] sm:$0xff] %vm60, %v272
  %284 = vst.msk [vmem:[#allocation3 + $0xc8] sm:$0xff] %vm60, %v274
  %285 = vst.msk [vmem:[#allocation3 + $0xd0] sm:$0xff] %vm60, %v276
  %286 = vst.msk [vmem:[#allocation3 + $0xd8] sm:$0xff] %vm60, %v278
  %v287 = vld [vmem:[#allocation2] sm:$0xff]
  %v288 = vld [vmem:[#allocation2 + $0x8] sm:$0xff]
  %v289 = vld [vmem:[#allocation2 + $0x10] sm:$0xff]
  %v290 = vld [vmem:[#allocation2 + $0x18] sm:$0xff]
  %v291 = vld [vmem:[%s3 + $0x7] sm:$0x1]
  %v292 = vlaneseq
  %v293 = vshrl.u32 %v292, 7
  %v294 = vsub.s32 0, %v293
  %v295 = vrot.slane %v291, %v294
  %297 = vrot.lane.b32.xlu0 %v295, 9
  %v298 = vpop.permute.xlu0 %297
  %v300 = vmul.f32 %v287, %v298
  %v301 = vmul.f32 %v288, %v298
  %v302 = vmul.f32 %v289, %v298
  %v303 = vmul.f32 %v290, %v298
  %308 = vrot.lane.b32.xlu0 %v300, 119
  %v309 = vpop.permute.xlu0 %308
  %310 = vrot.lane.b32.xlu0 %v301, 119
  %v311 = vpop.permute.xlu0 %310
  %312 = vrot.lane.b32.xlu0 %v302, 119
  %v313 = vpop.permute.xlu0 %312
  %314 = vrot.lane.b32.xlu0 %v303, 119
  %v315 = vpop.permute.xlu0 %314
  %320 = vst.msk [vmem:[#allocation3 + $0xe0] sm:$0xff] %vm60, %v309
  %321 = vst.msk [vmem:[#allocation3 + $0xe8] sm:$0xff] %vm60, %v311
  %322 = vst.msk [vmem:[#allocation3 + $0xf0] sm:$0xff] %vm60, %v313
  %323 = vst.msk [vmem:[#allocation3 + $0xf8] sm:$0xff] %vm60, %v315
  %v324 = vld [vmem:[#allocation2] sm:$0xff]
  %v325 = vld [vmem:[#allocation2 + $0x8] sm:$0xff]
  %v326 = vld [vmem:[#allocation2 + $0x10] sm:$0xff]
  %v327 = vld [vmem:[#allocation2 + $0x18] sm:$0xff]
  %v328 = vld [vmem:[%s3 + $0x8] sm:$0x1]
  %v329 = vlaneseq
  %v330 = vshrl.u32 %v329, 7
  %v331 = vsub.s32 0, %v330
  %v332 = vrot.slane %v328, %v331
  %334 = vrot.lane.b32.xlu0 %v332, 10
  %v335 = vpop.permute.xlu0 %334
  %v337 = vmul.f32 %v324, %v335
  %v338 = vmul.f32 %v325, %v335
  %v339 = vmul.f32 %v326, %v335
  %v340 = vmul.f32 %v327, %v335
  %345 = vrot.lane.b32.xlu0 %v337, 118
  %v346 = vpop.permute.xlu0 %345
  %347 = vrot.lane.b32.xlu0 %v338, 118
  %v348 = vpop.permute.xlu0 %347
  %349 = vrot.lane.b32.xlu0 %v339, 118
  %v350 = vpop.permute.xlu0 %349
  %351 = vrot.lane.b32.xlu0 %v340, 118
  %v352 = vpop.permute.xlu0 %351
  %357 = vst.msk [vmem:[#allocation3 + $0x100] sm:$0xff] %vm60, %v346
  %358 = vst.msk [vmem:[#allocation3 + $0x108] sm:$0xff] %vm60, %v348
  %359 = vst.msk [vmem:[#allocation3 + $0x110] sm:$0xff] %vm60, %v350
  %360 = vst.msk [vmem:[#allocation3 + $0x118] sm:$0xff] %vm60, %v352
  %v361 = vld [vmem:[%s1] sm:$0xff]
  %v362 = vld [vmem:[%s1 + $0x8] sm:$0xf]
  %v363 = vld [vmem:[%s1 + $0xc] sm:$0xff]
  %v364 = vld [vmem:[%s1 + $0x14] sm:$0xf]
  %v365 = vld [vmem:[%s1 + $0x18] sm:$0xff]
  %v366 = vld [vmem:[%s1 + $0x20] sm:$0xf]
  %v367 = vld [vmem:[%s1 + $0x24] sm:$0xff]
  %v368 = vld [vmem:[%s1 + $0x2c] sm:$0xf]
  %v369 = vunpack.c.l.bf16 %v361
  %v370 = vunpack.c.h.bf16 %v361
  %v371 = vunpack.c.l.bf16 %v362
  %v372 = vunpack.c.l.bf16 %v363
  %v373 = vunpack.c.h.bf16 %v363
  %v374 = vunpack.c.l.bf16 %v364
  %v375 = vunpack.c.l.bf16 %v365
  %v376 = vunpack.c.h.bf16 %v365
  %v377 = vunpack.c.l.bf16 %v366
  %v378 = vunpack.c.l.bf16 %v367
  %v379 = vunpack.c.h.bf16 %v367
  %v380 = vunpack.c.l.bf16 %v368
  %v381 = vld [vmem:[#allocation3] sm:$0xff]
  %v382 = vld [vmem:[#allocation3 + $0x8] sm:$0xff]
  %v383 = vld [vmem:[#allocation3 + $0x10] sm:$0xff]
  %v384 = vld [vmem:[#allocation3 + $0x18] sm:$0xff]
  %v385 = vld [vmem:[#allocation3 + $0x20] sm:$0xff]
  %v386 = vld [vmem:[#allocation3 + $0x28] sm:$0xff]
  %v387 = vld [vmem:[#allocation3 + $0x30] sm:$0xff]
  %v388 = vld [vmem:[#allocation3 + $0x38] sm:$0xff]
  %v389 = vld [vmem:[#allocation3 + $0x40] sm:$0xff]
  %v390 = vld [vmem:[#allocation3 + $0x48] sm:$0xff]
  %v391 = vld [vmem:[#allocation3 + $0x50] sm:$0xff]
  %v392 = vld [vmem:[#allocation3 + $0x58] sm:$0xff]
  %v393 = vld [vmem:[#allocation3 + $0x60] sm:$0xff]
  %v394 = vld [vmem:[#allocation3 + $0x68] sm:$0xff]
  %v395 = vld [vmem:[#allocation3 + $0x70] sm:$0xff]
  %v396 = vld [vmem:[#allocation3 + $0x78] sm:$0xff]
  %v397 = vld [vmem:[#allocation3 + $0x80] sm:$0xff]
  %v398 = vld [vmem:[#allocation3 + $0x88] sm:$0xff]
  %v399 = vld [vmem:[#allocation3 + $0x90] sm:$0xff]
  %v400 = vld [vmem:[#allocation3 + $0x98] sm:$0xff]
  %v401 = vld [vmem:[#allocation3 + $0xa0] sm:$0xff]
  %v402 = vld [vmem:[#allocation3 + $0xa8] sm:$0xff]
  %v403 = vld [vmem:[#allocation3 + $0xb0] sm:$0xff]
  %v404 = vld [vmem:[#allocation3 + $0xb8] sm:$0xff]
  %v405 = vld [vmem:[#allocation3 + $0xc0] sm:$0xff]
  %v406 = vld [vmem:[#allocation3 + $0xc8] sm:$0xff]
  %v407 = vld [vmem:[#allocation3 + $0xd0] sm:$0xff]
  %v408 = vld [vmem:[#allocation3 + $0xd8] sm:$0xff]
  %v409 = vld [vmem:[#allocation3 + $0xe0] sm:$0xff]
  %v410 = vld [vmem:[#allocation3 + $0xe8] sm:$0xff]
  %v411 = vld [vmem:[#allocation3 + $0xf0] sm:$0xff]
  %v412 = vld [vmem:[#allocation3 + $0xf8] sm:$0xff]
  %v413 = vld [vmem:[#allocation3 + $0x100] sm:$0xff]
  %v414 = vld [vmem:[#allocation3 + $0x108] sm:$0xff]
  %v415 = vld [vmem:[#allocation3 + $0x110] sm:$0xff]
  %v416 = vld [vmem:[#allocation3 + $0x118] sm:$0xff]
  %v418 = vsel %vm60, %v371, 0
  %v421 = vsel %vm60, %v374, 0
  %v424 = vsel %vm60, %v377, 0
  %v427 = vsel %vm60, %v380, 0
  %429 = vmatprep.subr.mxu0 0.0
  %430 = vmatpush1.msra.mxu0 %v381
  %431 = vmatprep.subr.mxu0 0.0
  %432 = vmatpush1.msra.mxu0 %v382
  %433 = vmatprep.subr.mxu0 0.0
  %434 = vmatpush1.msra.mxu0 %v383
  %435 = vmatprep.subr.mxu0 0.0
  %436 = vmatpush1.msra.mxu0 %v384
  %437 = vmatprep.subr.mxu0 0.0
  %438 = vmatpush1.msra.mxu0 %v385
  %439 = vmatprep.subr.mxu0 0.0
  %440 = vmatpush1.msra.mxu0 %v386
  %441 = vmatprep.subr.mxu0 0.0
  %442 = vmatpush1.msra.mxu0 %v387
  %443 = vmatprep.subr.mxu0 0.0
  %444 = vmatpush1.msra.mxu0 %v388
  %445 = vmatprep.subr.mxu0 0.0
  %446 = vmatpush1.msra.mxu0 %v389
  %447 = vmatprep.subr.mxu0 0.0
  %448 = vmatpush1.msra.mxu0 %v390
  %449 = vmatprep.subr.mxu0 0.0
  %450 = vmatpush1.msra.mxu0 %v391
  %451 = vmatprep.subr.mxu0 0.0
  %452 = vmatpush1.msra.mxu0 %v392
  %453 = vmatprep.subr.mxu0 0.0
  %454 = vmatpush1.msra.mxu0 %v393
  %455 = vmatprep.subr.mxu0 0.0
  %456 = vmatpush1.msra.mxu0 %v394
  %457 = vmatprep.subr.mxu0 0.0
  %458 = vmatpush1.msra.mxu0 %v395
  %459 = vmatprep.subr.mxu0 0.0
  %460 = vmatpush1.msra.mxu0 %v396
  %461 = vmatprep.subr.mxu0 0.0
  %462 = vmatpush1.msra.mxu0 %v397
  %463 = vmatprep.subr.mxu0 0.0
  %464 = vmatpush1.msra.mxu0 %v398
  %465 = vmatprep.subr.mxu0 0.0
  %466 = vmatpush1.msra.mxu0 %v399
  %467 = vmatprep.subr.mxu0 0.0
  %468 = vmatpush1.msra.mxu0 %v400
  %469 = vmatprep.subr.mxu0 0.0
  %470 = vmatpush1.msra.mxu0 %v401
  %471 = vmatprep.subr.mxu0 0.0
  %472 = vmatpush1.msra.mxu0 %v402
  %473 = vmatprep.subr.mxu0 0.0
  %474 = vmatpush1.msra.mxu0 %v403
  %475 = vmatprep.subr.mxu0 0.0
  %476 = vmatpush1.msra.mxu0 %v404
  %477 = vmatprep.subr.mxu0 0.0
  %478 = vmatpush1.msra.mxu0 %v405
  %479 = vmatprep.subr.mxu0 0.0
  %480 = vmatpush1.msra.mxu0 %v406
  %481 = vmatprep.subr.mxu0 0.0
  %482 = vmatpush1.msra.mxu0 %v407
  %483 = vmatprep.subr.mxu0 0.0
  %484 = vmatpush1.msra.mxu0 %v408
  %485 = vmatprep.subr.mxu0 0.0
  %486 = vmatpush1.msra.mxu0 %v409
  %487 = vmatprep.subr.mxu0 0.0
  %488 = vmatpush1.msra.mxu0 %v410
  %489 = vmatprep.subr.mxu0 0.0
  %490 = vmatpush1.msra.mxu0 %v411
  %491 = vmatprep.subr.mxu0 0.0
  %492 = vmatpush1.msra.mxu0 %v412
  %493 = vmatprep.mubr.f32.mxu0 %v370
  %494 = vmatmul.mubr.f32.gmra.mrb[0].mxu0 %v369
  %v495 = vpop.f32.mrb[0].mxu0
  %v496 = vadd.f32 0.0, %v495
  %v497 = vpop.f32.mrb[0].mxu0
  %498 = vmatprep.mubr.f32.mxu0 %v373
  %499 = vmatmul.mubr.f32.gmra.mrb[0].mxu0 %v372
  %v500 = vpop.f32.mrb[0].mxu0
  %v501 = vadd.f32 0.0, %v500
  %v502 = vpop.f32.mrb[0].mxu0
  %503 = vmatprep.mubr.f32.mxu0 %v376
  %504 = vmatmul.mubr.f32.gmra.mrb[0].mxu0 %v375
  %v505 = vpop.f32.mrb[0].mxu0
  %v506 = vadd.f32 0.0, %v505
  %v507 = vpop.f32.mrb[0].mxu0
  %508 = vmatprep.mubr.f32.mxu0 %v379
  %509 = vmatmul.mubr.f32.gmra.mrb[0].mxu0 %v378
  %v510 = vpop.f32.mrb[0].mxu0
  %v511 = vadd.f32 0.0, %v510
  %v512 = vpop.f32.mrb[0].mxu0
  %513 = vdwg.mxu0
  %514 = vmatprep.subr.mxu0 0.0
  %515 = vmatpush1.msra.mxu0 %v413
  %516 = vmatprep.subr.mxu0 0.0
  %517 = vmatpush1.msra.mxu0 %v414
  %518 = vmatprep.subr.mxu0 0.0
  %519 = vmatpush1.msra.mxu0 %v415
  %520 = vmatprep.subr.mxu0 0.0
  %521 = vmatpush1.msra.mxu0 %v416
  %522 = vmatprep.subr.mxu0 0.0
  %523 = vmatpush1.msra.mxu0 0.0
  %524 = vmatprep.subr.mxu0 0.0
  %525 = vmatpush1.msra.mxu0 0.0
  %526 = vmatprep.subr.mxu0 0.0
  %527 = vmatpush1.msra.mxu0 0.0
  %528 = vmatprep.subr.mxu0 0.0
  %529 = vmatpush1.msra.mxu0 0.0
  %530 = vmatprep.subr.mxu0 0.0
  %531 = vmatpush1.msra.mxu0 0.0
  %532 = vmatprep.subr.mxu0 0.0
  %533 = vmatpush1.msra.mxu0 0.0
  %534 = vmatprep.subr.mxu0 0.0
  %535 = vmatpush1.msra.mxu0 0.0
  %536 = vmatprep.subr.mxu0 0.0
  %537 = vmatpush1.msra.mxu0 0.0
  %538 = vmatprep.subr.mxu0 0.0
  %539 = vmatpush1.msra.mxu0 0.0
  %540 = vmatprep.subr.mxu0 0.0
  %541 = vmatpush1.msra.mxu0 0.0
  %542 = vmatprep.subr.mxu0 0.0
  %543 = vmatpush1.msra.mxu0 0.0
  %544 = vmatprep.subr.mxu0 0.0
  %545 = vmatpush1.msra.mxu0 0.0
  %546 = vmatprep.subr.mxu0 0.0
  %547 = vmatpush1.msra.mxu0 0.0
  %548 = vmatprep.subr.mxu0 0.0
  %549 = vmatpush1.msra.mxu0 0.0
  %550 = vmatprep.subr.mxu0 0.0
  %551 = vmatpush1.msra.mxu0 0.0
  %552 = vmatprep.subr.mxu0 0.0
  %553 = vmatpush1.msra.mxu0 0.0
  %554 = vmatprep.subr.mxu0 0.0
  %555 = vmatpush1.msra.mxu0 0.0
  %556 = vmatprep.subr.mxu0 0.0
  %557 = vmatpush1.msra.mxu0 0.0
  %558 = vmatprep.subr.mxu0 0.0
  %559 = vmatpush1.msra.mxu0 0.0
  %560 = vmatprep.subr.mxu0 0.0
  %561 = vmatpush1.msra.mxu0 0.0
  %562 = vmatprep.subr.mxu0 0.0
  %563 = vmatpush1.msra.mxu0 0.0
  %564 = vmatprep.subr.mxu0 0.0
  %565 = vmatpush1.msra.mxu0 0.0
  %566 = vmatprep.subr.mxu0 0.0
  %567 = vmatpush1.msra.mxu0 0.0
  %568 = vmatprep.subr.mxu0 0.0
  %569 = vmatpush1.msra.mxu0 0.0
  %570 = vmatprep.subr.mxu0 0.0
  %571 = vmatpush1.msra.mxu0 0.0
  %572 = vmatprep.subr.mxu0 0.0
  %573 = vmatpush1.msra.mxu0 0.0
  %574 = vmatprep.subr.mxu0 0.0
  %575 = vmatpush1.msra.mxu0 0.0
  %576 = vmatprep.subr.mxu0 0.0
  %577 = vmatpush1.msra.mxu0 0.0
  %578 = vmatprep.mubr.f32.mxu0 0.0
  %579 = vmatmul.mubr.f32.gmra.mrb[0].mxu0 %v418
  %v580 = vpop.f32.mrb[0].mxu0
  %v581 = vadd.f32 %v496, %v580
  %v582 = vpop.f32.mrb[0].mxu0
  %583 = vmatprep.mubr.f32.mxu0 0.0
  %584 = vmatmul.mubr.f32.gmra.mrb[0].mxu0 %v421
  %v585 = vpop.f32.mrb[0].mxu0
  %v586 = vadd.f32 %v501, %v585
  %v587 = vpop.f32.mrb[0].mxu0
  %588 = vmatprep.mubr.f32.mxu0 0.0
  %589 = vmatmul.mubr.f32.gmra.mrb[0].mxu0 %v424
  %v590 = vpop.f32.mrb[0].mxu0
  %v591 = vadd.f32 %v506, %v590
  %v592 = vpop.f32.mrb[0].mxu0
  %593 = vmatprep.mubr.f32.mxu0 0.0
  %594 = vmatmul.mubr.f32.gmra.mrb[0].mxu0 %v427
  %v595 = vpop.f32.mrb[0].mxu0
  %v596 = vadd.f32 %v511, %v595
  %v597 = vpop.f32.mrb[0].mxu0
  %598 = vdwg.mxu0
  %v599 = vmax.f32 %v581, 0.0
  %v600 = vmax.f32 %v586, 0.0
  %v601 = vmax.f32 %v591, 0.0
  %v602 = vmax.f32 %v596, 0.0
  %607 = vrot.lane.b32.xlu0 %v599, 5
  %v608 = vpop.permute.xlu0 %607
  %609 = vrot.lane.b32.xlu0 %v600, 5
  %v610 = vpop.permute.xlu0 %609
  %611 = vrot.lane.b32.xlu0 %v601, 5
  %v612 = vpop.permute.xlu0 %611
  %613 = vrot.lane.b32.xlu0 %v602, 5
  %v614 = vpop.permute.xlu0 %613
  %619 = vst.msk [vmem:[#allocation2] sm:$0xff] %vm42, %v608
  %620 = vst.msk [vmem:[#allocation2 + $0x8] sm:$0xff] %vm42, %v610
  %621 = vst.msk [vmem:[#allocation2 + $0x10] sm:$0xff] %vm42, %v612
  %622 = vst.msk [vmem:[#allocation2 + $0x18] sm:$0xff] %vm42, %v614
  %v623 = vld [vmem:[#allocation2] sm:$0xff]
  %v624 = vld [vmem:[#allocation2 + $0x8] sm:$0xff]
  %v625 = vld [vmem:[#allocation2 + $0x10] sm:$0xff]
  %v626 = vld [vmem:[#allocation2 + $0x18] sm:$0xff]
  %v627 = vld [vmem:[%s3] sm:$0x1]
  %v628 = vlaneseq
  %v629 = vshrl.u32 %v628, 7
  %v630 = vsub.s32 0, %v629
  %v631 = vrot.slane %v627, %v630
  %v632 = vmul.f32 %v623, %v631
  %v633 = vmul.f32 %v624, %v631
  %v634 = vmul.f32 %v625, %v631
  %v635 = vmul.f32 %v626, %v631
  %636 = vst.msk [vmem:[#allocation3] sm:$0xff] %vm60, %v632
  %637 = vst.msk [vmem:[#allocation3 + $0x8] sm:$0xff] %vm60, %v633
  %638 = vst.msk [vmem:[#allocation3 + $0x10] sm:$0xff] %vm60, %v634
  %639 = vst.msk [vmem:[#allocation3 + $0x18] sm:$0xff] %vm60, %v635
  %v640 = vld [vmem:[#allocation2] sm:$0xff]
  %v641 = vld [vmem:[#allocation2 + $0x8] sm:$0xff]
  %v642 = vld [vmem:[#allocation2 + $0x10] sm:$0xff]
  %v643 = vld [vmem:[#allocation2 + $0x18] sm:$0xff]
  %v644 = vld [vmem:[%s3 + $0x1] sm:$0x1]
  %v645 = vlaneseq
  %v646 = vshrl.u32 %v645, 7
  %v647 = vsub.s32 0, %v646
  %v648 = vrot.slane %v644, %v647
  %650 = vrot.lane.b32.xlu0 %v648, 1
  %v651 = vpop.permute.xlu0 %650
  %v653 = vmul.f32 %v640, %v651
  %v654 = vmul.f32 %v641, %v651
  %v655 = vmul.f32 %v642, %v651
  %v656 = vmul.f32 %v643, %v651
  %661 = vrot.lane.b32.xlu0 %v653, 127
  %v662 = vpop.permute.xlu0 %661
  %663 = vrot.lane.b32.xlu0 %v654, 127
  %v664 = vpop.permute.xlu0 %663
  %665 = vrot.lane.b32.xlu0 %v655, 127
  %v666 = vpop.permute.xlu0 %665
  %667 = vrot.lane.b32.xlu0 %v656, 127
  %v668 = vpop.permute.xlu0 %667
  %673 = vst.msk [vmem:[#allocation3 + $0x20] sm:$0xff] %vm60, %v662
  %674 = vst.msk [vmem:[#allocation3 + $0x28] sm:$0xff] %vm60, %v664
  %675 = vst.msk [vmem:[#allocation3 + $0x30] sm:$0xff] %vm60, %v666
  %676 = vst.msk [vmem:[#allocation3 + $0x38] sm:$0xff] %vm60, %v668
  %v677 = vld [vmem:[#allocation2] sm:$0xff]
  %v678 = vld [vmem:[#allocation2 + $0x8] sm:$0xff]
  %v679 = vld [vmem:[#allocation2 + $0x10] sm:$0xff]
  %v680 = vld [vmem:[#allocation2 + $0x18] sm:$0xff]
  %v681 = vld [vmem:[%s3 + $0x2] sm:$0x1]
  %v682 = vlaneseq
  %v683 = vshrl.u32 %v682, 7
  %v684 = vsub.s32 0, %v683
  %v685 = vrot.slane %v681, %v684
  %687 = vrot.lane.b32.xlu0 %v685, 2
  %v688 = vpop.permute.xlu0 %687
  %v690 = vmul.f32 %v677, %v688
  %v691 = vmul.f32 %v678, %v688
  %v692 = vmul.f32 %v679, %v688
  %v693 = vmul.f32 %v680, %v688
  %698 = vrot.lane.b32.xlu0 %v690, 126
  %v699 = vpop.permute.xlu0 %698
  %700 = vrot.lane.b32.xlu0 %v691, 126
  %v701 = vpop.permute.xlu0 %700
  %702 = vrot.lane.b32.xlu0 %v692, 126
  %v703 = vpop.permute.xlu0 %702
  %704 = vrot.lane.b32.xlu0 %v693, 126
  %v705 = vpop.permute.xlu0 %704
  %710 = vst.msk [vmem:[#allocation3 + $0x40] sm:$0xff] %vm60, %v699
  %711 = vst.msk [vmem:[#allocation3 + $0x48] sm:$0xff] %vm60, %v701
  %712 = vst.msk [vmem:[#allocation3 + $0x50] sm:$0xff] %vm60, %v703
  %713 = vst.msk [vmem:[#allocation3 + $0x58] sm:$0xff] %vm60, %v705
  %v714 = vld [vmem:[#allocation2] sm:$0xff]
  %v715 = vld [vmem:[#allocation2 + $0x8] sm:$0xff]
  %v716 = vld [vmem:[#allocation2 + $0x10] sm:$0xff]
  %v717 = vld [vmem:[#allocation2 + $0x18] sm:$0xff]
  %v718 = vld [vmem:[%s3 + $0x3] sm:$0x1]
  %v719 = vlaneseq
  %v720 = vshrl.u32 %v719, 7
  %v721 = vsub.s32 0, %v720
  %v722 = vrot.slane %v718, %v721
  %724 = vrot.lane.b32.xlu0 %v722, 4
  %v725 = vpop.permute.xlu0 %724
  %v727 = vmul.f32 %v714, %v725
  %v728 = vmul.f32 %v715, %v725
  %v729 = vmul.f32 %v716, %v725
  %v730 = vmul.f32 %v717, %v725
  %735 = vrot.lane.b32.xlu0 %v727, 124
  %v736 = vpop.permute.xlu0 %735
  %737 = vrot.lane.b32.xlu0 %v728, 124
  %v738 = vpop.permute.xlu0 %737
  %739 = vrot.lane.b32.xlu0 %v729, 124
  %v740 = vpop.permute.xlu0 %739
  %741 = vrot.lane.b32.xlu0 %v730, 124
  %v742 = vpop.permute.xlu0 %741
  %747 = vst.msk [vmem:[#allocation3 + $0x60] sm:$0xff] %vm60, %v736
  %748 = vst.msk [vmem:[#allocation3 + $0x68] sm:$0xff] %vm60, %v738
  %749 = vst.msk [vmem:[#allocation3 + $0x70] sm:$0xff] %vm60, %v740
  %750 = vst.msk [vmem:[#allocation3 + $0x78] sm:$0xff] %vm60, %v742
  %v751 = vld [vmem:[#allocation2] sm:$0xff]
  %v752 = vld [vmem:[#allocation2 + $0x8] sm:$0xff]
  %v753 = vld [vmem:[#allocation2 + $0x10] sm:$0xff]
  %v754 = vld [vmem:[#allocation2 + $0x18] sm:$0xff]
  %v755 = vld [vmem:[%s3 + $0x4] sm:$0x1]
  %v756 = vlaneseq
  %v757 = vshrl.u32 %v756, 7
  %v758 = vsub.s32 0, %v757
  %v759 = vrot.slane %v755, %v758
  %761 = vrot.lane.b32.xlu0 %v759, 5
  %v762 = vpop.permute.xlu0 %761
  %v764 = vmul.f32 %v751, %v762
  %v765 = vmul.f32 %v752, %v762
  %v766 = vmul.f32 %v753, %v762
  %v767 = vmul.f32 %v754, %v762
  %772 = vrot.lane.b32.xlu0 %v764, 123
  %v773 = vpop.permute.xlu0 %772
  %774 = vrot.lane.b32.xlu0 %v765, 123
  %v775 = vpop.permute.xlu0 %774
  %776 = vrot.lane.b32.xlu0 %v766, 123
  %v777 = vpop.permute.xlu0 %776
  %778 = vrot.lane.b32.xlu0 %v767, 123
  %v779 = vpop.permute.xlu0 %778
  %784 = vst.msk [vmem:[#allocation3 + $0x80] sm:$0xff] %vm60, %v773
  %785 = vst.msk [vmem:[#allocation3 + $0x88] sm:$0xff] %vm60, %v775
  %786 = vst.msk [vmem:[#allocation3 + $0x90] sm:$0xff] %vm60, %v777
  %787 = vst.msk [vmem:[#allocation3 + $0x98] sm:$0xff] %vm60, %v779
  %v788 = vld [vmem:[#allocation2] sm:$0xff]
  %v789 = vld [vmem:[#allocation2 + $0x8] sm:$0xff]
  %v790 = vld [vmem:[#allocation2 + $0x10] sm:$0xff]
  %v791 = vld [vmem:[#allocation2 + $0x18] sm:$0xff]
  %v792 = vld [vmem:[%s3 + $0x5] sm:$0x1]
  %v793 = vlaneseq
  %v794 = vshrl.u32 %v793, 7
  %v795 = vsub.s32 0, %v794
  %v796 = vrot.slane %v792, %v795
  %798 = vrot.lane.b32.xlu0 %v796, 6
  %v799 = vpop.permute.xlu0 %798
  %v801 = vmul.f32 %v788, %v799
  %v802 = vmul.f32 %v789, %v799
  %v803 = vmul.f32 %v790, %v799
  %v804 = vmul.f32 %v791, %v799
  %809 = vrot.lane.b32.xlu0 %v801, 122
  %v810 = vpop.permute.xlu0 %809
  %811 = vrot.lane.b32.xlu0 %v802, 122
  %v812 = vpop.permute.xlu0 %811
  %813 = vrot.lane.b32.xlu0 %v803, 122
  %v814 = vpop.permute.xlu0 %813
  %815 = vrot.lane.b32.xlu0 %v804, 122
  %v816 = vpop.permute.xlu0 %815
  %821 = vst.msk [vmem:[#allocation3 + $0xa0] sm:$0xff] %vm60, %v810
  %822 = vst.msk [vmem:[#allocation3 + $0xa8] sm:$0xff] %vm60, %v812
  %823 = vst.msk [vmem:[#allocation3 + $0xb0] sm:$0xff] %vm60, %v814
  %824 = vst.msk [vmem:[#allocation3 + $0xb8] sm:$0xff] %vm60, %v816
  %v825 = vld [vmem:[#allocation2] sm:$0xff]
  %v826 = vld [vmem:[#allocation2 + $0x8] sm:$0xff]
  %v827 = vld [vmem:[#allocation2 + $0x10] sm:$0xff]
  %v828 = vld [vmem:[#allocation2 + $0x18] sm:$0xff]
  %v829 = vld [vmem:[%s3 + $0x6] sm:$0x1]
  %v830 = vlaneseq
  %v831 = vshrl.u32 %v830, 7
  %v832 = vsub.s32 0, %v831
  %v833 = vrot.slane %v829, %v832
  %835 = vrot.lane.b32.xlu0 %v833, 8
  %v836 = vpop.permute.xlu0 %835
  %v838 = vmul.f32 %v825, %v836
  %v839 = vmul.f32 %v826, %v836
  %v840 = vmul.f32 %v827, %v836
  %v841 = vmul.f32 %v828, %v836
  %846 = vrot.lane.b32.xlu0 %v838, 120
  %v847 = vpop.permute.xlu0 %846
  %848 = vrot.lane.b32.xlu0 %v839, 120
  %v849 = vpop.permute.xlu0 %848
  %850 = vrot.lane.b32.xlu0 %v840, 120
  %v851 = vpop.permute.xlu0 %850
  %852 = vrot.lane.b32.xlu0 %v841, 120
  %v853 = vpop.permute.xlu0 %852
  %858 = vst.msk [vmem:[#allocation3 + $0xc0] sm:$0xff] %vm60, %v847
  %859 = vst.msk [vmem:[#allocation3 + $0xc8] sm:$0xff] %vm60, %v849
  %860 = vst.msk [vmem:[#allocation3 + $0xd0] sm:$0xff] %vm60, %v851
  %861 = vst.msk [vmem:[#allocation3 + $0xd8] sm:$0xff] %vm60, %v853
  %v862 = vld [vmem:[#allocation2] sm:$0xff]
  %v863 = vld [vmem:[#allocation2 + $0x8] sm:$0xff]
  %v864 = vld [vmem:[#allocation2 + $0x10] sm:$0xff]
  %v865 = vld [vmem:[#allocation2 + $0x18] sm:$0xff]
  %v866 = vld [vmem:[%s3 + $0x7] sm:$0x1]
  %v867 = vlaneseq
  %v868 = vshrl.u32 %v867, 7
  %v869 = vsub.s32 0, %v868
  %v870 = vrot.slane %v866, %v869
  %872 = vrot.lane.b32.xlu0 %v870, 9
  %v873 = vpop.permute.xlu0 %872
  %v875 = vmul.f32 %v862, %v873
  %v876 = vmul.f32 %v863, %v873
  %v877 = vmul.f32 %v864, %v873
  %v878 = vmul.f32 %v865, %v873
  %883 = vrot.lane.b32.xlu0 %v875, 119
  %v884 = vpop.permute.xlu0 %883
  %885 = vrot.lane.b32.xlu0 %v876, 119
  %v886 = vpop.permute.xlu0 %885
  %887 = vrot.lane.b32.xlu0 %v877, 119
  %v888 = vpop.permute.xlu0 %887
  %889 = vrot.lane.b32.xlu0 %v878, 119
  %v890 = vpop.permute.xlu0 %889
  %895 = vst.msk [vmem:[#allocation3 + $0xe0] sm:$0xff] %vm60, %v884
  %896 = vst.msk [vmem:[#allocation3 + $0xe8] sm:$0xff] %vm60, %v886
  %897 = vst.msk [vmem:[#allocation3 + $0xf0] sm:$0xff] %vm60, %v888
  %898 = vst.msk [vmem:[#allocation3 + $0xf8] sm:$0xff] %vm60, %v890
  %v899 = vld [vmem:[#allocation2] sm:$0xff]
  %v900 = vld [vmem:[#allocation2 + $0x8] sm:$0xff]
  %v901 = vld [vmem:[#allocation2 + $0x10] sm:$0xff]
  %v902 = vld [vmem:[#allocation2 + $0x18] sm:$0xff]
  %v903 = vld [vmem:[%s3 + $0x8] sm:$0x1]
  %v904 = vlaneseq
  %v905 = vshrl.u32 %v904, 7
  %v906 = vsub.s32 0, %v905
  %v907 = vrot.slane %v903, %v906
  %909 = vrot.lane.b32.xlu0 %v907, 10
  %v910 = vpop.permute.xlu0 %909
  %v912 = vmul.f32 %v899, %v910
  %v913 = vmul.f32 %v900, %v910
  %v914 = vmul.f32 %v901, %v910
  %v915 = vmul.f32 %v902, %v910
  %920 = vrot.lane.b32.xlu0 %v912, 118
  %v921 = vpop.permute.xlu0 %920
  %922 = vrot.lane.b32.xlu0 %v913, 118
  %v923 = vpop.permute.xlu0 %922
  %924 = vrot.lane.b32.xlu0 %v914, 118
  %v925 = vpop.permute.xlu0 %924
  %926 = vrot.lane.b32.xlu0 %v915, 118
  %v927 = vpop.permute.xlu0 %926
  %932 = vst.msk [vmem:[#allocation3 + $0x100] sm:$0xff] %vm60, %v921
  %933 = vst.msk [vmem:[#allocation3 + $0x108] sm:$0xff] %vm60, %v923
  %934 = vst.msk [vmem:[#allocation3 + $0x110] sm:$0xff] %vm60, %v925
  %935 = vst.msk [vmem:[#allocation3 + $0x118] sm:$0xff] %vm60, %v927
  %v936 = vld [vmem:[%s2] sm:$0xff]
  %v937 = vld [vmem:[%s2 + $0x8] sm:$0xf]
  %v938 = vld [vmem:[%s2 + $0xc] sm:$0xff]
  %v939 = vld [vmem:[%s2 + $0x14] sm:$0xf]
  %v940 = vld [vmem:[%s2 + $0x18] sm:$0xff]
  %v941 = vld [vmem:[%s2 + $0x20] sm:$0xf]
  %v942 = vld [vmem:[%s2 + $0x24] sm:$0xff]
  %v943 = vld [vmem:[%s2 + $0x2c] sm:$0xf]
  %v944 = vunpack.c.l.bf16 %v936
  %v945 = vunpack.c.h.bf16 %v936
  %v946 = vunpack.c.l.bf16 %v937
  %v947 = vunpack.c.l.bf16 %v938
  %v948 = vunpack.c.h.bf16 %v938
  %v949 = vunpack.c.l.bf16 %v939
  %v950 = vunpack.c.l.bf16 %v940
  %v951 = vunpack.c.h.bf16 %v940
  %v952 = vunpack.c.l.bf16 %v941
  %v953 = vunpack.c.l.bf16 %v942
  %v954 = vunpack.c.h.bf16 %v942
  %v955 = vunpack.c.l.bf16 %v943
  %v956 = vld [vmem:[#allocation3] sm:$0xff]
  %v957 = vld [vmem:[#allocation3 + $0x8] sm:$0xff]
  %v958 = vld [vmem:[#allocation3 + $0x10] sm:$0xff]
  %v959 = vld [vmem:[#allocation3 + $0x18] sm:$0xff]
  %v960 = vld [vmem:[#allocation3 + $0x20] sm:$0xff]
  %v961 = vld [vmem:[#allocation3 + $0x28] sm:$0xff]
  %v962 = vld [vmem:[#allocation3 + $0x30] sm:$0xff]
  %v963 = vld [vmem:[#allocation3 + $0x38] sm:$0xff]
  %v964 = vld [vmem:[#allocation3 + $0x40] sm:$0xff]
  %v965 = vld [vmem:[#allocation3 + $0x48] sm:$0xff]
  %v966 = vld [vmem:[#allocation3 + $0x50] sm:$0xff]
  %v967 = vld [vmem:[#allocation3 + $0x58] sm:$0xff]
  %v968 = vld [vmem:[#allocation3 + $0x60] sm:$0xff]
  %v969 = vld [vmem:[#allocation3 + $0x68] sm:$0xff]
  %v970 = vld [vmem:[#allocation3 + $0x70] sm:$0xff]
  %v971 = vld [vmem:[#allocation3 + $0x78] sm:$0xff]
  %v972 = vld [vmem:[#allocation3 + $0x80] sm:$0xff]
  %v973 = vld [vmem:[#allocation3 + $0x88] sm:$0xff]
  %v974 = vld [vmem:[#allocation3 + $0x90] sm:$0xff]
  %v975 = vld [vmem:[#allocation3 + $0x98] sm:$0xff]
  %v976 = vld [vmem:[#allocation3 + $0xa0] sm:$0xff]
  %v977 = vld [vmem:[#allocation3 + $0xa8] sm:$0xff]
  %v978 = vld [vmem:[#allocation3 + $0xb0] sm:$0xff]
  %v979 = vld [vmem:[#allocation3 + $0xb8] sm:$0xff]
  %v980 = vld [vmem:[#allocation3 + $0xc0] sm:$0xff]
  %v981 = vld [vmem:[#allocation3 + $0xc8] sm:$0xff]
  %v982 = vld [vmem:[#allocation3 + $0xd0] sm:$0xff]
  %v983 = vld [vmem:[#allocation3 + $0xd8] sm:$0xff]
  %v984 = vld [vmem:[#allocation3 + $0xe0] sm:$0xff]
  %v985 = vld [vmem:[#allocation3 + $0xe8] sm:$0xff]
  %v986 = vld [vmem:[#allocation3 + $0xf0] sm:$0xff]
  %v987 = vld [vmem:[#allocation3 + $0xf8] sm:$0xff]
  %v988 = vld [vmem:[#allocation3 + $0x100] sm:$0xff]
  %v989 = vld [vmem:[#allocation3 + $0x108] sm:$0xff]
  %v990 = vld [vmem:[#allocation3 + $0x110] sm:$0xff]
  %v991 = vld [vmem:[#allocation3 + $0x118] sm:$0xff]
  %v993 = vsel %vm60, %v946, 0
  %v996 = vsel %vm60, %v949, 0
  %v999 = vsel %vm60, %v952, 0
  %v1002 = vsel %vm60, %v955, 0
  %1004 = vmatprep.subr.mxu0 0.0
  %1005 = vmatpush1.msra.mxu0 %v956
  %1006 = vmatprep.subr.mxu0 0.0
  %1007 = vmatpush1.msra.mxu0 %v957
  %1008 = vmatprep.subr.mxu0 0.0
  %1009 = vmatpush1.msra.mxu0 %v958
  %1010 = vmatprep.subr.mxu0 0.0
  %1011 = vmatpush1.msra.mxu0 %v959
  %1012 = vmatprep.subr.mxu0 0.0
  %1013 = vmatpush1.msra.mxu0 %v960
  %1014 = vmatprep.subr.mxu0 0.0
  %1015 = vmatpush1.msra.mxu0 %v961
  %1016 = vmatprep.subr.mxu0 0.0
  %1017 = vmatpush1.msra.mxu0 %v962
  %1018 = vmatprep.subr.mxu0 0.0
  %1019 = vmatpush1.msra.mxu0 %v963
  %1020 = vmatprep.subr.mxu0 0.0
  %1021 = vmatpush1.msra.mxu0 %v964
  %1022 = vmatprep.subr.mxu0 0.0
  %1023 = vmatpush1.msra.mxu0 %v965
  %1024 = vmatprep.subr.mxu0 0.0
  %1025 = vmatpush1.msra.mxu0 %v966
  %1026 = vmatprep.subr.mxu0 0.0
  %1027 = vmatpush1.msra.mxu0 %v967
  %1028 = vmatprep.subr.mxu0 0.0
  %1029 = vmatpush1.msra.mxu0 %v968
  %1030 = vmatprep.subr.mxu0 0.0
  %1031 = vmatpush1.msra.mxu0 %v969
  %1032 = vmatprep.subr.mxu0 0.0
  %1033 = vmatpush1.msra.mxu0 %v970
  %1034 = vmatprep.subr.mxu0 0.0
  %1035 = vmatpush1.msra.mxu0 %v971
  %1036 = vmatprep.subr.mxu0 0.0
  %1037 = vmatpush1.msra.mxu0 %v972
  %1038 = vmatprep.subr.mxu0 0.0
  %1039 = vmatpush1.msra.mxu0 %v973
  %1040 = vmatprep.subr.mxu0 0.0
  %1041 = vmatpush1.msra.mxu0 %v974
  %1042 = vmatprep.subr.mxu0 0.0
  %1043 = vmatpush1.msra.mxu0 %v975
  %1044 = vmatprep.subr.mxu0 0.0
  %1045 = vmatpush1.msra.mxu0 %v976
  %1046 = vmatprep.subr.mxu0 0.0
  %1047 = vmatpush1.msra.mxu0 %v977
  %1048 = vmatprep.subr.mxu0 0.0
  %1049 = vmatpush1.msra.mxu0 %v978
  %1050 = vmatprep.subr.mxu0 0.0
  %1051 = vmatpush1.msra.mxu0 %v979
  %1052 = vmatprep.subr.mxu0 0.0
  %1053 = vmatpush1.msra.mxu0 %v980
  %1054 = vmatprep.subr.mxu0 0.0
  %1055 = vmatpush1.msra.mxu0 %v981
  %1056 = vmatprep.subr.mxu0 0.0
  %1057 = vmatpush1.msra.mxu0 %v982
  %1058 = vmatprep.subr.mxu0 0.0
  %1059 = vmatpush1.msra.mxu0 %v983
  %1060 = vmatprep.subr.mxu0 0.0
  %1061 = vmatpush1.msra.mxu0 %v984
  %1062 = vmatprep.subr.mxu0 0.0
  %1063 = vmatpush1.msra.mxu0 %v985
  %1064 = vmatprep.subr.mxu0 0.0
  %1065 = vmatpush1.msra.mxu0 %v986
  %1066 = vmatprep.subr.mxu0 0.0
  %1067 = vmatpush1.msra.mxu0 %v987
  %1068 = vmatprep.mubr.f32.mxu0 %v945
  %1069 = vmatmul.mubr.f32.gmra.mrb[0].mxu0 %v944
  %v1070 = vpop.f32.mrb[0].mxu0
  %v1071 = vadd.f32 0.0, %v1070
  %v1072 = vpop.f32.mrb[0].mxu0
  %1073 = vmatprep.mubr.f32.mxu0 %v948
  %1074 = vmatmul.mubr.f32.gmra.mrb[0].mxu0 %v947
  %v1075 = vpop.f32.mrb[0].mxu0
  %v1076 = vadd.f32 0.0, %v1075
  %v1077 = vpop.f32.mrb[0].mxu0
  %1078 = vmatprep.mubr.f32.mxu0 %v951
  %1079 = vmatmul.mubr.f32.gmra.mrb[0].mxu0 %v950
  %v1080 = vpop.f32.mrb[0].mxu0
  %v1081 = vadd.f32 0.0, %v1080
  %v1082 = vpop.f32.mrb[0].mxu0
  %1083 = vmatprep.mubr.f32.mxu0 %v954
  %1084 = vmatmul.mubr.f32.gmra.mrb[0].mxu0 %v953
  %v1085 = vpop.f32.mrb[0].mxu0
  %v1086 = vadd.f32 0.0, %v1085
  %v1087 = vpop.f32.mrb[0].mxu0
  %1088 = vdwg.mxu0
  %1089 = vmatprep.subr.mxu0 0.0
  %1090 = vmatpush1.msra.mxu0 %v988
  %1091 = vmatprep.subr.mxu0 0.0
  %1092 = vmatpush1.msra.mxu0 %v989
  %1093 = vmatprep.subr.mxu0 0.0
  %1094 = vmatpush1.msra.mxu0 %v990
  %1095 = vmatprep.subr.mxu0 0.0
  %1096 = vmatpush1.msra.mxu0 %v991
  %1097 = vmatprep.subr.mxu0 0.0
  %1098 = vmatpush1.msra.mxu0 0.0
  %1099 = vmatprep.subr.mxu0 0.0
  %1100 = vmatpush1.msra.mxu0 0.0
  %1101 = vmatprep.subr.mxu0 0.0
  %1102 = vmatpush1.msra.mxu0 0.0
  %1103 = vmatprep.subr.mxu0 0.0
  %1104 = vmatpush1.msra.mxu0 0.0
  %1105 = vmatprep.subr.mxu0 0.0
  %1106 = vmatpush1.msra.mxu0 0.0
  %1107 = vmatprep.subr.mxu0 0.0
  %1108 = vmatpush1.msra.mxu0 0.0
  %1109 = vmatprep.subr.mxu0 0.0
  %1110 = vmatpush1.msra.mxu0 0.0
  %1111 = vmatprep.subr.mxu0 0.0
  %1112 = vmatpush1.msra.mxu0 0.0
  %1113 = vmatprep.subr.mxu0 0.0
  %1114 = vmatpush1.msra.mxu0 0.0
  %1115 = vmatprep.subr.mxu0 0.0
  %1116 = vmatpush1.msra.mxu0 0.0
  %1117 = vmatprep.subr.mxu0 0.0
  %1118 = vmatpush1.msra.mxu0 0.0
  %1119 = vmatprep.subr.mxu0 0.0
  %1120 = vmatpush1.msra.mxu0 0.0
  %1121 = vmatprep.subr.mxu0 0.0
  %1122 = vmatpush1.msra.mxu0 0.0
  %1123 = vmatprep.subr.mxu0 0.0
  %1124 = vmatpush1.msra.mxu0 0.0
  %1125 = vmatprep.subr.mxu0 0.0
  %1126 = vmatpush1.msra.mxu0 0.0
  %1127 = vmatprep.subr.mxu0 0.0
  %1128 = vmatpush1.msra.mxu0 0.0
  %1129 = vmatprep.subr.mxu0 0.0
  %1130 = vmatpush1.msra.mxu0 0.0
  %1131 = vmatprep.subr.mxu0 0.0
  %1132 = vmatpush1.msra.mxu0 0.0
  %1133 = vmatprep.subr.mxu0 0.0
  %1134 = vmatpush1.msra.mxu0 0.0
  %1135 = vmatprep.subr.mxu0 0.0
  %1136 = vmatpush1.msra.mxu0 0.0
  %1137 = vmatprep.subr.mxu0 0.0
  %1138 = vmatpush1.msra.mxu0 0.0
  %1139 = vmatprep.subr.mxu0 0.0
  %1140 = vmatpush1.msra.mxu0 0.0
  %1141 = vmatprep.subr.mxu0 0.0
  %1142 = vmatpush1.msra.mxu0 0.0
  %1143 = vmatprep.subr.mxu0 0.0
  %1144 = vmatpush1.msra.mxu0 0.0
  %1145 = vmatprep.subr.mxu0 0.0
  %1146 = vmatpush1.msra.mxu0 0.0
  %1147 = vmatprep.subr.mxu0 0.0
  %1148 = vmatpush1.msra.mxu0 0.0
  %1149 = vmatprep.subr.mxu0 0.0
  %1150 = vmatpush1.msra.mxu0 0.0
  %1151 = vmatprep.subr.mxu0 0.0
  %1152 = vmatpush1.msra.mxu0 0.0
  %1153 = vmatprep.mubr.f32.mxu0 0.0
  %1154 = vmatmul.mubr.f32.gmra.mrb[0].mxu0 %v993
  %v1155 = vpop.f32.mrb[0].mxu0
  %v1156 = vadd.f32 %v1071, %v1155
  %v1157 = vpop.f32.mrb[0].mxu0
  %1158 = vmatprep.mubr.f32.mxu0 0.0
  %1159 = vmatmul.mubr.f32.gmra.mrb[0].mxu0 %v996
  %v1160 = vpop.f32.mrb[0].mxu0
  %v1161 = vadd.f32 %v1076, %v1160
  %v1162 = vpop.f32.mrb[0].mxu0
  %1163 = vmatprep.mubr.f32.mxu0 0.0
  %1164 = vmatmul.mubr.f32.gmra.mrb[0].mxu0 %v999
  %v1165 = vpop.f32.mrb[0].mxu0
  %v1166 = vadd.f32 %v1081, %v1165
  %v1167 = vpop.f32.mrb[0].mxu0
  %1168 = vmatprep.mubr.f32.mxu0 0.0
  %1169 = vmatmul.mubr.f32.gmra.mrb[0].mxu0 %v1002
  %v1170 = vpop.f32.mrb[0].mxu0
  %v1171 = vadd.f32 %v1086, %v1170
  %v1172 = vpop.f32.mrb[0].mxu0
  %1173 = vdwg.mxu0
  %v1174 = vadd.f32 %v17, %v1156
  %v1175 = vadd.f32 %v18, %v1161
  %v1176 = vadd.f32 %v19, %v1166
  %v1177 = vadd.f32 %v20, %v1171
  %1178 = vst.msk [vmem:[%s4] sm:$0xff] %vm60, %v1174
  %1179 = vst.msk [vmem:[%s4 + $0x8] sm:$0xff] %vm60, %v1175
  %1180 = vst.msk [vmem:[%s4 + $0x10] sm:$0xff] %vm60, %v1176
  %1181 = vst.msk [vmem:[%s4 + $0x18] sm:$0xff] %vm60, %v1177
  // Predicated region
  $region18: #{resnet_generator_forward.10} parent=0 // pred_check
    _
  $region19: #{resnet_generator_forward.10} parent=0 // pred_check_branch
    %1183 = sbr.rel (0) target = $region21
  $region20: #{resnet_generator_forward.10} parent=0 // pred_region
    _
  $region21: #{resnet_generator_forward.10} parent=0 // pred_fallthru
    _
  // Predicated region
  $region22: #{resnet_generator_forward.10} parent=0 // pred_check
    _
  $region23: #{resnet_generator_forward.10} parent=0 // pred_check_branch
    %1185 = sbr.rel (0) target = $region25
  $region24: #{resnet_generator_forward.10} parent=0 // pred_region
    _
  $region25: #{resnet_generator_forward.10} parent=0 // pred_fallthru
    _

// kernel: resnet_generator_forward.13
$region0: #{resnet_generator_forward.13}
  #allocation0 [shape = 'u32[]', space=smem, size = 0x4, offset = 0x4, fixed_abs, tag = 'smem constant byte address 0x4 - core index']
  #allocation1 [shape = 'u32[144,128]{1,0:T(1,128)}', space=vmem, size = 0x12000, scoped, tag = 'internal scratch']
  #allocation2 [shape = 'f32[8,614]{1,0:T(8,128)}', space=vmem, size = 0x5000, scoped, tag = 'scratch operand']
  #allocation3 [shape = 'f32[392,512]{1,0:T(8,128)}', space=vmem, size = 0xc4000, scoped, tag = 'scratch operand']
  %s0 = inlined_call_operand.vmem [shape: bf16[8,512], index: 0, kind: input, shape index: {}]
  %s1 = inlined_call_operand.vmem [shape: bf16[8,392], index: 1, kind: input, shape index: {}]
  %s2 = inlined_call_operand.vmem [shape: f32[8,1], index: 2, kind: input, shape index: {}]
  %s3 = inlined_call_operand.vmem [shape: f32[49,512], index: 3, kind: input, shape index: {}]
  %s4 = inlined_call_operand.vmem [shape: f32[8,512], index: 4, kind: output, shape index: {}]
  %s5 = sld [smem:[#allocation0]]
  $region26: #{resnet_generator_forward.13} parent=0
    _
  %s7 = ssub.s32 1, %s5
  %s8 = scalar_select 0, %s7, %s5
  // Predicated region
  $region2: #{resnet_generator_forward.13} parent=0 // pred_check
    _
  $region3: #{resnet_generator_forward.13} parent=0 // pred_check_branch
    %10 = sbr.rel (0) target = $region5
  $region4: #{resnet_generator_forward.13} parent=0 // pred_region
    _
  $region5: #{resnet_generator_forward.13} parent=0 // pred_fallthru
    _
  // Predicated region
  $region6: #{resnet_generator_forward.13} parent=0 // pred_check
    _
  $region7: #{resnet_generator_forward.13} parent=0 // pred_check_branch
    %12 = sbr.rel (0) target = $region9
  $region8: #{resnet_generator_forward.13} parent=0 // pred_region
    _
  $region9: #{resnet_generator_forward.13} parent=0 // pred_fallthru
    _
  // Predicated region
  $region10: #{resnet_generator_forward.13} parent=0 // pred_check
    _
  $region11: #{resnet_generator_forward.13} parent=0 // pred_check_branch
    %14 = sbr.rel (0) target = $region13
  $region12: #{resnet_generator_forward.13} parent=0 // pred_region
    _
  $region13: #{resnet_generator_forward.13} parent=0 // pred_fallthru
    _
  // Predicated region
  $region14: #{resnet_generator_forward.13} parent=0 // pred_check
    _
  $region15: #{resnet_generator_forward.13} parent=0 // pred_check_branch
    %16 = sbr.rel (0) target = $region17
  $region16: #{resnet_generator_forward.13} parent=0 // pred_region
    _
  $region17: #{resnet_generator_forward.13} parent=0 // pred_fallthru
    _
  %17 = vst [vmem:[#allocation2] sm:$0xff] 0.0
  %18 = vst [vmem:[#allocation2 + $0x8] sm:$0xff] 0.0
  %19 = vst [vmem:[#allocation2 + $0x10] sm:$0xff] 0.0
  %20 = vst [vmem:[#allocation2 + $0x18] sm:$0xff] 0.0
  %vm21 = vcmask 834560
  %22 = vst.msk [vmem:[#allocation2 + $0x20] sm:$0xff] %vm21, 0.0
  %v23 = vld [vmem:[%s0] sm:$0xff]
  %v24 = vld [vmem:[%s0 + $0x8] sm:$0xff]
  %v25 = vunpack.c.l.bf16 %v23
  %v26 = vunpack.c.h.bf16 %v23
  %v27 = vunpack.c.l.bf16 %v24
  %v28 = vunpack.c.h.bf16 %v24
  %33 = vrot.lane.b32.xlu0 %v25, 51
  %v34 = vpop.permute.xlu0 %33
  %35 = vrot.lane.b32.xlu0 %v26, 51
  %v36 = vpop.permute.xlu0 %35
  %37 = vrot.lane.b32.xlu0 %v27, 51
  %v38 = vpop.permute.xlu0 %37
  %39 = vrot.lane.b32.xlu0 %v28, 51
  %v40 = vpop.permute.xlu0 %39
  %vm41 = vcmask 416768
  %v42 = vsel %vm41, %v34, %v36
  %v43 = vsel %vm41, %v36, %v38
  %v44 = vsel %vm41, %v38, %v40
  %vm50 = vcmask 1047960
  %51 = vst.msk [vmem:[#allocation2] sm:$0xff] %vm50, %v34
  %52 = vst [vmem:[#allocation2 + $0x8] sm:$0xff] %v42
  %53 = vst [vmem:[#allocation2 + $0x10] sm:$0xff] %v43
  %54 = vst [vmem:[#allocation2 + $0x18] sm:$0xff] %v44
  %55 = vst.msk [vmem:[#allocation2 + $0x20] sm:$0xff] %vm41, %v40
  %v56 = vld [vmem:[#allocation2] sm:$0xff]
  %v57 = vld [vmem:[#allocation2 + $0x8] sm:$0xff]
  %v58 = vld [vmem:[#allocation2 + $0x10] sm:$0xff]
  %v59 = vld [vmem:[#allocation2 + $0x18] sm:$0xff]
  %v60 = vld [vmem:[%s3] ss:$8 sm:$0xf]
  %v62 = vlaneseq
  %v63 = vshrl.u32 %v62, 7
  %v64 = vsub.s32 0, %v63
  %v65 = vrot.slane %v60, %v64
  %v66 = vlaneseq
  %v67 = vshrl.u32 %v66, 7
  %v68 = vsub.s32 1, %v67
  %v69 = vrot.slane %v60, %v68
  %v70 = vlaneseq
  %v71 = vshrl.u32 %v70, 7
  %v72 = vsub.s32 2, %v71
  %v73 = vrot.slane %v60, %v72
  %v74 = vlaneseq
  %v75 = vshrl.u32 %v74, 7
  %v76 = vsub.s32 3, %v75
  %v77 = vrot.slane %v60, %v76
  %v82 = vmul.f32 %v56, %v65
  %v83 = vmul.f32 %v57, %v69
  %v84 = vmul.f32 %v58, %v73
  %v85 = vmul.f32 %v59, %v77
  %86 = vst [vmem:[#allocation3] sm:$0xff] %v82
  %87 = vst [vmem:[#allocation3 + $0x8] sm:$0xff] %v83
  %88 = vst [vmem:[#allocation3 + $0x10] sm:$0xff] %v84
  %89 = vst [vmem:[#allocation3 + $0x18] sm:$0xff] %v85
  %v90 = vld [vmem:[#allocation2] sm:$0xff]
  %v91 = vld [vmem:[#allocation2 + $0x8] sm:$0xff]
  %v92 = vld [vmem:[#allocation2 + $0x10] sm:$0xff]
  %v93 = vld [vmem:[#allocation2 + $0x18] sm:$0xff]
  %v94 = vld [vmem:[#allocation2 + $0x20] sm:$0xff]
  %s95 = scalar_lea.vmem %s3, 1
  %v96 = vld [vmem:[%s95] ss:$8 sm:$0xf]
  %v98 = vlaneseq
  %v99 = vshrl.u32 %v98, 7
  %v100 = vsub.s32 0, %v99
  %v101 = vrot.slane %v96, %v100
  %v102 = vlaneseq
  %v103 = vshrl.u32 %v102, 7
  %v104 = vsub.s32 1, %v103
  %v105 = vrot.slane %v96, %v104
  %v106 = vlaneseq
  %v107 = vshrl.u32 %v106, 7
  %v108 = vsub.s32 2, %v107
  %v109 = vrot.slane %v96, %v108
  %v110 = vlaneseq
  %v111 = vshrl.u32 %v110, 7
  %v112 = vsub.s32 3, %v111
  %v113 = vrot.slane %v96, %v112
  %114 = vrot.lane.b32.xlu0 %v101, 1
  %v115 = vpop.permute.xlu0 %114
  %116 = vrot.lane.b32.xlu0 %v105, 1
  %v117 = vpop.permute.xlu0 %116
  %118 = vrot.lane.b32.xlu0 %v109, 1
  %v119 = vpop.permute.xlu0 %118
  %120 = vrot.lane.b32.xlu0 %v113, 1
  %v121 = vpop.permute.xlu0 %120
  %vm122 = vcmask 7168
  %v123 = vsel %vm122, %v115, %v117
  %v124 = vsel %vm122, %v117, %v119
  %v125 = vsel %vm122, %v119, %v121
  %v131 = vmul.f32 %v90, %v115
  %v132 = vmul.f32 %v91, %v123
  %v133 = vmul.f32 %v92, %v124
  %v134 = vmul.f32 %v93, %v125
  %v135 = vmul.f32 %v94, %v121
  %141 = vrot.lane.b32.xlu0 %v131, 127
  %v142 = vpop.permute.xlu0 %141
  %143 = vrot.lane.b32.xlu0 %v132, 127
  %v144 = vpop.permute.xlu0 %143
  %145 = vrot.lane.b32.xlu0 %v133, 127
  %v146 = vpop.permute.xlu0 %145
  %147 = vrot.lane.b32.xlu0 %v134, 127
  %v148 = vpop.permute.xlu0 %147
  %149 = vrot.lane.b32.xlu0 %v135, 127
  %v150 = vpop.permute.xlu0 %149
  %vm151 = vcmask 1039360
  %v152 = vsel %vm151, %v142, %v144
  %v153 = vsel %vm151, %v144, %v146
  %v154 = vsel %vm151, %v146, %v148
  %v155 = vsel %vm151, %v148, %v150
  %160 = vst [vmem:[#allocation3 + $0x20] sm:$0xff] %v152
  %161 = vst [vmem:[#allocation3 + $0x28] sm:$0xff] %v153
  %162 = vst [vmem:[#allocation3 + $0x30] sm:$0xff] %v154
  %163 = vst [vmem:[#allocation3 + $0x38] sm:$0xff] %v155
  %v164 = vld [vmem:[#allocation2] sm:$0xff]
  %v165 = vld [vmem:[#allocation2 + $0x8] sm:$0xff]
  %v166 = vld [vmem:[#allocation2 + $0x10] sm:$0xff]
  %v167 = vld [vmem:[#allocation2 + $0x18] sm:$0xff]
  %v168 = vld [vmem:[#allocation2 + $0x20] sm:$0xff]
  %s169 = scalar_lea.vmem %s3, 2
  %v170 = vld [vmem:[%s169] ss:$8 sm:$0xf]
  %v172 = vlaneseq
  %v173 = vshrl.u32 %v172, 7
  %v174 = vsub.s32 0, %v173
  %v175 = vrot.slane %v170, %v174
  %v176 = vlaneseq
  %v177 = vshrl.u32 %v176, 7
  %v178 = vsub.s32 1, %v177
  %v179 = vrot.slane %v170, %v178
  %v180 = vlaneseq
  %v181 = vshrl.u32 %v180, 7
  %v182 = vsub.s32 2, %v181
  %v183 = vrot.slane %v170, %v182
  %v184 = vlaneseq
  %v185 = vshrl.u32 %v184, 7
  %v186 = vsub.s32 3, %v185
  %v187 = vrot.slane %v170, %v186
  %188 = vrot.lane.b32.xlu0 %v175, 2
  %v189 = vpop.permute.xlu0 %188
  %190 = vrot.lane.b32.xlu0 %v179, 2
  %v191 = vpop.permute.xlu0 %190
  %192 = vrot.lane.b32.xlu0 %v183, 2
  %v193 = vpop.permute.xlu0 %192
  %194 = vrot.lane.b32.xlu0 %v187, 2
  %v195 = vpop.permute.xlu0 %194
  %vm196 = vcmask 15360
  %v197 = vsel %vm196, %v189, %v191
  %v198 = vsel %vm196, %v191, %v193
  %v199 = vsel %vm196, %v193, %v195
  %v205 = vmul.f32 %v164, %v189
  %v206 = vmul.f32 %v165, %v197
  %v207 = vmul.f32 %v166, %v198
  %v208 = vmul.f32 %v167, %v199
  %v209 = vmul.f32 %v168, %v195
  %215 = vrot.lane.b32.xlu0 %v205, 126
  %v216 = vpop.permute.xlu0 %215
  %217 = vrot.lane.b32.xlu0 %v206, 126
  %v218 = vpop.permute.xlu0 %217
  %219 = vrot.lane.b32.xlu0 %v207, 126
  %v220 = vpop.permute.xlu0 %219
  %221 = vrot.lane.b32.xlu0 %v208, 126
  %v222 = vpop.permute.xlu0 %221
  %223 = vrot.lane.b32.xlu0 %v209, 126
  %v224 = vpop.permute.xlu0 %223
  %vm225 = vcmask 1031168
  %v226 = vsel %vm225, %v216, %v218
  %v227 = vsel %vm225, %v218, %v220
  %v228 = vsel %vm225, %v220, %v222
  %v229 = vsel %vm225, %v222, %v224
  %234 = vst [vmem:[#allocation3 + $0x40] sm:$0xff] %v226
  %235 = vst [vmem:[#allocation3 + $0x48] sm:$0xff] %v227
  %236 = vst [vmem:[#allocation3 + $0x50] sm:$0xff] %v228
  %237 = vst [vmem:[#allocation3 + $0x58] sm:$0xff] %v229
  %v238 = vld [vmem:[#allocation2] sm:$0xff]
  %v239 = vld [vmem:[#allocation2 + $0x8] sm:$0xff]
  %v240 = vld [vmem:[#allocation2 + $0x10] sm:$0xff]
  %v241 = vld [vmem:[#allocation2 + $0x18] sm:$0xff]
  %v242 = vld [vmem:[#allocation2 + $0x20] sm:$0xff]
  %s243 = scalar_lea.vmem %s3, 3
  %v244 = vld [vmem:[%s243] ss:$8 sm:$0xf]
  %v246 = vlaneseq
  %v247 = vshrl.u32 %v246, 7
  %v248 = vsub.s32 0, %v247
  %v249 = vrot.slane %v244, %v248
  %v250 = vlaneseq
  %v251 = vshrl.u32 %v250, 7
  %v252 = vsub.s32 1, %v251
  %v253 = vrot.slane %v244, %v252
  %v254 = vlaneseq
  %v255 = vshrl.u32 %v254, 7
  %v256 = vsub.s32 2, %v255
  %v257 = vrot.slane %v244, %v256
  %v258 = vlaneseq
  %v259 = vshrl.u32 %v258, 7
  %v260 = vsub.s32 3, %v259
  %v261 = vrot.slane %v244, %v260
  %262 = vrot.lane.b32.xlu0 %v249, 3
  %v263 = vpop.permute.xlu0 %262
  %264 = vrot.lane.b32.xlu0 %v253, 3
  %v265 = vpop.permute.xlu0 %264
  %266 = vrot.lane.b32.xlu0 %v257, 3
  %v267 = vpop.permute.xlu0 %266
  %268 = vrot.lane.b32.xlu0 %v261, 3
  %v269 = vpop.permute.xlu0 %268
  %vm270 = vcmask 23552
  %v271 = vsel %vm270, %v263, %v265
  %v272 = vsel %vm270, %v265, %v267
  %v273 = vsel %vm270, %v267, %v269
  %v279 = vmul.f32 %v238, %v263
  %v280 = vmul.f32 %v239, %v271
  %v281 = vmul.f32 %v240, %v272
  %v282 = vmul.f32 %v241, %v273
  %v283 = vmul.f32 %v242, %v269
  %289 = vrot.lane.b32.xlu0 %v279, 125
  %v290 = vpop.permute.xlu0 %289
  %291 = vrot.lane.b32.xlu0 %v280, 125
  %v292 = vpop.permute.xlu0 %291
  %293 = vrot.lane.b32.xlu0 %v281, 125
  %v294 = vpop.permute.xlu0 %293
  %295 = vrot.lane.b32.xlu0 %v282, 125
  %v296 = vpop.permute.xlu0 %295
  %297 = vrot.lane.b32.xlu0 %v283, 125
  %v298 = vpop.permute.xlu0 %297
  %vm299 = vcmask 1022976
  %v300 = vsel %vm299, %v290, %v292
  %v301 = vsel %vm299, %v292, %v294
  %v302 = vsel %vm299, %v294, %v296
  %v303 = vsel %vm299, %v296, %v298
  %308 = vst [vmem:[#allocation3 + $0x60] sm:$0xff] %v300
  %309 = vst [vmem:[#allocation3 + $0x68] sm:$0xff] %v301
  %310 = vst [vmem:[#allocation3 + $0x70] sm:$0xff] %v302
  %311 = vst [vmem:[#allocation3 + $0x78] sm:$0xff] %v303
  %v312 = vld [vmem:[#allocation2] sm:$0xff]
  %v313 = vld [vmem:[#allocation2 + $0x8] sm:$0xff]
  %v314 = vld [vmem:[#allocation2 + $0x10] sm:$0xff]
  %v315 = vld [vmem:[#allocation2 + $0x18] sm:$0xff]
  %v316 = vld [vmem:[#allocation2 + $0x20] sm:$0xff]
  %s317 = scalar_lea.vmem %s3, 4
  %v318 = vld [vmem:[%s317] ss:$8 sm:$0xf]
  %v320 = vlaneseq
  %v321 = vshrl.u32 %v320, 7
  %v322 = vsub.s32 0, %v321
  %v323 = vrot.slane %v318, %v322
  %v324 = vlaneseq
  %v325 = vshrl.u32 %v324, 7
  %v326 = vsub.s32 1, %v325
  %v327 = vrot.slane %v318, %v326
  %v328 = vlaneseq
  %v329 = vshrl.u32 %v328, 7
  %v330 = vsub.s32 2, %v329
  %v331 = vrot.slane %v318, %v330
  %v332 = vlaneseq
  %v333 = vshrl.u32 %v332, 7
  %v334 = vsub.s32 3, %v333
  %v335 = vrot.slane %v318, %v334
  %336 = vrot.lane.b32.xlu0 %v323, 4
  %v337 = vpop.permute.xlu0 %336
  %338 = vrot.lane.b32.xlu0 %v327, 4
  %v339 = vpop.permute.xlu0 %338
  %340 = vrot.lane.b32.xlu0 %v331, 4
  %v341 = vpop.permute.xlu0 %340
  %342 = vrot.lane.b32.xlu0 %v335, 4
  %v343 = vpop.permute.xlu0 %342
  %vm344 = vcmask 31744
  %v345 = vsel %vm344, %v337, %v339
  %v346 = vsel %vm344, %v339, %v341
  %v347 = vsel %vm344, %v341, %v343
  %v353 = vmul.f32 %v312, %v337
  %v354 = vmul.f32 %v313, %v345
  %v355 = vmul.f32 %v314, %v346
  %v356 = vmul.f32 %v315, %v347
  %v357 = vmul.f32 %v316, %v343
  %363 = vrot.lane.b32.xlu0 %v353, 124
  %v364 = vpop.permute.xlu0 %363
  %365 = vrot.lane.b32.xlu0 %v354, 124
  %v366 = vpop.permute.xlu0 %365
  %367 = vrot.lane.b32.xlu0 %v355, 124
  %v368 = vpop.permute.xlu0 %367
  %369 = vrot.lane.b32.xlu0 %v356, 124
  %v370 = vpop.permute.xlu0 %369
  %371 = vrot.lane.b32.xlu0 %v357, 124
  %v372 = vpop.permute.xlu0 %371
  %vm373 = vcmask 1014784
  %v374 = vsel %vm373, %v364, %v366
  %v375 = vsel %vm373, %v366, %v368
  %v376 = vsel %vm373, %v368, %v370
  %v377 = vsel %vm373, %v370, %v372
  %382 = vst [vmem:[#allocation3 + $0x80] sm:$0xff] %v374
  %383 = vst [vmem:[#allocation3 + $0x88] sm:$0xff] %v375
  %384 = vst [vmem:[#allocation3 + $0x90] sm:$0xff] %v376
  %385 = vst [vmem:[#allocation3 + $0x98] sm:$0xff] %v377
  %v386 = vld [vmem:[#allocation2] sm:$0xff]
  %v387 = vld [vmem:[#allocation2 + $0x8] sm:$0xff]
  %v388 = vld [vmem:[#allocation2 + $0x10] sm:$0xff]
  %v389 = vld [vmem:[#allocation2 + $0x18] sm:$0xff]
  %v390 = vld [vmem:[#allocation2 + $0x20] sm:$0xff]
  %s391 = scalar_lea.vmem %s3, 5
  %v392 = vld [vmem:[%s391] ss:$8 sm:$0xf]
  %v394 = vlaneseq
  %v395 = vshrl.u32 %v394, 7
  %v396 = vsub.s32 0, %v395
  %v397 = vrot.slane %v392, %v396
  %v398 = vlaneseq
  %v399 = vshrl.u32 %v398, 7
  %v400 = vsub.s32 1, %v399
  %v401 = vrot.slane %v392, %v400
  %v402 = vlaneseq
  %v403 = vshrl.u32 %v402, 7
  %v404 = vsub.s32 2, %v403
  %v405 = vrot.slane %v392, %v404
  %v406 = vlaneseq
  %v407 = vshrl.u32 %v406, 7
  %v408 = vsub.s32 3, %v407
  %v409 = vrot.slane %v392, %v408
  %410 = vrot.lane.b32.xlu0 %v397, 5
  %v411 = vpop.permute.xlu0 %410
  %412 = vrot.lane.b32.xlu0 %v401, 5
  %v413 = vpop.permute.xlu0 %412
  %414 = vrot.lane.b32.xlu0 %v405, 5
  %v415 = vpop.permute.xlu0 %414
  %416 = vrot.lane.b32.xlu0 %v409, 5
  %v417 = vpop.permute.xlu0 %416
  %vm418 = vcmask 39936
  %v419 = vsel %vm418, %v411, %v413
  %v420 = vsel %vm418, %v413, %v415
  %v421 = vsel %vm418, %v415, %v417
  %v427 = vmul.f32 %v386, %v411
  %v428 = vmul.f32 %v387, %v419
  %v429 = vmul.f32 %v388, %v420
  %v430 = vmul.f32 %v389, %v421
  %v431 = vmul.f32 %v390, %v417
  %437 = vrot.lane.b32.xlu0 %v427, 123
  %v438 = vpop.permute.xlu0 %437
  %439 = vrot.lane.b32.xlu0 %v428, 123
  %v440 = vpop.permute.xlu0 %439
  %441 = vrot.lane.b32.xlu0 %v429, 123
  %v442 = vpop.permute.xlu0 %441
  %443 = vrot.lane.b32.xlu0 %v430, 123
  %v444 = vpop.permute.xlu0 %443
  %445 = vrot.lane.b32.xlu0 %v431, 123
  %v446 = vpop.permute.xlu0 %445
  %vm447 = vcmask 1006592
  %v448 = vsel %vm447, %v438, %v440
  %v449 = vsel %vm447, %v440, %v442
  %v450 = vsel %vm447, %v442, %v444
  %v451 = vsel %vm447, %v444, %v446
  %456 = vst [vmem:[#allocation3 + $0xa0] sm:$0xff] %v448
  %457 = vst [vmem:[#allocation3 + $0xa8] sm:$0xff] %v449
  %458 = vst [vmem:[#allocation3 + $0xb0] sm:$0xff] %v450
  %459 = vst [vmem:[#allocation3 + $0xb8] sm:$0xff] %v451
  %v460 = vld [vmem:[#allocation2] sm:$0xff]
  %v461 = vld [vmem:[#allocation2 + $0x8] sm:$0xff]
  %v462 = vld [vmem:[#allocation2 + $0x10] sm:$0xff]
  %v463 = vld [vmem:[#allocation2 + $0x18] sm:$0xff]
  %v464 = vld [vmem:[#allocation2 + $0x20] sm:$0xff]
  %s465 = scalar_lea.vmem %s3, 6
  %v466 = vld [vmem:[%s465] ss:$8 sm:$0xf]
  %v468 = vlaneseq
  %v469 = vshrl.u32 %v468, 7
  %v470 = vsub.s32 0, %v469
  %v471 = vrot.slane %v466, %v470
  %v472 = vlaneseq
  %v473 = vshrl.u32 %v472, 7
  %v474 = vsub.s32 1, %v473
  %v475 = vrot.slane %v466, %v474
  %v476 = vlaneseq
  %v477 = vshrl.u32 %v476, 7
  %v478 = vsub.s32 2, %v477
  %v479 = vrot.slane %v466, %v478
  %v480 = vlaneseq
  %v481 = vshrl.u32 %v480, 7
  %v482 = vsub.s32 3, %v481
  %v483 = vrot.slane %v466, %v482
  %484 = vrot.lane.b32.xlu0 %v471, 6
  %v485 = vpop.permute.xlu0 %484
  %486 = vrot.lane.b32.xlu0 %v475, 6
  %v487 = vpop.permute.xlu0 %486
  %488 = vrot.lane.b32.xlu0 %v479, 6
  %v489 = vpop.permute.xlu0 %488
  %490 = vrot.lane.b32.xlu0 %v483, 6
  %v491 = vpop.permute.xlu0 %490
  %vm492 = vcmask 48128
  %v493 = vsel %vm492, %v485, %v487
  %v494 = vsel %vm492, %v487, %v489
  %v495 = vsel %vm492, %v489, %v491
  %v501 = vmul.f32 %v460, %v485
  %v502 = vmul.f32 %v461, %v493
  %v503 = vmul.f32 %v462, %v494
  %v504 = vmul.f32 %v463, %v495
  %v505 = vmul.f32 %v464, %v491
  %511 = vrot.lane.b32.xlu0 %v501, 122
  %v512 = vpop.permute.xlu0 %511
  %513 = vrot.lane.b32.xlu0 %v502, 122
  %v514 = vpop.permute.xlu0 %513
  %515 = vrot.lane.b32.xlu0 %v503, 122
  %v516 = vpop.permute.xlu0 %515
  %517 = vrot.lane.b32.xlu0 %v504, 122
  %v518 = vpop.permute.xlu0 %517
  %519 = vrot.lane.b32.xlu0 %v505, 122
  %v520 = vpop.permute.xlu0 %519
  %vm521 = vcmask 998400
  %v522 = vsel %vm521, %v512, %v514
  %v523 = vsel %vm521, %v514, %v516
  %v524 = vsel %vm521, %v516, %v518
  %v525 = vsel %vm521, %v518, %v520
  %530 = vst [vmem:[#allocation3 + $0xc0] sm:$0xff] %v522
  %531 = vst [vmem:[#allocation3 + $0xc8] sm:$0xff] %v523
  %532 = vst [vmem:[#allocation3 + $0xd0] sm:$0xff] %v524
  %533 = vst [vmem:[#allocation3 + $0xd8] sm:$0xff] %v525
  %v534 = vld [vmem:[#allocation2] sm:$0xff]
  %v535 = vld [vmem:[#allocation2 + $0x8] sm:$0xff]
  %v536 = vld [vmem:[#allocation2 + $0x10] sm:$0xff]
  %v537 = vld [vmem:[#allocation2 + $0x18] sm:$0xff]
  %v538 = vld [vmem:[#allocation2 + $0x20] sm:$0xff]
  %s539 = scalar_lea.vmem %s3, 7
  %v540 = vld [vmem:[%s539] ss:$8 sm:$0xf]
  %v542 = vlaneseq
  %v543 = vshrl.u32 %v542, 7
  %v544 = vsub.s32 0, %v543
  %v545 = vrot.slane %v540, %v544
  %v546 = vlaneseq
  %v547 = vshrl.u32 %v546, 7
  %v548 = vsub.s32 1, %v547
  %v549 = vrot.slane %v540, %v548
  %v550 = vlaneseq
  %v551 = vshrl.u32 %v550, 7
  %v552 = vsub.s32 2, %v551
  %v553 = vrot.slane %v540, %v552
  %v554 = vlaneseq
  %v555 = vshrl.u32 %v554, 7
  %v556 = vsub.s32 3, %v555
  %v557 = vrot.slane %v540, %v556
  %558 = vrot.lane.b32.xlu0 %v545, 16
  %v559 = vpop.permute.xlu0 %558
  %560 = vrot.lane.b32.xlu0 %v549, 16
  %v561 = vpop.permute.xlu0 %560
  %562 = vrot.lane.b32.xlu0 %v553, 16
  %v563 = vpop.permute.xlu0 %562
  %564 = vrot.lane.b32.xlu0 %v557, 16
  %v565 = vpop.permute.xlu0 %564
  %vm566 = vcmask 130048
  %v567 = vsel %vm566, %v559, %v561
  %v568 = vsel %vm566, %v561, %v563
  %v569 = vsel %vm566, %v563, %v565
  %v575 = vmul.f32 %v534, %v559
  %v576 = vmul.f32 %v535, %v567
  %v577 = vmul.f32 %v536, %v568
  %v578 = vmul.f32 %v537, %v569
  %v579 = vmul.f32 %v538, %v565
  %585 = vrot.lane.b32.xlu0 %v575, 112
  %v586 = vpop.permute.xlu0 %585
  %587 = vrot.lane.b32.xlu0 %v576, 112
  %v588 = vpop.permute.xlu0 %587
  %589 = vrot.lane.b32.xlu0 %v577, 112
  %v590 = vpop.permute.xlu0 %589
  %591 = vrot.lane.b32.xlu0 %v578, 112
  %v592 = vpop.permute.xlu0 %591
  %593 = vrot.lane.b32.xlu0 %v579, 112
  %v594 = vpop.permute.xlu0 %593
  %vm595 = vcmask 916480
  %v596 = vsel %vm595, %v586, %v588
  %v597 = vsel %vm595, %v588, %v590
  %v598 = vsel %vm595, %v590, %v592
  %v599 = vsel %vm595, %v592, %v594
  %604 = vst [vmem:[#allocation3 + $0xe0] sm:$0xff] %v596
  %605 = vst [vmem:[#allocation3 + $0xe8] sm:$0xff] %v597
  %606 = vst [vmem:[#allocation3 + $0xf0] sm:$0xff] %v598
  %607 = vst [vmem:[#allocation3 + $0xf8] sm:$0xff] %v599
  %v608 = vld [vmem:[#allocation2] sm:$0xff]
  %v609 = vld [vmem:[#allocation2 + $0x8] sm:$0xff]
  %v610 = vld [vmem:[#allocation2 + $0x10] sm:$0xff]
  %v611 = vld [vmem:[#allocation2 + $0x18] sm:$0xff]
  %v612 = vld [vmem:[#allocation2 + $0x20] sm:$0xff]
  %s613 = scalar_lea.vmem %s3, 32
  %v614 = vld [vmem:[%s613] ss:$8 sm:$0xf]
  %v616 = vlaneseq
  %v617 = vshrl.u32 %v616, 7
  %v618 = vsub.s32 0, %v617
  %v619 = vrot.slane %v614, %v618
  %v620 = vlaneseq
  %v621 = vshrl.u32 %v620, 7
  %v622 = vsub.s32 1, %v621
  %v623 = vrot.slane %v614, %v622
  %v624 = vlaneseq
  %v625 = vshrl.u32 %v624, 7
  %v626 = vsub.s32 2, %v625
  %v627 = vrot.slane %v614, %v626
  %v628 = vlaneseq
  %v629 = vshrl.u32 %v628, 7
  %v630 = vsub.s32 3, %v629
  %v631 = vrot.slane %v614, %v630
  %632 = vrot.lane.b32.xlu0 %v619, 17
  %v633 = vpop.permute.xlu0 %632
  %634 = vrot.lane.b32.xlu0 %v623, 17
  %v635 = vpop.permute.xlu0 %634
  %636 = vrot.lane.b32.xlu0 %v627, 17
  %v637 = vpop.permute.xlu0 %636
  %638 = vrot.lane.b32.xlu0 %v631, 17
  %v639 = vpop.permute.xlu0 %638
  %vm640 = vcmask 138240
  %v641 = vsel %vm640, %v633, %v635
  %v642 = vsel %vm640, %v635, %v637
  %v643 = vsel %vm640, %v637, %v639
  %v649 = vmul.f32 %v608, %v633
  %v650 = vmul.f32 %v609, %v641
  %v651 = vmul.f32 %v610, %v642
  %v652 = vmul.f32 %v611, %v643
  %v653 = vmul.f32 %v612, %v639
  %659 = vrot.lane.b32.xlu0 %v649, 111
  %v660 = vpop.permute.xlu0 %659
  %661 = vrot.lane.b32.xlu0 %v650, 111
  %v662 = vpop.permute.xlu0 %661
  %663 = vrot.lane.b32.xlu0 %v651, 111
  %v664 = vpop.permute.xlu0 %663
  %665 = vrot.lane.b32.xlu0 %v652, 111
  %v666 = vpop.permute.xlu0 %665
  %667 = vrot.lane.b32.xlu0 %v653, 111
  %v668 = vpop.permute.xlu0 %667
  %vm669 = vcmask 908288
  %v670 = vsel %vm669, %v660, %v662
  %v671 = vsel %vm669, %v662, %v664
  %v672 = vsel %vm669, %v664, %v666
  %v673 = vsel %vm669, %v666, %v668
  %678 = vst [vmem:[#allocation3 + $0x100] sm:$0xff] %v670
  %679 = vst [vmem:[#allocation3 + $0x108] sm:$0xff] %v671
  %680 = vst [vmem:[#allocation3 + $0x110] sm:$0xff] %v672
  %681 = vst [vmem:[#allocation3 + $0x118] sm:$0xff] %v673
  %v682 = vld [vmem:[#allocation2] sm:$0xff]
  %v683 = vld [vmem:[#allocation2 + $0x8] sm:$0xff]
  %v684 = vld [vmem:[#allocation2 + $0x10] sm:$0xff]
  %v685 = vld [vmem:[#allocation2 + $0x18] sm:$0xff]
  %v686 = vld [vmem:[#allocation2 + $0x20] sm:$0xff]
  %s687 = scalar_lea.vmem %s3, 33
  %v688 = vld [vmem:[%s687] ss:$8 sm:$0xf]
  %v690 = vlaneseq
  %v691 = vshrl.u32 %v690, 7
  %v692 = vsub.s32 0, %v691
  %v693 = vrot.slane %v688, %v692
  %v694 = vlaneseq
  %v695 = vshrl.u32 %v694, 7
  %v696 = vsub.s32 1, %v695
  %v697 = vrot.slane %v688, %v696
  %v698 = vlaneseq
  %v699 = vshrl.u32 %v698, 7
  %v700 = vsub.s32 2, %v699
  %v701 = vrot.slane %v688, %v700
  %v702 = vlaneseq
  %v703 = vshrl.u32 %v702, 7
  %v704 = vsub.s32 3, %v703
  %v705 = vrot.slane %v688, %v704
  %706 = vrot.lane.b32.xlu0 %v693, 18
  %v707 = vpop.permute.xlu0 %706
  %708 = vrot.lane.b32.xlu0 %v697, 18
  %v709 = vpop.permute.xlu0 %708
  %710 = vrot.lane.b32.xlu0 %v701, 18
  %v711 = vpop.permute.xlu0 %710
  %712 = vrot.lane.b32.xlu0 %v705, 18
  %v713 = vpop.permute.xlu0 %712
  %vm714 = vcmask 146432
  %v715 = vsel %vm714, %v707, %v709
  %v716 = vsel %vm714, %v709, %v711
  %v717 = vsel %vm714, %v711, %v713
  %v723 = vmul.f32 %v682, %v707
  %v724 = vmul.f32 %v683, %v715
  %v725 = vmul.f32 %v684, %v716
  %v726 = vmul.f32 %v685, %v717
  %v727 = vmul.f32 %v686, %v713
  %733 = vrot.lane.b32.xlu0 %v723, 110
  %v734 = vpop.permute.xlu0 %733
  %735 = vrot.lane.b32.xlu0 %v724, 110
  %v736 = vpop.permute.xlu0 %735
  %737 = vrot.lane.b32.xlu0 %v725, 110
  %v738 = vpop.permute.xlu0 %737
  %739 = vrot.lane.b32.xlu0 %v726, 110
  %v740 = vpop.permute.xlu0 %739
  %741 = vrot.lane.b32.xlu0 %v727, 110
  %v742 = vpop.permute.xlu0 %741
  %vm743 = vcmask 900096
  %v744 = vsel %vm743, %v734, %v736
  %v745 = vsel %vm743, %v736, %v738
  %v746 = vsel %vm743, %v738, %v740
  %v747 = vsel %vm743, %v740, %v742
  %752 = vst [vmem:[#allocation3 + $0x120] sm:$0xff] %v744
  %753 = vst [vmem:[#allocation3 + $0x128] sm:$0xff] %v745
  %754 = vst [vmem:[#allocation3 + $0x130] sm:$0xff] %v746
  %755 = vst [vmem:[#allocation3 + $0x138] sm:$0xff] %v747
  %v756 = vld [vmem:[#allocation2] sm:$0xff]
  %v757 = vld [vmem:[#allocation2 + $0x8] sm:$0xff]
  %v758 = vld [vmem:[#allocation2 + $0x10] sm:$0xff]
  %v759 = vld [vmem:[#allocation2 + $0x18] sm:$0xff]
  %v760 = vld [vmem:[#allocation2 + $0x20] sm:$0xff]
  %s761 = scalar_lea.vmem %s3, 34
  %v762 = vld [vmem:[%s761] ss:$8 sm:$0xf]
  %v764 = vlaneseq
  %v765 = vshrl.u32 %v764, 7
  %v766 = vsub.s32 0, %v765
  %v767 = vrot.slane %v762, %v766
  %v768 = vlaneseq
  %v769 = vshrl.u32 %v768, 7
  %v770 = vsub.s32 1, %v769
  %v771 = vrot.slane %v762, %v770
  %v772 = vlaneseq
  %v773 = vshrl.u32 %v772, 7
  %v774 = vsub.s32 2, %v773
  %v775 = vrot.slane %v762, %v774
  %v776 = vlaneseq
  %v777 = vshrl.u32 %v776, 7
  %v778 = vsub.s32 3, %v777
  %v779 = vrot.slane %v762, %v778
  %780 = vrot.lane.b32.xlu0 %v767, 19
  %v781 = vpop.permute.xlu0 %780
  %782 = vrot.lane.b32.xlu0 %v771, 19
  %v783 = vpop.permute.xlu0 %782
  %784 = vrot.lane.b32.xlu0 %v775, 19
  %v785 = vpop.permute.xlu0 %784
  %786 = vrot.lane.b32.xlu0 %v779, 19
  %v787 = vpop.permute.xlu0 %786
  %vm788 = vcmask 154624
  %v789 = vsel %vm788, %v781, %v783
  %v790 = vsel %vm788, %v783, %v785
  %v791 = vsel %vm788, %v785, %v787
  %v797 = vmul.f32 %v756, %v781
  %v798 = vmul.f32 %v757, %v789
  %v799 = vmul.f32 %v758, %v790
  %v800 = vmul.f32 %v759, %v791
  %v801 = vmul.f32 %v760, %v787
  %807 = vrot.lane.b32.xlu0 %v797, 109
  %v808 = vpop.permute.xlu0 %807
  %809 = vrot.lane.b32.xlu0 %v798, 109
  %v810 = vpop.permute.xlu0 %809
  %811 = vrot.lane.b32.xlu0 %v799, 109
  %v812 = vpop.permute.xlu0 %811
  %813 = vrot.lane.b32.xlu0 %v800, 109
  %v814 = vpop.permute.xlu0 %813
  %815 = vrot.lane.b32.xlu0 %v801, 109
  %v816 = vpop.permute.xlu0 %815
  %vm817 = vcmask 891904
  %v818 = vsel %vm817, %v808, %v810
  %v819 = vsel %vm817, %v810, %v812
  %v820 = vsel %vm817, %v812, %v814
  %v821 = vsel %vm817, %v814, %v816
  %826 = vst [vmem:[#allocation3 + $0x140] sm:$0xff] %v818
  %827 = vst [vmem:[#allocation3 + $0x148] sm:$0xff] %v819
  %828 = vst [vmem:[#allocation3 + $0x150] sm:$0xff] %v820
  %829 = vst [vmem:[#allocation3 + $0x158] sm:$0xff] %v821
  %v830 = vld [vmem:[#allocation2] sm:$0xff]
  %v831 = vld [vmem:[#allocation2 + $0x8] sm:$0xff]
  %v832 = vld [vmem:[#allocation2 + $0x10] sm:$0xff]
  %v833 = vld [vmem:[#allocation2 + $0x18] sm:$0xff]
  %v834 = vld [vmem:[#allocation2 + $0x20] sm:$0xff]
  %s835 = scalar_lea.vmem %s3, 35
  %v836 = vld [vmem:[%s835] ss:$8 sm:$0xf]
  %v838 = vlaneseq
  %v839 = vshrl.u32 %v838, 7
  %v840 = vsub.s32 0, %v839
  %v841 = vrot.slane %v836, %v840
  %v842 = vlaneseq
  %v843 = vshrl.u32 %v842, 7
  %v844 = vsub.s32 1, %v843
  %v845 = vrot.slane %v836, %v844
  %v846 = vlaneseq
  %v847 = vshrl.u32 %v846, 7
  %v848 = vsub.s32 2, %v847
  %v849 = vrot.slane %v836, %v848
  %v850 = vlaneseq
  %v851 = vshrl.u32 %v850, 7
  %v852 = vsub.s32 3, %v851
  %v853 = vrot.slane %v836, %v852
  %854 = vrot.lane.b32.xlu0 %v841, 20
  %v855 = vpop.permute.xlu0 %854
  %856 = vrot.lane.b32.xlu0 %v845, 20
  %v857 = vpop.permute.xlu0 %856
  %858 = vrot.lane.b32.xlu0 %v849, 20
  %v859 = vpop.permute.xlu0 %858
  %860 = vrot.lane.b32.xlu0 %v853, 20
  %v861 = vpop.permute.xlu0 %860
  %vm862 = vcmask 162816
  %v863 = vsel %vm862, %v855, %v857
  %v864 = vsel %vm862, %v857, %v859
  %v865 = vsel %vm862, %v859, %v861
  %v871 = vmul.f32 %v830, %v855
  %v872 = vmul.f32 %v831, %v863
  %v873 = vmul.f32 %v832, %v864
  %v874 = vmul.f32 %v833, %v865
  %v875 = vmul.f32 %v834, %v861
  %881 = vrot.lane.b32.xlu0 %v871, 108
  %v882 = vpop.permute.xlu0 %881
  %883 = vrot.lane.b32.xlu0 %v872, 108
  %v884 = vpop.permute.xlu0 %883
  %885 = vrot.lane.b32.xlu0 %v873, 108
  %v886 = vpop.permute.xlu0 %885
  %887 = vrot.lane.b32.xlu0 %v874, 108
  %v888 = vpop.permute.xlu0 %887
  %889 = vrot.lane.b32.xlu0 %v875, 108
  %v890 = vpop.permute.xlu0 %889
  %vm891 = vcmask 883712
  %v892 = vsel %vm891, %v882, %v884
  %v893 = vsel %vm891, %v884, %v886
  %v894 = vsel %vm891, %v886, %v888
  %v895 = vsel %vm891, %v888, %v890
  %900 = vst [vmem:[#allocation3 + $0x160] sm:$0xff] %v892
  %901 = vst [vmem:[#allocation3 + $0x168] sm:$0xff] %v893
  %902 = vst [vmem:[#allocation3 + $0x170] sm:$0xff] %v894
  %903 = vst [vmem:[#allocation3 + $0x178] sm:$0xff] %v895
  %v904 = vld [vmem:[#allocation2] sm:$0xff]
  %v905 = vld [vmem:[#allocation2 + $0x8] sm:$0xff]
  %v906 = vld [vmem:[#allocation2 + $0x10] sm:$0xff]
  %v907 = vld [vmem:[#allocation2 + $0x18] sm:$0xff]
  %v908 = vld [vmem:[#allocation2 + $0x20] sm:$0xff]
  %s909 = scalar_lea.vmem %s3, 36
  %v910 = vld [vmem:[%s909] ss:$8 sm:$0xf]
  %v912 = vlaneseq
  %v913 = vshrl.u32 %v912, 7
  %v914 = vsub.s32 0, %v913
  %v915 = vrot.slane %v910, %v914
  %v916 = vlaneseq
  %v917 = vshrl.u32 %v916, 7
  %v918 = vsub.s32 1, %v917
  %v919 = vrot.slane %v910, %v918
  %v920 = vlaneseq
  %v921 = vshrl.u32 %v920, 7
  %v922 = vsub.s32 2, %v921
  %v923 = vrot.slane %v910, %v922
  %v924 = vlaneseq
  %v925 = vshrl.u32 %v924, 7
  %v926 = vsub.s32 3, %v925
  %v927 = vrot.slane %v910, %v926
  %928 = vrot.lane.b32.xlu0 %v915, 21
  %v929 = vpop.permute.xlu0 %928
  %930 = vrot.lane.b32.xlu0 %v919, 21
  %v931 = vpop.permute.xlu0 %930
  %932 = vrot.lane.b32.xlu0 %v923, 21
  %v933 = vpop.permute.xlu0 %932
  %934 = vrot.lane.b32.xlu0 %v927, 21
  %v935 = vpop.permute.xlu0 %934
  %vm936 = vcmask 171008
  %v937 = vsel %vm936, %v929, %v931
  %v938 = vsel %vm936, %v931, %v933
  %v939 = vsel %vm936, %v933, %v935
  %v945 = vmul.f32 %v904, %v929
  %v946 = vmul.f32 %v905, %v937
  %v947 = vmul.f32 %v906, %v938
  %v948 = vmul.f32 %v907, %v939
  %v949 = vmul.f32 %v908, %v935
  %955 = vrot.lane.b32.xlu0 %v945, 107
  %v956 = vpop.permute.xlu0 %955
  %957 = vrot.lane.b32.xlu0 %v946, 107
  %v958 = vpop.permute.xlu0 %957
  %959 = vrot.lane.b32.xlu0 %v947, 107
  %v960 = vpop.permute.xlu0 %959
  %961 = vrot.lane.b32.xlu0 %v948, 107
  %v962 = vpop.permute.xlu0 %961
  %963 = vrot.lane.b32.xlu0 %v949, 107
  %v964 = vpop.permute.xlu0 %963
  %vm965 = vcmask 875520
  %v966 = vsel %vm965, %v956, %v958
  %v967 = vsel %vm965, %v958, %v960
  %v968 = vsel %vm965, %v960, %v962
  %v969 = vsel %vm965, %v962, %v964
  %974 = vst [vmem:[#allocation3 + $0x180] sm:$0xff] %v966
  %975 = vst [vmem:[#allocation3 + $0x188] sm:$0xff] %v967
  %976 = vst [vmem:[#allocation3 + $0x190] sm:$0xff] %v968
  %977 = vst [vmem:[#allocation3 + $0x198] sm:$0xff] %v969
  %v978 = vld [vmem:[#allocation2] sm:$0xff]
  %v979 = vld [vmem:[#allocation2 + $0x8] sm:$0xff]
  %v980 = vld [vmem:[#allocation2 + $0x10] sm:$0xff]
  %v981 = vld [vmem:[#allocation2 + $0x18] sm:$0xff]
  %v982 = vld [vmem:[#allocation2 + $0x20] sm:$0xff]
  %s983 = scalar_lea.vmem %s3, 37
  %v984 = vld [vmem:[%s983] ss:$8 sm:$0xf]
  %v986 = vlaneseq
  %v987 = vshrl.u32 %v986, 7
  %v988 = vsub.s32 0, %v987
  %v989 = vrot.slane %v984, %v988
  %v990 = vlaneseq
  %v991 = vshrl.u32 %v990, 7
  %v992 = vsub.s32 1, %v991
  %v993 = vrot.slane %v984, %v992
  %v994 = vlaneseq
  %v995 = vshrl.u32 %v994, 7
  %v996 = vsub.s32 2, %v995
  %v997 = vrot.slane %v984, %v996
  %v998 = vlaneseq
  %v999 = vshrl.u32 %v998, 7
  %v1000 = vsub.s32 3, %v999
  %v1001 = vrot.slane %v984, %v1000
  %1002 = vrot.lane.b32.xlu0 %v989, 22
  %v1003 = vpop.permute.xlu0 %1002
  %1004 = vrot.lane.b32.xlu0 %v993, 22
  %v1005 = vpop.permute.xlu0 %1004
  %1006 = vrot.lane.b32.xlu0 %v997, 22
  %v1007 = vpop.permute.xlu0 %1006
  %1008 = vrot.lane.b32.xlu0 %v1001, 22
  %v1009 = vpop.permute.xlu0 %1008
  %vm1010 = vcmask 179200
  %v1011 = vsel %vm1010, %v1003, %v1005
  %v1012 = vsel %vm1010, %v1005, %v1007
  %v1013 = vsel %vm1010, %v1007, %v1009
  %v1019 = vmul.f32 %v978, %v1003
  %v1020 = vmul.f32 %v979, %v1011
  %v1021 = vmul.f32 %v980, %v1012
  %v1022 = vmul.f32 %v981, %v1013
  %v1023 = vmul.f32 %v982, %v1009
  %1029 = vrot.lane.b32.xlu0 %v1019, 106
  %v1030 = vpop.permute.xlu0 %1029
  %1031 = vrot.lane.b32.xlu0 %v1020, 106
  %v1032 = vpop.permute.xlu0 %1031
  %1033 = vrot.lane.b32.xlu0 %v1021, 106
  %v1034 = vpop.permute.xlu0 %1033
  %1035 = vrot.lane.b32.xlu0 %v1022, 106
  %v1036 = vpop.permute.xlu0 %1035
  %1037 = vrot.lane.b32.xlu0 %v1023, 106
  %v1038 = vpop.permute.xlu0 %1037
  %vm1039 = vcmask 867328
  %v1040 = vsel %vm1039, %v1030, %v1032
  %v1041 = vsel %vm1039, %v1032, %v1034
  %v1042 = vsel %vm1039, %v1034, %v1036
  %v1043 = vsel %vm1039, %v1036, %v1038
  %1048 = vst [vmem:[#allocation3 + $0x1a0] sm:$0xff] %v1040
  %1049 = vst [vmem:[#allocation3 + $0x1a8] sm:$0xff] %v1041
  %1050 = vst [vmem:[#allocation3 + $0x1b0] sm:$0xff] %v1042
  %1051 = vst [vmem:[#allocation3 + $0x1b8] sm:$0xff] %v1043
  %v1052 = vld [vmem:[#allocation2] sm:$0xff]
  %v1053 = vld [vmem:[#allocation2 + $0x8] sm:$0xff]
  %v1054 = vld [vmem:[#allocation2 + $0x10] sm:$0xff]
  %v1055 = vld [vmem:[#allocation2 + $0x18] sm:$0xff]
  %v1056 = vld [vmem:[#allocation2 + $0x20] sm:$0xff]
  %s1057 = scalar_lea.vmem %s3, 38
  %v1058 = vld [vmem:[%s1057] ss:$8 sm:$0xf]
  %v1060 = vlaneseq
  %v1061 = vshrl.u32 %v1060, 7
  %v1062 = vsub.s32 0, %v1061
  %v1063 = vrot.slane %v1058, %v1062
  %v1064 = vlaneseq
  %v1065 = vshrl.u32 %v1064, 7
  %v1066 = vsub.s32 1, %v1065
  %v1067 = vrot.slane %v1058, %v1066
  %v1068 = vlaneseq
  %v1069 = vshrl.u32 %v1068, 7
  %v1070 = vsub.s32 2, %v1069
  %v1071 = vrot.slane %v1058, %v1070
  %v1072 = vlaneseq
  %v1073 = vshrl.u32 %v1072, 7
  %v1074 = vsub.s32 3, %v1073
  %v1075 = vrot.slane %v1058, %v1074
  %1076 = vrot.lane.b32.xlu0 %v1063, 32
  %v1077 = vpop.permute.xlu0 %1076
  %1078 = vrot.lane.b32.xlu0 %v1067, 32
  %v1079 = vpop.permute.xlu0 %1078
  %1080 = vrot.lane.b32.xlu0 %v1071, 32
  %v1081 = vpop.permute.xlu0 %1080
  %1082 = vrot.lane.b32.xlu0 %v1075, 32
  %v1083 = vpop.permute.xlu0 %1082
  %vm1084 = vcmask 261120
  %v1085 = vsel %vm1084, %v1077, %v1079
  %v1086 = vsel %vm1084, %v1079, %v1081
  %v1087 = vsel %vm1084, %v1081, %v1083
  %v1093 = vmul.f32 %v1052, %v1077
  %v1094 = vmul.f32 %v1053, %v1085
  %v1095 = vmul.f32 %v1054, %v1086
  %v1096 = vmul.f32 %v1055, %v1087
  %v1097 = vmul.f32 %v1056, %v1083
  %1103 = vrot.lane.b32.xlu0 %v1093, 96
  %v1104 = vpop.permute.xlu0 %1103
  %1105 = vrot.lane.b32.xlu0 %v1094, 96
  %v1106 = vpop.permute.xlu0 %1105
  %1107 = vrot.lane.b32.xlu0 %v1095, 96
  %v1108 = vpop.permute.xlu0 %1107
  %1109 = vrot.lane.b32.xlu0 %v1096, 96
  %v1110 = vpop.permute.xlu0 %1109
  %1111 = vrot.lane.b32.xlu0 %v1097, 96
  %v1112 = vpop.permute.xlu0 %1111
  %vm1113 = vcmask 785408
  %v1114 = vsel %vm1113, %v1104, %v1106
  %v1115 = vsel %vm1113, %v1106, %v1108
  %v1116 = vsel %vm1113, %v1108, %v1110
  %v1117 = vsel %vm1113, %v1110, %v1112
  %1122 = vst [vmem:[#allocation3 + $0x1c0] sm:$0xff] %v1114
  %1123 = vst [vmem:[#allocation3 + $0x1c8] sm:$0xff] %v1115
  %1124 = vst [vmem:[#allocation3 + $0x1d0] sm:$0xff] %v1116
  %1125 = vst [vmem:[#allocation3 + $0x1d8] sm:$0xff] %v1117
  %v1126 = vld [vmem:[#allocation2] sm:$0xff]
  %v1127 = vld [vmem:[#allocation2 + $0x8] sm:$0xff]
  %v1128 = vld [vmem:[#allocation2 + $0x10] sm:$0xff]
  %v1129 = vld [vmem:[#allocation2 + $0x18] sm:$0xff]
  %v1130 = vld [vmem:[#allocation2 + $0x20] sm:$0xff]
  %s1131 = scalar_lea.vmem %s3, 39
  %v1132 = vld [vmem:[%s1131] ss:$8 sm:$0xf]
  %v1134 = vlaneseq
  %v1135 = vshrl.u32 %v1134, 7
  %v1136 = vsub.s32 0, %v1135
  %v1137 = vrot.slane %v1132, %v1136
  %v1138 = vlaneseq
  %v1139 = vshrl.u32 %v1138, 7
  %v1140 = vsub.s32 1, %v1139
  %v1141 = vrot.slane %v1132, %v1140
  %v1142 = vlaneseq
  %v1143 = vshrl.u32 %v1142, 7
  %v1144 = vsub.s32 2, %v1143
  %v1145 = vrot.slane %v1132, %v1144
  %v1146 = vlaneseq
  %v1147 = vshrl.u32 %v1146, 7
  %v1148 = vsub.s32 3, %v1147
  %v1149 = vrot.slane %v1132, %v1148
  %1150 = vrot.lane.b32.xlu0 %v1137, 33
  %v1151 = vpop.permute.xlu0 %1150
  %1152 = vrot.lane.b32.xlu0 %v1141, 33
  %v1153 = vpop.permute.xlu0 %1152
  %1154 = vrot.lane.b32.xlu0 %v1145, 33
  %v1155 = vpop.permute.xlu0 %1154
  %1156 = vrot.lane.b32.xlu0 %v1149, 33
  %v1157 = vpop.permute.xlu0 %1156
  %vm1158 = vcmask 269312
  %v1159 = vsel %vm1158, %v1151, %v1153
  %v1160 = vsel %vm1158, %v1153, %v1155
  %v1161 = vsel %vm1158, %v1155, %v1157
  %v1167 = vmul.f32 %v1126, %v1151
  %v1168 = vmul.f32 %v1127, %v1159
  %v1169 = vmul.f32 %v1128, %v1160
  %v1170 = vmul.f32 %v1129, %v1161
  %v1171 = vmul.f32 %v1130, %v1157
  %1177 = vrot.lane.b32.xlu0 %v1167, 95
  %v1178 = vpop.permute.xlu0 %1177
  %1179 = vrot.lane.b32.xlu0 %v1168, 95
  %v1180 = vpop.permute.xlu0 %1179
  %1181 = vrot.lane.b32.xlu0 %v1169, 95
  %v1182 = vpop.permute.xlu0 %1181
  %1183 = vrot.lane.b32.xlu0 %v1170, 95
  %v1184 = vpop.permute.xlu0 %1183
  %1185 = vrot.lane.b32.xlu0 %v1171, 95
  %v1186 = vpop.permute.xlu0 %1185
  %vm1187 = vcmask 777216
  %v1188 = vsel %vm1187, %v1178, %v1180
  %v1189 = vsel %vm1187, %v1180, %v1182
  %v1190 = vsel %vm1187, %v1182, %v1184
  %v1191 = vsel %vm1187, %v1184, %v1186
  %1196 = vst [vmem:[#allocation3 + $0x1e0] sm:$0xff] %v1188
  %1197 = vst [vmem:[#allocation3 + $0x1e8] sm:$0xff] %v1189
  %1198 = vst [vmem:[#allocation3 + $0x1f0] sm:$0xff] %v1190
  %1199 = vst [vmem:[#allocation3 + $0x1f8] sm:$0xff] %v1191
  %v1200 = vld [vmem:[#allocation2] sm:$0xff]
  %v1201 = vld [vmem:[#allocation2 + $0x8] sm:$0xff]
  %v1202 = vld [vmem:[#allocation2 + $0x10] sm:$0xff]
  %v1203 = vld [vmem:[#allocation2 + $0x18] sm:$0xff]
  %v1204 = vld [vmem:[#allocation2 + $0x20] sm:$0xff]
  %s1205 = scalar_lea.vmem %s3, 64
  %v1206 = vld [vmem:[%s1205] ss:$8 sm:$0xf]
  %v1208 = vlaneseq
  %v1209 = vshrl.u32 %v1208, 7
  %v1210 = vsub.s32 0, %v1209
  %v1211 = vrot.slane %v1206, %v1210
  %v1212 = vlaneseq
  %v1213 = vshrl.u32 %v1212, 7
  %v1214 = vsub.s32 1, %v1213
  %v1215 = vrot.slane %v1206, %v1214
  %v1216 = vlaneseq
  %v1217 = vshrl.u32 %v1216, 7
  %v1218 = vsub.s32 2, %v1217
  %v1219 = vrot.slane %v1206, %v1218
  %v1220 = vlaneseq
  %v1221 = vshrl.u32 %v1220, 7
  %v1222 = vsub.s32 3, %v1221
  %v1223 = vrot.slane %v1206, %v1222
  %1224 = vrot.lane.b32.xlu0 %v1211, 34
  %v1225 = vpop.permute.xlu0 %1224
  %1226 = vrot.lane.b32.xlu0 %v1215, 34
  %v1227 = vpop.permute.xlu0 %1226
  %1228 = vrot.lane.b32.xlu0 %v1219, 34
  %v1229 = vpop.permute.xlu0 %1228
  %1230 = vrot.lane.b32.xlu0 %v1223, 34
  %v1231 = vpop.permute.xlu0 %1230
  %vm1232 = vcmask 277504
  %v1233 = vsel %vm1232, %v1225, %v1227
  %v1234 = vsel %vm1232, %v1227, %v1229
  %v1235 = vsel %vm1232, %v1229, %v1231
  %v1241 = vmul.f32 %v1200, %v1225
  %v1242 = vmul.f32 %v1201, %v1233
  %v1243 = vmul.f32 %v1202, %v1234
  %v1244 = vmul.f32 %v1203, %v1235
  %v1245 = vmul.f32 %v1204, %v1231
  %1251 = vrot.lane.b32.xlu0 %v1241, 94
  %v1252 = vpop.permute.xlu0 %1251
  %1253 = vrot.lane.b32.xlu0 %v1242, 94
  %v1254 = vpop.permute.xlu0 %1253
  %1255 = vrot.lane.b32.xlu0 %v1243, 94
  %v1256 = vpop.permute.xlu0 %1255
  %1257 = vrot.lane.b32.xlu0 %v1244, 94
  %v1258 = vpop.permute.xlu0 %1257
  %1259 = vrot.lane.b32.xlu0 %v1245, 94
  %v1260 = vpop.permute.xlu0 %1259
  %vm1261 = vcmask 769024
  %v1262 = vsel %vm1261, %v1252, %v1254
  %v1263 = vsel %vm1261, %v1254, %v1256
  %v1264 = vsel %vm1261, %v1256, %v1258
  %v1265 = vsel %vm1261, %v1258, %v1260
  %1270 = vst [vmem:[#allocation3 + $0x200] sm:$0xff] %v1262
  %1271 = vst [vmem:[#allocation3 + $0x208] sm:$0xff] %v1263
  %1272 = vst [vmem:[#allocation3 + $0x210] sm:$0xff] %v1264
  %1273 = vst [vmem:[#allocation3 + $0x218] sm:$0xff] %v1265
  %v1274 = vld [vmem:[#allocation2] sm:$0xff]
  %v1275 = vld [vmem:[#allocation2 + $0x8] sm:$0xff]
  %v1276 = vld [vmem:[#allocation2 + $0x10] sm:$0xff]
  %v1277 = vld [vmem:[#allocation2 + $0x18] sm:$0xff]
  %v1278 = vld [vmem:[#allocation2 + $0x20] sm:$0xff]
  %s1279 = scalar_lea.vmem %s3, 65
  %v1280 = vld [vmem:[%s1279] ss:$8 sm:$0xf]
  %v1282 = vlaneseq
  %v1283 = vshrl.u32 %v1282, 7
  %v1284 = vsub.s32 0, %v1283
  %v1285 = vrot.slane %v1280, %v1284
  %v1286 = vlaneseq
  %v1287 = vshrl.u32 %v1286, 7
  %v1288 = vsub.s32 1, %v1287
  %v1289 = vrot.slane %v1280, %v1288
  %v1290 = vlaneseq
  %v1291 = vshrl.u32 %v1290, 7
  %v1292 = vsub.s32 2, %v1291
  %v1293 = vrot.slane %v1280, %v1292
  %v1294 = vlaneseq
  %v1295 = vshrl.u32 %v1294, 7
  %v1296 = vsub.s32 3, %v1295
  %v1297 = vrot.slane %v1280, %v1296
  %1298 = vrot.lane.b32.xlu0 %v1285, 35
  %v1299 = vpop.permute.xlu0 %1298
  %1300 = vrot.lane.b32.xlu0 %v1289, 35
  %v1301 = vpop.permute.xlu0 %1300
  %1302 = vrot.lane.b32.xlu0 %v1293, 35
  %v1303 = vpop.permute.xlu0 %1302
  %1304 = vrot.lane.b32.xlu0 %v1297, 35
  %v1305 = vpop.permute.xlu0 %1304
  %vm1306 = vcmask 285696
  %v1307 = vsel %vm1306, %v1299, %v1301
  %v1308 = vsel %vm1306, %v1301, %v1303
  %v1309 = vsel %vm1306, %v1303, %v1305
  %v1315 = vmul.f32 %v1274, %v1299
  %v1316 = vmul.f32 %v1275, %v1307
  %v1317 = vmul.f32 %v1276, %v1308
  %v1318 = vmul.f32 %v1277, %v1309
  %v1319 = vmul.f32 %v1278, %v1305
  %1325 = vrot.lane.b32.xlu0 %v1315, 93
  %v1326 = vpop.permute.xlu0 %1325
  %1327 = vrot.lane.b32.xlu0 %v1316, 93
  %v1328 = vpop.permute.xlu0 %1327
  %1329 = vrot.lane.b32.xlu0 %v1317, 93
  %v1330 = vpop.permute.xlu0 %1329
  %1331 = vrot.lane.b32.xlu0 %v1318, 93
  %v1332 = vpop.permute.xlu0 %1331
  %1333 = vrot.lane.b32.xlu0 %v1319, 93
  %v1334 = vpop.permute.xlu0 %1333
  %vm1335 = vcmask 760832
  %v1336 = vsel %vm1335, %v1326, %v1328
  %v1337 = vsel %vm1335, %v1328, %v1330
  %v1338 = vsel %vm1335, %v1330, %v1332
  %v1339 = vsel %vm1335, %v1332, %v1334
  %1344 = vst [vmem:[#allocation3 + $0x220] sm:$0xff] %v1336
  %1345 = vst [vmem:[#allocation3 + $0x228] sm:$0xff] %v1337
  %1346 = vst [vmem:[#allocation3 + $0x230] sm:$0xff] %v1338
  %1347 = vst [vmem:[#allocation3 + $0x238] sm:$0xff] %v1339
  %v1348 = vld [vmem:[#allocation2] sm:$0xff]
  %v1349 = vld [vmem:[#allocation2 + $0x8] sm:$0xff]
  %v1350 = vld [vmem:[#allocation2 + $0x10] sm:$0xff]
  %v1351 = vld [vmem:[#allocation2 + $0x18] sm:$0xff]
  %v1352 = vld [vmem:[#allocation2 + $0x20] sm:$0xff]
  %s1353 = scalar_lea.vmem %s3, 66
  %v1354 = vld [vmem:[%s1353] ss:$8 sm:$0xf]
  %v1356 = vlaneseq
  %v1357 = vshrl.u32 %v1356, 7
  %v1358 = vsub.s32 0, %v1357
  %v1359 = vrot.slane %v1354, %v1358
  %v1360 = vlaneseq
  %v1361 = vshrl.u32 %v1360, 7
  %v1362 = vsub.s32 1, %v1361
  %v1363 = vrot.slane %v1354, %v1362
  %v1364 = vlaneseq
  %v1365 = vshrl.u32 %v1364, 7
  %v1366 = vsub.s32 2, %v1365
  %v1367 = vrot.slane %v1354, %v1366
  %v1368 = vlaneseq
  %v1369 = vshrl.u32 %v1368, 7
  %v1370 = vsub.s32 3, %v1369
  %v1371 = vrot.slane %v1354, %v1370
  %1372 = vrot.lane.b32.xlu0 %v1359, 36
  %v1373 = vpop.permute.xlu0 %1372
  %1374 = vrot.lane.b32.xlu0 %v1363, 36
  %v1375 = vpop.permute.xlu0 %1374
  %1376 = vrot.lane.b32.xlu0 %v1367, 36
  %v1377 = vpop.permute.xlu0 %1376
  %1378 = vrot.lane.b32.xlu0 %v1371, 36
  %v1379 = vpop.permute.xlu0 %1378
  %vm1380 = vcmask 293888
  %v1381 = vsel %vm1380, %v1373, %v1375
  %v1382 = vsel %vm1380, %v1375, %v1377
  %v1383 = vsel %vm1380, %v1377, %v1379
  %v1389 = vmul.f32 %v1348, %v1373
  %v1390 = vmul.f32 %v1349, %v1381
  %v1391 = vmul.f32 %v1350, %v1382
  %v1392 = vmul.f32 %v1351, %v1383
  %v1393 = vmul.f32 %v1352, %v1379
  %1399 = vrot.lane.b32.xlu0 %v1389, 92
  %v1400 = vpop.permute.xlu0 %1399
  %1401 = vrot.lane.b32.xlu0 %v1390, 92
  %v1402 = vpop.permute.xlu0 %1401
  %1403 = vrot.lane.b32.xlu0 %v1391, 92
  %v1404 = vpop.permute.xlu0 %1403
  %1405 = vrot.lane.b32.xlu0 %v1392, 92
  %v1406 = vpop.permute.xlu0 %1405
  %1407 = vrot.lane.b32.xlu0 %v1393, 92
  %v1408 = vpop.permute.xlu0 %1407
  %vm1409 = vcmask 752640
  %v1410 = vsel %vm1409, %v1400, %v1402
  %v1411 = vsel %vm1409, %v1402, %v1404
  %v1412 = vsel %vm1409, %v1404, %v1406
  %v1413 = vsel %vm1409, %v1406, %v1408
  %1418 = vst [vmem:[#allocation3 + $0x240] sm:$0xff] %v1410
  %1419 = vst [vmem:[#allocation3 + $0x248] sm:$0xff] %v1411
  %1420 = vst [vmem:[#allocation3 + $0x250] sm:$0xff] %v1412
  %1421 = vst [vmem:[#allocation3 + $0x258] sm:$0xff] %v1413
  %v1422 = vld [vmem:[#allocation2] sm:$0xff]
  %v1423 = vld [vmem:[#allocation2 + $0x8] sm:$0xff]
  %v1424 = vld [vmem:[#allocation2 + $0x10] sm:$0xff]
  %v1425 = vld [vmem:[#allocation2 + $0x18] sm:$0xff]
  %v1426 = vld [vmem:[#allocation2 + $0x20] sm:$0xff]
  %s1427 = scalar_lea.vmem %s3, 67
  %v1428 = vld [vmem:[%s1427] ss:$8 sm:$0xf]
  %v1430 = vlaneseq
  %v1431 = vshrl.u32 %v1430, 7
  %v1432 = vsub.s32 0, %v1431
  %v1433 = vrot.slane %v1428, %v1432
  %v1434 = vlaneseq
  %v1435 = vshrl.u32 %v1434, 7
  %v1436 = vsub.s32 1, %v1435
  %v1437 = vrot.slane %v1428, %v1436
  %v1438 = vlaneseq
  %v1439 = vshrl.u32 %v1438, 7
  %v1440 = vsub.s32 2, %v1439
  %v1441 = vrot.slane %v1428, %v1440
  %v1442 = vlaneseq
  %v1443 = vshrl.u32 %v1442, 7
  %v1444 = vsub.s32 3, %v1443
  %v1445 = vrot.slane %v1428, %v1444
  %1446 = vrot.lane.b32.xlu0 %v1433, 37
  %v1447 = vpop.permute.xlu0 %1446
  %1448 = vrot.lane.b32.xlu0 %v1437, 37
  %v1449 = vpop.permute.xlu0 %1448
  %1450 = vrot.lane.b32.xlu0 %v1441, 37
  %v1451 = vpop.permute.xlu0 %1450
  %1452 = vrot.lane.b32.xlu0 %v1445, 37
  %v1453 = vpop.permute.xlu0 %1452
  %vm1454 = vcmask 302080
  %v1455 = vsel %vm1454, %v1447, %v1449
  %v1456 = vsel %vm1454, %v1449, %v1451
  %v1457 = vsel %vm1454, %v1451, %v1453
  %v1463 = vmul.f32 %v1422, %v1447
  %v1464 = vmul.f32 %v1423, %v1455
  %v1465 = vmul.f32 %v1424, %v1456
  %v1466 = vmul.f32 %v1425, %v1457
  %v1467 = vmul.f32 %v1426, %v1453
  %1473 = vrot.lane.b32.xlu0 %v1463, 91
  %v1474 = vpop.permute.xlu0 %1473
  %1475 = vrot.lane.b32.xlu0 %v1464, 91
  %v1476 = vpop.permute.xlu0 %1475
  %1477 = vrot.lane.b32.xlu0 %v1465, 91
  %v1478 = vpop.permute.xlu0 %1477
  %1479 = vrot.lane.b32.xlu0 %v1466, 91
  %v1480 = vpop.permute.xlu0 %1479
  %1481 = vrot.lane.b32.xlu0 %v1467, 91
  %v1482 = vpop.permute.xlu0 %1481
  %vm1483 = vcmask 744448
  %v1484 = vsel %vm1483, %v1474, %v1476
  %v1485 = vsel %vm1483, %v1476, %v1478
  %v1486 = vsel %vm1483, %v1478, %v1480
  %v1487 = vsel %vm1483, %v1480, %v1482
  %1492 = vst [vmem:[#allocation3 + $0x260] sm:$0xff] %v1484
  %1493 = vst [vmem:[#allocation3 + $0x268] sm:$0xff] %v1485
  %1494 = vst [vmem:[#allocation3 + $0x270] sm:$0xff] %v1486
  %1495 = vst [vmem:[#allocation3 + $0x278] sm:$0xff] %v1487
  %v1496 = vld [vmem:[#allocation2] sm:$0xff]
  %v1497 = vld [vmem:[#allocation2 + $0x8] sm:$0xff]
  %v1498 = vld [vmem:[#allocation2 + $0x10] sm:$0xff]
  %v1499 = vld [vmem:[#allocation2 + $0x18] sm:$0xff]
  %v1500 = vld [vmem:[#allocation2 + $0x20] sm:$0xff]
  %s1501 = scalar_lea.vmem %s3, 68
  %v1502 = vld [vmem:[%s1501] ss:$8 sm:$0xf]
  %v1504 = vlaneseq
  %v1505 = vshrl.u32 %v1504, 7
  %v1506 = vsub.s32 0, %v1505
  %v1507 = vrot.slane %v1502, %v1506
  %v1508 = vlaneseq
  %v1509 = vshrl.u32 %v1508, 7
  %v1510 = vsub.s32 1, %v1509
  %v1511 = vrot.slane %v1502, %v1510
  %v1512 = vlaneseq
  %v1513 = vshrl.u32 %v1512, 7
  %v1514 = vsub.s32 2, %v1513
  %v1515 = vrot.slane %v1502, %v1514
  %v1516 = vlaneseq
  %v1517 = vshrl.u32 %v1516, 7
  %v1518 = vsub.s32 3, %v1517
  %v1519 = vrot.slane %v1502, %v1518
  %1520 = vrot.lane.b32.xlu0 %v1507, 38
  %v1521 = vpop.permute.xlu0 %1520
  %1522 = vrot.lane.b32.xlu0 %v1511, 38
  %v1523 = vpop.permute.xlu0 %1522
  %1524 = vrot.lane.b32.xlu0 %v1515, 38
  %v1525 = vpop.permute.xlu0 %1524
  %1526 = vrot.lane.b32.xlu0 %v1519, 38
  %v1527 = vpop.permute.xlu0 %1526
  %vm1528 = vcmask 310272
  %v1529 = vsel %vm1528, %v1521, %v1523
  %v1530 = vsel %vm1528, %v1523, %v1525
  %v1531 = vsel %vm1528, %v1525, %v1527
  %v1537 = vmul.f32 %v1496, %v1521
  %v1538 = vmul.f32 %v1497, %v1529
  %v1539 = vmul.f32 %v1498, %v1530
  %v1540 = vmul.f32 %v1499, %v1531
  %v1541 = vmul.f32 %v1500, %v1527
  %1547 = vrot.lane.b32.xlu0 %v1537, 90
  %v1548 = vpop.permute.xlu0 %1547
  %1549 = vrot.lane.b32.xlu0 %v1538, 90
  %v1550 = vpop.permute.xlu0 %1549
  %1551 = vrot.lane.b32.xlu0 %v1539, 90
  %v1552 = vpop.permute.xlu0 %1551
  %1553 = vrot.lane.b32.xlu0 %v1540, 90
  %v1554 = vpop.permute.xlu0 %1553
  %1555 = vrot.lane.b32.xlu0 %v1541, 90
  %v1556 = vpop.permute.xlu0 %1555
  %vm1557 = vcmask 736256
  %v1558 = vsel %vm1557, %v1548, %v1550
  %v1559 = vsel %vm1557, %v1550, %v1552
  %v1560 = vsel %vm1557, %v1552, %v1554
  %v1561 = vsel %vm1557, %v1554, %v1556
  %1566 = vst [vmem:[#allocation3 + $0x280] sm:$0xff] %v1558
  %1567 = vst [vmem:[#allocation3 + $0x288] sm:$0xff] %v1559
  %1568 = vst [vmem:[#allocation3 + $0x290] sm:$0xff] %v1560
  %1569 = vst [vmem:[#allocation3 + $0x298] sm:$0xff] %v1561
  %v1570 = vld [vmem:[#allocation2] sm:$0xff]
  %v1571 = vld [vmem:[#allocation2 + $0x8] sm:$0xff]
  %v1572 = vld [vmem:[#allocation2 + $0x10] sm:$0xff]
  %v1573 = vld [vmem:[#allocation2 + $0x18] sm:$0xff]
  %v1574 = vld [vmem:[#allocation2 + $0x20] sm:$0xff]
  %s1575 = scalar_lea.vmem %s3, 69
  %v1576 = vld [vmem:[%s1575] ss:$8 sm:$0xf]
  %v1578 = vlaneseq
  %v1579 = vshrl.u32 %v1578, 7
  %v1580 = vsub.s32 0, %v1579
  %v1581 = vrot.slane %v1576, %v1580
  %v1582 = vlaneseq
  %v1583 = vshrl.u32 %v1582, 7
  %v1584 = vsub.s32 1, %v1583
  %v1585 = vrot.slane %v1576, %v1584
  %v1586 = vlaneseq
  %v1587 = vshrl.u32 %v1586, 7
  %v1588 = vsub.s32 2, %v1587
  %v1589 = vrot.slane %v1576, %v1588
  %v1590 = vlaneseq
  %v1591 = vshrl.u32 %v1590, 7
  %v1592 = vsub.s32 3, %v1591
  %v1593 = vrot.slane %v1576, %v1592
  %1594 = vrot.lane.b32.xlu0 %v1581, 48
  %v1595 = vpop.permute.xlu0 %1594
  %1596 = vrot.lane.b32.xlu0 %v1585, 48
  %v1597 = vpop.permute.xlu0 %1596
  %1598 = vrot.lane.b32.xlu0 %v1589, 48
  %v1599 = vpop.permute.xlu0 %1598
  %1600 = vrot.lane.b32.xlu0 %v1593, 48
  %v1601 = vpop.permute.xlu0 %1600
  %vm1602 = vcmask 392192
  %v1603 = vsel %vm1602, %v1595, %v1597
  %v1604 = vsel %vm1602, %v1597, %v1599
  %v1605 = vsel %vm1602, %v1599, %v1601
  %v1611 = vmul.f32 %v1570, %v1595
  %v1612 = vmul.f32 %v1571, %v1603
  %v1613 = vmul.f32 %v1572, %v1604
  %v1614 = vmul.f32 %v1573, %v1605
  %v1615 = vmul.f32 %v1574, %v1601
  %1621 = vrot.lane.b32.xlu0 %v1611, 80
  %v1622 = vpop.permute.xlu0 %1621
  %1623 = vrot.lane.b32.xlu0 %v1612, 80
  %v1624 = vpop.permute.xlu0 %1623
  %1625 = vrot.lane.b32.xlu0 %v1613, 80
  %v1626 = vpop.permute.xlu0 %1625
  %1627 = vrot.lane.b32.xlu0 %v1614, 80
  %v1628 = vpop.permute.xlu0 %1627
  %1629 = vrot.lane.b32.xlu0 %v1615, 80
  %v1630 = vpop.permute.xlu0 %1629
  %vm1631 = vcmask 654336
  %v1632 = vsel %vm1631, %v1622, %v1624
  %v1633 = vsel %vm1631, %v1624, %v1626
  %v1634 = vsel %vm1631, %v1626, %v1628
  %v1635 = vsel %vm1631, %v1628, %v1630
  %1640 = vst [vmem:[#allocation3 + $0x2a0] sm:$0xff] %v1632
  %1641 = vst [vmem:[#allocation3 + $0x2a8] sm:$0xff] %v1633
  %1642 = vst [vmem:[#allocation3 + $0x2b0] sm:$0xff] %v1634
  %1643 = vst [vmem:[#allocation3 + $0x2b8] sm:$0xff] %v1635
  %v1644 = vld [vmem:[#allocation2] sm:$0xff]
  %v1645 = vld [vmem:[#allocation2 + $0x8] sm:$0xff]
  %v1646 = vld [vmem:[#allocation2 + $0x10] sm:$0xff]
  %v1647 = vld [vmem:[#allocation2 + $0x18] sm:$0xff]
  %v1648 = vld [vmem:[#allocation2 + $0x20] sm:$0xff]
  %s1649 = scalar_lea.vmem %s3, 70
  %v1650 = vld [vmem:[%s1649] ss:$8 sm:$0xf]
  %v1652 = vlaneseq
  %v1653 = vshrl.u32 %v1652, 7
  %v1654 = vsub.s32 0, %v1653
  %v1655 = vrot.slane %v1650, %v1654
  %v1656 = vlaneseq
  %v1657 = vshrl.u32 %v1656, 7
  %v1658 = vsub.s32 1, %v1657
  %v1659 = vrot.slane %v1650, %v1658
  %v1660 = vlaneseq
  %v1661 = vshrl.u32 %v1660, 7
  %v1662 = vsub.s32 2, %v1661
  %v1663 = vrot.slane %v1650, %v1662
  %v1664 = vlaneseq
  %v1665 = vshrl.u32 %v1664, 7
  %v1666 = vsub.s32 3, %v1665
  %v1667 = vrot.slane %v1650, %v1666
  %1668 = vrot.lane.b32.xlu0 %v1655, 49
  %v1669 = vpop.permute.xlu0 %1668
  %1670 = vrot.lane.b32.xlu0 %v1659, 49
  %v1671 = vpop.permute.xlu0 %1670
  %1672 = vrot.lane.b32.xlu0 %v1663, 49
  %v1673 = vpop.permute.xlu0 %1672
  %1674 = vrot.lane.b32.xlu0 %v1667, 49
  %v1675 = vpop.permute.xlu0 %1674
  %vm1676 = vcmask 400384
  %v1677 = vsel %vm1676, %v1669, %v1671
  %v1678 = vsel %vm1676, %v1671, %v1673
  %v1679 = vsel %vm1676, %v1673, %v1675
  %v1685 = vmul.f32 %v1644, %v1669
  %v1686 = vmul.f32 %v1645, %v1677
  %v1687 = vmul.f32 %v1646, %v1678
  %v1688 = vmul.f32 %v1647, %v1679
  %v1689 = vmul.f32 %v1648, %v1675
  %1695 = vrot.lane.b32.xlu0 %v1685, 79
  %v1696 = vpop.permute.xlu0 %1695
  %1697 = vrot.lane.b32.xlu0 %v1686, 79
  %v1698 = vpop.permute.xlu0 %1697
  %1699 = vrot.lane.b32.xlu0 %v1687, 79
  %v1700 = vpop.permute.xlu0 %1699
  %1701 = vrot.lane.b32.xlu0 %v1688, 79
  %v1702 = vpop.permute.xlu0 %1701
  %1703 = vrot.lane.b32.xlu0 %v1689, 79
  %v1704 = vpop.permute.xlu0 %1703
  %vm1705 = vcmask 646144
  %v1706 = vsel %vm1705, %v1696, %v1698
  %v1707 = vsel %vm1705, %v1698, %v1700
  %v1708 = vsel %vm1705, %v1700, %v1702
  %v1709 = vsel %vm1705, %v1702, %v1704
  %1714 = vst [vmem:[#allocation3 + $0x2c0] sm:$0xff] %v1706
  %1715 = vst [vmem:[#allocation3 + $0x2c8] sm:$0xff] %v1707
  %1716 = vst [vmem:[#allocation3 + $0x2d0] sm:$0xff] %v1708
  %1717 = vst [vmem:[#allocation3 + $0x2d8] sm:$0xff] %v1709
  %v1718 = vld [vmem:[#allocation2] sm:$0xff]
  %v1719 = vld [vmem:[#allocation2 + $0x8] sm:$0xff]
  %v1720 = vld [vmem:[#allocation2 + $0x10] sm:$0xff]
  %v1721 = vld [vmem:[#allocation2 + $0x18] sm:$0xff]
  %v1722 = vld [vmem:[#allocation2 + $0x20] sm:$0xff]
  %s1723 = scalar_lea.vmem %s3, 71
  %v1724 = vld [vmem:[%s1723] ss:$8 sm:$0xf]
  %v1726 = vlaneseq
  %v1727 = vshrl.u32 %v1726, 7
  %v1728 = vsub.s32 0, %v1727
  %v1729 = vrot.slane %v1724, %v1728
  %v1730 = vlaneseq
  %v1731 = vshrl.u32 %v1730, 7
  %v1732 = vsub.s32 1, %v1731
  %v1733 = vrot.slane %v1724, %v1732
  %v1734 = vlaneseq
  %v1735 = vshrl.u32 %v1734, 7
  %v1736 = vsub.s32 2, %v1735
  %v1737 = vrot.slane %v1724, %v1736
  %v1738 = vlaneseq
  %v1739 = vshrl.u32 %v1738, 7
  %v1740 = vsub.s32 3, %v1739
  %v1741 = vrot.slane %v1724, %v1740
  %1742 = vrot.lane.b32.xlu0 %v1729, 50
  %v1743 = vpop.permute.xlu0 %1742
  %1744 = vrot.lane.b32.xlu0 %v1733, 50
  %v1745 = vpop.permute.xlu0 %1744
  %1746 = vrot.lane.b32.xlu0 %v1737, 50
  %v1747 = vpop.permute.xlu0 %1746
  %1748 = vrot.lane.b32.xlu0 %v1741, 50
  %v1749 = vpop.permute.xlu0 %1748
  %vm1750 = vcmask 408576
  %v1751 = vsel %vm1750, %v1743, %v1745
  %v1752 = vsel %vm1750, %v1745, %v1747
  %v1753 = vsel %vm1750, %v1747, %v1749
  %v1759 = vmul.f32 %v1718, %v1743
  %v1760 = vmul.f32 %v1719, %v1751
  %v1761 = vmul.f32 %v1720, %v1752
  %v1762 = vmul.f32 %v1721, %v1753
  %v1763 = vmul.f32 %v1722, %v1749
  %1769 = vrot.lane.b32.xlu0 %v1759, 78
  %v1770 = vpop.permute.xlu0 %1769
  %1771 = vrot.lane.b32.xlu0 %v1760, 78
  %v1772 = vpop.permute.xlu0 %1771
  %1773 = vrot.lane.b32.xlu0 %v1761, 78
  %v1774 = vpop.permute.xlu0 %1773
  %1775 = vrot.lane.b32.xlu0 %v1762, 78
  %v1776 = vpop.permute.xlu0 %1775
  %1777 = vrot.lane.b32.xlu0 %v1763, 78
  %v1778 = vpop.permute.xlu0 %1777
  %vm1779 = vcmask 637952
  %v1780 = vsel %vm1779, %v1770, %v1772
  %v1781 = vsel %vm1779, %v1772, %v1774
  %v1782 = vsel %vm1779, %v1774, %v1776
  %v1783 = vsel %vm1779, %v1776, %v1778
  %1788 = vst [vmem:[#allocation3 + $0x2e0] sm:$0xff] %v1780
  %1789 = vst [vmem:[#allocation3 + $0x2e8] sm:$0xff] %v1781
  %1790 = vst [vmem:[#allocation3 + $0x2f0] sm:$0xff] %v1782
  %1791 = vst [vmem:[#allocation3 + $0x2f8] sm:$0xff] %v1783
  %v1792 = vld [vmem:[#allocation2] sm:$0xff]
  %v1793 = vld [vmem:[#allocation2 + $0x8] sm:$0xff]
  %v1794 = vld [vmem:[#allocation2 + $0x10] sm:$0xff]
  %v1795 = vld [vmem:[#allocation2 + $0x18] sm:$0xff]
  %v1796 = vld [vmem:[#allocation2 + $0x20] sm:$0xff]
  %s1797 = scalar_lea.vmem %s3, 96
  %v1798 = vld [vmem:[%s1797] ss:$8 sm:$0xf]
  %v1800 = vlaneseq
  %v1801 = vshrl.u32 %v1800, 7
  %v1802 = vsub.s32 0, %v1801
  %v1803 = vrot.slane %v1798, %v1802
  %v1804 = vlaneseq
  %v1805 = vshrl.u32 %v1804, 7
  %v1806 = vsub.s32 1, %v1805
  %v1807 = vrot.slane %v1798, %v1806
  %v1808 = vlaneseq
  %v1809 = vshrl.u32 %v1808, 7
  %v1810 = vsub.s32 2, %v1809
  %v1811 = vrot.slane %v1798, %v1810
  %v1812 = vlaneseq
  %v1813 = vshrl.u32 %v1812, 7
  %v1814 = vsub.s32 3, %v1813
  %v1815 = vrot.slane %v1798, %v1814
  %1816 = vrot.lane.b32.xlu0 %v1803, 51
  %v1817 = vpop.permute.xlu0 %1816
  %1818 = vrot.lane.b32.xlu0 %v1807, 51
  %v1819 = vpop.permute.xlu0 %1818
  %1820 = vrot.lane.b32.xlu0 %v1811, 51
  %v1821 = vpop.permute.xlu0 %1820
  %1822 = vrot.lane.b32.xlu0 %v1815, 51
  %v1823 = vpop.permute.xlu0 %1822
  %v1824 = vsel %vm41, %v1817, %v1819
  %v1825 = vsel %vm41, %v1819, %v1821
  %v1826 = vsel %vm41, %v1821, %v1823
  %v1832 = vmul.f32 %v1792, %v1817
  %v1833 = vmul.f32 %v1793, %v1824
  %v1834 = vmul.f32 %v1794, %v1825
  %v1835 = vmul.f32 %v1795, %v1826
  %v1836 = vmul.f32 %v1796, %v1823
  %1842 = vrot.lane.b32.xlu0 %v1832, 77
  %v1843 = vpop.permute.xlu0 %1842
  %1844 = vrot.lane.b32.xlu0 %v1833, 77
  %v1845 = vpop.permute.xlu0 %1844
  %1846 = vrot.lane.b32.xlu0 %v1834, 77
  %v1847 = vpop.permute.xlu0 %1846
  %1848 = vrot.lane.b32.xlu0 %v1835, 77
  %v1849 = vpop.permute.xlu0 %1848
  %1850 = vrot.lane.b32.xlu0 %v1836, 77
  %v1851 = vpop.permute.xlu0 %1850
  %vm1852 = vcmask 629760
  %v1853 = vsel %vm1852, %v1843, %v1845
  %v1854 = vsel %vm1852, %v1845, %v1847
  %v1855 = vsel %vm1852, %v1847, %v1849
  %v1856 = vsel %vm1852, %v1849, %v1851
  %1861 = vst [vmem:[#allocation3 + $0x300] sm:$0xff] %v1853
  %1862 = vst [vmem:[#allocation3 + $0x308] sm:$0xff] %v1854
  %1863 = vst [vmem:[#allocation3 + $0x310] sm:$0xff] %v1855
  %1864 = vst [vmem:[#allocation3 + $0x318] sm:$0xff] %v1856
  %v1865 = vld [vmem:[#allocation2] sm:$0xff]
  %v1866 = vld [vmem:[#allocation2 + $0x8] sm:$0xff]
  %v1867 = vld [vmem:[#allocation2 + $0x10] sm:$0xff]
  %v1868 = vld [vmem:[#allocation2 + $0x18] sm:$0xff]
  %v1869 = vld [vmem:[#allocation2 + $0x20] sm:$0xff]
  %s1870 = scalar_lea.vmem %s3, 97
  %v1871 = vld [vmem:[%s1870] ss:$8 sm:$0xf]
  %v1873 = vlaneseq
  %v1874 = vshrl.u32 %v1873, 7
  %v1875 = vsub.s32 0, %v1874
  %v1876 = vrot.slane %v1871, %v1875
  %v1877 = vlaneseq
  %v1878 = vshrl.u32 %v1877, 7
  %v1879 = vsub.s32 1, %v1878
  %v1880 = vrot.slane %v1871, %v1879
  %v1881 = vlaneseq
  %v1882 = vshrl.u32 %v1881, 7
  %v1883 = vsub.s32 2, %v1882
  %v1884 = vrot.slane %v1871, %v1883
  %v1885 = vlaneseq
  %v1886 = vshrl.u32 %v1885, 7
  %v1887 = vsub.s32 3, %v1886
  %v1888 = vrot.slane %v1871, %v1887
  %1889 = vrot.lane.b32.xlu0 %v1876, 52
  %v1890 = vpop.permute.xlu0 %1889
  %1891 = vrot.lane.b32.xlu0 %v1880, 52
  %v1892 = vpop.permute.xlu0 %1891
  %1893 = vrot.lane.b32.xlu0 %v1884, 52
  %v1894 = vpop.permute.xlu0 %1893
  %1895 = vrot.lane.b32.xlu0 %v1888, 52
  %v1896 = vpop.permute.xlu0 %1895
  %vm1897 = vcmask 424960
  %v1898 = vsel %vm1897, %v1890, %v1892
  %v1899 = vsel %vm1897, %v1892, %v1894
  %v1900 = vsel %vm1897, %v1894, %v1896
  %v1906 = vmul.f32 %v1865, %v1890
  %v1907 = vmul.f32 %v1866, %v1898
  %v1908 = vmul.f32 %v1867, %v1899
  %v1909 = vmul.f32 %v1868, %v1900
  %v1910 = vmul.f32 %v1869, %v1896
  %1916 = vrot.lane.b32.xlu0 %v1906, 76
  %v1917 = vpop.permute.xlu0 %1916
  %1918 = vrot.lane.b32.xlu0 %v1907, 76
  %v1919 = vpop.permute.xlu0 %1918
  %1920 = vrot.lane.b32.xlu0 %v1908, 76
  %v1921 = vpop.permute.xlu0 %1920
  %1922 = vrot.lane.b32.xlu0 %v1909, 76
  %v1923 = vpop.permute.xlu0 %1922
  %1924 = vrot.lane.b32.xlu0 %v1910, 76
  %v1925 = vpop.permute.xlu0 %1924
  %vm1926 = vcmask 621568
  %v1927 = vsel %vm1926, %v1917, %v1919
  %v1928 = vsel %vm1926, %v1919, %v1921
  %v1929 = vsel %vm1926, %v1921, %v1923
  %v1930 = vsel %vm1926, %v1923, %v1925
  %1935 = vst [vmem:[#allocation3 + $0x320] sm:$0xff] %v1927
  %1936 = vst [vmem:[#allocation3 + $0x328] sm:$0xff] %v1928
  %1937 = vst [vmem:[#allocation3 + $0x330] sm:$0xff] %v1929
  %1938 = vst [vmem:[#allocation3 + $0x338] sm:$0xff] %v1930
  %v1939 = vld [vmem:[#allocation2] sm:$0xff]
  %v1940 = vld [vmem:[#allocation2 + $0x8] sm:$0xff]
  %v1941 = vld [vmem:[#allocation2 + $0x10] sm:$0xff]
  %v1942 = vld [vmem:[#allocation2 + $0x18] sm:$0xff]
  %v1943 = vld [vmem:[#allocation2 + $0x20] sm:$0xff]
  %s1944 = scalar_lea.vmem %s3, 98
  %v1945 = vld [vmem:[%s1944] ss:$8 sm:$0xf]
  %v1947 = vlaneseq
  %v1948 = vshrl.u32 %v1947, 7
  %v1949 = vsub.s32 0, %v1948
  %v1950 = vrot.slane %v1945, %v1949
  %v1951 = vlaneseq
  %v1952 = vshrl.u32 %v1951, 7
  %v1953 = vsub.s32 1, %v1952
  %v1954 = vrot.slane %v1945, %v1953
  %v1955 = vlaneseq
  %v1956 = vshrl.u32 %v1955, 7
  %v1957 = vsub.s32 2, %v1956
  %v1958 = vrot.slane %v1945, %v1957
  %v1959 = vlaneseq
  %v1960 = vshrl.u32 %v1959, 7
  %v1961 = vsub.s32 3, %v1960
  %v1962 = vrot.slane %v1945, %v1961
  %1963 = vrot.lane.b32.xlu0 %v1950, 53
  %v1964 = vpop.permute.xlu0 %1963
  %1965 = vrot.lane.b32.xlu0 %v1954, 53
  %v1966 = vpop.permute.xlu0 %1965
  %1967 = vrot.lane.b32.xlu0 %v1958, 53
  %v1968 = vpop.permute.xlu0 %1967
  %1969 = vrot.lane.b32.xlu0 %v1962, 53
  %v1970 = vpop.permute.xlu0 %1969
  %vm1971 = vcmask 433152
  %v1972 = vsel %vm1971, %v1964, %v1966
  %v1973 = vsel %vm1971, %v1966, %v1968
  %v1974 = vsel %vm1971, %v1968, %v1970
  %v1980 = vmul.f32 %v1939, %v1964
  %v1981 = vmul.f32 %v1940, %v1972
  %v1982 = vmul.f32 %v1941, %v1973
  %v1983 = vmul.f32 %v1942, %v1974
  %v1984 = vmul.f32 %v1943, %v1970
  %1990 = vrot.lane.b32.xlu0 %v1980, 75
  %v1991 = vpop.permute.xlu0 %1990
  %1992 = vrot.lane.b32.xlu0 %v1981, 75
  %v1993 = vpop.permute.xlu0 %1992
  %1994 = vrot.lane.b32.xlu0 %v1982, 75
  %v1995 = vpop.permute.xlu0 %1994
  %1996 = vrot.lane.b32.xlu0 %v1983, 75
  %v1997 = vpop.permute.xlu0 %1996
  %1998 = vrot.lane.b32.xlu0 %v1984, 75
  %v1999 = vpop.permute.xlu0 %1998
  %vm2000 = vcmask 613376
  %v2001 = vsel %vm2000, %v1991, %v1993
  %v2002 = vsel %vm2000, %v1993, %v1995
  %v2003 = vsel %vm2000, %v1995, %v1997
  %v2004 = vsel %vm2000, %v1997, %v1999
  %2009 = vst [vmem:[#allocation3 + $0x340] sm:$0xff] %v2001
  %2010 = vst [vmem:[#allocation3 + $0x348] sm:$0xff] %v2002
  %2011 = vst [vmem:[#allocation3 + $0x350] sm:$0xff] %v2003
  %2012 = vst [vmem:[#allocation3 + $0x358] sm:$0xff] %v2004
  %v2013 = vld [vmem:[#allocation2] sm:$0xff]
  %v2014 = vld [vmem:[#allocation2 + $0x8] sm:$0xff]
  %v2015 = vld [vmem:[#allocation2 + $0x10] sm:$0xff]
  %v2016 = vld [vmem:[#allocation2 + $0x18] sm:$0xff]
  %v2017 = vld [vmem:[#allocation2 + $0x20] sm:$0xff]
  %s2018 = scalar_lea.vmem %s3, 99
  %v2019 = vld [vmem:[%s2018] ss:$8 sm:$0xf]
  %v2021 = vlaneseq
  %v2022 = vshrl.u32 %v2021, 7
  %v2023 = vsub.s32 0, %v2022
  %v2024 = vrot.slane %v2019, %v2023
  %v2025 = vlaneseq
  %v2026 = vshrl.u32 %v2025, 7
  %v2027 = vsub.s32 1, %v2026
  %v2028 = vrot.slane %v2019, %v2027
  %v2029 = vlaneseq
  %v2030 = vshrl.u32 %v2029, 7
  %v2031 = vsub.s32 2, %v2030
  %v2032 = vrot.slane %v2019, %v2031
  %v2033 = vlaneseq
  %v2034 = vshrl.u32 %v2033, 7
  %v2035 = vsub.s32 3, %v2034
  %v2036 = vrot.slane %v2019, %v2035
  %2037 = vrot.lane.b32.xlu0 %v2024, 54
  %v2038 = vpop.permute.xlu0 %2037
  %2039 = vrot.lane.b32.xlu0 %v2028, 54
  %v2040 = vpop.permute.xlu0 %2039
  %2041 = vrot.lane.b32.xlu0 %v2032, 54
  %v2042 = vpop.permute.xlu0 %2041
  %2043 = vrot.lane.b32.xlu0 %v2036, 54
  %v2044 = vpop.permute.xlu0 %2043
  %vm2045 = vcmask 441344
  %v2046 = vsel %vm2045, %v2038, %v2040
  %v2047 = vsel %vm2045, %v2040, %v2042
  %v2048 = vsel %vm2045, %v2042, %v2044
  %v2054 = vmul.f32 %v2013, %v2038
  %v2055 = vmul.f32 %v2014, %v2046
  %v2056 = vmul.f32 %v2015, %v2047
  %v2057 = vmul.f32 %v2016, %v2048
  %v2058 = vmul.f32 %v2017, %v2044
  %2064 = vrot.lane.b32.xlu0 %v2054, 74
  %v2065 = vpop.permute.xlu0 %2064
  %2066 = vrot.lane.b32.xlu0 %v2055, 74
  %v2067 = vpop.permute.xlu0 %2066
  %2068 = vrot.lane.b32.xlu0 %v2056, 74
  %v2069 = vpop.permute.xlu0 %2068
  %2070 = vrot.lane.b32.xlu0 %v2057, 74
  %v2071 = vpop.permute.xlu0 %2070
  %2072 = vrot.lane.b32.xlu0 %v2058, 74
  %v2073 = vpop.permute.xlu0 %2072
  %vm2074 = vcmask 605184
  %v2075 = vsel %vm2074, %v2065, %v2067
  %v2076 = vsel %vm2074, %v2067, %v2069
  %v2077 = vsel %vm2074, %v2069, %v2071
  %v2078 = vsel %vm2074, %v2071, %v2073
  %2083 = vst [vmem:[#allocation3 + $0x360] sm:$0xff] %v2075
  %2084 = vst [vmem:[#allocation3 + $0x368] sm:$0xff] %v2076
  %2085 = vst [vmem:[#allocation3 + $0x370] sm:$0xff] %v2077
  %2086 = vst [vmem:[#allocation3 + $0x378] sm:$0xff] %v2078
  %v2087 = vld [vmem:[#allocation2] sm:$0xff]
  %v2088 = vld [vmem:[#allocation2 + $0x8] sm:$0xff]
  %v2089 = vld [vmem:[#allocation2 + $0x10] sm:$0xff]
  %v2090 = vld [vmem:[#allocation2 + $0x18] sm:$0xff]
  %v2091 = vld [vmem:[#allocation2 + $0x20] sm:$0xff]
  %s2092 = scalar_lea.vmem %s3, 100
  %v2093 = vld [vmem:[%s2092] ss:$8 sm:$0xf]
  %v2095 = vlaneseq
  %v2096 = vshrl.u32 %v2095, 7
  %v2097 = vsub.s32 0, %v2096
  %v2098 = vrot.slane %v2093, %v2097
  %v2099 = vlaneseq
  %v2100 = vshrl.u32 %v2099, 7
  %v2101 = vsub.s32 1, %v2100
  %v2102 = vrot.slane %v2093, %v2101
  %v2103 = vlaneseq
  %v2104 = vshrl.u32 %v2103, 7
  %v2105 = vsub.s32 2, %v2104
  %v2106 = vrot.slane %v2093, %v2105
  %v2107 = vlaneseq
  %v2108 = vshrl.u32 %v2107, 7
  %v2109 = vsub.s32 3, %v2108
  %v2110 = vrot.slane %v2093, %v2109
  %2111 = vrot.lane.b32.xlu0 %v2098, 64
  %v2112 = vpop.permute.xlu0 %2111
  %2113 = vrot.lane.b32.xlu0 %v2102, 64
  %v2114 = vpop.permute.xlu0 %2113
  %2115 = vrot.lane.b32.xlu0 %v2106, 64
  %v2116 = vpop.permute.xlu0 %2115
  %2117 = vrot.lane.b32.xlu0 %v2110, 64
  %v2118 = vpop.permute.xlu0 %2117
  %vm2119 = vcmask 523264
  %v2120 = vsel %vm2119, %v2112, %v2114
  %v2121 = vsel %vm2119, %v2114, %v2116
  %v2122 = vsel %vm2119, %v2116, %v2118
  %v2128 = vmul.f32 %v2087, %v2112
  %v2129 = vmul.f32 %v2088, %v2120
  %v2130 = vmul.f32 %v2089, %v2121
  %v2131 = vmul.f32 %v2090, %v2122
  %v2132 = vmul.f32 %v2091, %v2118
  %2138 = vrot.lane.b32.xlu0 %v2128, 64
  %v2139 = vpop.permute.xlu0 %2138
  %2140 = vrot.lane.b32.xlu0 %v2129, 64
  %v2141 = vpop.permute.xlu0 %2140
  %2142 = vrot.lane.b32.xlu0 %v2130, 64
  %v2143 = vpop.permute.xlu0 %2142
  %2144 = vrot.lane.b32.xlu0 %v2131, 64
  %v2145 = vpop.permute.xlu0 %2144
  %2146 = vrot.lane.b32.xlu0 %v2132, 64
  %v2147 = vpop.permute.xlu0 %2146
  %v2148 = vsel %vm2119, %v2139, %v2141
  %v2149 = vsel %vm2119, %v2141, %v2143
  %v2150 = vsel %vm2119, %v2143, %v2145
  %v2151 = vsel %vm2119, %v2145, %v2147
  %2156 = vst [vmem:[#allocation3 + $0x380] sm:$0xff] %v2148
  %2157 = vst [vmem:[#allocation3 + $0x388] sm:$0xff] %v2149
  %2158 = vst [vmem:[#allocation3 + $0x390] sm:$0xff] %v2150
  %2159 = vst [vmem:[#allocation3 + $0x398] sm:$0xff] %v2151
  %v2160 = vld [vmem:[#allocation2] sm:$0xff]
  %v2161 = vld [vmem:[#allocation2 + $0x8] sm:$0xff]
  %v2162 = vld [vmem:[#allocation2 + $0x10] sm:$0xff]
  %v2163 = vld [vmem:[#allocation2 + $0x18] sm:$0xff]
  %v2164 = vld [vmem:[#allocation2 + $0x20] sm:$0xff]
  %s2165 = scalar_lea.vmem %s3, 101
  %v2166 = vld [vmem:[%s2165] ss:$8 sm:$0xf]
  %v2168 = vlaneseq
  %v2169 = vshrl.u32 %v2168, 7
  %v2170 = vsub.s32 0, %v2169
  %v2171 = vrot.slane %v2166, %v2170
  %v2172 = vlaneseq
  %v2173 = vshrl.u32 %v2172, 7
  %v2174 = vsub.s32 1, %v2173
  %v2175 = vrot.slane %v2166, %v2174
  %v2176 = vlaneseq
  %v2177 = vshrl.u32 %v2176, 7
  %v2178 = vsub.s32 2, %v2177
  %v2179 = vrot.slane %v2166, %v2178
  %v2180 = vlaneseq
  %v2181 = vshrl.u32 %v2180, 7
  %v2182 = vsub.s32 3, %v2181
  %v2183 = vrot.slane %v2166, %v2182
  %2184 = vrot.lane.b32.xlu0 %v2171, 65
  %v2185 = vpop.permute.xlu0 %2184
  %2186 = vrot.lane.b32.xlu0 %v2175, 65
  %v2187 = vpop.permute.xlu0 %2186
  %2188 = vrot.lane.b32.xlu0 %v2179, 65
  %v2189 = vpop.permute.xlu0 %2188
  %2190 = vrot.lane.b32.xlu0 %v2183, 65
  %v2191 = vpop.permute.xlu0 %2190
  %vm2192 = vcmask 531456
  %v2193 = vsel %vm2192, %v2185, %v2187
  %v2194 = vsel %vm2192, %v2187, %v2189
  %v2195 = vsel %vm2192, %v2189, %v2191
  %v2201 = vmul.f32 %v2160, %v2185
  %v2202 = vmul.f32 %v2161, %v2193
  %v2203 = vmul.f32 %v2162, %v2194
  %v2204 = vmul.f32 %v2163, %v2195
  %v2205 = vmul.f32 %v2164, %v2191
  %2211 = vrot.lane.b32.xlu0 %v2201, 63
  %v2212 = vpop.permute.xlu0 %2211
  %2213 = vrot.lane.b32.xlu0 %v2202, 63
  %v2214 = vpop.permute.xlu0 %2213
  %2215 = vrot.lane.b32.xlu0 %v2203, 63
  %v2216 = vpop.permute.xlu0 %2215
  %2217 = vrot.lane.b32.xlu0 %v2204, 63
  %v2218 = vpop.permute.xlu0 %2217
  %2219 = vrot.lane.b32.xlu0 %v2205, 63
  %v2220 = vpop.permute.xlu0 %2219
  %vm2221 = vcmask 515072
  %v2222 = vsel %vm2221, %v2212, %v2214
  %v2223 = vsel %vm2221, %v2214, %v2216
  %v2224 = vsel %vm2221, %v2216, %v2218
  %v2225 = vsel %vm2221, %v2218, %v2220
  %2230 = vst [vmem:[#allocation3 + $0x3a0] sm:$0xff] %v2222
  %2231 = vst [vmem:[#allocation3 + $0x3a8] sm:$0xff] %v2223
  %2232 = vst [vmem:[#allocation3 + $0x3b0] sm:$0xff] %v2224
  %2233 = vst [vmem:[#allocation3 + $0x3b8] sm:$0xff] %v2225
  %v2234 = vld [vmem:[#allocation2] sm:$0xff]
  %v2235 = vld [vmem:[#allocation2 + $0x8] sm:$0xff]
  %v2236 = vld [vmem:[#allocation2 + $0x10] sm:$0xff]
  %v2237 = vld [vmem:[#allocation2 + $0x18] sm:$0xff]
  %v2238 = vld [vmem:[#allocation2 + $0x20] sm:$0xff]
  %s2239 = scalar_lea.vmem %s3, 102
  %v2240 = vld [vmem:[%s2239] ss:$8 sm:$0xf]
  %v2242 = vlaneseq
  %v2243 = vshrl.u32 %v2242, 7
  %v2244 = vsub.s32 0, %v2243
  %v2245 = vrot.slane %v2240, %v2244
  %v2246 = vlaneseq
  %v2247 = vshrl.u32 %v2246, 7
  %v2248 = vsub.s32 1, %v2247
  %v2249 = vrot.slane %v2240, %v2248
  %v2250 = vlaneseq
  %v2251 = vshrl.u32 %v2250, 7
  %v2252 = vsub.s32 2, %v2251
  %v2253 = vrot.slane %v2240, %v2252
  %v2254 = vlaneseq
  %v2255 = vshrl.u32 %v2254, 7
  %v2256 = vsub.s32 3, %v2255
  %v2257 = vrot.slane %v2240, %v2256
  %2258 = vrot.lane.b32.xlu0 %v2245, 66
  %v2259 = vpop.permute.xlu0 %2258
  %2260 = vrot.lane.b32.xlu0 %v2249, 66
  %v2261 = vpop.permute.xlu0 %2260
  %2262 = vrot.lane.b32.xlu0 %v2253, 66
  %v2263 = vpop.permute.xlu0 %2262
  %2264 = vrot.lane.b32.xlu0 %v2257, 66
  %v2265 = vpop.permute.xlu0 %2264
  %vm2266 = vcmask 539648
  %v2267 = vsel %vm2266, %v2259, %v2261
  %v2268 = vsel %vm2266, %v2261, %v2263
  %v2269 = vsel %vm2266, %v2263, %v2265
  %v2275 = vmul.f32 %v2234, %v2259
  %v2276 = vmul.f32 %v2235, %v2267
  %v2277 = vmul.f32 %v2236, %v2268
  %v2278 = vmul.f32 %v2237, %v2269
  %v2279 = vmul.f32 %v2238, %v2265
  %2285 = vrot.lane.b32.xlu0 %v2275, 62
  %v2286 = vpop.permute.xlu0 %2285
  %2287 = vrot.lane.b32.xlu0 %v2276, 62
  %v2288 = vpop.permute.xlu0 %2287
  %2289 = vrot.lane.b32.xlu0 %v2277, 62
  %v2290 = vpop.permute.xlu0 %2289
  %2291 = vrot.lane.b32.xlu0 %v2278, 62
  %v2292 = vpop.permute.xlu0 %2291
  %2293 = vrot.lane.b32.xlu0 %v2279, 62
  %v2294 = vpop.permute.xlu0 %2293
  %vm2295 = vcmask 506880
  %v2296 = vsel %vm2295, %v2286, %v2288
  %v2297 = vsel %vm2295, %v2288, %v2290
  %v2298 = vsel %vm2295, %v2290, %v2292
  %v2299 = vsel %vm2295, %v2292, %v2294
  %2304 = vst [vmem:[#allocation3 + $0x3c0] sm:$0xff] %v2296
  %2305 = vst [vmem:[#allocation3 + $0x3c8] sm:$0xff] %v2297
  %2306 = vst [vmem:[#allocation3 + $0x3d0] sm:$0xff] %v2298
  %2307 = vst [vmem:[#allocation3 + $0x3d8] sm:$0xff] %v2299
  %v2308 = vld [vmem:[#allocation2] sm:$0xff]
  %v2309 = vld [vmem:[#allocation2 + $0x8] sm:$0xff]
  %v2310 = vld [vmem:[#allocation2 + $0x10] sm:$0xff]
  %v2311 = vld [vmem:[#allocation2 + $0x18] sm:$0xff]
  %v2312 = vld [vmem:[#allocation2 + $0x20] sm:$0xff]
  %s2313 = scalar_lea.vmem %s3, 103
  %v2314 = vld [vmem:[%s2313] ss:$8 sm:$0xf]
  %v2316 = vlaneseq
  %v2317 = vshrl.u32 %v2316, 7
  %v2318 = vsub.s32 0, %v2317
  %v2319 = vrot.slane %v2314, %v2318
  %v2320 = vlaneseq
  %v2321 = vshrl.u32 %v2320, 7
  %v2322 = vsub.s32 1, %v2321
  %v2323 = vrot.slane %v2314, %v2322
  %v2324 = vlaneseq
  %v2325 = vshrl.u32 %v2324, 7
  %v2326 = vsub.s32 2, %v2325
  %v2327 = vrot.slane %v2314, %v2326
  %v2328 = vlaneseq
  %v2329 = vshrl.u32 %v2328, 7
  %v2330 = vsub.s32 3, %v2329
  %v2331 = vrot.slane %v2314, %v2330
  %2332 = vrot.lane.b32.xlu0 %v2319, 67
  %v2333 = vpop.permute.xlu0 %2332
  %2334 = vrot.lane.b32.xlu0 %v2323, 67
  %v2335 = vpop.permute.xlu0 %2334
  %2336 = vrot.lane.b32.xlu0 %v2327, 67
  %v2337 = vpop.permute.xlu0 %2336
  %2338 = vrot.lane.b32.xlu0 %v2331, 67
  %v2339 = vpop.permute.xlu0 %2338
  %vm2340 = vcmask 547840
  %v2341 = vsel %vm2340, %v2333, %v2335
  %v2342 = vsel %vm2340, %v2335, %v2337
  %v2343 = vsel %vm2340, %v2337, %v2339
  %v2349 = vmul.f32 %v2308, %v2333
  %v2350 = vmul.f32 %v2309, %v2341
  %v2351 = vmul.f32 %v2310, %v2342
  %v2352 = vmul.f32 %v2311, %v2343
  %v2353 = vmul.f32 %v2312, %v2339
  %2359 = vrot.lane.b32.xlu0 %v2349, 61
  %v2360 = vpop.permute.xlu0 %2359
  %2361 = vrot.lane.b32.xlu0 %v2350, 61
  %v2362 = vpop.permute.xlu0 %2361
  %2363 = vrot.lane.b32.xlu0 %v2351, 61
  %v2364 = vpop.permute.xlu0 %2363
  %2365 = vrot.lane.b32.xlu0 %v2352, 61
  %v2366 = vpop.permute.xlu0 %2365
  %2367 = vrot.lane.b32.xlu0 %v2353, 61
  %v2368 = vpop.permute.xlu0 %2367
  %vm2369 = vcmask 498688
  %v2370 = vsel %vm2369, %v2360, %v2362
  %v2371 = vsel %vm2369, %v2362, %v2364
  %v2372 = vsel %vm2369, %v2364, %v2366
  %v2373 = vsel %vm2369, %v2366, %v2368
  %2378 = vst [vmem:[#allocation3 + $0x3e0] sm:$0xff] %v2370
  %2379 = vst [vmem:[#allocation3 + $0x3e8] sm:$0xff] %v2371
  %2380 = vst [vmem:[#allocation3 + $0x3f0] sm:$0xff] %v2372
  %2381 = vst [vmem:[#allocation3 + $0x3f8] sm:$0xff] %v2373
  %v2382 = vld [vmem:[#allocation2] sm:$0xff]
  %v2383 = vld [vmem:[#allocation2 + $0x8] sm:$0xff]
  %v2384 = vld [vmem:[#allocation2 + $0x10] sm:$0xff]
  %v2385 = vld [vmem:[#allocation2 + $0x18] sm:$0xff]
  %v2386 = vld [vmem:[#allocation2 + $0x20] sm:$0xff]
  %s2387 = scalar_lea.vmem %s3, 128
  %v2388 = vld [vmem:[%s2387] ss:$8 sm:$0xf]
  %v2390 = vlaneseq
  %v2391 = vshrl.u32 %v2390, 7
  %v2392 = vsub.s32 0, %v2391
  %v2393 = vrot.slane %v2388, %v2392
  %v2394 = vlaneseq
  %v2395 = vshrl.u32 %v2394, 7
  %v2396 = vsub.s32 1, %v2395
  %v2397 = vrot.slane %v2388, %v2396
  %v2398 = vlaneseq
  %v2399 = vshrl.u32 %v2398, 7
  %v2400 = vsub.s32 2, %v2399
  %v2401 = vrot.slane %v2388, %v2400
  %v2402 = vlaneseq
  %v2403 = vshrl.u32 %v2402, 7
  %v2404 = vsub.s32 3, %v2403
  %v2405 = vrot.slane %v2388, %v2404
  %2406 = vrot.lane.b32.xlu0 %v2393, 68
  %v2407 = vpop.permute.xlu0 %2406
  %2408 = vrot.lane.b32.xlu0 %v2397, 68
  %v2409 = vpop.permute.xlu0 %2408
  %2410 = vrot.lane.b32.xlu0 %v2401, 68
  %v2411 = vpop.permute.xlu0 %2410
  %2412 = vrot.lane.b32.xlu0 %v2405, 68
  %v2413 = vpop.permute.xlu0 %2412
  %vm2414 = vcmask 556032
  %v2415 = vsel %vm2414, %v2407, %v2409
  %v2416 = vsel %vm2414, %v2409, %v2411
  %v2417 = vsel %vm2414, %v2411, %v2413
  %v2423 = vmul.f32 %v2382, %v2407
  %v2424 = vmul.f32 %v2383, %v2415
  %v2425 = vmul.f32 %v2384, %v2416
  %v2426 = vmul.f32 %v2385, %v2417
  %v2427 = vmul.f32 %v2386, %v2413
  %2433 = vrot.lane.b32.xlu0 %v2423, 60
  %v2434 = vpop.permute.xlu0 %2433
  %2435 = vrot.lane.b32.xlu0 %v2424, 60
  %v2436 = vpop.permute.xlu0 %2435
  %2437 = vrot.lane.b32.xlu0 %v2425, 60
  %v2438 = vpop.permute.xlu0 %2437
  %2439 = vrot.lane.b32.xlu0 %v2426, 60
  %v2440 = vpop.permute.xlu0 %2439
  %2441 = vrot.lane.b32.xlu0 %v2427, 60
  %v2442 = vpop.permute.xlu0 %2441
  %vm2443 = vcmask 490496
  %v2444 = vsel %vm2443, %v2434, %v2436
  %v2445 = vsel %vm2443, %v2436, %v2438
  %v2446 = vsel %vm2443, %v2438, %v2440
  %v2447 = vsel %vm2443, %v2440, %v2442
  %2452 = vst [vmem:[#allocation3 + $0x400] sm:$0xff] %v2444
  %2453 = vst [vmem:[#allocation3 + $0x408] sm:$0xff] %v2445
  %2454 = vst [vmem:[#allocation3 + $0x410] sm:$0xff] %v2446
  %2455 = vst [vmem:[#allocation3 + $0x418] sm:$0xff] %v2447
  %v2456 = vld [vmem:[#allocation2] sm:$0xff]
  %v2457 = vld [vmem:[#allocation2 + $0x8] sm:$0xff]
  %v2458 = vld [vmem:[#allocation2 + $0x10] sm:$0xff]
  %v2459 = vld [vmem:[#allocation2 + $0x18] sm:$0xff]
  %v2460 = vld [vmem:[#allocation2 + $0x20] sm:$0xff]
  %s2461 = scalar_lea.vmem %s3, 129
  %v2462 = vld [vmem:[%s2461] ss:$8 sm:$0xf]
  %v2464 = vlaneseq
  %v2465 = vshrl.u32 %v2464, 7
  %v2466 = vsub.s32 0, %v2465
  %v2467 = vrot.slane %v2462, %v2466
  %v2468 = vlaneseq
  %v2469 = vshrl.u32 %v2468, 7
  %v2470 = vsub.s32 1, %v2469
  %v2471 = vrot.slane %v2462, %v2470
  %v2472 = vlaneseq
  %v2473 = vshrl.u32 %v2472, 7
  %v2474 = vsub.s32 2, %v2473
  %v2475 = vrot.slane %v2462, %v2474
  %v2476 = vlaneseq
  %v2477 = vshrl.u32 %v2476, 7
  %v2478 = vsub.s32 3, %v2477
  %v2479 = vrot.slane %v2462, %v2478
  %2480 = vrot.lane.b32.xlu0 %v2467, 69
  %v2481 = vpop.permute.xlu0 %2480
  %2482 = vrot.lane.b32.xlu0 %v2471, 69
  %v2483 = vpop.permute.xlu0 %2482
  %2484 = vrot.lane.b32.xlu0 %v2475, 69
  %v2485 = vpop.permute.xlu0 %2484
  %2486 = vrot.lane.b32.xlu0 %v2479, 69
  %v2487 = vpop.permute.xlu0 %2486
  %vm2488 = vcmask 564224
  %v2489 = vsel %vm2488, %v2481, %v2483
  %v2490 = vsel %vm2488, %v2483, %v2485
  %v2491 = vsel %vm2488, %v2485, %v2487
  %v2497 = vmul.f32 %v2456, %v2481
  %v2498 = vmul.f32 %v2457, %v2489
  %v2499 = vmul.f32 %v2458, %v2490
  %v2500 = vmul.f32 %v2459, %v2491
  %v2501 = vmul.f32 %v2460, %v2487
  %2507 = vrot.lane.b32.xlu0 %v2497, 59
  %v2508 = vpop.permute.xlu0 %2507
  %2509 = vrot.lane.b32.xlu0 %v2498, 59
  %v2510 = vpop.permute.xlu0 %2509
  %2511 = vrot.lane.b32.xlu0 %v2499, 59
  %v2512 = vpop.permute.xlu0 %2511
  %2513 = vrot.lane.b32.xlu0 %v2500, 59
  %v2514 = vpop.permute.xlu0 %2513
  %2515 = vrot.lane.b32.xlu0 %v2501, 59
  %v2516 = vpop.permute.xlu0 %2515
  %vm2517 = vcmask 482304
  %v2518 = vsel %vm2517, %v2508, %v2510
  %v2519 = vsel %vm2517, %v2510, %v2512
  %v2520 = vsel %vm2517, %v2512, %v2514
  %v2521 = vsel %vm2517, %v2514, %v2516
  %2526 = vst [vmem:[#allocation3 + $0x420] sm:$0xff] %v2518
  %2527 = vst [vmem:[#allocation3 + $0x428] sm:$0xff] %v2519
  %2528 = vst [vmem:[#allocation3 + $0x430] sm:$0xff] %v2520
  %2529 = vst [vmem:[#allocation3 + $0x438] sm:$0xff] %v2521
  %v2530 = vld [vmem:[#allocation2] sm:$0xff]
  %v2531 = vld [vmem:[#allocation2 + $0x8] sm:$0xff]
  %v2532 = vld [vmem:[#allocation2 + $0x10] sm:$0xff]
  %v2533 = vld [vmem:[#allocation2 + $0x18] sm:$0xff]
  %v2534 = vld [vmem:[#allocation2 + $0x20] sm:$0xff]
  %s2535 = scalar_lea.vmem %s3, 130
  %v2536 = vld [vmem:[%s2535] ss:$8 sm:$0xf]
  %v2538 = vlaneseq
  %v2539 = vshrl.u32 %v2538, 7
  %v2540 = vsub.s32 0, %v2539
  %v2541 = vrot.slane %v2536, %v2540
  %v2542 = vlaneseq
  %v2543 = vshrl.u32 %v2542, 7
  %v2544 = vsub.s32 1, %v2543
  %v2545 = vrot.slane %v2536, %v2544
  %v2546 = vlaneseq
  %v2547 = vshrl.u32 %v2546, 7
  %v2548 = vsub.s32 2, %v2547
  %v2549 = vrot.slane %v2536, %v2548
  %v2550 = vlaneseq
  %v2551 = vshrl.u32 %v2550, 7
  %v2552 = vsub.s32 3, %v2551
  %v2553 = vrot.slane %v2536, %v2552
  %2554 = vrot.lane.b32.xlu0 %v2541, 70
  %v2555 = vpop.permute.xlu0 %2554
  %2556 = vrot.lane.b32.xlu0 %v2545, 70
  %v2557 = vpop.permute.xlu0 %2556
  %2558 = vrot.lane.b32.xlu0 %v2549, 70
  %v2559 = vpop.permute.xlu0 %2558
  %2560 = vrot.lane.b32.xlu0 %v2553, 70
  %v2561 = vpop.permute.xlu0 %2560
  %vm2562 = vcmask 572416
  %v2563 = vsel %vm2562, %v2555, %v2557
  %v2564 = vsel %vm2562, %v2557, %v2559
  %v2565 = vsel %vm2562, %v2559, %v2561
  %v2571 = vmul.f32 %v2530, %v2555
  %v2572 = vmul.f32 %v2531, %v2563
  %v2573 = vmul.f32 %v2532, %v2564
  %v2574 = vmul.f32 %v2533, %v2565
  %v2575 = vmul.f32 %v2534, %v2561
  %2581 = vrot.lane.b32.xlu0 %v2571, 58
  %v2582 = vpop.permute.xlu0 %2581
  %2583 = vrot.lane.b32.xlu0 %v2572, 58
  %v2584 = vpop.permute.xlu0 %2583
  %2585 = vrot.lane.b32.xlu0 %v2573, 58
  %v2586 = vpop.permute.xlu0 %2585
  %2587 = vrot.lane.b32.xlu0 %v2574, 58
  %v2588 = vpop.permute.xlu0 %2587
  %2589 = vrot.lane.b32.xlu0 %v2575, 58
  %v2590 = vpop.permute.xlu0 %2589
  %vm2591 = vcmask 474112
  %v2592 = vsel %vm2591, %v2582, %v2584
  %v2593 = vsel %vm2591, %v2584, %v2586
  %v2594 = vsel %vm2591, %v2586, %v2588
  %v2595 = vsel %vm2591, %v2588, %v2590
  %2600 = vst [vmem:[#allocation3 + $0x440] sm:$0xff] %v2592
  %2601 = vst [vmem:[#allocation3 + $0x448] sm:$0xff] %v2593
  %2602 = vst [vmem:[#allocation3 + $0x450] sm:$0xff] %v2594
  %2603 = vst [vmem:[#allocation3 + $0x458] sm:$0xff] %v2595
  %v2604 = vld [vmem:[#allocation2] sm:$0xff]
  %v2605 = vld [vmem:[#allocation2 + $0x8] sm:$0xff]
  %v2606 = vld [vmem:[#allocation2 + $0x10] sm:$0xff]
  %v2607 = vld [vmem:[#allocation2 + $0x18] sm:$0xff]
  %v2608 = vld [vmem:[#allocation2 + $0x20] sm:$0xff]
  %s2609 = scalar_lea.vmem %s3, 131
  %v2610 = vld [vmem:[%s2609] ss:$8 sm:$0xf]
  %v2612 = vlaneseq
  %v2613 = vshrl.u32 %v2612, 7
  %v2614 = vsub.s32 0, %v2613
  %v2615 = vrot.slane %v2610, %v2614
  %v2616 = vlaneseq
  %v2617 = vshrl.u32 %v2616, 7
  %v2618 = vsub.s32 1, %v2617
  %v2619 = vrot.slane %v2610, %v2618
  %v2620 = vlaneseq
  %v2621 = vshrl.u32 %v2620, 7
  %v2622 = vsub.s32 2, %v2621
  %v2623 = vrot.slane %v2610, %v2622
  %v2624 = vlaneseq
  %v2625 = vshrl.u32 %v2624, 7
  %v2626 = vsub.s32 3, %v2625
  %v2627 = vrot.slane %v2610, %v2626
  %2628 = vrot.lane.b32.xlu0 %v2615, 80
  %v2629 = vpop.permute.xlu0 %2628
  %2630 = vrot.lane.b32.xlu0 %v2619, 80
  %v2631 = vpop.permute.xlu0 %2630
  %2632 = vrot.lane.b32.xlu0 %v2623, 80
  %v2633 = vpop.permute.xlu0 %2632
  %2634 = vrot.lane.b32.xlu0 %v2627, 80
  %v2635 = vpop.permute.xlu0 %2634
  %v2636 = vsel %vm1631, %v2629, %v2631
  %v2637 = vsel %vm1631, %v2631, %v2633
  %v2638 = vsel %vm1631, %v2633, %v2635
  %v2644 = vmul.f32 %v2604, %v2629
  %v2645 = vmul.f32 %v2605, %v2636
  %v2646 = vmul.f32 %v2606, %v2637
  %v2647 = vmul.f32 %v2607, %v2638
  %v2648 = vmul.f32 %v2608, %v2635
  %2654 = vrot.lane.b32.xlu0 %v2644, 48
  %v2655 = vpop.permute.xlu0 %2654
  %2656 = vrot.lane.b32.xlu0 %v2645, 48
  %v2657 = vpop.permute.xlu0 %2656
  %2658 = vrot.lane.b32.xlu0 %v2646, 48
  %v2659 = vpop.permute.xlu0 %2658
  %2660 = vrot.lane.b32.xlu0 %v2647, 48
  %v2661 = vpop.permute.xlu0 %2660
  %2662 = vrot.lane.b32.xlu0 %v2648, 48
  %v2663 = vpop.permute.xlu0 %2662
  %v2664 = vsel %vm1602, %v2655, %v2657
  %v2665 = vsel %vm1602, %v2657, %v2659
  %v2666 = vsel %vm1602, %v2659, %v2661
  %v2667 = vsel %vm1602, %v2661, %v2663
  %2672 = vst [vmem:[#allocation3 + $0x460] sm:$0xff] %v2664
  %2673 = vst [vmem:[#allocation3 + $0x468] sm:$0xff] %v2665
  %2674 = vst [vmem:[#allocation3 + $0x470] sm:$0xff] %v2666
  %2675 = vst [vmem:[#allocation3 + $0x478] sm:$0xff] %v2667
  %v2676 = vld [vmem:[#allocation2] sm:$0xff]
  %v2677 = vld [vmem:[#allocation2 + $0x8] sm:$0xff]
  %v2678 = vld [vmem:[#allocation2 + $0x10] sm:$0xff]
  %v2679 = vld [vmem:[#allocation2 + $0x18] sm:$0xff]
  %v2680 = vld [vmem:[#allocation2 + $0x20] sm:$0xff]
  %s2681 = scalar_lea.vmem %s3, 132
  %v2682 = vld [vmem:[%s2681] ss:$8 sm:$0xf]
  %v2684 = vlaneseq
  %v2685 = vshrl.u32 %v2684, 7
  %v2686 = vsub.s32 0, %v2685
  %v2687 = vrot.slane %v2682, %v2686
  %v2688 = vlaneseq
  %v2689 = vshrl.u32 %v2688, 7
  %v2690 = vsub.s32 1, %v2689
  %v2691 = vrot.slane %v2682, %v2690
  %v2692 = vlaneseq
  %v2693 = vshrl.u32 %v2692, 7
  %v2694 = vsub.s32 2, %v2693
  %v2695 = vrot.slane %v2682, %v2694
  %v2696 = vlaneseq
  %v2697 = vshrl.u32 %v2696, 7
  %v2698 = vsub.s32 3, %v2697
  %v2699 = vrot.slane %v2682, %v2698
  %2700 = vrot.lane.b32.xlu0 %v2687, 81
  %v2701 = vpop.permute.xlu0 %2700
  %2702 = vrot.lane.b32.xlu0 %v2691, 81
  %v2703 = vpop.permute.xlu0 %2702
  %2704 = vrot.lane.b32.xlu0 %v2695, 81
  %v2705 = vpop.permute.xlu0 %2704
  %2706 = vrot.lane.b32.xlu0 %v2699, 81
  %v2707 = vpop.permute.xlu0 %2706
  %vm2708 = vcmask 662528
  %v2709 = vsel %vm2708, %v2701, %v2703
  %v2710 = vsel %vm2708, %v2703, %v2705
  %v2711 = vsel %vm2708, %v2705, %v2707
  %v2717 = vmul.f32 %v2676, %v2701
  %v2718 = vmul.f32 %v2677, %v2709
  %v2719 = vmul.f32 %v2678, %v2710
  %v2720 = vmul.f32 %v2679, %v2711
  %v2721 = vmul.f32 %v2680, %v2707
  %2727 = vrot.lane.b32.xlu0 %v2717, 47
  %v2728 = vpop.permute.xlu0 %2727
  %2729 = vrot.lane.b32.xlu0 %v2718, 47
  %v2730 = vpop.permute.xlu0 %2729
  %2731 = vrot.lane.b32.xlu0 %v2719, 47
  %v2732 = vpop.permute.xlu0 %2731
  %2733 = vrot.lane.b32.xlu0 %v2720, 47
  %v2734 = vpop.permute.xlu0 %2733
  %2735 = vrot.lane.b32.xlu0 %v2721, 47
  %v2736 = vpop.permute.xlu0 %2735
  %vm2737 = vcmask 384000
  %v2738 = vsel %vm2737, %v2728, %v2730
  %v2739 = vsel %vm2737, %v2730, %v2732
  %v2740 = vsel %vm2737, %v2732, %v2734
  %v2741 = vsel %vm2737, %v2734, %v2736
  %2746 = vst [vmem:[#allocation3 + $0x480] sm:$0xff] %v2738
  %2747 = vst [vmem:[#allocation3 + $0x488] sm:$0xff] %v2739
  %2748 = vst [vmem:[#allocation3 + $0x490] sm:$0xff] %v2740
  %2749 = vst [vmem:[#allocation3 + $0x498] sm:$0xff] %v2741
  %v2750 = vld [vmem:[#allocation2] sm:$0xff]
  %v2751 = vld [vmem:[#allocation2 + $0x8] sm:$0xff]
  %v2752 = vld [vmem:[#allocation2 + $0x10] sm:$0xff]
  %v2753 = vld [vmem:[#allocation2 + $0x18] sm:$0xff]
  %v2754 = vld [vmem:[#allocation2 + $0x20] sm:$0xff]
  %s2755 = scalar_lea.vmem %s3, 133
  %v2756 = vld [vmem:[%s2755] ss:$8 sm:$0xf]
  %v2758 = vlaneseq
  %v2759 = vshrl.u32 %v2758, 7
  %v2760 = vsub.s32 0, %v2759
  %v2761 = vrot.slane %v2756, %v2760
  %v2762 = vlaneseq
  %v2763 = vshrl.u32 %v2762, 7
  %v2764 = vsub.s32 1, %v2763
  %v2765 = vrot.slane %v2756, %v2764
  %v2766 = vlaneseq
  %v2767 = vshrl.u32 %v2766, 7
  %v2768 = vsub.s32 2, %v2767
  %v2769 = vrot.slane %v2756, %v2768
  %v2770 = vlaneseq
  %v2771 = vshrl.u32 %v2770, 7
  %v2772 = vsub.s32 3, %v2771
  %v2773 = vrot.slane %v2756, %v2772
  %2774 = vrot.lane.b32.xlu0 %v2761, 82
  %v2775 = vpop.permute.xlu0 %2774
  %2776 = vrot.lane.b32.xlu0 %v2765, 82
  %v2777 = vpop.permute.xlu0 %2776
  %2778 = vrot.lane.b32.xlu0 %v2769, 82
  %v2779 = vpop.permute.xlu0 %2778
  %2780 = vrot.lane.b32.xlu0 %v2773, 82
  %v2781 = vpop.permute.xlu0 %2780
  %vm2782 = vcmask 670720
  %v2783 = vsel %vm2782, %v2775, %v2777
  %v2784 = vsel %vm2782, %v2777, %v2779
  %v2785 = vsel %vm2782, %v2779, %v2781
  %v2791 = vmul.f32 %v2750, %v2775
  %v2792 = vmul.f32 %v2751, %v2783
  %v2793 = vmul.f32 %v2752, %v2784
  %v2794 = vmul.f32 %v2753, %v2785
  %v2795 = vmul.f32 %v2754, %v2781
  %2801 = vrot.lane.b32.xlu0 %v2791, 46
  %v2802 = vpop.permute.xlu0 %2801
  %2803 = vrot.lane.b32.xlu0 %v2792, 46
  %v2804 = vpop.permute.xlu0 %2803
  %2805 = vrot.lane.b32.xlu0 %v2793, 46
  %v2806 = vpop.permute.xlu0 %2805
  %2807 = vrot.lane.b32.xlu0 %v2794, 46
  %v2808 = vpop.permute.xlu0 %2807
  %2809 = vrot.lane.b32.xlu0 %v2795, 46
  %v2810 = vpop.permute.xlu0 %2809
  %vm2811 = vcmask 375808
  %v2812 = vsel %vm2811, %v2802, %v2804
  %v2813 = vsel %vm2811, %v2804, %v2806
  %v2814 = vsel %vm2811, %v2806, %v2808
  %v2815 = vsel %vm2811, %v2808, %v2810
  %2820 = vst [vmem:[#allocation3 + $0x4a0] sm:$0xff] %v2812
  %2821 = vst [vmem:[#allocation3 + $0x4a8] sm:$0xff] %v2813
  %2822 = vst [vmem:[#allocation3 + $0x4b0] sm:$0xff] %v2814
  %2823 = vst [vmem:[#allocation3 + $0x4b8] sm:$0xff] %v2815
  %v2824 = vld [vmem:[#allocation2] sm:$0xff]
  %v2825 = vld [vmem:[#allocation2 + $0x8] sm:$0xff]
  %v2826 = vld [vmem:[#allocation2 + $0x10] sm:$0xff]
  %v2827 = vld [vmem:[#allocation2 + $0x18] sm:$0xff]
  %v2828 = vld [vmem:[#allocation2 + $0x20] sm:$0xff]
  %s2829 = scalar_lea.vmem %s3, 134
  %v2830 = vld [vmem:[%s2829] ss:$8 sm:$0xf]
  %v2832 = vlaneseq
  %v2833 = vshrl.u32 %v2832, 7
  %v2834 = vsub.s32 0, %v2833
  %v2835 = vrot.slane %v2830, %v2834
  %v2836 = vlaneseq
  %v2837 = vshrl.u32 %v2836, 7
  %v2838 = vsub.s32 1, %v2837
  %v2839 = vrot.slane %v2830, %v2838
  %v2840 = vlaneseq
  %v2841 = vshrl.u32 %v2840, 7
  %v2842 = vsub.s32 2, %v2841
  %v2843 = vrot.slane %v2830, %v2842
  %v2844 = vlaneseq
  %v2845 = vshrl.u32 %v2844, 7
  %v2846 = vsub.s32 3, %v2845
  %v2847 = vrot.slane %v2830, %v2846
  %2848 = vrot.lane.b32.xlu0 %v2835, 83
  %v2849 = vpop.permute.xlu0 %2848
  %2850 = vrot.lane.b32.xlu0 %v2839, 83
  %v2851 = vpop.permute.xlu0 %2850
  %2852 = vrot.lane.b32.xlu0 %v2843, 83
  %v2853 = vpop.permute.xlu0 %2852
  %2854 = vrot.lane.b32.xlu0 %v2847, 83
  %v2855 = vpop.permute.xlu0 %2854
  %vm2856 = vcmask 678912
  %v2857 = vsel %vm2856, %v2849, %v2851
  %v2858 = vsel %vm2856, %v2851, %v2853
  %v2859 = vsel %vm2856, %v2853, %v2855
  %v2865 = vmul.f32 %v2824, %v2849
  %v2866 = vmul.f32 %v2825, %v2857
  %v2867 = vmul.f32 %v2826, %v2858
  %v2868 = vmul.f32 %v2827, %v2859
  %v2869 = vmul.f32 %v2828, %v2855
  %2875 = vrot.lane.b32.xlu0 %v2865, 45
  %v2876 = vpop.permute.xlu0 %2875
  %2877 = vrot.lane.b32.xlu0 %v2866, 45
  %v2878 = vpop.permute.xlu0 %2877
  %2879 = vrot.lane.b32.xlu0 %v2867, 45
  %v2880 = vpop.permute.xlu0 %2879
  %2881 = vrot.lane.b32.xlu0 %v2868, 45
  %v2882 = vpop.permute.xlu0 %2881
  %2883 = vrot.lane.b32.xlu0 %v2869, 45
  %v2884 = vpop.permute.xlu0 %2883
  %vm2885 = vcmask 367616
  %v2886 = vsel %vm2885, %v2876, %v2878
  %v2887 = vsel %vm2885, %v2878, %v2880
  %v2888 = vsel %vm2885, %v2880, %v2882
  %v2889 = vsel %vm2885, %v2882, %v2884
  %2894 = vst [vmem:[#allocation3 + $0x4c0] sm:$0xff] %v2886
  %2895 = vst [vmem:[#allocation3 + $0x4c8] sm:$0xff] %v2887
  %2896 = vst [vmem:[#allocation3 + $0x4d0] sm:$0xff] %v2888
  %2897 = vst [vmem:[#allocation3 + $0x4d8] sm:$0xff] %v2889
  %v2898 = vld [vmem:[#allocation2] sm:$0xff]
  %v2899 = vld [vmem:[#allocation2 + $0x8] sm:$0xff]
  %v2900 = vld [vmem:[#allocation2 + $0x10] sm:$0xff]
  %v2901 = vld [vmem:[#allocation2 + $0x18] sm:$0xff]
  %v2902 = vld [vmem:[#allocation2 + $0x20] sm:$0xff]
  %s2903 = scalar_lea.vmem %s3, 135
  %v2904 = vld [vmem:[%s2903] ss:$8 sm:$0xf]
  %v2906 = vlaneseq
  %v2907 = vshrl.u32 %v2906, 7
  %v2908 = vsub.s32 0, %v2907
  %v2909 = vrot.slane %v2904, %v2908
  %v2910 = vlaneseq
  %v2911 = vshrl.u32 %v2910, 7
  %v2912 = vsub.s32 1, %v2911
  %v2913 = vrot.slane %v2904, %v2912
  %v2914 = vlaneseq
  %v2915 = vshrl.u32 %v2914, 7
  %v2916 = vsub.s32 2, %v2915
  %v2917 = vrot.slane %v2904, %v2916
  %v2918 = vlaneseq
  %v2919 = vshrl.u32 %v2918, 7
  %v2920 = vsub.s32 3, %v2919
  %v2921 = vrot.slane %v2904, %v2920
  %2922 = vrot.lane.b32.xlu0 %v2909, 84
  %v2923 = vpop.permute.xlu0 %2922
  %2924 = vrot.lane.b32.xlu0 %v2913, 84
  %v2925 = vpop.permute.xlu0 %2924
  %2926 = vrot.lane.b32.xlu0 %v2917, 84
  %v2927 = vpop.permute.xlu0 %2926
  %2928 = vrot.lane.b32.xlu0 %v2921, 84
  %v2929 = vpop.permute.xlu0 %2928
  %vm2930 = vcmask 687104
  %v2931 = vsel %vm2930, %v2923, %v2925
  %v2932 = vsel %vm2930, %v2925, %v2927
  %v2933 = vsel %vm2930, %v2927, %v2929
  %v2939 = vmul.f32 %v2898, %v2923
  %v2940 = vmul.f32 %v2899, %v2931
  %v2941 = vmul.f32 %v2900, %v2932
  %v2942 = vmul.f32 %v2901, %v2933
  %v2943 = vmul.f32 %v2902, %v2929
  %2949 = vrot.lane.b32.xlu0 %v2939, 44
  %v2950 = vpop.permute.xlu0 %2949
  %2951 = vrot.lane.b32.xlu0 %v2940, 44
  %v2952 = vpop.permute.xlu0 %2951
  %2953 = vrot.lane.b32.xlu0 %v2941, 44
  %v2954 = vpop.permute.xlu0 %2953
  %2955 = vrot.lane.b32.xlu0 %v2942, 44
  %v2956 = vpop.permute.xlu0 %2955
  %2957 = vrot.lane.b32.xlu0 %v2943, 44
  %v2958 = vpop.permute.xlu0 %2957
  %vm2959 = vcmask 359424
  %v2960 = vsel %vm2959, %v2950, %v2952
  %v2961 = vsel %vm2959, %v2952, %v2954
  %v2962 = vsel %vm2959, %v2954, %v2956
  %v2963 = vsel %vm2959, %v2956, %v2958
  %2968 = vst [vmem:[#allocation3 + $0x4e0] sm:$0xff] %v2960
  %2969 = vst [vmem:[#allocation3 + $0x4e8] sm:$0xff] %v2961
  %2970 = vst [vmem:[#allocation3 + $0x4f0] sm:$0xff] %v2962
  %2971 = vst [vmem:[#allocation3 + $0x4f8] sm:$0xff] %v2963
  %v2972 = vld [vmem:[#allocation2] sm:$0xff]
  %v2973 = vld [vmem:[#allocation2 + $0x8] sm:$0xff]
  %v2974 = vld [vmem:[#allocation2 + $0x10] sm:$0xff]
  %v2975 = vld [vmem:[#allocation2 + $0x18] sm:$0xff]
  %v2976 = vld [vmem:[#allocation2 + $0x20] sm:$0xff]
  %s2977 = scalar_lea.vmem %s3, 160
  %v2978 = vld [vmem:[%s2977] ss:$8 sm:$0xf]
  %v2980 = vlaneseq
  %v2981 = vshrl.u32 %v2980, 7
  %v2982 = vsub.s32 0, %v2981
  %v2983 = vrot.slane %v2978, %v2982
  %v2984 = vlaneseq
  %v2985 = vshrl.u32 %v2984, 7
  %v2986 = vsub.s32 1, %v2985
  %v2987 = vrot.slane %v2978, %v2986
  %v2988 = vlaneseq
  %v2989 = vshrl.u32 %v2988, 7
  %v2990 = vsub.s32 2, %v2989
  %v2991 = vrot.slane %v2978, %v2990
  %v2992 = vlaneseq
  %v2993 = vshrl.u32 %v2992, 7
  %v2994 = vsub.s32 3, %v2993
  %v2995 = vrot.slane %v2978, %v2994
  %2996 = vrot.lane.b32.xlu0 %v2983, 85
  %v2997 = vpop.permute.xlu0 %2996
  %2998 = vrot.lane.b32.xlu0 %v2987, 85
  %v2999 = vpop.permute.xlu0 %2998
  %3000 = vrot.lane.b32.xlu0 %v2991, 85
  %v3001 = vpop.permute.xlu0 %3000
  %3002 = vrot.lane.b32.xlu0 %v2995, 85
  %v3003 = vpop.permute.xlu0 %3002
  %vm3004 = vcmask 695296
  %v3005 = vsel %vm3004, %v2997, %v2999
  %v3006 = vsel %vm3004, %v2999, %v3001
  %v3007 = vsel %vm3004, %v3001, %v3003
  %v3013 = vmul.f32 %v2972, %v2997
  %v3014 = vmul.f32 %v2973, %v3005
  %v3015 = vmul.f32 %v2974, %v3006
  %v3016 = vmul.f32 %v2975, %v3007
  %v3017 = vmul.f32 %v2976, %v3003
  %3023 = vrot.lane.b32.xlu0 %v3013, 43
  %v3024 = vpop.permute.xlu0 %3023
  %3025 = vrot.lane.b32.xlu0 %v3014, 43
  %v3026 = vpop.permute.xlu0 %3025
  %3027 = vrot.lane.b32.xlu0 %v3015, 43
  %v3028 = vpop.permute.xlu0 %3027
  %3029 = vrot.lane.b32.xlu0 %v3016, 43
  %v3030 = vpop.permute.xlu0 %3029
  %3031 = vrot.lane.b32.xlu0 %v3017, 43
  %v3032 = vpop.permute.xlu0 %3031
  %vm3033 = vcmask 351232
  %v3034 = vsel %vm3033, %v3024, %v3026
  %v3035 = vsel %vm3033, %v3026, %v3028
  %v3036 = vsel %vm3033, %v3028, %v3030
  %v3037 = vsel %vm3033, %v3030, %v3032
  %3042 = vst [vmem:[#allocation3 + $0x500] sm:$0xff] %v3034
  %3043 = vst [vmem:[#allocation3 + $0x508] sm:$0xff] %v3035
  %3044 = vst [vmem:[#allocation3 + $0x510] sm:$0xff] %v3036
  %3045 = vst [vmem:[#allocation3 + $0x518] sm:$0xff] %v3037
  %v3046 = vld [vmem:[#allocation2] sm:$0xff]
  %v3047 = vld [vmem:[#allocation2 + $0x8] sm:$0xff]
  %v3048 = vld [vmem:[#allocation2 + $0x10] sm:$0xff]
  %v3049 = vld [vmem:[#allocation2 + $0x18] sm:$0xff]
  %v3050 = vld [vmem:[#allocation2 + $0x20] sm:$0xff]
  %s3051 = scalar_lea.vmem %s3, 161
  %v3052 = vld [vmem:[%s3051] ss:$8 sm:$0xf]
  %v3054 = vlaneseq
  %v3055 = vshrl.u32 %v3054, 7
  %v3056 = vsub.s32 0, %v3055
  %v3057 = vrot.slane %v3052, %v3056
  %v3058 = vlaneseq
  %v3059 = vshrl.u32 %v3058, 7
  %v3060 = vsub.s32 1, %v3059
  %v3061 = vrot.slane %v3052, %v3060
  %v3062 = vlaneseq
  %v3063 = vshrl.u32 %v3062, 7
  %v3064 = vsub.s32 2, %v3063
  %v3065 = vrot.slane %v3052, %v3064
  %v3066 = vlaneseq
  %v3067 = vshrl.u32 %v3066, 7
  %v3068 = vsub.s32 3, %v3067
  %v3069 = vrot.slane %v3052, %v3068
  %3070 = vrot.lane.b32.xlu0 %v3057, 86
  %v3071 = vpop.permute.xlu0 %3070
  %3072 = vrot.lane.b32.xlu0 %v3061, 86
  %v3073 = vpop.permute.xlu0 %3072
  %3074 = vrot.lane.b32.xlu0 %v3065, 86
  %v3075 = vpop.permute.xlu0 %3074
  %3076 = vrot.lane.b32.xlu0 %v3069, 86
  %v3077 = vpop.permute.xlu0 %3076
  %vm3078 = vcmask 703488
  %v3079 = vsel %vm3078, %v3071, %v3073
  %v3080 = vsel %vm3078, %v3073, %v3075
  %v3081 = vsel %vm3078, %v3075, %v3077
  %v3087 = vmul.f32 %v3046, %v3071
  %v3088 = vmul.f32 %v3047, %v3079
  %v3089 = vmul.f32 %v3048, %v3080
  %v3090 = vmul.f32 %v3049, %v3081
  %v3091 = vmul.f32 %v3050, %v3077
  %3097 = vrot.lane.b32.xlu0 %v3087, 42
  %v3098 = vpop.permute.xlu0 %3097
  %3099 = vrot.lane.b32.xlu0 %v3088, 42
  %v3100 = vpop.permute.xlu0 %3099
  %3101 = vrot.lane.b32.xlu0 %v3089, 42
  %v3102 = vpop.permute.xlu0 %3101
  %3103 = vrot.lane.b32.xlu0 %v3090, 42
  %v3104 = vpop.permute.xlu0 %3103
  %3105 = vrot.lane.b32.xlu0 %v3091, 42
  %v3106 = vpop.permute.xlu0 %3105
  %vm3107 = vcmask 343040
  %v3108 = vsel %vm3107, %v3098, %v3100
  %v3109 = vsel %vm3107, %v3100, %v3102
  %v3110 = vsel %vm3107, %v3102, %v3104
  %v3111 = vsel %vm3107, %v3104, %v3106
  %3116 = vst [vmem:[#allocation3 + $0x520] sm:$0xff] %v3108
  %3117 = vst [vmem:[#allocation3 + $0x528] sm:$0xff] %v3109
  %3118 = vst [vmem:[#allocation3 + $0x530] sm:$0xff] %v3110
  %3119 = vst [vmem:[#allocation3 + $0x538] sm:$0xff] %v3111
  %v3120 = vld [vmem:[#allocation2] sm:$0xff]
  %v3121 = vld [vmem:[#allocation2 + $0x8] sm:$0xff]
  %v3122 = vld [vmem:[#allocation2 + $0x10] sm:$0xff]
  %v3123 = vld [vmem:[#allocation2 + $0x18] sm:$0xff]
  %v3124 = vld [vmem:[#allocation2 + $0x20] sm:$0xff]
  %s3125 = scalar_lea.vmem %s3, 162
  %v3126 = vld [vmem:[%s3125] ss:$8 sm:$0xf]
  %v3128 = vlaneseq
  %v3129 = vshrl.u32 %v3128, 7
  %v3130 = vsub.s32 0, %v3129
  %v3131 = vrot.slane %v3126, %v3130
  %v3132 = vlaneseq
  %v3133 = vshrl.u32 %v3132, 7
  %v3134 = vsub.s32 1, %v3133
  %v3135 = vrot.slane %v3126, %v3134
  %v3136 = vlaneseq
  %v3137 = vshrl.u32 %v3136, 7
  %v3138 = vsub.s32 2, %v3137
  %v3139 = vrot.slane %v3126, %v3138
  %v3140 = vlaneseq
  %v3141 = vshrl.u32 %v3140, 7
  %v3142 = vsub.s32 3, %v3141
  %v3143 = vrot.slane %v3126, %v3142
  %3144 = vrot.lane.b32.xlu0 %v3131, 96
  %v3145 = vpop.permute.xlu0 %3144
  %3146 = vrot.lane.b32.xlu0 %v3135, 96
  %v3147 = vpop.permute.xlu0 %3146
  %3148 = vrot.lane.b32.xlu0 %v3139, 96
  %v3149 = vpop.permute.xlu0 %3148
  %3150 = vrot.lane.b32.xlu0 %v3143, 96
  %v3151 = vpop.permute.xlu0 %3150
  %v3152 = vsel %vm1113, %v3145, %v3147
  %v3153 = vsel %vm1113, %v3147, %v3149
  %v3154 = vsel %vm1113, %v3149, %v3151
  %v3160 = vmul.f32 %v3120, %v3145
  %v3161 = vmul.f32 %v3121, %v3152
  %v3162 = vmul.f32 %v3122, %v3153
  %v3163 = vmul.f32 %v3123, %v3154
  %v3164 = vmul.f32 %v3124, %v3151
  %3170 = vrot.lane.b32.xlu0 %v3160, 32
  %v3171 = vpop.permute.xlu0 %3170
  %3172 = vrot.lane.b32.xlu0 %v3161, 32
  %v3173 = vpop.permute.xlu0 %3172
  %3174 = vrot.lane.b32.xlu0 %v3162, 32
  %v3175 = vpop.permute.xlu0 %3174
  %3176 = vrot.lane.b32.xlu0 %v3163, 32
  %v3177 = vpop.permute.xlu0 %3176
  %3178 = vrot.lane.b32.xlu0 %v3164, 32
  %v3179 = vpop.permute.xlu0 %3178
  %v3180 = vsel %vm1084, %v3171, %v3173
  %v3181 = vsel %vm1084, %v3173, %v3175
  %v3182 = vsel %vm1084, %v3175, %v3177
  %v3183 = vsel %vm1084, %v3177, %v3179
  %3188 = vst [vmem:[#allocation3 + $0x540] sm:$0xff] %v3180
  %3189 = vst [vmem:[#allocation3 + $0x548] sm:$0xff] %v3181
  %3190 = vst [vmem:[#allocation3 + $0x550] sm:$0xff] %v3182
  %3191 = vst [vmem:[#allocation3 + $0x558] sm:$0xff] %v3183
  %v3192 = vld [vmem:[#allocation2] sm:$0xff]
  %v3193 = vld [vmem:[#allocation2 + $0x8] sm:$0xff]
  %v3194 = vld [vmem:[#allocation2 + $0x10] sm:$0xff]
  %v3195 = vld [vmem:[#allocation2 + $0x18] sm:$0xff]
  %v3196 = vld [vmem:[#allocation2 + $0x20] sm:$0xff]
  %s3197 = scalar_lea.vmem %s3, 163
  %v3198 = vld [vmem:[%s3197] ss:$8 sm:$0xf]
  %v3200 = vlaneseq
  %v3201 = vshrl.u32 %v3200, 7
  %v3202 = vsub.s32 0, %v3201
  %v3203 = vrot.slane %v3198, %v3202
  %v3204 = vlaneseq
  %v3205 = vshrl.u32 %v3204, 7
  %v3206 = vsub.s32 1, %v3205
  %v3207 = vrot.slane %v3198, %v3206
  %v3208 = vlaneseq
  %v3209 = vshrl.u32 %v3208, 7
  %v3210 = vsub.s32 2, %v3209
  %v3211 = vrot.slane %v3198, %v3210
  %v3212 = vlaneseq
  %v3213 = vshrl.u32 %v3212, 7
  %v3214 = vsub.s32 3, %v3213
  %v3215 = vrot.slane %v3198, %v3214
  %3216 = vrot.lane.b32.xlu0 %v3203, 97
  %v3217 = vpop.permute.xlu0 %3216
  %3218 = vrot.lane.b32.xlu0 %v3207, 97
  %v3219 = vpop.permute.xlu0 %3218
  %3220 = vrot.lane.b32.xlu0 %v3211, 97
  %v3221 = vpop.permute.xlu0 %3220
  %3222 = vrot.lane.b32.xlu0 %v3215, 97
  %v3223 = vpop.permute.xlu0 %3222
  %vm3224 = vcmask 793600
  %v3225 = vsel %vm3224, %v3217, %v3219
  %v3226 = vsel %vm3224, %v3219, %v3221
  %v3227 = vsel %vm3224, %v3221, %v3223
  %v3233 = vmul.f32 %v3192, %v3217
  %v3234 = vmul.f32 %v3193, %v3225
  %v3235 = vmul.f32 %v3194, %v3226
  %v3236 = vmul.f32 %v3195, %v3227
  %v3237 = vmul.f32 %v3196, %v3223
  %3243 = vrot.lane.b32.xlu0 %v3233, 31
  %v3244 = vpop.permute.xlu0 %3243
  %3245 = vrot.lane.b32.xlu0 %v3234, 31
  %v3246 = vpop.permute.xlu0 %3245
  %3247 = vrot.lane.b32.xlu0 %v3235, 31
  %v3248 = vpop.permute.xlu0 %3247
  %3249 = vrot.lane.b32.xlu0 %v3236, 31
  %v3250 = vpop.permute.xlu0 %3249
  %3251 = vrot.lane.b32.xlu0 %v3237, 31
  %v3252 = vpop.permute.xlu0 %3251
  %vm3253 = vcmask 252928
  %v3254 = vsel %vm3253, %v3244, %v3246
  %v3255 = vsel %vm3253, %v3246, %v3248
  %v3256 = vsel %vm3253, %v3248, %v3250
  %v3257 = vsel %vm3253, %v3250, %v3252
  %3262 = vst [vmem:[#allocation3 + $0x560] sm:$0xff] %v3254
  %3263 = vst [vmem:[#allocation3 + $0x568] sm:$0xff] %v3255
  %3264 = vst [vmem:[#allocation3 + $0x570] sm:$0xff] %v3256
  %3265 = vst [vmem:[#allocation3 + $0x578] sm:$0xff] %v3257
  %v3266 = vld [vmem:[#allocation2] sm:$0xff]
  %v3267 = vld [vmem:[#allocation2 + $0x8] sm:$0xff]
  %v3268 = vld [vmem:[#allocation2 + $0x10] sm:$0xff]
  %v3269 = vld [vmem:[#allocation2 + $0x18] sm:$0xff]
  %v3270 = vld [vmem:[#allocation2 + $0x20] sm:$0xff]
  %s3271 = scalar_lea.vmem %s3, 164
  %v3272 = vld [vmem:[%s3271] ss:$8 sm:$0xf]
  %v3274 = vlaneseq
  %v3275 = vshrl.u32 %v3274, 7
  %v3276 = vsub.s32 0, %v3275
  %v3277 = vrot.slane %v3272, %v3276
  %v3278 = vlaneseq
  %v3279 = vshrl.u32 %v3278, 7
  %v3280 = vsub.s32 1, %v3279
  %v3281 = vrot.slane %v3272, %v3280
  %v3282 = vlaneseq
  %v3283 = vshrl.u32 %v3282, 7
  %v3284 = vsub.s32 2, %v3283
  %v3285 = vrot.slane %v3272, %v3284
  %v3286 = vlaneseq
  %v3287 = vshrl.u32 %v3286, 7
  %v3288 = vsub.s32 3, %v3287
  %v3289 = vrot.slane %v3272, %v3288
  %3290 = vrot.lane.b32.xlu0 %v3277, 98
  %v3291 = vpop.permute.xlu0 %3290
  %3292 = vrot.lane.b32.xlu0 %v3281, 98
  %v3293 = vpop.permute.xlu0 %3292
  %3294 = vrot.lane.b32.xlu0 %v3285, 98
  %v3295 = vpop.permute.xlu0 %3294
  %3296 = vrot.lane.b32.xlu0 %v3289, 98
  %v3297 = vpop.permute.xlu0 %3296
  %vm3298 = vcmask 801792
  %v3299 = vsel %vm3298, %v3291, %v3293
  %v3300 = vsel %vm3298, %v3293, %v3295
  %v3301 = vsel %vm3298, %v3295, %v3297
  %v3307 = vmul.f32 %v3266, %v3291
  %v3308 = vmul.f32 %v3267, %v3299
  %v3309 = vmul.f32 %v3268, %v3300
  %v3310 = vmul.f32 %v3269, %v3301
  %v3311 = vmul.f32 %v3270, %v3297
  %3317 = vrot.lane.b32.xlu0 %v3307, 30
  %v3318 = vpop.permute.xlu0 %3317
  %3319 = vrot.lane.b32.xlu0 %v3308, 30
  %v3320 = vpop.permute.xlu0 %3319
  %3321 = vrot.lane.b32.xlu0 %v3309, 30
  %v3322 = vpop.permute.xlu0 %3321
  %3323 = vrot.lane.b32.xlu0 %v3310, 30
  %v3324 = vpop.permute.xlu0 %3323
  %3325 = vrot.lane.b32.xlu0 %v3311, 30
  %v3326 = vpop.permute.xlu0 %3325
  %vm3327 = vcmask 244736
  %v3328 = vsel %vm3327, %v3318, %v3320
  %v3329 = vsel %vm3327, %v3320, %v3322
  %v3330 = vsel %vm3327, %v3322, %v3324
  %v3331 = vsel %vm3327, %v3324, %v3326
  %3336 = vst [vmem:[#allocation3 + $0x580] sm:$0xff] %v3328
  %3337 = vst [vmem:[#allocation3 + $0x588] sm:$0xff] %v3329
  %3338 = vst [vmem:[#allocation3 + $0x590] sm:$0xff] %v3330
  %3339 = vst [vmem:[#allocation3 + $0x598] sm:$0xff] %v3331
  %v3340 = vld [vmem:[#allocation2] sm:$0xff]
  %v3341 = vld [vmem:[#allocation2 + $0x8] sm:$0xff]
  %v3342 = vld [vmem:[#allocation2 + $0x10] sm:$0xff]
  %v3343 = vld [vmem:[#allocation2 + $0x18] sm:$0xff]
  %v3344 = vld [vmem:[#allocation2 + $0x20] sm:$0xff]
  %s3345 = scalar_lea.vmem %s3, 165
  %v3346 = vld [vmem:[%s3345] ss:$8 sm:$0xf]
  %v3348 = vlaneseq
  %v3349 = vshrl.u32 %v3348, 7
  %v3350 = vsub.s32 0, %v3349
  %v3351 = vrot.slane %v3346, %v3350
  %v3352 = vlaneseq
  %v3353 = vshrl.u32 %v3352, 7
  %v3354 = vsub.s32 1, %v3353
  %v3355 = vrot.slane %v3346, %v3354
  %v3356 = vlaneseq
  %v3357 = vshrl.u32 %v3356, 7
  %v3358 = vsub.s32 2, %v3357
  %v3359 = vrot.slane %v3346, %v3358
  %v3360 = vlaneseq
  %v3361 = vshrl.u32 %v3360, 7
  %v3362 = vsub.s32 3, %v3361
  %v3363 = vrot.slane %v3346, %v3362
  %3364 = vrot.lane.b32.xlu0 %v3351, 99
  %v3365 = vpop.permute.xlu0 %3364
  %3366 = vrot.lane.b32.xlu0 %v3355, 99
  %v3367 = vpop.permute.xlu0 %3366
  %3368 = vrot.lane.b32.xlu0 %v3359, 99
  %v3369 = vpop.permute.xlu0 %3368
  %3370 = vrot.lane.b32.xlu0 %v3363, 99
  %v3371 = vpop.permute.xlu0 %3370
  %vm3372 = vcmask 809984
  %v3373 = vsel %vm3372, %v3365, %v3367
  %v3374 = vsel %vm3372, %v3367, %v3369
  %v3375 = vsel %vm3372, %v3369, %v3371
  %v3381 = vmul.f32 %v3340, %v3365
  %v3382 = vmul.f32 %v3341, %v3373
  %v3383 = vmul.f32 %v3342, %v3374
  %v3384 = vmul.f32 %v3343, %v3375
  %v3385 = vmul.f32 %v3344, %v3371
  %3391 = vrot.lane.b32.xlu0 %v3381, 29
  %v3392 = vpop.permute.xlu0 %3391
  %3393 = vrot.lane.b32.xlu0 %v3382, 29
  %v3394 = vpop.permute.xlu0 %3393
  %3395 = vrot.lane.b32.xlu0 %v3383, 29
  %v3396 = vpop.permute.xlu0 %3395
  %3397 = vrot.lane.b32.xlu0 %v3384, 29
  %v3398 = vpop.permute.xlu0 %3397
  %3399 = vrot.lane.b32.xlu0 %v3385, 29
  %v3400 = vpop.permute.xlu0 %3399
  %vm3401 = vcmask 236544
  %v3402 = vsel %vm3401, %v3392, %v3394
  %v3403 = vsel %vm3401, %v3394, %v3396
  %v3404 = vsel %vm3401, %v3396, %v3398
  %v3405 = vsel %vm3401, %v3398, %v3400
  %3410 = vst [vmem:[#allocation3 + $0x5a0] sm:$0xff] %v3402
  %3411 = vst [vmem:[#allocation3 + $0x5a8] sm:$0xff] %v3403
  %3412 = vst [vmem:[#allocation3 + $0x5b0] sm:$0xff] %v3404
  %3413 = vst [vmem:[#allocation3 + $0x5b8] sm:$0xff] %v3405
  %v3414 = vld [vmem:[#allocation2] sm:$0xff]
  %v3415 = vld [vmem:[#allocation2 + $0x8] sm:$0xff]
  %v3416 = vld [vmem:[#allocation2 + $0x10] sm:$0xff]
  %v3417 = vld [vmem:[#allocation2 + $0x18] sm:$0xff]
  %v3418 = vld [vmem:[#allocation2 + $0x20] sm:$0xff]
  %s3419 = scalar_lea.vmem %s3, 166
  %v3420 = vld [vmem:[%s3419] ss:$8 sm:$0xf]
  %v3422 = vlaneseq
  %v3423 = vshrl.u32 %v3422, 7
  %v3424 = vsub.s32 0, %v3423
  %v3425 = vrot.slane %v3420, %v3424
  %v3426 = vlaneseq
  %v3427 = vshrl.u32 %v3426, 7
  %v3428 = vsub.s32 1, %v3427
  %v3429 = vrot.slane %v3420, %v3428
  %v3430 = vlaneseq
  %v3431 = vshrl.u32 %v3430, 7
  %v3432 = vsub.s32 2, %v3431
  %v3433 = vrot.slane %v3420, %v3432
  %v3434 = vlaneseq
  %v3435 = vshrl.u32 %v3434, 7
  %v3436 = vsub.s32 3, %v3435
  %v3437 = vrot.slane %v3420, %v3436
  %3438 = vrot.lane.b32.xlu0 %v3425, 100
  %v3439 = vpop.permute.xlu0 %3438
  %3440 = vrot.lane.b32.xlu0 %v3429, 100
  %v3441 = vpop.permute.xlu0 %3440
  %3442 = vrot.lane.b32.xlu0 %v3433, 100
  %v3443 = vpop.permute.xlu0 %3442
  %3444 = vrot.lane.b32.xlu0 %v3437, 100
  %v3445 = vpop.permute.xlu0 %3444
  %vm3446 = vcmask 818176
  %v3447 = vsel %vm3446, %v3439, %v3441
  %v3448 = vsel %vm3446, %v3441, %v3443
  %v3449 = vsel %vm3446, %v3443, %v3445
  %v3455 = vmul.f32 %v3414, %v3439
  %v3456 = vmul.f32 %v3415, %v3447
  %v3457 = vmul.f32 %v3416, %v3448
  %v3458 = vmul.f32 %v3417, %v3449
  %v3459 = vmul.f32 %v3418, %v3445
  %3465 = vrot.lane.b32.xlu0 %v3455, 28
  %v3466 = vpop.permute.xlu0 %3465
  %3467 = vrot.lane.b32.xlu0 %v3456, 28
  %v3468 = vpop.permute.xlu0 %3467
  %3469 = vrot.lane.b32.xlu0 %v3457, 28
  %v3470 = vpop.permute.xlu0 %3469
  %3471 = vrot.lane.b32.xlu0 %v3458, 28
  %v3472 = vpop.permute.xlu0 %3471
  %3473 = vrot.lane.b32.xlu0 %v3459, 28
  %v3474 = vpop.permute.xlu0 %3473
  %vm3475 = vcmask 228352
  %v3476 = vsel %vm3475, %v3466, %v3468
  %v3477 = vsel %vm3475, %v3468, %v3470
  %v3478 = vsel %vm3475, %v3470, %v3472
  %v3479 = vsel %vm3475, %v3472, %v3474
  %3484 = vst [vmem:[#allocation3 + $0x5c0] sm:$0xff] %v3476
  %3485 = vst [vmem:[#allocation3 + $0x5c8] sm:$0xff] %v3477
  %3486 = vst [vmem:[#allocation3 + $0x5d0] sm:$0xff] %v3478
  %3487 = vst [vmem:[#allocation3 + $0x5d8] sm:$0xff] %v3479
  %v3488 = vld [vmem:[#allocation2] sm:$0xff]
  %v3489 = vld [vmem:[#allocation2 + $0x8] sm:$0xff]
  %v3490 = vld [vmem:[#allocation2 + $0x10] sm:$0xff]
  %v3491 = vld [vmem:[#allocation2 + $0x18] sm:$0xff]
  %v3492 = vld [vmem:[#allocation2 + $0x20] sm:$0xff]
  %s3493 = scalar_lea.vmem %s3, 167
  %v3494 = vld [vmem:[%s3493] ss:$8 sm:$0xf]
  %v3496 = vlaneseq
  %v3497 = vshrl.u32 %v3496, 7
  %v3498 = vsub.s32 0, %v3497
  %v3499 = vrot.slane %v3494, %v3498
  %v3500 = vlaneseq
  %v3501 = vshrl.u32 %v3500, 7
  %v3502 = vsub.s32 1, %v3501
  %v3503 = vrot.slane %v3494, %v3502
  %v3504 = vlaneseq
  %v3505 = vshrl.u32 %v3504, 7
  %v3506 = vsub.s32 2, %v3505
  %v3507 = vrot.slane %v3494, %v3506
  %v3508 = vlaneseq
  %v3509 = vshrl.u32 %v3508, 7
  %v3510 = vsub.s32 3, %v3509
  %v3511 = vrot.slane %v3494, %v3510
  %3512 = vrot.lane.b32.xlu0 %v3499, 101
  %v3513 = vpop.permute.xlu0 %3512
  %3514 = vrot.lane.b32.xlu0 %v3503, 101
  %v3515 = vpop.permute.xlu0 %3514
  %3516 = vrot.lane.b32.xlu0 %v3507, 101
  %v3517 = vpop.permute.xlu0 %3516
  %3518 = vrot.lane.b32.xlu0 %v3511, 101
  %v3519 = vpop.permute.xlu0 %3518
  %vm3520 = vcmask 826368
  %v3521 = vsel %vm3520, %v3513, %v3515
  %v3522 = vsel %vm3520, %v3515, %v3517
  %v3523 = vsel %vm3520, %v3517, %v3519
  %v3529 = vmul.f32 %v3488, %v3513
  %v3530 = vmul.f32 %v3489, %v3521
  %v3531 = vmul.f32 %v3490, %v3522
  %v3532 = vmul.f32 %v3491, %v3523
  %v3533 = vmul.f32 %v3492, %v3519
  %3539 = vrot.lane.b32.xlu0 %v3529, 27
  %v3540 = vpop.permute.xlu0 %3539
  %3541 = vrot.lane.b32.xlu0 %v3530, 27
  %v3542 = vpop.permute.xlu0 %3541
  %3543 = vrot.lane.b32.xlu0 %v3531, 27
  %v3544 = vpop.permute.xlu0 %3543
  %3545 = vrot.lane.b32.xlu0 %v3532, 27
  %v3546 = vpop.permute.xlu0 %3545
  %3547 = vrot.lane.b32.xlu0 %v3533, 27
  %v3548 = vpop.permute.xlu0 %3547
  %vm3549 = vcmask 220160
  %v3550 = vsel %vm3549, %v3540, %v3542
  %v3551 = vsel %vm3549, %v3542, %v3544
  %v3552 = vsel %vm3549, %v3544, %v3546
  %v3553 = vsel %vm3549, %v3546, %v3548
  %3558 = vst [vmem:[#allocation3 + $0x5e0] sm:$0xff] %v3550
  %3559 = vst [vmem:[#allocation3 + $0x5e8] sm:$0xff] %v3551
  %3560 = vst [vmem:[#allocation3 + $0x5f0] sm:$0xff] %v3552
  %3561 = vst [vmem:[#allocation3 + $0x5f8] sm:$0xff] %v3553
  %v3562 = vld [vmem:[#allocation2] sm:$0xff]
  %v3563 = vld [vmem:[#allocation2 + $0x8] sm:$0xff]
  %v3564 = vld [vmem:[#allocation2 + $0x10] sm:$0xff]
  %v3565 = vld [vmem:[#allocation2 + $0x18] sm:$0xff]
  %v3566 = vld [vmem:[#allocation2 + $0x20] sm:$0xff]
  %s3567 = scalar_lea.vmem %s3, 192
  %v3568 = vld [vmem:[%s3567] ss:$8 sm:$0xf]
  %v3570 = vlaneseq
  %v3571 = vshrl.u32 %v3570, 7
  %v3572 = vsub.s32 0, %v3571
  %v3573 = vrot.slane %v3568, %v3572
  %v3574 = vlaneseq
  %v3575 = vshrl.u32 %v3574, 7
  %v3576 = vsub.s32 1, %v3575
  %v3577 = vrot.slane %v3568, %v3576
  %v3578 = vlaneseq
  %v3579 = vshrl.u32 %v3578, 7
  %v3580 = vsub.s32 2, %v3579
  %v3581 = vrot.slane %v3568, %v3580
  %v3582 = vlaneseq
  %v3583 = vshrl.u32 %v3582, 7
  %v3584 = vsub.s32 3, %v3583
  %v3585 = vrot.slane %v3568, %v3584
  %3586 = vrot.lane.b32.xlu0 %v3573, 102
  %v3587 = vpop.permute.xlu0 %3586
  %3588 = vrot.lane.b32.xlu0 %v3577, 102
  %v3589 = vpop.permute.xlu0 %3588
  %3590 = vrot.lane.b32.xlu0 %v3581, 102
  %v3591 = vpop.permute.xlu0 %3590
  %3592 = vrot.lane.b32.xlu0 %v3585, 102
  %v3593 = vpop.permute.xlu0 %3592
  %v3594 = vsel %vm21, %v3587, %v3589
  %v3595 = vsel %vm21, %v3589, %v3591
  %v3596 = vsel %vm21, %v3591, %v3593
  %v3602 = vmul.f32 %v3562, %v3587
  %v3603 = vmul.f32 %v3563, %v3594
  %v3604 = vmul.f32 %v3564, %v3595
  %v3605 = vmul.f32 %v3565, %v3596
  %v3606 = vmul.f32 %v3566, %v3593
  %3612 = vrot.lane.b32.xlu0 %v3602, 26
  %v3613 = vpop.permute.xlu0 %3612
  %3614 = vrot.lane.b32.xlu0 %v3603, 26
  %v3615 = vpop.permute.xlu0 %3614
  %3616 = vrot.lane.b32.xlu0 %v3604, 26
  %v3617 = vpop.permute.xlu0 %3616
  %3618 = vrot.lane.b32.xlu0 %v3605, 26
  %v3619 = vpop.permute.xlu0 %3618
  %3620 = vrot.lane.b32.xlu0 %v3606, 26
  %v3621 = vpop.permute.xlu0 %3620
  %vm3622 = vcmask 211968
  %v3623 = vsel %vm3622, %v3613, %v3615
  %v3624 = vsel %vm3622, %v3615, %v3617
  %v3625 = vsel %vm3622, %v3617, %v3619
  %v3626 = vsel %vm3622, %v3619, %v3621
  %3631 = vst [vmem:[#allocation3 + $0x600] sm:$0xff] %v3623
  %3632 = vst [vmem:[#allocation3 + $0x608] sm:$0xff] %v3624
  %3633 = vst [vmem:[#allocation3 + $0x610] sm:$0xff] %v3625
  %3634 = vst [vmem:[#allocation3 + $0x618] sm:$0xff] %v3626
  %v3635 = vld [vmem:[%s1] sm:$0xff]
  %v3636 = vld [vmem:[%s1 + $0x8] sm:$0xff]
  %v3637 = vunpack.c.l.bf16 %v3635
  %v3638 = vunpack.c.h.bf16 %v3635
  %v3639 = vunpack.c.l.bf16 %v3636
  %v3640 = vunpack.c.h.bf16 %v3636
  %v3641 = vld [vmem:[#allocation3] sm:$0xff]
  %v3642 = vld [vmem:[#allocation3 + $0x8] sm:$0xff]
  %v3643 = vld [vmem:[#allocation3 + $0x10] sm:$0xff]
  %v3644 = vld [vmem:[#allocation3 + $0x18] sm:$0xff]
  %v3645 = vld [vmem:[#allocation3 + $0x20] sm:$0xff]
  %v3646 = vld [vmem:[#allocation3 + $0x28] sm:$0xff]
  %v3647 = vld [vmem:[#allocation3 + $0x30] sm:$0xff]
  %v3648 = vld [vmem:[#allocation3 + $0x38] sm:$0xff]
  %v3649 = vld [vmem:[#allocation3 + $0x40] sm:$0xff]
  %v3650 = vld [vmem:[#allocation3 + $0x48] sm:$0xff]
  %v3651 = vld [vmem:[#allocation3 + $0x50] sm:$0xff]
  %v3652 = vld [vmem:[#allocation3 + $0x58] sm:$0xff]
  %v3653 = vld [vmem:[#allocation3 + $0x60] sm:$0xff]
  %v3654 = vld [vmem:[#allocation3 + $0x68] sm:$0xff]
  %v3655 = vld [vmem:[#allocation3 + $0x70] sm:$0xff]
  %v3656 = vld [vmem:[#allocation3 + $0x78] sm:$0xff]
  %v3657 = vld [vmem:[#allocation3 + $0x80] sm:$0xff]
  %v3658 = vld [vmem:[#allocation3 + $0x88] sm:$0xff]
  %v3659 = vld [vmem:[#allocation3 + $0x90] sm:$0xff]
  %v3660 = vld [vmem:[#allocation3 + $0x98] sm:$0xff]
  %v3661 = vld [vmem:[#allocation3 + $0xa0] sm:$0xff]
  %v3662 = vld [vmem:[#allocation3 + $0xa8] sm:$0xff]
  %v3663 = vld [vmem:[#allocation3 + $0xb0] sm:$0xff]
  %v3664 = vld [vmem:[#allocation3 + $0xb8] sm:$0xff]
  %v3665 = vld [vmem:[#allocation3 + $0xc0] sm:$0xff]
  %v3666 = vld [vmem:[#allocation3 + $0xc8] sm:$0xff]
  %v3667 = vld [vmem:[#allocation3 + $0xd0] sm:$0xff]
  %v3668 = vld [vmem:[#allocation3 + $0xd8] sm:$0xff]
  %v3669 = vld [vmem:[#allocation3 + $0xe0] sm:$0xff]
  %v3670 = vld [vmem:[#allocation3 + $0xe8] sm:$0xff]
  %v3671 = vld [vmem:[#allocation3 + $0xf0] sm:$0xff]
  %v3672 = vld [vmem:[#allocation3 + $0xf8] sm:$0xff]
  %v3673 = vld [vmem:[#allocation3 + $0x100] sm:$0xff]
  %v3674 = vld [vmem:[#allocation3 + $0x108] sm:$0xff]
  %v3675 = vld [vmem:[#allocation3 + $0x110] sm:$0xff]
  %v3676 = vld [vmem:[#allocation3 + $0x118] sm:$0xff]
  %v3677 = vld [vmem:[#allocation3 + $0x120] sm:$0xff]
  %v3678 = vld [vmem:[#allocation3 + $0x128] sm:$0xff]
  %v3679 = vld [vmem:[#allocation3 + $0x130] sm:$0xff]
  %v3680 = vld [vmem:[#allocation3 + $0x138] sm:$0xff]
  %v3681 = vld [vmem:[#allocation3 + $0x140] sm:$0xff]
  %v3682 = vld [vmem:[#allocation3 + $0x148] sm:$0xff]
  %v3683 = vld [vmem:[#allocation3 + $0x150] sm:$0xff]
  %v3684 = vld [vmem:[#allocation3 + $0x158] sm:$0xff]
  %v3685 = vld [vmem:[#allocation3 + $0x160] sm:$0xff]
  %v3686 = vld [vmem:[#allocation3 + $0x168] sm:$0xff]
  %v3687 = vld [vmem:[#allocation3 + $0x170] sm:$0xff]
  %v3688 = vld [vmem:[#allocation3 + $0x178] sm:$0xff]
  %v3689 = vld [vmem:[#allocation3 + $0x180] sm:$0xff]
  %v3690 = vld [vmem:[#allocation3 + $0x188] sm:$0xff]
  %v3691 = vld [vmem:[#allocation3 + $0x190] sm:$0xff]
  %v3692 = vld [vmem:[#allocation3 + $0x198] sm:$0xff]
  %v3693 = vld [vmem:[#allocation3 + $0x1a0] sm:$0xff]
  %v3694 = vld [vmem:[#allocation3 + $0x1a8] sm:$0xff]
  %v3695 = vld [vmem:[#allocation3 + $0x1b0] sm:$0xff]
  %v3696 = vld [vmem:[#allocation3 + $0x1b8] sm:$0xff]
  %v3697 = vld [vmem:[#allocation3 + $0x1c0] sm:$0xff]
  %v3698 = vld [vmem:[#allocation3 + $0x1c8] sm:$0xff]
  %v3699 = vld [vmem:[#allocation3 + $0x1d0] sm:$0xff]
  %v3700 = vld [vmem:[#allocation3 + $0x1d8] sm:$0xff]
  %v3701 = vld [vmem:[#allocation3 + $0x1e0] sm:$0xff]
  %v3702 = vld [vmem:[#allocation3 + $0x1e8] sm:$0xff]
  %v3703 = vld [vmem:[#allocation3 + $0x1f0] sm:$0xff]
  %v3704 = vld [vmem:[#allocation3 + $0x1f8] sm:$0xff]
  %v3705 = vld [vmem:[#allocation3 + $0x200] sm:$0xff]
  %v3706 = vld [vmem:[#allocation3 + $0x208] sm:$0xff]
  %v3707 = vld [vmem:[#allocation3 + $0x210] sm:$0xff]
  %v3708 = vld [vmem:[#allocation3 + $0x218] sm:$0xff]
  %v3709 = vld [vmem:[#allocation3 + $0x220] sm:$0xff]
  %v3710 = vld [vmem:[#allocation3 + $0x228] sm:$0xff]
  %v3711 = vld [vmem:[#allocation3 + $0x230] sm:$0xff]
  %v3712 = vld [vmem:[#allocation3 + $0x238] sm:$0xff]
  %v3713 = vld [vmem:[#allocation3 + $0x240] sm:$0xff]
  %v3714 = vld [vmem:[#allocation3 + $0x248] sm:$0xff]
  %v3715 = vld [vmem:[#allocation3 + $0x250] sm:$0xff]
  %v3716 = vld [vmem:[#allocation3 + $0x258] sm:$0xff]
  %v3717 = vld [vmem:[#allocation3 + $0x260] sm:$0xff]
  %v3718 = vld [vmem:[#allocation3 + $0x268] sm:$0xff]
  %v3719 = vld [vmem:[#allocation3 + $0x270] sm:$0xff]
  %v3720 = vld [vmem:[#allocation3 + $0x278] sm:$0xff]
  %v3721 = vld [vmem:[#allocation3 + $0x280] sm:$0xff]
  %v3722 = vld [vmem:[#allocation3 + $0x288] sm:$0xff]
  %v3723 = vld [vmem:[#allocation3 + $0x290] sm:$0xff]
  %v3724 = vld [vmem:[#allocation3 + $0x298] sm:$0xff]
  %v3725 = vld [vmem:[#allocation3 + $0x2a0] sm:$0xff]
  %v3726 = vld [vmem:[#allocation3 + $0x2a8] sm:$0xff]
  %v3727 = vld [vmem:[#allocation3 + $0x2b0] sm:$0xff]
  %v3728 = vld [vmem:[#allocation3 + $0x2b8] sm:$0xff]
  %v3729 = vld [vmem:[#allocation3 + $0x2c0] sm:$0xff]
  %v3730 = vld [vmem:[#allocation3 + $0x2c8] sm:$0xff]
  %v3731 = vld [vmem:[#allocation3 + $0x2d0] sm:$0xff]
  %v3732 = vld [vmem:[#allocation3 + $0x2d8] sm:$0xff]
  %v3733 = vld [vmem:[#allocation3 + $0x2e0] sm:$0xff]
  %v3734 = vld [vmem:[#allocation3 + $0x2e8] sm:$0xff]
  %v3735 = vld [vmem:[#allocation3 + $0x2f0] sm:$0xff]
  %v3736 = vld [vmem:[#allocation3 + $0x2f8] sm:$0xff]
  %v3737 = vld [vmem:[#allocation3 + $0x300] sm:$0xff]
  %v3738 = vld [vmem:[#allocation3 + $0x308] sm:$0xff]
  %v3739 = vld [vmem:[#allocation3 + $0x310] sm:$0xff]
  %v3740 = vld [vmem:[#allocation3 + $0x318] sm:$0xff]
  %v3741 = vld [vmem:[#allocation3 + $0x320] sm:$0xff]
  %v3742 = vld [vmem:[#allocation3 + $0x328] sm:$0xff]
  %v3743 = vld [vmem:[#allocation3 + $0x330] sm:$0xff]
  %v3744 = vld [vmem:[#allocation3 + $0x338] sm:$0xff]
  %v3745 = vld [vmem:[#allocation3 + $0x340] sm:$0xff]
  %v3746 = vld [vmem:[#allocation3 + $0x348] sm:$0xff]
  %v3747 = vld [vmem:[#allocation3 + $0x350] sm:$0xff]
  %v3748 = vld [vmem:[#allocation3 + $0x358] sm:$0xff]
  %v3749 = vld [vmem:[#allocation3 + $0x360] sm:$0xff]
  %v3750 = vld [vmem:[#allocation3 + $0x368] sm:$0xff]
  %v3751 = vld [vmem:[#allocation3 + $0x370] sm:$0xff]
  %v3752 = vld [vmem:[#allocation3 + $0x378] sm:$0xff]
  %v3753 = vld [vmem:[#allocation3 + $0x380] sm:$0xff]
  %v3754 = vld [vmem:[#allocation3 + $0x388] sm:$0xff]
  %v3755 = vld [vmem:[#allocation3 + $0x390] sm:$0xff]
  %v3756 = vld [vmem:[#allocation3 + $0x398] sm:$0xff]
  %v3757 = vld [vmem:[#allocation3 + $0x3a0] sm:$0xff]
  %v3758 = vld [vmem:[#allocation3 + $0x3a8] sm:$0xff]
  %v3759 = vld [vmem:[#allocation3 + $0x3b0] sm:$0xff]
  %v3760 = vld [vmem:[#allocation3 + $0x3b8] sm:$0xff]
  %v3761 = vld [vmem:[#allocation3 + $0x3c0] sm:$0xff]
  %v3762 = vld [vmem:[#allocation3 + $0x3c8] sm:$0xff]
  %v3763 = vld [vmem:[#allocation3 + $0x3d0] sm:$0xff]
  %v3764 = vld [vmem:[#allocation3 + $0x3d8] sm:$0xff]
  %v3765 = vld [vmem:[#allocation3 + $0x3e0] sm:$0xff]
  %v3766 = vld [vmem:[#allocation3 + $0x3e8] sm:$0xff]
  %v3767 = vld [vmem:[#allocation3 + $0x3f0] sm:$0xff]
  %v3768 = vld [vmem:[#allocation3 + $0x3f8] sm:$0xff]
  %v3769 = vld [vmem:[#allocation3 + $0x400] sm:$0xff]
  %v3770 = vld [vmem:[#allocation3 + $0x408] sm:$0xff]
  %v3771 = vld [vmem:[#allocation3 + $0x410] sm:$0xff]
  %v3772 = vld [vmem:[#allocation3 + $0x418] sm:$0xff]
  %v3773 = vld [vmem:[#allocation3 + $0x420] sm:$0xff]
  %v3774 = vld [vmem:[#allocation3 + $0x428] sm:$0xff]
  %v3775 = vld [vmem:[#allocation3 + $0x430] sm:$0xff]
  %v3776 = vld [vmem:[#allocation3 + $0x438] sm:$0xff]
  %v3777 = vld [vmem:[#allocation3 + $0x440] sm:$0xff]
  %v3778 = vld [vmem:[#allocation3 + $0x448] sm:$0xff]
  %v3779 = vld [vmem:[#allocation3 + $0x450] sm:$0xff]
  %v3780 = vld [vmem:[#allocation3 + $0x458] sm:$0xff]
  %v3781 = vld [vmem:[#allocation3 + $0x460] sm:$0xff]
  %v3782 = vld [vmem:[#allocation3 + $0x468] sm:$0xff]
  %v3783 = vld [vmem:[#allocation3 + $0x470] sm:$0xff]
  %v3784 = vld [vmem:[#allocation3 + $0x478] sm:$0xff]
  %v3785 = vld [vmem:[#allocation3 + $0x480] sm:$0xff]
  %v3786 = vld [vmem:[#allocation3 + $0x488] sm:$0xff]
  %v3787 = vld [vmem:[#allocation3 + $0x490] sm:$0xff]
  %v3788 = vld [vmem:[#allocation3 + $0x498] sm:$0xff]
  %v3789 = vld [vmem:[#allocation3 + $0x4a0] sm:$0xff]
  %v3790 = vld [vmem:[#allocation3 + $0x4a8] sm:$0xff]
  %v3791 = vld [vmem:[#allocation3 + $0x4b0] sm:$0xff]
  %v3792 = vld [vmem:[#allocation3 + $0x4b8] sm:$0xff]
  %v3793 = vld [vmem:[#allocation3 + $0x4c0] sm:$0xff]
  %v3794 = vld [vmem:[#allocation3 + $0x4c8] sm:$0xff]
  %v3795 = vld [vmem:[#allocation3 + $0x4d0] sm:$0xff]
  %v3796 = vld [vmem:[#allocation3 + $0x4d8] sm:$0xff]
  %v3797 = vld [vmem:[#allocation3 + $0x4e0] sm:$0xff]
  %v3798 = vld [vmem:[#allocation3 + $0x4e8] sm:$0xff]
  %v3799 = vld [vmem:[#allocation3 + $0x4f0] sm:$0xff]
  %v3800 = vld [vmem:[#allocation3 + $0x4f8] sm:$0xff]
  %v3801 = vld [vmem:[#allocation3 + $0x500] sm:$0xff]
  %v3802 = vld [vmem:[#allocation3 + $0x508] sm:$0xff]
  %v3803 = vld [vmem:[#allocation3 + $0x510] sm:$0xff]
  %v3804 = vld [vmem:[#allocation3 + $0x518] sm:$0xff]
  %v3805 = vld [vmem:[#allocation3 + $0x520] sm:$0xff]
  %v3806 = vld [vmem:[#allocation3 + $0x528] sm:$0xff]
  %v3807 = vld [vmem:[#allocation3 + $0x530] sm:$0xff]
  %v3808 = vld [vmem:[#allocation3 + $0x538] sm:$0xff]
  %v3809 = vld [vmem:[#allocation3 + $0x540] sm:$0xff]
  %v3810 = vld [vmem:[#allocation3 + $0x548] sm:$0xff]
  %v3811 = vld [vmem:[#allocation3 + $0x550] sm:$0xff]
  %v3812 = vld [vmem:[#allocation3 + $0x558] sm:$0xff]
  %v3813 = vld [vmem:[#allocation3 + $0x560] sm:$0xff]
  %v3814 = vld [vmem:[#allocation3 + $0x568] sm:$0xff]
  %v3815 = vld [vmem:[#allocation3 + $0x570] sm:$0xff]
  %v3816 = vld [vmem:[#allocation3 + $0x578] sm:$0xff]
  %v3817 = vld [vmem:[#allocation3 + $0x580] sm:$0xff]
  %v3818 = vld [vmem:[#allocation3 + $0x588] sm:$0xff]
  %v3819 = vld [vmem:[#allocation3 + $0x590] sm:$0xff]
  %v3820 = vld [vmem:[#allocation3 + $0x598] sm:$0xff]
  %v3821 = vld [vmem:[#allocation3 + $0x5a0] sm:$0xff]
  %v3822 = vld [vmem:[#allocation3 + $0x5a8] sm:$0xff]
  %v3823 = vld [vmem:[#allocation3 + $0x5b0] sm:$0xff]
  %v3824 = vld [vmem:[#allocation3 + $0x5b8] sm:$0xff]
  %v3825 = vld [vmem:[#allocation3 + $0x5c0] sm:$0xff]
  %v3826 = vld [vmem:[#allocation3 + $0x5c8] sm:$0xff]
  %v3827 = vld [vmem:[#allocation3 + $0x5d0] sm:$0xff]
  %v3828 = vld [vmem:[#allocation3 + $0x5d8] sm:$0xff]
  %v3829 = vld [vmem:[#allocation3 + $0x5e0] sm:$0xff]
  %v3830 = vld [vmem:[#allocation3 + $0x5e8] sm:$0xff]
  %v3831 = vld [vmem:[#allocation3 + $0x5f0] sm:$0xff]
  %v3832 = vld [vmem:[#allocation3 + $0x5f8] sm:$0xff]
  %v3833 = vld [vmem:[#allocation3 + $0x600] sm:$0xff]
  %v3834 = vld [vmem:[#allocation3 + $0x608] sm:$0xff]
  %v3835 = vld [vmem:[#allocation3 + $0x610] sm:$0xff]
  %v3836 = vld [vmem:[#allocation3 + $0x618] sm:$0xff]
  %v3837 = vld [vmem:[%s2] sm:$0xff]
  %3839 = vset.pattern.permute.xlu0 0
  %3840 = vperm.xlu0 %3839, %v3837
  %v3841 = vpop.permute.xlu0 %3840
  %vm3843 = vcmask 64512
  %v3845 = vsel %vm3843, %v3640, 0
  %3847 = vmatprep.subr.mxu0 %v3642
  %3848 = vmatpush1.msra.mxu0 %v3641
  %3849 = vmatprep.subr.mxu0 %v3646
  %3850 = vmatpush1.msra.mxu0 %v3645
  %3851 = vmatprep.subr.mxu0 %v3650
  %3852 = vmatpush1.msra.mxu0 %v3649
  %3853 = vmatprep.subr.mxu0 %v3654
  %3854 = vmatpush1.msra.mxu0 %v3653
  %3855 = vmatprep.subr.mxu0 %v3658
  %3856 = vmatpush1.msra.mxu0 %v3657
  %3857 = vmatprep.subr.mxu0 %v3662
  %3858 = vmatpush1.msra.mxu0 %v3661
  %3859 = vmatprep.subr.mxu0 %v3666
  %3860 = vmatpush1.msra.mxu0 %v3665
  %3861 = vmatprep.subr.mxu0 %v3670
  %3862 = vmatpush1.msra.mxu0 %v3669
  %3863 = vmatprep.subr.mxu0 %v3674
  %3864 = vmatpush1.msra.mxu0 %v3673
  %3865 = vmatprep.subr.mxu0 %v3678
  %3866 = vmatpush1.msra.mxu0 %v3677
  %3867 = vmatprep.subr.mxu0 %v3682
  %3868 = vmatpush1.msra.mxu0 %v3681
  %3869 = vmatprep.subr.mxu0 %v3686
  %3870 = vmatpush1.msra.mxu0 %v3685
  %3871 = vmatprep.subr.mxu0 %v3690
  %3872 = vmatpush1.msra.mxu0 %v3689
  %3873 = vmatprep.subr.mxu0 %v3694
  %3874 = vmatpush1.msra.mxu0 %v3693
  %3875 = vmatprep.subr.mxu0 %v3698
  %3876 = vmatpush1.msra.mxu0 %v3697
  %3877 = vmatprep.subr.mxu0 %v3702
  %3878 = vmatpush1.msra.mxu0 %v3701
  %3879 = vmatprep.subr.mxu0 %v3706
  %3880 = vmatpush1.msra.mxu0 %v3705
  %3881 = vmatprep.subr.mxu0 %v3710
  %3882 = vmatpush1.msra.mxu0 %v3709
  %3883 = vmatprep.subr.mxu0 %v3714
  %3884 = vmatpush1.msra.mxu0 %v3713
  %3885 = vmatprep.subr.mxu0 %v3718
  %3886 = vmatpush1.msra.mxu0 %v3717
  %3887 = vmatprep.subr.mxu0 %v3722
  %3888 = vmatpush1.msra.mxu0 %v3721
  %3889 = vmatprep.subr.mxu0 %v3726
  %3890 = vmatpush1.msra.mxu0 %v3725
  %3891 = vmatprep.subr.mxu0 %v3730
  %3892 = vmatpush1.msra.mxu0 %v3729
  %3893 = vmatprep.subr.mxu0 %v3734
  %3894 = vmatpush1.msra.mxu0 %v3733
  %3895 = vmatprep.subr.mxu0 %v3738
  %3896 = vmatpush1.msra.mxu0 %v3737
  %3897 = vmatprep.subr.mxu0 %v3742
  %3898 = vmatpush1.msra.mxu0 %v3741
  %3899 = vmatprep.subr.mxu0 %v3746
  %3900 = vmatpush1.msra.mxu0 %v3745
  %3901 = vmatprep.subr.mxu0 %v3750
  %3902 = vmatpush1.msra.mxu0 %v3749
  %3903 = vmatprep.subr.mxu0 %v3754
  %3904 = vmatpush1.msra.mxu0 %v3753
  %3905 = vmatprep.subr.mxu0 %v3758
  %3906 = vmatpush1.msra.mxu0 %v3757
  %3907 = vmatprep.subr.mxu0 %v3762
  %3908 = vmatpush1.msra.mxu0 %v3761
  %3909 = vmatprep.subr.mxu0 %v3766
  %3910 = vmatpush1.msra.mxu0 %v3765
  %3911 = vmatprep.mubr.f32.mxu0 %v3638
  %3912 = vmatmul.mubr.f32.gmra.mrb[0].mxu0 %v3637
  %v3913 = vpop.f32.mrb[0].mxu0
  %v3914 = vadd.f32 %v3841, %v3913
  %v3915 = vpop.f32.mrb[0].mxu0
  %v3916 = vadd.f32 %v3841, %v3915
  %3917 = vdwg.mxu0
  %3918 = vmatprep.subr.mxu0 %v3770
  %3919 = vmatpush1.msra.mxu0 %v3769
  %3920 = vmatprep.subr.mxu0 %v3774
  %3921 = vmatpush1.msra.mxu0 %v3773
  %3922 = vmatprep.subr.mxu0 %v3778
  %3923 = vmatpush1.msra.mxu0 %v3777
  %3924 = vmatprep.subr.mxu0 %v3782
  %3925 = vmatpush1.msra.mxu0 %v3781
  %3926 = vmatprep.subr.mxu0 %v3786
  %3927 = vmatpush1.msra.mxu0 %v3785
  %3928 = vmatprep.subr.mxu0 %v3790
  %3929 = vmatpush1.msra.mxu0 %v3789
  %3930 = vmatprep.subr.mxu0 %v3794
  %3931 = vmatpush1.msra.mxu0 %v3793
  %3932 = vmatprep.subr.mxu0 %v3798
  %3933 = vmatpush1.msra.mxu0 %v3797
  %3934 = vmatprep.subr.mxu0 %v3802
  %3935 = vmatpush1.msra.mxu0 %v3801
  %3936 = vmatprep.subr.mxu0 %v3806
  %3937 = vmatpush1.msra.mxu0 %v3805
  %3938 = vmatprep.subr.mxu0 %v3810
  %3939 = vmatpush1.msra.mxu0 %v3809
  %3940 = vmatprep.subr.mxu0 %v3814
  %3941 = vmatpush1.msra.mxu0 %v3813
  %3942 = vmatprep.subr.mxu0 %v3818
  %3943 = vmatpush1.msra.mxu0 %v3817
  %3944 = vmatprep.subr.mxu0 %v3822
  %3945 = vmatpush1.msra.mxu0 %v3821
  %3946 = vmatprep.subr.mxu0 %v3826
  %3947 = vmatpush1.msra.mxu0 %v3825
  %3948 = vmatprep.subr.mxu0 %v3830
  %3949 = vmatpush1.msra.mxu0 %v3829
  %3950 = vmatprep.subr.mxu0 %v3834
  %3951 = vmatpush1.msra.mxu0 %v3833
  %3952 = vmatprep.subr.mxu0 0.0
  %3953 = vmatpush1.msra.mxu0 0.0
  %3954 = vmatprep.subr.mxu0 0.0
  %3955 = vmatpush1.msra.mxu0 0.0
  %3956 = vmatprep.subr.mxu0 0.0
  %3957 = vmatpush1.msra.mxu0 0.0
  %3958 = vmatprep.subr.mxu0 0.0
  %3959 = vmatpush1.msra.mxu0 0.0
  %3960 = vmatprep.subr.mxu0 0.0
  %3961 = vmatpush1.msra.mxu0 0.0
  %3962 = vmatprep.subr.mxu0 0.0
  %3963 = vmatpush1.msra.mxu0 0.0
  %3964 = vmatprep.subr.mxu0 0.0
  %3965 = vmatpush1.msra.mxu0 0.0
  %3966 = vmatprep.subr.mxu0 0.0
  %3967 = vmatpush1.msra.mxu0 0.0
  %3968 = vmatprep.subr.mxu0 0.0
  %3969 = vmatpush1.msra.mxu0 0.0
  %3970 = vmatprep.subr.mxu0 0.0
  %3971 = vmatpush1.msra.mxu0 0.0
  %3972 = vmatprep.subr.mxu0 0.0
  %3973 = vmatpush1.msra.mxu0 0.0
  %3974 = vmatprep.subr.mxu0 0.0
  %3975 = vmatpush1.msra.mxu0 0.0
  %3976 = vmatprep.subr.mxu0 0.0
  %3977 = vmatpush1.msra.mxu0 0.0
  %3978 = vmatprep.subr.mxu0 0.0
  %3979 = vmatpush1.msra.mxu0 0.0
  %3980 = vmatprep.subr.mxu0 0.0
  %3981 = vmatpush1.msra.mxu0 0.0
  %3982 = vmatprep.mubr.f32.mxu0 %v3845
  %3983 = vmatmul.mubr.f32.gmra.mrb[0].mxu0 %v3639
  %v3984 = vpop.f32.mrb[0].mxu0
  %v3985 = vadd.f32 %v3914, %v3984
  %v3986 = vpop.f32.mrb[0].mxu0
  %v3987 = vadd.f32 %v3916, %v3986
  %3988 = vdwg.mxu0
  %3989 = vmatprep.subr.mxu0 %v3644
  %3990 = vmatpush1.msra.mxu0 %v3643
  %3991 = vmatprep.subr.mxu0 %v3648
  %3992 = vmatpush1.msra.mxu0 %v3647
  %3993 = vmatprep.subr.mxu0 %v3652
  %3994 = vmatpush1.msra.mxu0 %v3651
  %3995 = vmatprep.subr.mxu0 %v3656
  %3996 = vmatpush1.msra.mxu0 %v3655
  %3997 = vmatprep.subr.mxu0 %v3660
  %3998 = vmatpush1.msra.mxu0 %v3659
  %3999 = vmatprep.subr.mxu0 %v3664
  %4000 = vmatpush1.msra.mxu0 %v3663
  %4001 = vmatprep.subr.mxu0 %v3668
  %4002 = vmatpush1.msra.mxu0 %v3667
  %4003 = vmatprep.subr.mxu0 %v3672
  %4004 = vmatpush1.msra.mxu0 %v3671
  %4005 = vmatprep.subr.mxu0 %v3676
  %4006 = vmatpush1.msra.mxu0 %v3675
  %4007 = vmatprep.subr.mxu0 %v3680
  %4008 = vmatpush1.msra.mxu0 %v3679
  %4009 = vmatprep.subr.mxu0 %v3684
  %4010 = vmatpush1.msra.mxu0 %v3683
  %4011 = vmatprep.subr.mxu0 %v3688
  %4012 = vmatpush1.msra.mxu0 %v3687
  %4013 = vmatprep.subr.mxu0 %v3692
  %4014 = vmatpush1.msra.mxu0 %v3691
  %4015 = vmatprep.subr.mxu0 %v3696
  %4016 = vmatpush1.msra.mxu0 %v3695
  %4017 = vmatprep.subr.mxu0 %v3700
  %4018 = vmatpush1.msra.mxu0 %v3699
  %4019 = vmatprep.subr.mxu0 %v3704
  %4020 = vmatpush1.msra.mxu0 %v3703
  %4021 = vmatprep.subr.mxu0 %v3708
  %4022 = vmatpush1.msra.mxu0 %v3707
  %4023 = vmatprep.subr.mxu0 %v3712
  %4024 = vmatpush1.msra.mxu0 %v3711
  %4025 = vmatprep.subr.mxu0 %v3716
  %4026 = vmatpush1.msra.mxu0 %v3715
  %4027 = vmatprep.subr.mxu0 %v3720
  %4028 = vmatpush1.msra.mxu0 %v3719
  %4029 = vmatprep.subr.mxu0 %v3724
  %4030 = vmatpush1.msra.mxu0 %v3723
  %4031 = vmatprep.subr.mxu0 %v3728
  %4032 = vmatpush1.msra.mxu0 %v3727
  %4033 = vmatprep.subr.mxu0 %v3732
  %4034 = vmatpush1.msra.mxu0 %v3731
  %4035 = vmatprep.subr.mxu0 %v3736
  %4036 = vmatpush1.msra.mxu0 %v3735
  %4037 = vmatprep.subr.mxu0 %v3740
  %4038 = vmatpush1.msra.mxu0 %v3739
  %4039 = vmatprep.subr.mxu0 %v3744
  %4040 = vmatpush1.msra.mxu0 %v3743
  %4041 = vmatprep.subr.mxu0 %v3748
  %4042 = vmatpush1.msra.mxu0 %v3747
  %4043 = vmatprep.subr.mxu0 %v3752
  %4044 = vmatpush1.msra.mxu0 %v3751
  %4045 = vmatprep.subr.mxu0 %v3756
  %4046 = vmatpush1.msra.mxu0 %v3755
  %4047 = vmatprep.subr.mxu0 %v3760
  %4048 = vmatpush1.msra.mxu0 %v3759
  %4049 = vmatprep.subr.mxu0 %v3764
  %4050 = vmatpush1.msra.mxu0 %v3763
  %4051 = vmatprep.subr.mxu0 %v3768
  %4052 = vmatpush1.msra.mxu0 %v3767
  %4053 = vmatprep.mubr.f32.mxu0 %v3638
  %4054 = vmatmul.mubr.f32.gmra.mrb[0].mxu0 %v3637
  %v4055 = vpop.f32.mrb[0].mxu0
  %v4056 = vadd.f32 %v3841, %v4055
  %v4057 = vpop.f32.mrb[0].mxu0
  %v4058 = vadd.f32 %v3841, %v4057
  %4059 = vdwg.mxu0
  %4060 = vmatprep.subr.mxu0 %v3772
  %4061 = vmatpush1.msra.mxu0 %v3771
  %4062 = vmatprep.subr.mxu0 %v3776
  %4063 = vmatpush1.msra.mxu0 %v3775
  %4064 = vmatprep.subr.mxu0 %v3780
  %4065 = vmatpush1.msra.mxu0 %v3779
  %4066 = vmatprep.subr.mxu0 %v3784
  %4067 = vmatpush1.msra.mxu0 %v3783
  %4068 = vmatprep.subr.mxu0 %v3788
  %4069 = vmatpush1.msra.mxu0 %v3787
  %4070 = vmatprep.subr.mxu0 %v3792
  %4071 = vmatpush1.msra.mxu0 %v3791
  %4072 = vmatprep.subr.mxu0 %v3796
  %4073 = vmatpush1.msra.mxu0 %v3795
  %4074 = vmatprep.subr.mxu0 %v3800
  %4075 = vmatpush1.msra.mxu0 %v3799
  %4076 = vmatprep.subr.mxu0 %v3804
  %4077 = vmatpush1.msra.mxu0 %v3803
  %4078 = vmatprep.subr.mxu0 %v3808
  %4079 = vmatpush1.msra.mxu0 %v3807
  %4080 = vmatprep.subr.mxu0 %v3812
  %4081 = vmatpush1.msra.mxu0 %v3811
  %4082 = vmatprep.subr.mxu0 %v3816
  %4083 = vmatpush1.msra.mxu0 %v3815
  %4084 = vmatprep.subr.mxu0 %v3820
  %4085 = vmatpush1.msra.mxu0 %v3819
  %4086 = vmatprep.subr.mxu0 %v3824
  %4087 = vmatpush1.msra.mxu0 %v3823
  %4088 = vmatprep.subr.mxu0 %v3828
  %4089 = vmatpush1.msra.mxu0 %v3827
  %4090 = vmatprep.subr.mxu0 %v3832
  %4091 = vmatpush1.msra.mxu0 %v3831
  %4092 = vmatprep.subr.mxu0 %v3836
  %4093 = vmatpush1.msra.mxu0 %v3835
  %4094 = vmatprep.subr.mxu0 0.0
  %4095 = vmatpush1.msra.mxu0 0.0
  %4096 = vmatprep.subr.mxu0 0.0
  %4097 = vmatpush1.msra.mxu0 0.0
  %4098 = vmatprep.subr.mxu0 0.0
  %4099 = vmatpush1.msra.mxu0 0.0
  %4100 = vmatprep.subr.mxu0 0.0
  %4101 = vmatpush1.msra.mxu0 0.0
  %4102 = vmatprep.subr.mxu0 0.0
  %4103 = vmatpush1.msra.mxu0 0.0
  %4104 = vmatprep.subr.mxu0 0.0
  %4105 = vmatpush1.msra.mxu0 0.0
  %4106 = vmatprep.subr.mxu0 0.0
  %4107 = vmatpush1.msra.mxu0 0.0
  %4108 = vmatprep.subr.mxu0 0.0
  %4109 = vmatpush1.msra.mxu0 0.0
  %4110 = vmatprep.subr.mxu0 0.0
  %4111 = vmatpush1.msra.mxu0 0.0
  %4112 = vmatprep.subr.mxu0 0.0
  %4113 = vmatpush1.msra.mxu0 0.0
  %4114 = vmatprep.subr.mxu0 0.0
  %4115 = vmatpush1.msra.mxu0 0.0
  %4116 = vmatprep.subr.mxu0 0.0
  %4117 = vmatpush1.msra.mxu0 0.0
  %4118 = vmatprep.subr.mxu0 0.0
  %4119 = vmatpush1.msra.mxu0 0.0
  %4120 = vmatprep.subr.mxu0 0.0
  %4121 = vmatpush1.msra.mxu0 0.0
  %4122 = vmatprep.subr.mxu0 0.0
  %4123 = vmatpush1.msra.mxu0 0.0
  %4124 = vmatprep.mubr.f32.mxu0 %v3845
  %4125 = vmatmul.mubr.f32.gmra.mrb[0].mxu0 %v3639
  %v4126 = vpop.f32.mrb[0].mxu0
  %v4127 = vadd.f32 %v4056, %v4126
  %v4128 = vpop.f32.mrb[0].mxu0
  %v4129 = vadd.f32 %v4058, %v4128
  %4130 = vdwg.mxu0
  %v4131 = vtanh.pop %v3985
  %v4132 = vtanh.pop %v3987
  %v4133 = vtanh.pop %v4127
  %v4134 = vtanh.pop %v4129
  %4135 = vst [vmem:[%s4] sm:$0xff] %v4131
  %4136 = vst [vmem:[%s4 + $0x8] sm:$0xff] %v4132
  %4137 = vst [vmem:[%s4 + $0x10] sm:$0xff] %v4133
  %4138 = vst [vmem:[%s4 + $0x18] sm:$0xff] %v4134
  // Predicated region
  $region18: #{resnet_generator_forward.13} parent=0 // pred_check
    _
  $region19: #{resnet_generator_forward.13} parent=0 // pred_check_branch
    %4140 = sbr.rel (0) target = $region21
  $region20: #{resnet_generator_forward.13} parent=0 // pred_region
    _
  $region21: #{resnet_generator_forward.13} parent=0 // pred_fallthru
    _
  // Predicated region
  $region22: #{resnet_generator_forward.13} parent=0 // pred_check
    _
  $region23: #{resnet_generator_forward.13} parent=0 // pred_check_branch
    %4142 = sbr.rel (0) target = $region25
  $region24: #{resnet_generator_forward.13} parent=0 // pred_region
    _
  $region25: #{resnet_generator_forward.13} parent=0 // pred_fallthru
    _

</llo_original>
